<compile_context>
chip_gen: v7x
topology: tpu7x:2x2x1
jax: 0.10.0
libtpu: 0.0.40
codegen_flags: <defaults>
</compile_context>

<pallas_src>
import functools

import jax
import jax.numpy as jnp
from jax import lax
from jax.experimental import pallas as pl
from jax.experimental.pallas import tpu as pltpu


def _round_up(x, m):
    return (x + m - 1) // m * m


def _sigmoid(x):
    # Exact identity: sigmoid(x) = 0.5*tanh(0.5*x) + 0.5 ; one EUP transcendental.
    return 0.5 * jnp.tanh(0.5 * x) + 0.5


# ----------------------------------------------------------------------------
# Pallas kernel: one time-chunk, BOTH directions interleaved.
#   gxf_ref : (Tc, B, 4H) bf16  x@W_ih^T + b for the forward dir, chunk t
#   gxb_ref : (Tc, B, 4H) bf16  same for the backward dir, chunk nT-1-t
#   whh_ref : (2, H, 4H)  bf16  recurrent weights (transposed), [fwd, bwd]
#   of_ref  : (Tc, B, H)  bf16  forward hidden states for chunk t
#   ob_ref  : (Tc, B, H)  bf16  backward hidden states for chunk nT-1-t
#   hf/cf/hb/cb_ref : (B, H) f32 carries, persist across grid steps
# ----------------------------------------------------------------------------
def _bilstm_chunk_kernel(gxf_ref, gxb_ref, whh_ref, of_ref, ob_ref,
                         hf_ref, cf_ref, hb_ref, cb_ref):
    t = pl.program_id(0)
    Tc = gxf_ref.shape[0]
    H = hf_ref.shape[-1]

    @pl.when(t == 0)
    def _init():
        hf_ref[...] = jnp.zeros_like(hf_ref)
        cf_ref[...] = jnp.zeros_like(cf_ref)
        hb_ref[...] = jnp.zeros_like(hb_ref)
        cb_ref[...] = jnp.zeros_like(cb_ref)

    # Carries live in vregs for the whole chunk ((B,H) f32 is a single vreg
    # when B=8, H=128); VMEM round-trips happen once per chunk, not per step.
    hf = hf_ref[...]
    cf = cf_ref[...]
    hb = hb_ref[...]
    cb = cb_ref[...]

    def cell(gx, h, c, d):
        # gates: (B, 4H) f32; recurrent matmul in bf16 with f32 accumulation.
        gates = gx.astype(jnp.float32) + jnp.dot(
            h.astype(jnp.bfloat16), whh_ref[d],
            preferred_element_type=jnp.float32)
        i_g = _sigmoid(gates[:, 0 * H:1 * H])
        f_g = _sigmoid(gates[:, 1 * H:2 * H])
        g_g = jnp.tanh(gates[:, 2 * H:3 * H])
        o_g = _sigmoid(gates[:, 3 * H:4 * H])
        c_new = f_g * c + i_g * g_g
        h_new = o_g * jnp.tanh(c_new)
        return h_new, c_new

    # Two independent dependency chains interleaved: the forward chain walks its
    # chunk front-to-back; the backward chain (whose chunk was already selected
    # in reversed chunk order by the index_map) walks its chunk back-to-front.
    for s in range(Tc):
        hf, cf = cell(gxf_ref[s], hf, cf, 0)
        of_ref[s] = hf.astype(of_ref.dtype)
        sb = Tc - 1 - s
        hb, cb = cell(gxb_ref[sb], hb, cb, 1)
        ob_ref[sb] = hb.astype(ob_ref.dtype)

    hf_ref[...] = hf
    cf_ref[...] = cf
    hb_ref[...] = hb
    cb_ref[...] = cb


# ----------------------------------------------------------------------------
# One bidirectional LSTM layer.
# ----------------------------------------------------------------------------
def _input_projection(inputs, wih_t, bias):
    """Hoisted input projection (big XLA matmuls, off the recurrent path).

    inputs: list of (T, B, X) activations (layer 0: [x]; later: [h_fwd, h_bwd]
            from the previous layer -- no concat is ever materialized).
    wih_t : (2, n_in, X, 4H) f32 ; bias: (2, 4H) f32.
    Returns (gx_fwd, gx_bwd), each (T, B, 4H) bf16.
    """
    gx = []
    for k in range(2):
        g = bias[k][None, None, :]
        for j, inp in enumerate(inputs):
            g = g + jnp.einsum("tbx,xg->tbg", inp.astype(jnp.float32),
                               wih_t[k, j],
                               preferred_element_type=jnp.float32)
        gx.append(g.astype(jnp.bfloat16))
    return gx[0], gx[1]


def _bilstm_layer(inputs, params, time_chunk):
    """Returns (h_fwd, h_bwd), each (T, B, H) bf16."""
    gx_f, gx_b = _input_projection(inputs, params["wih_t"], params["bias"])
    whh_t = params["whh_t"]                       # (2, H, 4H) bf16
    T, B, _ = gx_f.shape
    H = whh_t.shape[1]
    Tc = time_chunk
    nT = T // Tc

    out_f, out_b = pl.pallas_call(
        _bilstm_chunk_kernel,
        out_shape=(jax.ShapeDtypeStruct((T, B, H), jnp.bfloat16),
                   jax.ShapeDtypeStruct((T, B, H), jnp.bfloat16)),
        grid_spec=pltpu.PrefetchScalarGridSpec(
            num_scalar_prefetch=0,
            grid=(nT,),
            in_specs=[
                pl.BlockSpec((Tc, B, 4 * H), lambda t: (t, 0, 0)),
                pl.BlockSpec((Tc, B, 4 * H), lambda t: (nT - 1 - t, 0, 0)),
                pl.BlockSpec((2, H, 4 * H), lambda t: (0, 0, 0)),
            ],
            out_specs=[
                pl.BlockSpec((Tc, B, H), lambda t: (t, 0, 0)),
                pl.BlockSpec((Tc, B, H), lambda t: (nT - 1 - t, 0, 0)),
            ],
            scratch_shapes=[
                pltpu.VMEM((B, H), jnp.float32),   # h fwd carry
                pltpu.VMEM((B, H), jnp.float32),   # c fwd carry
                pltpu.VMEM((B, H), jnp.float32),   # h bwd carry
                pltpu.VMEM((B, H), jnp.float32),   # c bwd carry
            ],
        ),
        compiler_params=pltpu.CompilerParams(
            dimension_semantics=("arbitrary",),     # time is a true recurrence
            vmem_limit_bytes=32 * 1024 * 1024,
        ),
    )(gx_f, gx_b, whh_t)
    return out_f, out_b


def _choose_time_chunk(T, B, H, budget_bytes=8 * 1024 * 1024):
    """Largest T-divisor chunk whose double-buffered bf16 blocks fit the budget."""
    per_step = 2 * 2 * B * (4 * H + H) * 2            # gx + out, 2 dirs, 2 buffers
    fixed = 2 * 2 * H * 4 * H * 2 + 4 * B * H * 4     # whh (2 buf) + f32 carries
    cap = max(1, (budget_bytes - fixed) // per_step)
    tc = int(min(T, cap, 128))
    # TODO(synk): prime T falls back to tiny chunks; a ragged last chunk (with
    # masking on the backward chain) would avoid that perf cliff.
    while T % tc:
        tc -= 1
    return tc


@functools.partial(jax.jit, static_argnames=("hidden_dim",))
def bilstm_forward(x, prepared_params, *, hidden_dim):
    """x: (B, T, input_dim) batch_first. Returns (B, T, 2*hidden_dim) f32."""
    B, T, _ = x.shape
    B_pad = _round_up(B, 8)
    H_pad = prepared_params[0]["whh_t"].shape[1]

    x_tm = jnp.transpose(x, (1, 0, 2))                        # (T, B, D)
    if B_pad != B:
        x_tm = jnp.pad(x_tm, ((0, 0), (0, B_pad - B), (0, 0)))

    time_chunk = _choose_time_chunk(T, B_pad, H_pad)
    inputs = [x_tm]
    for p in prepared_params:
        h_f, h_b = _bilstm_layer(inputs, p, time_chunk)
        inputs = [h_f, h_b]

    h_f, h_b = inputs
    out = jnp.concatenate(
        [h_f[:, :B, :hidden_dim], h_b[:, :B, :hidden_dim]], axis=-1)
    return jnp.transpose(out, (1, 0, 2)).astype(jnp.float32)   # (B, T, 2H)


# ----------------------------------------------------------------------------
# One-time weight prep: gate-block padding to H_pad = ceil(H/128)*128, transpose,
# fwd/bwd stacking, bias folding, bf16 recurrent weights.
# ----------------------------------------------------------------------------
def prepare_bilstm_params(raw_params, hidden_dim):
    H = hidden_dim
    H_pad = _round_up(H, 128)

    def pad_gate_rows(w):                        # (4H, X) -> (4*H_pad, X)
        w4 = w.reshape(4, H, w.shape[1])
        return jnp.pad(w4, ((0, 0), (0, H_pad - H), (0, 0))).reshape(4 * H_pad, -1)

    def pad_bias(b):                             # (4H,) -> (4*H_pad,)
        return jnp.pad(b.reshape(4, H), ((0, 0), (0, H_pad - H))).reshape(-1)

    prepared = []
    for layer_idx, p in enumerate(raw_params):
        wih, whh, bias = [], [], []
        for d in ("f", "b"):
            w_hh = pad_gate_rows(p[f"w_hh_{d}"])                      # (4Hp, H)
            w_hh = jnp.pad(w_hh, ((0, 0), (0, H_pad - H)))            # (4Hp, Hp)
            whh.append(w_hh.T.astype(jnp.bfloat16))                   # (Hp, 4Hp)
            bias.append(pad_bias(p[f"b_ih_{d}"] + p[f"b_hh_{d}"]))    # (4Hp,)

            w_ih = p[f"w_ih_{d}"]                                     # (4H, D_in)
            if layer_idx == 0:
                parts = [w_ih]                         # contracts the raw input x
            else:
                parts = [w_ih[:, :H], w_ih[:, H:]]     # fwd-h half, bwd-h half
            parts_t = []
            for wpart in parts:
                wp = pad_gate_rows(wpart)
                if layer_idx > 0:
                    wp = jnp.pad(wp, ((0, 0), (0, H_pad - H)))
                parts_t.append(wp.T)                                  # (X, 4Hp)
            wih.append(jnp.stack(parts_t))                            # (n_in, X, 4Hp)

        prepared.append({
            "wih_t": jnp.stack(wih),   # (2, n_in, X, 4*H_pad) f32
            "whh_t": jnp.stack(whh),   # (2, H_pad, 4*H_pad)   bf16
            "bias": jnp.stack(bias),   # (2, 4*H_pad)          f32
        })
    return prepared


# ----------------------------------------------------------------------------
# Pure-JAX reference (lax.scan, f32) for correctness checking.
# ----------------------------------------------------------------------------
def _lstm_direction_ref(x_tm, w_ih, w_hh, b_ih, b_hh):
    T, B, D = x_tm.shape
    H = w_hh.shape[1]

    def step(carry, x_t):
        h, c = carry
        gates = x_t @ w_ih.T + h @ w_hh.T + b_ih + b_hh
        i_g = jax.nn.sigmoid(gates[:, 0 * H:1 * H])
        f_g = jax.nn.sigmoid(gates[:, 1 * H:2 * H])
        g_g = jnp.tanh(gates[:, 2 * H:3 * H])
        o_g = jax.nn.sigmoid(gates[:, 3 * H:4 * H])
        c_new = f_g * c + i_g * g_g
        h_new = o_g * jnp.tanh(c_new)
        return (h_new, c_new), h_new

    h0 = jnp.zeros((B, H), x_tm.dtype)
    c0 = jnp.zeros((B, H), x_tm.dtype)
    _, out = lax.scan(step, (h0, c0), x_tm)
    return out


def bilstm_forward_ref(x, params):
    x_tm = jnp.transpose(x, (1, 0, 2))
    for p in params:
        fwd = _lstm_direction_ref(x_tm, p["w_ih_f"], p["w_hh_f"], p["b_ih_f"], p["b_hh_f"])
        bwd = _lstm_direction_ref(x_tm[::-1], p["w_ih_b"], p["w_hh_b"], p["b_ih_b"], p["b_hh_b"])[::-1]
        x_tm = jnp.concatenate([fwd, bwd], axis=-1)
    return jnp.transpose(x_tm, (1, 0, 2))


# ----------------------------------------------------------------------------
# Deterministic parameter init (matches nn.LSTM shapes; uniform(-k, k), k=1/sqrt(H)).
# ----------------------------------------------------------------------------
def init_bilstm_params(key, input_dim, hidden_dim, num_layers):
    params = []
    k = 1.0 / jnp.sqrt(jnp.float32(hidden_dim))
    for layer in range(num_layers):
        d_in = input_dim if layer == 0 else 2 * hidden_dim
        layer_p = {}
        for suffix, in_dim in (("f", d_in), ("b", d_in)):
            key, k1, k2, k3, k4 = jax.random.split(key, 5)
            layer_p[f"w_ih_{suffix}"] = jax.random.uniform(
                k1, (4 * hidden_dim, in_dim), jnp.float32, -k, k)
            layer_p[f"w_hh_{suffix}"] = jax.random.uniform(
                k2, (4 * hidden_dim, hidden_dim), jnp.float32, -k, k)
            layer_p[f"b_ih_{suffix}"] = jax.random.uniform(
                k3, (4 * hidden_dim,), jnp.float32, -k, k)
            layer_p[f"b_hh_{suffix}"] = jax.random.uniform(
                k4, (4 * hidden_dim,), jnp.float32, -k, k)
        params.append(layer_p)
    return params


if __name__ == "__main__":
    B, T = 2, 8
    input_dim, hidden_dim, num_layers = 16, 32, 2

    key = jax.random.PRNGKey(0)
    key, xk = jax.random.split(key)
    x = jax.random.normal(xk, (B, T, input_dim), jnp.float32)
    raw_params = init_bilstm_params(key, input_dim, hidden_dim, num_layers)
    prepared = prepare_bilstm_params(raw_params, hidden_dim)

    out = jax.block_until_ready(bilstm_forward(x, prepared, hidden_dim=hidden_dim))
    ref = jax.block_until_ready(bilstm_forward_ref(x, raw_params))

    assert out.shape == (B, T, 2 * hidden_dim), out.shape
    max_err = float(jnp.max(jnp.abs(out - ref)))
    # bf16 gates_x + bf16 recurrent matmul (f32 accumulation/carries): loosen
    # the tolerance vs. the pure-f32 reference.
    assert max_err < 5e-2, f"max abs err {max_err}"

    print("KERNEL_OK")
</pallas_src>

<mosaic_0001>
module attributes {stable_mosaic.version = 11 : i64} {
  func.func @_bilstm_chunk_kernel(%arg0: i32, %arg1: memref<8x8x512xbf16, #tpu.memory_space<vmem>>, %arg2: memref<8x8x512xbf16, #tpu.memory_space<vmem>>, %arg3: memref<2x128x512xbf16, #tpu.memory_space<vmem>>, %arg4: memref<8x8x128xbf16, #tpu.memory_space<vmem>>, %arg5: memref<8x8x128xbf16, #tpu.memory_space<vmem>>, %arg6: memref<8x128xf32, #tpu.memory_space<vmem>>, %arg7: memref<8x128xf32, #tpu.memory_space<vmem>>, %arg8: memref<8x128xf32, #tpu.memory_space<vmem>>, %arg9: memref<8x128xf32, #tpu.memory_space<vmem>>) attributes {dimension_semantics = [#tpu.dimension_semantics<arbitrary>], iteration_bounds = array<i64: 1>, scalar_prefetch = 0 : i64, scratch_operands = 4 : i64, tpu.core_type = #tpu.core_type<tc>, window_params = [{transform_indices = @transform_0, window_bounds = array<i64: 8, 8, 512>}, {transform_indices = @transform_1, window_bounds = array<i64: 8, 8, 512>}, {pipeline_mode = #tpu.pipeline_mode<synchronous>, transform_indices = @transform_2, window_bounds = array<i64: 2, 128, 512>}, {transform_indices = @transform_3, window_bounds = array<i64: 8, 8, 128>}, {transform_indices = @transform_4, window_bounds = array<i64: 8, 8, 128>}]} {
    %c0_i32 = arith.constant 0 : i32
    %0 = arith.cmpi eq, %arg0, %c0_i32 : i32
    %1 = arith.extui %0 : i1 to i32
    %c0_i32_0 = arith.constant 0 : i32
    %2 = arith.cmpi ne, %1, %c0_i32_0 : i32
    scf.if %2 {
      %cst_312 = arith.constant 0.000000e+00 : f32
      %699 = vector.broadcast %cst_312 : f32 to vector<8x128xf32>
      %c0_313 = arith.constant 0 : index
      %c0_314 = arith.constant 0 : index
      %700 = vector.load %arg6[%c0_313, %c0_314] : memref<8x128xf32, #tpu.memory_space<vmem>>, vector<8x128xf32>
      tpu.vector_store %arg6[%c0_313, %c0_314], %699 {strides = array<i32>} : memref<8x128xf32, #tpu.memory_space<vmem>>, vector<8x128xf32>,
      %cst_315 = arith.constant 0.000000e+00 : f32
      %701 = vector.broadcast %cst_315 : f32 to vector<8x128xf32>
      %c0_316 = arith.constant 0 : index
      %c0_317 = arith.constant 0 : index
      %702 = vector.load %arg7[%c0_316, %c0_317] : memref<8x128xf32, #tpu.memory_space<vmem>>, vector<8x128xf32>
      tpu.vector_store %arg7[%c0_316, %c0_317], %701 {strides = array<i32>} : memref<8x128xf32, #tpu.memory_space<vmem>>, vector<8x128xf32>,
      %cst_318 = arith.constant 0.000000e+00 : f32
      %703 = vector.broadcast %cst_318 : f32 to vector<8x128xf32>
      %c0_319 = arith.constant 0 : index
      %c0_320 = arith.constant 0 : index
      %704 = vector.load %arg8[%c0_319, %c0_320] : memref<8x128xf32, #tpu.memory_space<vmem>>, vector<8x128xf32>
      tpu.vector_store %arg8[%c0_319, %c0_320], %703 {strides = array<i32>} : memref<8x128xf32, #tpu.memory_space<vmem>>, vector<8x128xf32>,
      %cst_321 = arith.constant 0.000000e+00 : f32
      %705 = vector.broadcast %cst_321 : f32 to vector<8x128xf32>
      %c0_322 = arith.constant 0 : index
      %c0_323 = arith.constant 0 : index
      %706 = vector.load %arg9[%c0_322, %c0_323] : memref<8x128xf32, #tpu.memory_space<vmem>>, vector<8x128xf32>
      tpu.vector_store %arg9[%c0_322, %c0_323], %705 {strides = array<i32>} : memref<8x128xf32, #tpu.memory_space<vmem>>, vector<8x128xf32>,
    } else {
    }
    %c0 = arith.constant 0 : index
    %c0_1 = arith.constant 0 : index
    %3 = vector.load %arg6[%c0, %c0_1] : memref<8x128xf32, #tpu.memory_space<vmem>>, vector<8x128xf32>
    %c0_2 = arith.constant 0 : index
    %c0_3 = arith.constant 0 : index
    %4 = vector.load %arg7[%c0_2, %c0_3] : memref<8x128xf32, #tpu.memory_space<vmem>>, vector<8x128xf32>
    %c0_4 = arith.constant 0 : index
    %c0_5 = arith.constant 0 : index
    %5 = vector.load %arg8[%c0_4, %c0_5] : memref<8x128xf32, #tpu.memory_space<vmem>>, vector<8x128xf32>
    %c0_6 = arith.constant 0 : index
    %c0_7 = arith.constant 0 : index
    %6 = vector.load %arg9[%c0_6, %c0_7] : memref<8x128xf32, #tpu.memory_space<vmem>>, vector<8x128xf32>
    %c0_8 = arith.constant 0 : index
    %c0_9 = arith.constant 0 : index
    %c0_10 = arith.constant 0 : index
    %7 = vector.load %arg1[%c0_8, %c0_9, %c0_10] : memref<8x8x512xbf16, #tpu.memory_space<vmem>>, vector<1x8x512xbf16>
    %8 = vector.shape_cast %7 : vector<1x8x512xbf16> to vector<8x512xbf16>
    %9 = arith.extf %8 : vector<8x512xbf16> to vector<8x512xf32>
    %10 = arith.truncf %3 : vector<8x128xf32> to vector<8x128xbf16>
    %c0_11 = arith.constant 0 : index
    %c0_12 = arith.constant 0 : index
    %c0_13 = arith.constant 0 : index
    %11 = vector.load %arg3[%c0_11, %c0_12, %c0_13] : memref<2x128x512xbf16, #tpu.memory_space<vmem>>, vector<1x128x512xbf16>
    %12 = vector.shape_cast %11 : vector<1x128x512xbf16> to vector<128x512xbf16>
    %cst = arith.constant dense<0.000000e+00> : vector<8x512xf32>
    %13 = tpu.matmul %10, %12, %cst {dimension_numbers = #tpu.dot_dimension_numbers<[1], [0], [0], [1], [0, 0, 1, 1], [], []>} : vector<8x128xbf16>, vector<128x512xbf16>, vector<8x512xf32> -> vector<8x512xf32>
    %14 = arith.addf %9, %13 : vector<8x512xf32>
    %15 = vector.extract_strided_slice %14 {offsets = [0, 0], sizes = [8, 128], strides = [1, 1]} : vector<8x512xf32> to vector<8x128xf32>
    %cst_14 = arith.constant 5.000000e-01 : f32
    %16 = vector.broadcast %cst_14 : f32 to vector<8x128xf32>
    %17 = arith.mulf %16, %15 : vector<8x128xf32>
    %18 = math.tanh %17 : vector<8x128xf32>
    %cst_15 = arith.constant 5.000000e-01 : f32
    %19 = vector.broadcast %cst_15 : f32 to vector<8x128xf32>
    %20 = arith.mulf %19, %18 : vector<8x128xf32>
    %cst_16 = arith.constant 5.000000e-01 : f32
    %21 = vector.broadcast %cst_16 : f32 to vector<8x128xf32>
    %22 = arith.addf %20, %21 : vector<8x128xf32>
    %23 = vector.extract_strided_slice %14 {offsets = [0, 128], sizes = [8, 128], strides = [1, 1]} : vector<8x512xf32> to vector<8x128xf32>
    %cst_17 = arith.constant 5.000000e-01 : f32
    %24 = vector.broadcast %cst_17 : f32 to vector<8x128xf32>
    %25 = arith.mulf %24, %23 : vector<8x128xf32>
    %26 = math.tanh %25 : vector<8x128xf32>
    %cst_18 = arith.constant 5.000000e-01 : f32
    %27 = vector.broadcast %cst_18 : f32 to vector<8x128xf32>
    %28 = arith.mulf %27, %26 : vector<8x128xf32>
    %cst_19 = arith.constant 5.000000e-01 : f32
    %29 = vector.broadcast %cst_19 : f32 to vector<8x128xf32>
    %30 = arith.addf %28, %29 : vector<8x128xf32>
    %31 = vector.extract_strided_slice %14 {offsets = [0, 256], sizes = [8, 128], strides = [1, 1]} : vector<8x512xf32> to vector<8x128xf32>
    %32 = math.tanh %31 : vector<8x128xf32>
    %33 = vector.extract_strided_slice %14 {offsets = [0, 384], sizes = [8, 128], strides = [1, 1]} : vector<8x512xf32> to vector<8x128xf32>
    %cst_20 = arith.constant 5.000000e-01 : f32
    %34 = vector.broadcast %cst_20 : f32 to vector<8x128xf32>
    %35 = arith.mulf %34, %33 : vector<8x128xf32>
    %36 = math.tanh %35 : vector<8x128xf32>
    %cst_21 = arith.constant 5.000000e-01 : f32
    %37 = vector.broadcast %cst_21 : f32 to vector<8x128xf32>
    %38 = arith.mulf %37, %36 : vector<8x128xf32>
    %cst_22 = arith.constant 5.000000e-01 : f32
    %39 = vector.broadcast %cst_22 : f32 to vector<8x128xf32>
    %40 = arith.addf %38, %39 : vector<8x128xf32>
    %41 = arith.mulf %30, %4 : vector<8x128xf32>
    %42 = arith.mulf %22, %32 : vector<8x128xf32>
    %43 = arith.addf %41, %42 : vector<8x128xf32>
    %44 = math.tanh %43 : vector<8x128xf32>
    %45 = arith.mulf %40, %44 : vector<8x128xf32>
    %46 = arith.truncf %45 : vector<8x128xf32> to vector<8x128xbf16>
    %c0_23 = arith.constant 0 : index
    %c0_24 = arith.constant 0 : index
    %c0_25 = arith.constant 0 : index
    %47 = vector.load %arg4[%c0_23, %c0_24, %c0_25] : memref<8x8x128xbf16, #tpu.memory_space<vmem>>, vector<1x8x128xbf16>
    %48 = vector.shape_cast %47 : vector<1x8x128xbf16> to vector<8x128xbf16>
    %49 = vector.shape_cast %46 : vector<8x128xbf16> to vector<1x8x128xbf16>
    tpu.vector_store %arg4[%c0_23, %c0_24, %c0_25], %49 {strides = array<i32>} : memref<8x8x128xbf16, #tpu.memory_space<vmem>>, vector<1x8x128xbf16>,
    %c7 = arith.constant 7 : index
    %c0_26 = arith.constant 0 : index
    %c0_27 = arith.constant 0 : index
    %50 = vector.load %arg2[%c7, %c0_26, %c0_27] : memref<8x8x512xbf16, #tpu.memory_space<vmem>>, vector<1x8x512xbf16>
    %51 = vector.shape_cast %50 : vector<1x8x512xbf16> to vector<8x512xbf16>
    %52 = arith.extf %51 : vector<8x512xbf16> to vector<8x512xf32>
    %53 = arith.truncf %5 : vector<8x128xf32> to vector<8x128xbf16>
    %c1 = arith.constant 1 : index
    %c0_28 = arith.constant 0 : index
    %c0_29 = arith.constant 0 : index
    %54 = vector.load %arg3[%c1, %c0_28, %c0_29] : memref<2x128x512xbf16, #tpu.memory_space<vmem>>, vector<1x128x512xbf16>
    %55 = vector.shape_cast %54 : vector<1x128x512xbf16> to vector<128x512xbf16>
    %cst_30 = arith.constant dense<0.000000e+00> : vector<8x512xf32>
    %56 = tpu.matmul %53, %55, %cst_30 {dimension_numbers = #tpu.dot_dimension_numbers<[1], [0], [0], [1], [0, 0, 1, 1], [], []>} : vector<8x128xbf16>, vector<128x512xbf16>, vector<8x512xf32> -> vector<8x512xf32>
    %57 = arith.addf %52, %56 : vector<8x512xf32>
    %58 = vector.extract_strided_slice %57 {offsets = [0, 0], sizes = [8, 128], strides = [1, 1]} : vector<8x512xf32> to vector<8x128xf32>
    %cst_31 = arith.constant 5.000000e-01 : f32
    %59 = vector.broadcast %cst_31 : f32 to vector<8x128xf32>
    %60 = arith.mulf %59, %58 : vector<8x128xf32>
    %61 = math.tanh %60 : vector<8x128xf32>
    %cst_32 = arith.constant 5.000000e-01 : f32
    %62 = vector.broadcast %cst_32 : f32 to vector<8x128xf32>
    %63 = arith.mulf %62, %61 : vector<8x128xf32>
    %cst_33 = arith.constant 5.000000e-01 : f32
    %64 = vector.broadcast %cst_33 : f32 to vector<8x128xf32>
    %65 = arith.addf %63, %64 : vector<8x128xf32>
    %66 = vector.extract_strided_slice %57 {offsets = [0, 128], sizes = [8, 128], strides = [1, 1]} : vector<8x512xf32> to vector<8x128xf32>
    %cst_34 = arith.constant 5.000000e-01 : f32
    %67 = vector.broadcast %cst_34 : f32 to vector<8x128xf32>
    %68 = arith.mulf %67, %66 : vector<8x128xf32>
    %69 = math.tanh %68 : vector<8x128xf32>
    %cst_35 = arith.constant 5.000000e-01 : f32
    %70 = vector.broadcast %cst_35 : f32 to vector<8x128xf32>
    %71 = arith.mulf %70, %69 : vector<8x128xf32>
    %cst_36 = arith.constant 5.000000e-01 : f32
    %72 = vector.broadcast %cst_36 : f32 to vector<8x128xf32>
    %73 = arith.addf %71, %72 : vector<8x128xf32>
    %74 = vector.extract_strided_slice %57 {offsets = [0, 256], sizes = [8, 128], strides = [1, 1]} : vector<8x512xf32> to vector<8x128xf32>
    %75 = math.tanh %74 : vector<8x128xf32>
    %76 = vector.extract_strided_slice %57 {offsets = [0, 384], sizes = [8, 128], strides = [1, 1]} : vector<8x512xf32> to vector<8x128xf32>
    %cst_37 = arith.constant 5.000000e-01 : f32
    %77 = vector.broadcast %cst_37 : f32 to vector<8x128xf32>
    %78 = arith.mulf %77, %76 : vector<8x128xf32>
    %79 = math.tanh %78 : vector<8x128xf32>
    %cst_38 = arith.constant 5.000000e-01 : f32
    %80 = vector.broadcast %cst_38 : f32 to vector<8x128xf32>
    %81 = arith.mulf %80, %79 : vector<8x128xf32>
    %cst_39 = arith.constant 5.000000e-01 : f32
    %82 = vector.broadcast %cst_39 : f32 to vector<8x128xf32>
    %83 = arith.addf %81, %82 : vector<8x128xf32>
    %84 = arith.mulf %73, %6 : vector<8x128xf32>
    %85 = arith.mulf %65, %75 : vector<8x128xf32>
    %86 = arith.addf %84, %85 : vector<8x128xf32>
    %87 = math.tanh %86 : vector<8x128xf32>
    %88 = arith.mulf %83, %87 : vector<8x128xf32>
    %89 = arith.truncf %88 : vector<8x128xf32> to vector<8x128xbf16>
    %c7_40 = arith.constant 7 : index
    %c0_41 = arith.constant 0 : index
    %c0_42 = arith.constant 0 : index
    %90 = vector.load %arg5[%c7_40, %c0_41, %c0_42] : memref<8x8x128xbf16, #tpu.memory_space<vmem>>, vector<1x8x128xbf16>
    %91 = vector.shape_cast %90 : vector<1x8x128xbf16> to vector<8x128xbf16>
    %92 = vector.shape_cast %89 : vector<8x128xbf16> to vector<1x8x128xbf16>
    tpu.vector_store %arg5[%c7_40, %c0_41, %c0_42], %92 {strides = array<i32>} : memref<8x8x128xbf16, #tpu.memory_space<vmem>>, vector<1x8x128xbf16>,
    %c1_43 = arith.constant 1 : index
    %c0_44 = arith.constant 0 : index
    %c0_45 = arith.constant 0 : index
    %93 = vector.load %arg1[%c1_43, %c0_44, %c0_45] : memref<8x8x512xbf16, #tpu.memory_space<vmem>>, vector<1x8x512xbf16>
    %94 = vector.shape_cast %93 : vector<1x8x512xbf16> to vector<8x512xbf16>
    %95 = arith.extf %94 : vector<8x512xbf16> to vector<8x512xf32>
    %96 = arith.truncf %45 : vector<8x128xf32> to vector<8x128xbf16>
    %c0_46 = arith.constant 0 : index
    %c0_47 = arith.constant 0 : index
    %c0_48 = arith.constant 0 : index
    %97 = vector.load %arg3[%c0_46, %c0_47, %c0_48] : memref<2x128x512xbf16, #tpu.memory_space<vmem>>, vector<1x128x512xbf16>
    %98 = vector.shape_cast %97 : vector<1x128x512xbf16> to vector<128x512xbf16>
    %cst_49 = arith.constant dense<0.000000e+00> : vector<8x512xf32>
    %99 = tpu.matmul %96, %98, %cst_49 {dimension_numbers = #tpu.dot_dimension_numbers<[1], [0], [0], [1], [0, 0, 1, 1], [], []>} : vector<8x128xbf16>, vector<128x512xbf16>, vector<8x512xf32> -> vector<8x512xf32>
    %100 = arith.addf %95, %99 : vector<8x512xf32>
    %101 = vector.extract_strided_slice %100 {offsets = [0, 0], sizes = [8, 128], strides = [1, 1]} : vector<8x512xf32> to vector<8x128xf32>
    %cst_50 = arith.constant 5.000000e-01 : f32
    %102 = vector.broadcast %cst_50 : f32 to vector<8x128xf32>
    %103 = arith.mulf %102, %101 : vector<8x128xf32>
    %104 = math.tanh %103 : vector<8x128xf32>
    %cst_51 = arith.constant 5.000000e-01 : f32
    %105 = vector.broadcast %cst_51 : f32 to vector<8x128xf32>
    %106 = arith.mulf %105, %104 : vector<8x128xf32>
    %cst_52 = arith.constant 5.000000e-01 : f32
    %107 = vector.broadcast %cst_52 : f32 to vector<8x128xf32>
    %108 = arith.addf %106, %107 : vector<8x128xf32>
    %109 = vector.extract_strided_slice %100 {offsets = [0, 128], sizes = [8, 128], strides = [1, 1]} : vector<8x512xf32> to vector<8x128xf32>
    %cst_53 = arith.constant 5.000000e-01 : f32
    %110 = vector.broadcast %cst_53 : f32 to vector<8x128xf32>
    %111 = arith.mulf %110, %109 : vector<8x128xf32>
    %112 = math.tanh %111 : vector<8x128xf32>
    %cst_54 = arith.constant 5.000000e-01 : f32
    %113 = vector.broadcast %cst_54 : f32 to vector<8x128xf32>
    %114 = arith.mulf %113, %112 : vector<8x128xf32>
    %cst_55 = arith.constant 5.000000e-01 : f32
    %115 = vector.broadcast %cst_55 : f32 to vector<8x128xf32>
    %116 = arith.addf %114, %115 : vector<8x128xf32>
    %117 = vector.extract_strided_slice %100 {offsets = [0, 256], sizes = [8, 128], strides = [1, 1]} : vector<8x512xf32> to vector<8x128xf32>
    %118 = math.tanh %117 : vector<8x128xf32>
    %119 = vector.extract_strided_slice %100 {offsets = [0, 384], sizes = [8, 128], strides = [1, 1]} : vector<8x512xf32> to vector<8x128xf32>
    %cst_56 = arith.constant 5.000000e-01 : f32
    %120 = vector.broadcast %cst_56 : f32 to vector<8x128xf32>
    %121 = arith.mulf %120, %119 : vector<8x128xf32>
    %122 = math.tanh %121 : vector<8x128xf32>
    %cst_57 = arith.constant 5.000000e-01 : f32
    %123 = vector.broadcast %cst_57 : f32 to vector<8x128xf32>
    %124 = arith.mulf %123, %122 : vector<8x128xf32>
    %cst_58 = arith.constant 5.000000e-01 : f32
    %125 = vector.broadcast %cst_58 : f32 to vector<8x128xf32>
    %126 = arith.addf %124, %125 : vector<8x128xf32>
    %127 = arith.mulf %116, %43 : vector<8x128xf32>
    %128 = arith.mulf %108, %118 : vector<8x128xf32>
    %129 = arith.addf %127, %128 : vector<8x128xf32>
    %130 = math.tanh %129 : vector<8x128xf32>
    %131 = arith.mulf %126, %130 : vector<8x128xf32>
    %132 = arith.truncf %131 : vector<8x128xf32> to vector<8x128xbf16>
    %c1_59 = arith.constant 1 : index
    %c0_60 = arith.constant 0 : index
    %c0_61 = arith.constant 0 : index
    %133 = vector.load %arg4[%c1_59, %c0_60, %c0_61] : memref<8x8x128xbf16, #tpu.memory_space<vmem>>, vector<1x8x128xbf16>
    %134 = vector.shape_cast %133 : vector<1x8x128xbf16> to vector<8x128xbf16>
    %135 = vector.shape_cast %132 : vector<8x128xbf16> to vector<1x8x128xbf16>
    tpu.vector_store %arg4[%c1_59, %c0_60, %c0_61], %135 {strides = array<i32>} : memref<8x8x128xbf16, #tpu.memory_space<vmem>>, vector<1x8x128xbf16>,
    %c6 = arith.constant 6 : index
    %c0_62 = arith.constant 0 : index
    %c0_63 = arith.constant 0 : index
    %136 = vector.load %arg2[%c6, %c0_62, %c0_63] : memref<8x8x512xbf16, #tpu.memory_space<vmem>>, vector<1x8x512xbf16>
    %137 = vector.shape_cast %136 : vector<1x8x512xbf16> to vector<8x512xbf16>
    %138 = arith.extf %137 : vector<8x512xbf16> to vector<8x512xf32>
    %139 = arith.truncf %88 : vector<8x128xf32> to vector<8x128xbf16>
    %c1_64 = arith.constant 1 : index
    %c0_65 = arith.constant 0 : index
    %c0_66 = arith.constant 0 : index
    %140 = vector.load %arg3[%c1_64, %c0_65, %c0_66] : memref<2x128x512xbf16, #tpu.memory_space<vmem>>, vector<1x128x512xbf16>
    %141 = vector.shape_cast %140 : vector<1x128x512xbf16> to vector<128x512xbf16>
    %cst_67 = arith.constant dense<0.000000e+00> : vector<8x512xf32>
    %142 = tpu.matmul %139, %141, %cst_67 {dimension_numbers = #tpu.dot_dimension_numbers<[1], [0], [0], [1], [0, 0, 1, 1], [], []>} : vector<8x128xbf16>, vector<128x512xbf16>, vector<8x512xf32> -> vector<8x512xf32>
    %143 = arith.addf %138, %142 : vector<8x512xf32>
    %144 = vector.extract_strided_slice %143 {offsets = [0, 0], sizes = [8, 128], strides = [1, 1]} : vector<8x512xf32> to vector<8x128xf32>
    %cst_68 = arith.constant 5.000000e-01 : f32
    %145 = vector.broadcast %cst_68 : f32 to vector<8x128xf32>
    %146 = arith.mulf %145, %144 : vector<8x128xf32>
    %147 = math.tanh %146 : vector<8x128xf32>
    %cst_69 = arith.constant 5.000000e-01 : f32
    %148 = vector.broadcast %cst_69 : f32 to vector<8x128xf32>
    %149 = arith.mulf %148, %147 : vector<8x128xf32>
    %cst_70 = arith.constant 5.000000e-01 : f32
    %150 = vector.broadcast %cst_70 : f32 to vector<8x128xf32>
    %151 = arith.addf %149, %150 : vector<8x128xf32>
    %152 = vector.extract_strided_slice %143 {offsets = [0, 128], sizes = [8, 128], strides = [1, 1]} : vector<8x512xf32> to vector<8x128xf32>
    %cst_71 = arith.constant 5.000000e-01 : f32
    %153 = vector.broadcast %cst_71 : f32 to vector<8x128xf32>
    %154 = arith.mulf %153, %152 : vector<8x128xf32>
    %155 = math.tanh %154 : vector<8x128xf32>
    %cst_72 = arith.constant 5.000000e-01 : f32
    %156 = vector.broadcast %cst_72 : f32 to vector<8x128xf32>
    %157 = arith.mulf %156, %155 : vector<8x128xf32>
    %cst_73 = arith.constant 5.000000e-01 : f32
    %158 = vector.broadcast %cst_73 : f32 to vector<8x128xf32>
    %159 = arith.addf %157, %158 : vector<8x128xf32>
    %160 = vector.extract_strided_slice %143 {offsets = [0, 256], sizes = [8, 128], strides = [1, 1]} : vector<8x512xf32> to vector<8x128xf32>
    %161 = math.tanh %160 : vector<8x128xf32>
    %162 = vector.extract_strided_slice %143 {offsets = [0, 384], sizes = [8, 128], strides = [1, 1]} : vector<8x512xf32> to vector<8x128xf32>
    %cst_74 = arith.constant 5.000000e-01 : f32
    %163 = vector.broadcast %cst_74 : f32 to vector<8x128xf32>
    %164 = arith.mulf %163, %162 : vector<8x128xf32>
    %165 = math.tanh %164 : vector<8x128xf32>
    %cst_75 = arith.constant 5.000000e-01 : f32
    %166 = vector.broadcast %cst_75 : f32 to vector<8x128xf32>
    %167 = arith.mulf %166, %165 : vector<8x128xf32>
    %cst_76 = arith.constant 5.000000e-01 : f32
    %168 = vector.broadcast %cst_76 : f32 to vector<8x128xf32>
    %169 = arith.addf %167, %168 : vector<8x128xf32>
    %170 = arith.mulf %159, %86 : vector<8x128xf32>
    %171 = arith.mulf %151, %161 : vector<8x128xf32>
    %172 = arith.addf %170, %171 : vector<8x128xf32>
    %173 = math.tanh %172 : vector<8x128xf32>
    %174 = arith.mulf %169, %173 : vector<8x128xf32>
    %175 = arith.truncf %174 : vector<8x128xf32> to vector<8x128xbf16>
    %c6_77 = arith.constant 6 : index
    %c0_78 = arith.constant 0 : index
    %c0_79 = arith.constant 0 : index
    %176 = vector.load %arg5[%c6_77, %c0_78, %c0_79] : memref<8x8x128xbf16, #tpu.memory_space<vmem>>, vector<1x8x128xbf16>
    %177 = vector.shape_cast %176 : vector<1x8x128xbf16> to vector<8x128xbf16>
    %178 = vector.shape_cast %175 : vector<8x128xbf16> to vector<1x8x128xbf16>
    tpu.vector_store %arg5[%c6_77, %c0_78, %c0_79], %178 {strides = array<i32>} : memref<8x8x128xbf16, #tpu.memory_space<vmem>>, vector<1x8x128xbf16>,
    %c2 = arith.constant 2 : index
    %c0_80 = arith.constant 0 : index
    %c0_81 = arith.constant 0 : index
    %179 = vector.load %arg1[%c2, %c0_80, %c0_81] : memref<8x8x512xbf16, #tpu.memory_space<vmem>>, vector<1x8x512xbf16>
    %180 = vector.shape_cast %179 : vector<1x8x512xbf16> to vector<8x512xbf16>
    %181 = arith.extf %180 : vector<8x512xbf16> to vector<8x512xf32>
    %182 = arith.truncf %131 : vector<8x128xf32> to vector<8x128xbf16>
    %c0_82 = arith.constant 0 : index
    %c0_83 = arith.constant 0 : index
    %c0_84 = arith.constant 0 : index
    %183 = vector.load %arg3[%c0_82, %c0_83, %c0_84] : memref<2x128x512xbf16, #tpu.memory_space<vmem>>, vector<1x128x512xbf16>
    %184 = vector.shape_cast %183 : vector<1x128x512xbf16> to vector<128x512xbf16>
    %cst_85 = arith.constant dense<0.000000e+00> : vector<8x512xf32>
    %185 = tpu.matmul %182, %184, %cst_85 {dimension_numbers = #tpu.dot_dimension_numbers<[1], [0], [0], [1], [0, 0, 1, 1], [], []>} : vector<8x128xbf16>, vector<128x512xbf16>, vector<8x512xf32> -> vector<8x512xf32>
    %186 = arith.addf %181, %185 : vector<8x512xf32>
    %187 = vector.extract_strided_slice %186 {offsets = [0, 0], sizes = [8, 128], strides = [1, 1]} : vector<8x512xf32> to vector<8x128xf32>
    %cst_86 = arith.constant 5.000000e-01 : f32
    %188 = vector.broadcast %cst_86 : f32 to vector<8x128xf32>
    %189 = arith.mulf %188, %187 : vector<8x128xf32>
    %190 = math.tanh %189 : vector<8x128xf32>
    %cst_87 = arith.constant 5.000000e-01 : f32
    %191 = vector.broadcast %cst_87 : f32 to vector<8x128xf32>
    %192 = arith.mulf %191, %190 : vector<8x128xf32>
    %cst_88 = arith.constant 5.000000e-01 : f32
    %193 = vector.broadcast %cst_88 : f32 to vector<8x128xf32>
    %194 = arith.addf %192, %193 : vector<8x128xf32>
    %195 = vector.extract_strided_slice %186 {offsets = [0, 128], sizes = [8, 128], strides = [1, 1]} : vector<8x512xf32> to vector<8x128xf32>
    %cst_89 = arith.constant 5.000000e-01 : f32
    %196 = vector.broadcast %cst_89 : f32 to vector<8x128xf32>
    %197 = arith.mulf %196, %195 : vector<8x128xf32>
    %198 = math.tanh %197 : vector<8x128xf32>
    %cst_90 = arith.constant 5.000000e-01 : f32
    %199 = vector.broadcast %cst_90 : f32 to vector<8x128xf32>
    %200 = arith.mulf %199, %198 : vector<8x128xf32>
    %cst_91 = arith.constant 5.000000e-01 : f32
    %201 = vector.broadcast %cst_91 : f32 to vector<8x128xf32>
    %202 = arith.addf %200, %201 : vector<8x128xf32>
    %203 = vector.extract_strided_slice %186 {offsets = [0, 256], sizes = [8, 128], strides = [1, 1]} : vector<8x512xf32> to vector<8x128xf32>
    %204 = math.tanh %203 : vector<8x128xf32>
    %205 = vector.extract_strided_slice %186 {offsets = [0, 384], sizes = [8, 128], strides = [1, 1]} : vector<8x512xf32> to vector<8x128xf32>
    %cst_92 = arith.constant 5.000000e-01 : f32
    %206 = vector.broadcast %cst_92 : f32 to vector<8x128xf32>
    %207 = arith.mulf %206, %205 : vector<8x128xf32>
    %208 = math.tanh %207 : vector<8x128xf32>
    %cst_93 = arith.constant 5.000000e-01 : f32
    %209 = vector.broadcast %cst_93 : f32 to vector<8x128xf32>
    %210 = arith.mulf %209, %208 : vector<8x128xf32>
    %cst_94 = arith.constant 5.000000e-01 : f32
    %211 = vector.broadcast %cst_94 : f32 to vector<8x128xf32>
    %212 = arith.addf %210, %211 : vector<8x128xf32>
    %213 = arith.mulf %202, %129 : vector<8x128xf32>
    %214 = arith.mulf %194, %204 : vector<8x128xf32>
    %215 = arith.addf %213, %214 : vector<8x128xf32>
    %216 = math.tanh %215 : vector<8x128xf32>
    %217 = arith.mulf %212, %216 : vector<8x128xf32>
    %218 = arith.truncf %217 : vector<8x128xf32> to vector<8x128xbf16>
    %c2_95 = arith.constant 2 : index
    %c0_96 = arith.constant 0 : index
    %c0_97 = arith.constant 0 : index
    %219 = vector.load %arg4[%c2_95, %c0_96, %c0_97] : memref<8x8x128xbf16, #tpu.memory_space<vmem>>, vector<1x8x128xbf16>
    %220 = vector.shape_cast %219 : vector<1x8x128xbf16> to vector<8x128xbf16>
    %221 = vector.shape_cast %218 : vector<8x128xbf16> to vector<1x8x128xbf16>
    tpu.vector_store %arg4[%c2_95, %c0_96, %c0_97], %221 {strides = array<i32>} : memref<8x8x128xbf16, #tpu.memory_space<vmem>>, vector<1x8x128xbf16>,
    %c5 = arith.constant 5 : index
    %c0_98 = arith.constant 0 : index
    %c0_99 = arith.constant 0 : index
    %222 = vector.load %arg2[%c5, %c0_98, %c0_99] : memref<8x8x512xbf16, #tpu.memory_space<vmem>>, vector<1x8x512xbf16>
    %223 = vector.shape_cast %222 : vector<1x8x512xbf16> to vector<8x512xbf16>
    %224 = arith.extf %223 : vector<8x512xbf16> to vector<8x512xf32>
    %225 = arith.truncf %174 : vector<8x128xf32> to vector<8x128xbf16>
    %c1_100 = arith.constant 1 : index
    %c0_101 = arith.constant 0 : index
    %c0_102 = arith.constant 0 : index
    %226 = vector.load %arg3[%c1_100, %c0_101, %c0_102] : memref<2x128x512xbf16, #tpu.memory_space<vmem>>, vector<1x128x512xbf16>
    %227 = vector.shape_cast %226 : vector<1x128x512xbf16> to vector<128x512xbf16>
    %cst_103 = arith.constant dense<0.000000e+00> : vector<8x512xf32>
    %228 = tpu.matmul %225, %227, %cst_103 {dimension_numbers = #tpu.dot_dimension_numbers<[1], [0], [0], [1], [0, 0, 1, 1], [], []>} : vector<8x128xbf16>, vector<128x512xbf16>, vector<8x512xf32> -> vector<8x512xf32>
    %229 = arith.addf %224, %228 : vector<8x512xf32>
    %230 = vector.extract_strided_slice %229 {offsets = [0, 0], sizes = [8, 128], strides = [1, 1]} : vector<8x512xf32> to vector<8x128xf32>
    %cst_104 = arith.constant 5.000000e-01 : f32
    %231 = vector.broadcast %cst_104 : f32 to vector<8x128xf32>
    %232 = arith.mulf %231, %230 : vector<8x128xf32>
    %233 = math.tanh %232 : vector<8x128xf32>
    %cst_105 = arith.constant 5.000000e-01 : f32
    %234 = vector.broadcast %cst_105 : f32 to vector<8x128xf32>
    %235 = arith.mulf %234, %233 : vector<8x128xf32>
    %cst_106 = arith.constant 5.000000e-01 : f32
    %236 = vector.broadcast %cst_106 : f32 to vector<8x128xf32>
    %237 = arith.addf %235, %236 : vector<8x128xf32>
    %238 = vector.extract_strided_slice %229 {offsets = [0, 128], sizes = [8, 128], strides = [1, 1]} : vector<8x512xf32> to vector<8x128xf32>
    %cst_107 = arith.constant 5.000000e-01 : f32
    %239 = vector.broadcast %cst_107 : f32 to vector<8x128xf32>
    %240 = arith.mulf %239, %238 : vector<8x128xf32>
    %241 = math.tanh %240 : vector<8x128xf32>
    %cst_108 = arith.constant 5.000000e-01 : f32
    %242 = vector.broadcast %cst_108 : f32 to vector<8x128xf32>
    %243 = arith.mulf %242, %241 : vector<8x128xf32>
    %cst_109 = arith.constant 5.000000e-01 : f32
    %244 = vector.broadcast %cst_109 : f32 to vector<8x128xf32>
    %245 = arith.addf %243, %244 : vector<8x128xf32>
    %246 = vector.extract_strided_slice %229 {offsets = [0, 256], sizes = [8, 128], strides = [1, 1]} : vector<8x512xf32> to vector<8x128xf32>
    %247 = math.tanh %246 : vector<8x128xf32>
    %248 = vector.extract_strided_slice %229 {offsets = [0, 384], sizes = [8, 128], strides = [1, 1]} : vector<8x512xf32> to vector<8x128xf32>
    %cst_110 = arith.constant 5.000000e-01 : f32
    %249 = vector.broadcast %cst_110 : f32 to vector<8x128xf32>
    %250 = arith.mulf %249, %248 : vector<8x128xf32>
    %251 = math.tanh %250 : vector<8x128xf32>
    %cst_111 = arith.constant 5.000000e-01 : f32
    %252 = vector.broadcast %cst_111 : f32 to vector<8x128xf32>
    %253 = arith.mulf %252, %251 : vector<8x128xf32>
    %cst_112 = arith.constant 5.000000e-01 : f32
    %254 = vector.broadcast %cst_112 : f32 to vector<8x128xf32>
    %255 = arith.addf %253, %254 : vector<8x128xf32>
    %256 = arith.mulf %245, %172 : vector<8x128xf32>
    %257 = arith.mulf %237, %247 : vector<8x128xf32>
    %258 = arith.addf %256, %257 : vector<8x128xf32>
    %259 = math.tanh %258 : vector<8x128xf32>
    %260 = arith.mulf %255, %259 : vector<8x128xf32>
    %261 = arith.truncf %260 : vector<8x128xf32> to vector<8x128xbf16>
    %c5_113 = arith.constant 5 : index
    %c0_114 = arith.constant 0 : index
    %c0_115 = arith.constant 0 : index
    %262 = vector.load %arg5[%c5_113, %c0_114, %c0_115] : memref<8x8x128xbf16, #tpu.memory_space<vmem>>, vector<1x8x128xbf16>
    %263 = vector.shape_cast %262 : vector<1x8x128xbf16> to vector<8x128xbf16>
    %264 = vector.shape_cast %261 : vector<8x128xbf16> to vector<1x8x128xbf16>
    tpu.vector_store %arg5[%c5_113, %c0_114, %c0_115], %264 {strides = array<i32>} : memref<8x8x128xbf16, #tpu.memory_space<vmem>>, vector<1x8x128xbf16>,
    %c3 = arith.constant 3 : index
    %c0_116 = arith.constant 0 : index
    %c0_117 = arith.constant 0 : index
    %265 = vector.load %arg1[%c3, %c0_116, %c0_117] : memref<8x8x512xbf16, #tpu.memory_space<vmem>>, vector<1x8x512xbf16>
    %266 = vector.shape_cast %265 : vector<1x8x512xbf16> to vector<8x512xbf16>
    %267 = arith.extf %266 : vector<8x512xbf16> to vector<8x512xf32>
    %268 = arith.truncf %217 : vector<8x128xf32> to vector<8x128xbf16>
    %c0_118 = arith.constant 0 : index
    %c0_119 = arith.constant 0 : index
    %c0_120 = arith.constant 0 : index
    %269 = vector.load %arg3[%c0_118, %c0_119, %c0_120] : memref<2x128x512xbf16, #tpu.memory_space<vmem>>, vector<1x128x512xbf16>
    %270 = vector.shape_cast %269 : vector<1x128x512xbf16> to vector<128x512xbf16>
    %cst_121 = arith.constant dense<0.000000e+00> : vector<8x512xf32>
    %271 = tpu.matmul %268, %270, %cst_121 {dimension_numbers = #tpu.dot_dimension_numbers<[1], [0], [0], [1], [0, 0, 1, 1], [], []>} : vector<8x128xbf16>, vector<128x512xbf16>, vector<8x512xf32> -> vector<8x512xf32>
    %272 = arith.addf %267, %271 : vector<8x512xf32>
    %273 = vector.extract_strided_slice %272 {offsets = [0, 0], sizes = [8, 128], strides = [1, 1]} : vector<8x512xf32> to vector<8x128xf32>
    %cst_122 = arith.constant 5.000000e-01 : f32
    %274 = vector.broadcast %cst_122 : f32 to vector<8x128xf32>
    %275 = arith.mulf %274, %273 : vector<8x128xf32>
    %276 = math.tanh %275 : vector<8x128xf32>
    %cst_123 = arith.constant 5.000000e-01 : f32
    %277 = vector.broadcast %cst_123 : f32 to vector<8x128xf32>
    %278 = arith.mulf %277, %276 : vector<8x128xf32>
    %cst_124 = arith.constant 5.000000e-01 : f32
    %279 = vector.broadcast %cst_124 : f32 to vector<8x128xf32>
    %280 = arith.addf %278, %279 : vector<8x128xf32>
    %281 = vector.extract_strided_slice %272 {offsets = [0, 128], sizes = [8, 128], strides = [1, 1]} : vector<8x512xf32> to vector<8x128xf32>
    %cst_125 = arith.constant 5.000000e-01 : f32
    %282 = vector.broadcast %cst_125 : f32 to vector<8x128xf32>
    %283 = arith.mulf %282, %281 : vector<8x128xf32>
    %284 = math.tanh %283 : vector<8x128xf32>
    %cst_126 = arith.constant 5.000000e-01 : f32
    %285 = vector.broadcast %cst_126 : f32 to vector<8x128xf32>
    %286 = arith.mulf %285, %284 : vector<8x128xf32>
    %cst_127 = arith.constant 5.000000e-01 : f32
    %287 = vector.broadcast %cst_127 : f32 to vector<8x128xf32>
    %288 = arith.addf %286, %287 : vector<8x128xf32>
    %289 = vector.extract_strided_slice %272 {offsets = [0, 256], sizes = [8, 128], strides = [1, 1]} : vector<8x512xf32> to vector<8x128xf32>
    %290 = math.tanh %289 : vector<8x128xf32>
    %291 = vector.extract_strided_slice %272 {offsets = [0, 384], sizes = [8, 128], strides = [1, 1]} : vector<8x512xf32> to vector<8x128xf32>
    %cst_128 = arith.constant 5.000000e-01 : f32
    %292 = vector.broadcast %cst_128 : f32 to vector<8x128xf32>
    %293 = arith.mulf %292, %291 : vector<8x128xf32>
    %294 = math.tanh %293 : vector<8x128xf32>
    %cst_129 = arith.constant 5.000000e-01 : f32
    %295 = vector.broadcast %cst_129 : f32 to vector<8x128xf32>
    %296 = arith.mulf %295, %294 : vector<8x128xf32>
    %cst_130 = arith.constant 5.000000e-01 : f32
    %297 = vector.broadcast %cst_130 : f32 to vector<8x128xf32>
    %298 = arith.addf %296, %297 : vector<8x128xf32>
    %299 = arith.mulf %288, %215 : vector<8x128xf32>
    %300 = arith.mulf %280, %290 : vector<8x128xf32>
    %301 = arith.addf %299, %300 : vector<8x128xf32>
    %302 = math.tanh %301 : vector<8x128xf32>
    %303 = arith.mulf %298, %302 : vector<8x128xf32>
    %304 = arith.truncf %303 : vector<8x128xf32> to vector<8x128xbf16>
    %c3_131 = arith.constant 3 : index
    %c0_132 = arith.constant 0 : index
    %c0_133 = arith.constant 0 : index
    %305 = vector.load %arg4[%c3_131, %c0_132, %c0_133] : memref<8x8x128xbf16, #tpu.memory_space<vmem>>, vector<1x8x128xbf16>
    %306 = vector.shape_cast %305 : vector<1x8x128xbf16> to vector<8x128xbf16>
    %307 = vector.shape_cast %304 : vector<8x128xbf16> to vector<1x8x128xbf16>
    tpu.vector_store %arg4[%c3_131, %c0_132, %c0_133], %307 {strides = array<i32>} : memref<8x8x128xbf16, #tpu.memory_space<vmem>>, vector<1x8x128xbf16>,
    %c4 = arith.constant 4 : index
    %c0_134 = arith.constant 0 : index
    %c0_135 = arith.constant 0 : index
    %308 = vector.load %arg2[%c4, %c0_134, %c0_135] : memref<8x8x512xbf16, #tpu.memory_space<vmem>>, vector<1x8x512xbf16>
    %309 = vector.shape_cast %308 : vector<1x8x512xbf16> to vector<8x512xbf16>
    %310 = arith.extf %309 : vector<8x512xbf16> to vector<8x512xf32>
    %311 = arith.truncf %260 : vector<8x128xf32> to vector<8x128xbf16>
    %c1_136 = arith.constant 1 : index
    %c0_137 = arith.constant 0 : index
    %c0_138 = arith.constant 0 : index
    %312 = vector.load %arg3[%c1_136, %c0_137, %c0_138] : memref<2x128x512xbf16, #tpu.memory_space<vmem>>, vector<1x128x512xbf16>
    %313 = vector.shape_cast %312 : vector<1x128x512xbf16> to vector<128x512xbf16>
    %cst_139 = arith.constant dense<0.000000e+00> : vector<8x512xf32>
    %314 = tpu.matmul %311, %313, %cst_139 {dimension_numbers = #tpu.dot_dimension_numbers<[1], [0], [0], [1], [0, 0, 1, 1], [], []>} : vector<8x128xbf16>, vector<128x512xbf16>, vector<8x512xf32> -> vector<8x512xf32>
    %315 = arith.addf %310, %314 : vector<8x512xf32>
    %316 = vector.extract_strided_slice %315 {offsets = [0, 0], sizes = [8, 128], strides = [1, 1]} : vector<8x512xf32> to vector<8x128xf32>
    %cst_140 = arith.constant 5.000000e-01 : f32
    %317 = vector.broadcast %cst_140 : f32 to vector<8x128xf32>
    %318 = arith.mulf %317, %316 : vector<8x128xf32>
    %319 = math.tanh %318 : vector<8x128xf32>
    %cst_141 = arith.constant 5.000000e-01 : f32
    %320 = vector.broadcast %cst_141 : f32 to vector<8x128xf32>
    %321 = arith.mulf %320, %319 : vector<8x128xf32>
    %cst_142 = arith.constant 5.000000e-01 : f32
    %322 = vector.broadcast %cst_142 : f32 to vector<8x128xf32>
    %323 = arith.addf %321, %322 : vector<8x128xf32>
    %324 = vector.extract_strided_slice %315 {offsets = [0, 128], sizes = [8, 128], strides = [1, 1]} : vector<8x512xf32> to vector<8x128xf32>
    %cst_143 = arith.constant 5.000000e-01 : f32
    %325 = vector.broadcast %cst_143 : f32 to vector<8x128xf32>
    %326 = arith.mulf %325, %324 : vector<8x128xf32>
    %327 = math.tanh %326 : vector<8x128xf32>
    %cst_144 = arith.constant 5.000000e-01 : f32
    %328 = vector.broadcast %cst_144 : f32 to vector<8x128xf32>
    %329 = arith.mulf %328, %327 : vector<8x128xf32>
    %cst_145 = arith.constant 5.000000e-01 : f32
    %330 = vector.broadcast %cst_145 : f32 to vector<8x128xf32>
    %331 = arith.addf %329, %330 : vector<8x128xf32>
    %332 = vector.extract_strided_slice %315 {offsets = [0, 256], sizes = [8, 128], strides = [1, 1]} : vector<8x512xf32> to vector<8x128xf32>
    %333 = math.tanh %332 : vector<8x128xf32>
    %334 = vector.extract_strided_slice %315 {offsets = [0, 384], sizes = [8, 128], strides = [1, 1]} : vector<8x512xf32> to vector<8x128xf32>
    %cst_146 = arith.constant 5.000000e-01 : f32
    %335 = vector.broadcast %cst_146 : f32 to vector<8x128xf32>
    %336 = arith.mulf %335, %334 : vector<8x128xf32>
    %337 = math.tanh %336 : vector<8x128xf32>
    %cst_147 = arith.constant 5.000000e-01 : f32
    %338 = vector.broadcast %cst_147 : f32 to vector<8x128xf32>
    %339 = arith.mulf %338, %337 : vector<8x128xf32>
    %cst_148 = arith.constant 5.000000e-01 : f32
    %340 = vector.broadcast %cst_148 : f32 to vector<8x128xf32>
    %341 = arith.addf %339, %340 : vector<8x128xf32>
    %342 = arith.mulf %331, %258 : vector<8x128xf32>
    %343 = arith.mulf %323, %333 : vector<8x128xf32>
    %344 = arith.addf %342, %343 : vector<8x128xf32>
    %345 = math.tanh %344 : vector<8x128xf32>
    %346 = arith.mulf %341, %345 : vector<8x128xf32>
    %347 = arith.truncf %346 : vector<8x128xf32> to vector<8x128xbf16>
    %c4_149 = arith.constant 4 : index
    %c0_150 = arith.constant 0 : index
    %c0_151 = arith.constant 0 : index
    %348 = vector.load %arg5[%c4_149, %c0_150, %c0_151] : memref<8x8x128xbf16, #tpu.memory_space<vmem>>, vector<1x8x128xbf16>
    %349 = vector.shape_cast %348 : vector<1x8x128xbf16> to vector<8x128xbf16>
    %350 = vector.shape_cast %347 : vector<8x128xbf16> to vector<1x8x128xbf16>
    tpu.vector_store %arg5[%c4_149, %c0_150, %c0_151], %350 {strides = array<i32>} : memref<8x8x128xbf16, #tpu.memory_space<vmem>>, vector<1x8x128xbf16>,
    %c4_152 = arith.constant 4 : index
    %c0_153 = arith.constant 0 : index
    %c0_154 = arith.constant 0 : index
    %351 = vector.load %arg1[%c4_152, %c0_153, %c0_154] : memref<8x8x512xbf16, #tpu.memory_space<vmem>>, vector<1x8x512xbf16>
    %352 = vector.shape_cast %351 : vector<1x8x512xbf16> to vector<8x512xbf16>
    %353 = arith.extf %352 : vector<8x512xbf16> to vector<8x512xf32>
    %354 = arith.truncf %303 : vector<8x128xf32> to vector<8x128xbf16>
    %c0_155 = arith.constant 0 : index
    %c0_156 = arith.constant 0 : index
    %c0_157 = arith.constant 0 : index
    %355 = vector.load %arg3[%c0_155, %c0_156, %c0_157] : memref<2x128x512xbf16, #tpu.memory_space<vmem>>, vector<1x128x512xbf16>
    %356 = vector.shape_cast %355 : vector<1x128x512xbf16> to vector<128x512xbf16>
    %cst_158 = arith.constant dense<0.000000e+00> : vector<8x512xf32>
    %357 = tpu.matmul %354, %356, %cst_158 {dimension_numbers = #tpu.dot_dimension_numbers<[1], [0], [0], [1], [0, 0, 1, 1], [], []>} : vector<8x128xbf16>, vector<128x512xbf16>, vector<8x512xf32> -> vector<8x512xf32>
    %358 = arith.addf %353, %357 : vector<8x512xf32>
    %359 = vector.extract_strided_slice %358 {offsets = [0, 0], sizes = [8, 128], strides = [1, 1]} : vector<8x512xf32> to vector<8x128xf32>
    %cst_159 = arith.constant 5.000000e-01 : f32
    %360 = vector.broadcast %cst_159 : f32 to vector<8x128xf32>
    %361 = arith.mulf %360, %359 : vector<8x128xf32>
    %362 = math.tanh %361 : vector<8x128xf32>
    %cst_160 = arith.constant 5.000000e-01 : f32
    %363 = vector.broadcast %cst_160 : f32 to vector<8x128xf32>
    %364 = arith.mulf %363, %362 : vector<8x128xf32>
    %cst_161 = arith.constant 5.000000e-01 : f32
    %365 = vector.broadcast %cst_161 : f32 to vector<8x128xf32>
    %366 = arith.addf %364, %365 : vector<8x128xf32>
    %367 = vector.extract_strided_slice %358 {offsets = [0, 128], sizes = [8, 128], strides = [1, 1]} : vector<8x512xf32> to vector<8x128xf32>
    %cst_162 = arith.constant 5.000000e-01 : f32
    %368 = vector.broadcast %cst_162 : f32 to vector<8x128xf32>
    %369 = arith.mulf %368, %367 : vector<8x128xf32>
    %370 = math.tanh %369 : vector<8x128xf32>
    %cst_163 = arith.constant 5.000000e-01 : f32
    %371 = vector.broadcast %cst_163 : f32 to vector<8x128xf32>
    %372 = arith.mulf %371, %370 : vector<8x128xf32>
    %cst_164 = arith.constant 5.000000e-01 : f32
    %373 = vector.broadcast %cst_164 : f32 to vector<8x128xf32>
    %374 = arith.addf %372, %373 : vector<8x128xf32>
    %375 = vector.extract_strided_slice %358 {offsets = [0, 256], sizes = [8, 128], strides = [1, 1]} : vector<8x512xf32> to vector<8x128xf32>
    %376 = math.tanh %375 : vector<8x128xf32>
    %377 = vector.extract_strided_slice %358 {offsets = [0, 384], sizes = [8, 128], strides = [1, 1]} : vector<8x512xf32> to vector<8x128xf32>
    %cst_165 = arith.constant 5.000000e-01 : f32
    %378 = vector.broadcast %cst_165 : f32 to vector<8x128xf32>
    %379 = arith.mulf %378, %377 : vector<8x128xf32>
    %380 = math.tanh %379 : vector<8x128xf32>
    %cst_166 = arith.constant 5.000000e-01 : f32
    %381 = vector.broadcast %cst_166 : f32 to vector<8x128xf32>
    %382 = arith.mulf %381, %380 : vector<8x128xf32>
    %cst_167 = arith.constant 5.000000e-01 : f32
    %383 = vector.broadcast %cst_167 : f32 to vector<8x128xf32>
    %384 = arith.addf %382, %383 : vector<8x128xf32>
    %385 = arith.mulf %374, %301 : vector<8x128xf32>
    %386 = arith.mulf %366, %376 : vector<8x128xf32>
    %387 = arith.addf %385, %386 : vector<8x128xf32>
    %388 = math.tanh %387 : vector<8x128xf32>
    %389 = arith.mulf %384, %388 : vector<8x128xf32>
    %390 = arith.truncf %389 : vector<8x128xf32> to vector<8x128xbf16>
    %c4_168 = arith.constant 4 : index
    %c0_169 = arith.constant 0 : index
    %c0_170 = arith.constant 0 : index
    %391 = vector.load %arg4[%c4_168, %c0_169, %c0_170] : memref<8x8x128xbf16, #tpu.memory_space<vmem>>, vector<1x8x128xbf16>
    %392 = vector.shape_cast %391 : vector<1x8x128xbf16> to vector<8x128xbf16>
    %393 = vector.shape_cast %390 : vector<8x128xbf16> to vector<1x8x128xbf16>
    tpu.vector_store %arg4[%c4_168, %c0_169, %c0_170], %393 {strides = array<i32>} : memref<8x8x128xbf16, #tpu.memory_space<vmem>>, vector<1x8x128xbf16>,
    %c3_171 = arith.constant 3 : index
    %c0_172 = arith.constant 0 : index
    %c0_173 = arith.constant 0 : index
    %394 = vector.load %arg2[%c3_171, %c0_172, %c0_173] : memref<8x8x512xbf16, #tpu.memory_space<vmem>>, vector<1x8x512xbf16>
    %395 = vector.shape_cast %394 : vector<1x8x512xbf16> to vector<8x512xbf16>
    %396 = arith.extf %395 : vector<8x512xbf16> to vector<8x512xf32>
    %397 = arith.truncf %346 : vector<8x128xf32> to vector<8x128xbf16>
    %c1_174 = arith.constant 1 : index
    %c0_175 = arith.constant 0 : index
    %c0_176 = arith.constant 0 : index
    %398 = vector.load %arg3[%c1_174, %c0_175, %c0_176] : memref<2x128x512xbf16, #tpu.memory_space<vmem>>, vector<1x128x512xbf16>
    %399 = vector.shape_cast %398 : vector<1x128x512xbf16> to vector<128x512xbf16>
    %cst_177 = arith.constant dense<0.000000e+00> : vector<8x512xf32>
    %400 = tpu.matmul %397, %399, %cst_177 {dimension_numbers = #tpu.dot_dimension_numbers<[1], [0], [0], [1], [0, 0, 1, 1], [], []>} : vector<8x128xbf16>, vector<128x512xbf16>, vector<8x512xf32> -> vector<8x512xf32>
    %401 = arith.addf %396, %400 : vector<8x512xf32>
    %402 = vector.extract_strided_slice %401 {offsets = [0, 0], sizes = [8, 128], strides = [1, 1]} : vector<8x512xf32> to vector<8x128xf32>
    %cst_178 = arith.constant 5.000000e-01 : f32
    %403 = vector.broadcast %cst_178 : f32 to vector<8x128xf32>
    %404 = arith.mulf %403, %402 : vector<8x128xf32>
    %405 = math.tanh %404 : vector<8x128xf32>
    %cst_179 = arith.constant 5.000000e-01 : f32
    %406 = vector.broadcast %cst_179 : f32 to vector<8x128xf32>
    %407 = arith.mulf %406, %405 : vector<8x128xf32>
    %cst_180 = arith.constant 5.000000e-01 : f32
    %408 = vector.broadcast %cst_180 : f32 to vector<8x128xf32>
    %409 = arith.addf %407, %408 : vector<8x128xf32>
    %410 = vector.extract_strided_slice %401 {offsets = [0, 128], sizes = [8, 128], strides = [1, 1]} : vector<8x512xf32> to vector<8x128xf32>
    %cst_181 = arith.constant 5.000000e-01 : f32
    %411 = vector.broadcast %cst_181 : f32 to vector<8x128xf32>
    %412 = arith.mulf %411, %410 : vector<8x128xf32>
    %413 = math.tanh %412 : vector<8x128xf32>
    %cst_182 = arith.constant 5.000000e-01 : f32
    %414 = vector.broadcast %cst_182 : f32 to vector<8x128xf32>
    %415 = arith.mulf %414, %413 : vector<8x128xf32>
    %cst_183 = arith.constant 5.000000e-01 : f32
    %416 = vector.broadcast %cst_183 : f32 to vector<8x128xf32>
    %417 = arith.addf %415, %416 : vector<8x128xf32>
    %418 = vector.extract_strided_slice %401 {offsets = [0, 256], sizes = [8, 128], strides = [1, 1]} : vector<8x512xf32> to vector<8x128xf32>
    %419 = math.tanh %418 : vector<8x128xf32>
    %420 = vector.extract_strided_slice %401 {offsets = [0, 384], sizes = [8, 128], strides = [1, 1]} : vector<8x512xf32> to vector<8x128xf32>
    %cst_184 = arith.constant 5.000000e-01 : f32
    %421 = vector.broadcast %cst_184 : f32 to vector<8x128xf32>
    %422 = arith.mulf %421, %420 : vector<8x128xf32>
    %423 = math.tanh %422 : vector<8x128xf32>
    %cst_185 = arith.constant 5.000000e-01 : f32
    %424 = vector.broadcast %cst_185 : f32 to vector<8x128xf32>
    %425 = arith.mulf %424, %423 : vector<8x128xf32>
    %cst_186 = arith.constant 5.000000e-01 : f32
    %426 = vector.broadcast %cst_186 : f32 to vector<8x128xf32>
    %427 = arith.addf %425, %426 : vector<8x128xf32>
    %428 = arith.mulf %417, %344 : vector<8x128xf32>
    %429 = arith.mulf %409, %419 : vector<8x128xf32>
    %430 = arith.addf %428, %429 : vector<8x128xf32>
    %431 = math.tanh %430 : vector<8x128xf32>
    %432 = arith.mulf %427, %431 : vector<8x128xf32>
    %433 = arith.truncf %432 : vector<8x128xf32> to vector<8x128xbf16>
    %c3_187 = arith.constant 3 : index
    %c0_188 = arith.constant 0 : index
    %c0_189 = arith.constant 0 : index
    %434 = vector.load %arg5[%c3_187, %c0_188, %c0_189] : memref<8x8x128xbf16, #tpu.memory_space<vmem>>, vector<1x8x128xbf16>
    %435 = vector.shape_cast %434 : vector<1x8x128xbf16> to vector<8x128xbf16>
    %436 = vector.shape_cast %433 : vector<8x128xbf16> to vector<1x8x128xbf16>
    tpu.vector_store %arg5[%c3_187, %c0_188, %c0_189], %436 {strides = array<i32>} : memref<8x8x128xbf16, #tpu.memory_space<vmem>>, vector<1x8x128xbf16>,
    %c5_190 = arith.constant 5 : index
    %c0_191 = arith.constant 0 : index
    %c0_192 = arith.constant 0 : index
    %437 = vector.load %arg1[%c5_190, %c0_191, %c0_192] : memref<8x8x512xbf16, #tpu.memory_space<vmem>>, vector<1x8x512xbf16>
    %438 = vector.shape_cast %437 : vector<1x8x512xbf16> to vector<8x512xbf16>
    %439 = arith.extf %438 : vector<8x512xbf16> to vector<8x512xf32>
    %440 = arith.truncf %389 : vector<8x128xf32> to vector<8x128xbf16>
    %c0_193 = arith.constant 0 : index
    %c0_194 = arith.constant 0 : index
    %c0_195 = arith.constant 0 : index
    %441 = vector.load %arg3[%c0_193, %c0_194, %c0_195] : memref<2x128x512xbf16, #tpu.memory_space<vmem>>, vector<1x128x512xbf16>
    %442 = vector.shape_cast %441 : vector<1x128x512xbf16> to vector<128x512xbf16>
    %cst_196 = arith.constant dense<0.000000e+00> : vector<8x512xf32>
    %443 = tpu.matmul %440, %442, %cst_196 {dimension_numbers = #tpu.dot_dimension_numbers<[1], [0], [0], [1], [0, 0, 1, 1], [], []>} : vector<8x128xbf16>, vector<128x512xbf16>, vector<8x512xf32> -> vector<8x512xf32>
    %444 = arith.addf %439, %443 : vector<8x512xf32>
    %445 = vector.extract_strided_slice %444 {offsets = [0, 0], sizes = [8, 128], strides = [1, 1]} : vector<8x512xf32> to vector<8x128xf32>
    %cst_197 = arith.constant 5.000000e-01 : f32
    %446 = vector.broadcast %cst_197 : f32 to vector<8x128xf32>
    %447 = arith.mulf %446, %445 : vector<8x128xf32>
    %448 = math.tanh %447 : vector<8x128xf32>
    %cst_198 = arith.constant 5.000000e-01 : f32
    %449 = vector.broadcast %cst_198 : f32 to vector<8x128xf32>
    %450 = arith.mulf %449, %448 : vector<8x128xf32>
    %cst_199 = arith.constant 5.000000e-01 : f32
    %451 = vector.broadcast %cst_199 : f32 to vector<8x128xf32>
    %452 = arith.addf %450, %451 : vector<8x128xf32>
    %453 = vector.extract_strided_slice %444 {offsets = [0, 128], sizes = [8, 128], strides = [1, 1]} : vector<8x512xf32> to vector<8x128xf32>
    %cst_200 = arith.constant 5.000000e-01 : f32
    %454 = vector.broadcast %cst_200 : f32 to vector<8x128xf32>
    %455 = arith.mulf %454, %453 : vector<8x128xf32>
    %456 = math.tanh %455 : vector<8x128xf32>
    %cst_201 = arith.constant 5.000000e-01 : f32
    %457 = vector.broadcast %cst_201 : f32 to vector<8x128xf32>
    %458 = arith.mulf %457, %456 : vector<8x128xf32>
    %cst_202 = arith.constant 5.000000e-01 : f32
    %459 = vector.broadcast %cst_202 : f32 to vector<8x128xf32>
    %460 = arith.addf %458, %459 : vector<8x128xf32>
    %461 = vector.extract_strided_slice %444 {offsets = [0, 256], sizes = [8, 128], strides = [1, 1]} : vector<8x512xf32> to vector<8x128xf32>
    %462 = math.tanh %461 : vector<8x128xf32>
    %463 = vector.extract_strided_slice %444 {offsets = [0, 384], sizes = [8, 128], strides = [1, 1]} : vector<8x512xf32> to vector<8x128xf32>
    %cst_203 = arith.constant 5.000000e-01 : f32
    %464 = vector.broadcast %cst_203 : f32 to vector<8x128xf32>
    %465 = arith.mulf %464, %463 : vector<8x128xf32>
    %466 = math.tanh %465 : vector<8x128xf32>
    %cst_204 = arith.constant 5.000000e-01 : f32
    %467 = vector.broadcast %cst_204 : f32 to vector<8x128xf32>
    %468 = arith.mulf %467, %466 : vector<8x128xf32>
    %cst_205 = arith.constant 5.000000e-01 : f32
    %469 = vector.broadcast %cst_205 : f32 to vector<8x128xf32>
    %470 = arith.addf %468, %469 : vector<8x128xf32>
    %471 = arith.mulf %460, %387 : vector<8x128xf32>
    %472 = arith.mulf %452, %462 : vector<8x128xf32>
    %473 = arith.addf %471, %472 : vector<8x128xf32>
    %474 = math.tanh %473 : vector<8x128xf32>
    %475 = arith.mulf %470, %474 : vector<8x128xf32>
    %476 = arith.truncf %475 : vector<8x128xf32> to vector<8x128xbf16>
    %c5_206 = arith.constant 5 : index
    %c0_207 = arith.constant 0 : index
    %c0_208 = arith.constant 0 : index
    %477 = vector.load %arg4[%c5_206, %c0_207, %c0_208] : memref<8x8x128xbf16, #tpu.memory_space<vmem>>, vector<1x8x128xbf16>
    %478 = vector.shape_cast %477 : vector<1x8x128xbf16> to vector<8x128xbf16>
    %479 = vector.shape_cast %476 : vector<8x128xbf16> to vector<1x8x128xbf16>
    tpu.vector_store %arg4[%c5_206, %c0_207, %c0_208], %479 {strides = array<i32>} : memref<8x8x128xbf16, #tpu.memory_space<vmem>>, vector<1x8x128xbf16>,
    %c2_209 = arith.constant 2 : index
    %c0_210 = arith.constant 0 : index
    %c0_211 = arith.constant 0 : index
    %480 = vector.load %arg2[%c2_209, %c0_210, %c0_211] : memref<8x8x512xbf16, #tpu.memory_space<vmem>>, vector<1x8x512xbf16>
    %481 = vector.shape_cast %480 : vector<1x8x512xbf16> to vector<8x512xbf16>
    %482 = arith.extf %481 : vector<8x512xbf16> to vector<8x512xf32>
    %483 = arith.truncf %432 : vector<8x128xf32> to vector<8x128xbf16>
    %c1_212 = arith.constant 1 : index
    %c0_213 = arith.constant 0 : index
    %c0_214 = arith.constant 0 : index
    %484 = vector.load %arg3[%c1_212, %c0_213, %c0_214] : memref<2x128x512xbf16, #tpu.memory_space<vmem>>, vector<1x128x512xbf16>
    %485 = vector.shape_cast %484 : vector<1x128x512xbf16> to vector<128x512xbf16>
    %cst_215 = arith.constant dense<0.000000e+00> : vector<8x512xf32>
    %486 = tpu.matmul %483, %485, %cst_215 {dimension_numbers = #tpu.dot_dimension_numbers<[1], [0], [0], [1], [0, 0, 1, 1], [], []>} : vector<8x128xbf16>, vector<128x512xbf16>, vector<8x512xf32> -> vector<8x512xf32>
    %487 = arith.addf %482, %486 : vector<8x512xf32>
    %488 = vector.extract_strided_slice %487 {offsets = [0, 0], sizes = [8, 128], strides = [1, 1]} : vector<8x512xf32> to vector<8x128xf32>
    %cst_216 = arith.constant 5.000000e-01 : f32
    %489 = vector.broadcast %cst_216 : f32 to vector<8x128xf32>
    %490 = arith.mulf %489, %488 : vector<8x128xf32>
    %491 = math.tanh %490 : vector<8x128xf32>
    %cst_217 = arith.constant 5.000000e-01 : f32
    %492 = vector.broadcast %cst_217 : f32 to vector<8x128xf32>
    %493 = arith.mulf %492, %491 : vector<8x128xf32>
    %cst_218 = arith.constant 5.000000e-01 : f32
    %494 = vector.broadcast %cst_218 : f32 to vector<8x128xf32>
    %495 = arith.addf %493, %494 : vector<8x128xf32>
    %496 = vector.extract_strided_slice %487 {offsets = [0, 128], sizes = [8, 128], strides = [1, 1]} : vector<8x512xf32> to vector<8x128xf32>
    %cst_219 = arith.constant 5.000000e-01 : f32
    %497 = vector.broadcast %cst_219 : f32 to vector<8x128xf32>
    %498 = arith.mulf %497, %496 : vector<8x128xf32>
    %499 = math.tanh %498 : vector<8x128xf32>
    %cst_220 = arith.constant 5.000000e-01 : f32
    %500 = vector.broadcast %cst_220 : f32 to vector<8x128xf32>
    %501 = arith.mulf %500, %499 : vector<8x128xf32>
    %cst_221 = arith.constant 5.000000e-01 : f32
    %502 = vector.broadcast %cst_221 : f32 to vector<8x128xf32>
    %503 = arith.addf %501, %502 : vector<8x128xf32>
    %504 = vector.extract_strided_slice %487 {offsets = [0, 256], sizes = [8, 128], strides = [1, 1]} : vector<8x512xf32> to vector<8x128xf32>
    %505 = math.tanh %504 : vector<8x128xf32>
    %506 = vector.extract_strided_slice %487 {offsets = [0, 384], sizes = [8, 128], strides = [1, 1]} : vector<8x512xf32> to vector<8x128xf32>
    %cst_222 = arith.constant 5.000000e-01 : f32
    %507 = vector.broadcast %cst_222 : f32 to vector<8x128xf32>
    %508 = arith.mulf %507, %506 : vector<8x128xf32>
    %509 = math.tanh %508 : vector<8x128xf32>
    %cst_223 = arith.constant 5.000000e-01 : f32
    %510 = vector.broadcast %cst_223 : f32 to vector<8x128xf32>
    %511 = arith.mulf %510, %509 : vector<8x128xf32>
    %cst_224 = arith.constant 5.000000e-01 : f32
    %512 = vector.broadcast %cst_224 : f32 to vector<8x128xf32>
    %513 = arith.addf %511, %512 : vector<8x128xf32>
    %514 = arith.mulf %503, %430 : vector<8x128xf32>
    %515 = arith.mulf %495, %505 : vector<8x128xf32>
    %516 = arith.addf %514, %515 : vector<8x128xf32>
    %517 = math.tanh %516 : vector<8x128xf32>
    %518 = arith.mulf %513, %517 : vector<8x128xf32>
    %519 = arith.truncf %518 : vector<8x128xf32> to vector<8x128xbf16>
    %c2_225 = arith.constant 2 : index
    %c0_226 = arith.constant 0 : index
    %c0_227 = arith.constant 0 : index
    %520 = vector.load %arg5[%c2_225, %c0_226, %c0_227] : memref<8x8x128xbf16, #tpu.memory_space<vmem>>, vector<1x8x128xbf16>
    %521 = vector.shape_cast %520 : vector<1x8x128xbf16> to vector<8x128xbf16>
    %522 = vector.shape_cast %519 : vector<8x128xbf16> to vector<1x8x128xbf16>
    tpu.vector_store %arg5[%c2_225, %c0_226, %c0_227], %522 {strides = array<i32>} : memref<8x8x128xbf16, #tpu.memory_space<vmem>>, vector<1x8x128xbf16>,
    %c6_228 = arith.constant 6 : index
    %c0_229 = arith.constant 0 : index
    %c0_230 = arith.constant 0 : index
    %523 = vector.load %arg1[%c6_228, %c0_229, %c0_230] : memref<8x8x512xbf16, #tpu.memory_space<vmem>>, vector<1x8x512xbf16>
    %524 = vector.shape_cast %523 : vector<1x8x512xbf16> to vector<8x512xbf16>
    %525 = arith.extf %524 : vector<8x512xbf16> to vector<8x512xf32>
    %526 = arith.truncf %475 : vector<8x128xf32> to vector<8x128xbf16>
    %c0_231 = arith.constant 0 : index
    %c0_232 = arith.constant 0 : index
    %c0_233 = arith.constant 0 : index
    %527 = vector.load %arg3[%c0_231, %c0_232, %c0_233] : memref<2x128x512xbf16, #tpu.memory_space<vmem>>, vector<1x128x512xbf16>
    %528 = vector.shape_cast %527 : vector<1x128x512xbf16> to vector<128x512xbf16>
    %cst_234 = arith.constant dense<0.000000e+00> : vector<8x512xf32>
    %529 = tpu.matmul %526, %528, %cst_234 {dimension_numbers = #tpu.dot_dimension_numbers<[1], [0], [0], [1], [0, 0, 1, 1], [], []>} : vector<8x128xbf16>, vector<128x512xbf16>, vector<8x512xf32> -> vector<8x512xf32>
    %530 = arith.addf %525, %529 : vector<8x512xf32>
    %531 = vector.extract_strided_slice %530 {offsets = [0, 0], sizes = [8, 128], strides = [1, 1]} : vector<8x512xf32> to vector<8x128xf32>
    %cst_235 = arith.constant 5.000000e-01 : f32
    %532 = vector.broadcast %cst_235 : f32 to vector<8x128xf32>
    %533 = arith.mulf %532, %531 : vector<8x128xf32>
    %534 = math.tanh %533 : vector<8x128xf32>
    %cst_236 = arith.constant 5.000000e-01 : f32
    %535 = vector.broadcast %cst_236 : f32 to vector<8x128xf32>
    %536 = arith.mulf %535, %534 : vector<8x128xf32>
    %cst_237 = arith.constant 5.000000e-01 : f32
    %537 = vector.broadcast %cst_237 : f32 to vector<8x128xf32>
    %538 = arith.addf %536, %537 : vector<8x128xf32>
    %539 = vector.extract_strided_slice %530 {offsets = [0, 128], sizes = [8, 128], strides = [1, 1]} : vector<8x512xf32> to vector<8x128xf32>
    %cst_238 = arith.constant 5.000000e-01 : f32
    %540 = vector.broadcast %cst_238 : f32 to vector<8x128xf32>
    %541 = arith.mulf %540, %539 : vector<8x128xf32>
    %542 = math.tanh %541 : vector<8x128xf32>
    %cst_239 = arith.constant 5.000000e-01 : f32
    %543 = vector.broadcast %cst_239 : f32 to vector<8x128xf32>
    %544 = arith.mulf %543, %542 : vector<8x128xf32>
    %cst_240 = arith.constant 5.000000e-01 : f32
    %545 = vector.broadcast %cst_240 : f32 to vector<8x128xf32>
    %546 = arith.addf %544, %545 : vector<8x128xf32>
    %547 = vector.extract_strided_slice %530 {offsets = [0, 256], sizes = [8, 128], strides = [1, 1]} : vector<8x512xf32> to vector<8x128xf32>
    %548 = math.tanh %547 : vector<8x128xf32>
    %549 = vector.extract_strided_slice %530 {offsets = [0, 384], sizes = [8, 128], strides = [1, 1]} : vector<8x512xf32> to vector<8x128xf32>
    %cst_241 = arith.constant 5.000000e-01 : f32
    %550 = vector.broadcast %cst_241 : f32 to vector<8x128xf32>
    %551 = arith.mulf %550, %549 : vector<8x128xf32>
    %552 = math.tanh %551 : vector<8x128xf32>
    %cst_242 = arith.constant 5.000000e-01 : f32
    %553 = vector.broadcast %cst_242 : f32 to vector<8x128xf32>
    %554 = arith.mulf %553, %552 : vector<8x128xf32>
    %cst_243 = arith.constant 5.000000e-01 : f32
    %555 = vector.broadcast %cst_243 : f32 to vector<8x128xf32>
    %556 = arith.addf %554, %555 : vector<8x128xf32>
    %557 = arith.mulf %546, %473 : vector<8x128xf32>
    %558 = arith.mulf %538, %548 : vector<8x128xf32>
    %559 = arith.addf %557, %558 : vector<8x128xf32>
    %560 = math.tanh %559 : vector<8x128xf32>
    %561 = arith.mulf %556, %560 : vector<8x128xf32>
    %562 = arith.truncf %561 : vector<8x128xf32> to vector<8x128xbf16>
    %c6_244 = arith.constant 6 : index
    %c0_245 = arith.constant 0 : index
    %c0_246 = arith.constant 0 : index
    %563 = vector.load %arg4[%c6_244, %c0_245, %c0_246] : memref<8x8x128xbf16, #tpu.memory_space<vmem>>, vector<1x8x128xbf16>
    %564 = vector.shape_cast %563 : vector<1x8x128xbf16> to vector<8x128xbf16>
    %565 = vector.shape_cast %562 : vector<8x128xbf16> to vector<1x8x128xbf16>
    tpu.vector_store %arg4[%c6_244, %c0_245, %c0_246], %565 {strides = array<i32>} : memref<8x8x128xbf16, #tpu.memory_space<vmem>>, vector<1x8x128xbf16>,
    %c1_247 = arith.constant 1 : index
    %c0_248 = arith.constant 0 : index
    %c0_249 = arith.constant 0 : index
    %566 = vector.load %arg2[%c1_247, %c0_248, %c0_249] : memref<8x8x512xbf16, #tpu.memory_space<vmem>>, vector<1x8x512xbf16>
    %567 = vector.shape_cast %566 : vector<1x8x512xbf16> to vector<8x512xbf16>
    %568 = arith.extf %567 : vector<8x512xbf16> to vector<8x512xf32>
    %569 = arith.truncf %518 : vector<8x128xf32> to vector<8x128xbf16>
    %c1_250 = arith.constant 1 : index
    %c0_251 = arith.constant 0 : index
    %c0_252 = arith.constant 0 : index
    %570 = vector.load %arg3[%c1_250, %c0_251, %c0_252] : memref<2x128x512xbf16, #tpu.memory_space<vmem>>, vector<1x128x512xbf16>
    %571 = vector.shape_cast %570 : vector<1x128x512xbf16> to vector<128x512xbf16>
    %cst_253 = arith.constant dense<0.000000e+00> : vector<8x512xf32>
    %572 = tpu.matmul %569, %571, %cst_253 {dimension_numbers = #tpu.dot_dimension_numbers<[1], [0], [0], [1], [0, 0, 1, 1], [], []>} : vector<8x128xbf16>, vector<128x512xbf16>, vector<8x512xf32> -> vector<8x512xf32>
    %573 = arith.addf %568, %572 : vector<8x512xf32>
    %574 = vector.extract_strided_slice %573 {offsets = [0, 0], sizes = [8, 128], strides = [1, 1]} : vector<8x512xf32> to vector<8x128xf32>
    %cst_254 = arith.constant 5.000000e-01 : f32
    %575 = vector.broadcast %cst_254 : f32 to vector<8x128xf32>
    %576 = arith.mulf %575, %574 : vector<8x128xf32>
    %577 = math.tanh %576 : vector<8x128xf32>
    %cst_255 = arith.constant 5.000000e-01 : f32
    %578 = vector.broadcast %cst_255 : f32 to vector<8x128xf32>
    %579 = arith.mulf %578, %577 : vector<8x128xf32>
    %cst_256 = arith.constant 5.000000e-01 : f32
    %580 = vector.broadcast %cst_256 : f32 to vector<8x128xf32>
    %581 = arith.addf %579, %580 : vector<8x128xf32>
    %582 = vector.extract_strided_slice %573 {offsets = [0, 128], sizes = [8, 128], strides = [1, 1]} : vector<8x512xf32> to vector<8x128xf32>
    %cst_257 = arith.constant 5.000000e-01 : f32
    %583 = vector.broadcast %cst_257 : f32 to vector<8x128xf32>
    %584 = arith.mulf %583, %582 : vector<8x128xf32>
    %585 = math.tanh %584 : vector<8x128xf32>
    %cst_258 = arith.constant 5.000000e-01 : f32
    %586 = vector.broadcast %cst_258 : f32 to vector<8x128xf32>
    %587 = arith.mulf %586, %585 : vector<8x128xf32>
    %cst_259 = arith.constant 5.000000e-01 : f32
    %588 = vector.broadcast %cst_259 : f32 to vector<8x128xf32>
    %589 = arith.addf %587, %588 : vector<8x128xf32>
    %590 = vector.extract_strided_slice %573 {offsets = [0, 256], sizes = [8, 128], strides = [1, 1]} : vector<8x512xf32> to vector<8x128xf32>
    %591 = math.tanh %590 : vector<8x128xf32>
    %592 = vector.extract_strided_slice %573 {offsets = [0, 384], sizes = [8, 128], strides = [1, 1]} : vector<8x512xf32> to vector<8x128xf32>
    %cst_260 = arith.constant 5.000000e-01 : f32
    %593 = vector.broadcast %cst_260 : f32 to vector<8x128xf32>
    %594 = arith.mulf %593, %592 : vector<8x128xf32>
    %595 = math.tanh %594 : vector<8x128xf32>
    %cst_261 = arith.constant 5.000000e-01 : f32
    %596 = vector.broadcast %cst_261 : f32 to vector<8x128xf32>
    %597 = arith.mulf %596, %595 : vector<8x128xf32>
    %cst_262 = arith.constant 5.000000e-01 : f32
    %598 = vector.broadcast %cst_262 : f32 to vector<8x128xf32>
    %599 = arith.addf %597, %598 : vector<8x128xf32>
    %600 = arith.mulf %589, %516 : vector<8x128xf32>
    %601 = arith.mulf %581, %591 : vector<8x128xf32>
    %602 = arith.addf %600, %601 : vector<8x128xf32>
    %603 = math.tanh %602 : vector<8x128xf32>
    %604 = arith.mulf %599, %603 : vector<8x128xf32>
    %605 = arith.truncf %604 : vector<8x128xf32> to vector<8x128xbf16>
    %c1_263 = arith.constant 1 : index
    %c0_264 = arith.constant 0 : index
    %c0_265 = arith.constant 0 : index
    %606 = vector.load %arg5[%c1_263, %c0_264, %c0_265] : memref<8x8x128xbf16, #tpu.memory_space<vmem>>, vector<1x8x128xbf16>
    %607 = vector.shape_cast %606 : vector<1x8x128xbf16> to vector<8x128xbf16>
    %608 = vector.shape_cast %605 : vector<8x128xbf16> to vector<1x8x128xbf16>
    tpu.vector_store %arg5[%c1_263, %c0_264, %c0_265], %608 {strides = array<i32>} : memref<8x8x128xbf16, #tpu.memory_space<vmem>>, vector<1x8x128xbf16>,
    %c7_266 = arith.constant 7 : index
    %c0_267 = arith.constant 0 : index
    %c0_268 = arith.constant 0 : index
    %609 = vector.load %arg1[%c7_266, %c0_267, %c0_268] : memref<8x8x512xbf16, #tpu.memory_space<vmem>>, vector<1x8x512xbf16>
    %610 = vector.shape_cast %609 : vector<1x8x512xbf16> to vector<8x512xbf16>
    %611 = arith.extf %610 : vector<8x512xbf16> to vector<8x512xf32>
    %612 = arith.truncf %561 : vector<8x128xf32> to vector<8x128xbf16>
    %c0_269 = arith.constant 0 : index
    %c0_270 = arith.constant 0 : index
    %c0_271 = arith.constant 0 : index
    %613 = vector.load %arg3[%c0_269, %c0_270, %c0_271] : memref<2x128x512xbf16, #tpu.memory_space<vmem>>, vector<1x128x512xbf16>
    %614 = vector.shape_cast %613 : vector<1x128x512xbf16> to vector<128x512xbf16>
    %cst_272 = arith.constant dense<0.000000e+00> : vector<8x512xf32>
    %615 = tpu.matmul %612, %614, %cst_272 {dimension_numbers = #tpu.dot_dimension_numbers<[1], [0], [0], [1], [0, 0, 1, 1], [], []>} : vector<8x128xbf16>, vector<128x512xbf16>, vector<8x512xf32> -> vector<8x512xf32>
    %616 = arith.addf %611, %615 : vector<8x512xf32>
    %617 = vector.extract_strided_slice %616 {offsets = [0, 0], sizes = [8, 128], strides = [1, 1]} : vector<8x512xf32> to vector<8x128xf32>
    %cst_273 = arith.constant 5.000000e-01 : f32
    %618 = vector.broadcast %cst_273 : f32 to vector<8x128xf32>
    %619 = arith.mulf %618, %617 : vector<8x128xf32>
    %620 = math.tanh %619 : vector<8x128xf32>
    %cst_274 = arith.constant 5.000000e-01 : f32
    %621 = vector.broadcast %cst_274 : f32 to vector<8x128xf32>
    %622 = arith.mulf %621, %620 : vector<8x128xf32>
    %cst_275 = arith.constant 5.000000e-01 : f32
    %623 = vector.broadcast %cst_275 : f32 to vector<8x128xf32>
    %624 = arith.addf %622, %623 : vector<8x128xf32>
    %625 = vector.extract_strided_slice %616 {offsets = [0, 128], sizes = [8, 128], strides = [1, 1]} : vector<8x512xf32> to vector<8x128xf32>
    %cst_276 = arith.constant 5.000000e-01 : f32
    %626 = vector.broadcast %cst_276 : f32 to vector<8x128xf32>
    %627 = arith.mulf %626, %625 : vector<8x128xf32>
    %628 = math.tanh %627 : vector<8x128xf32>
    %cst_277 = arith.constant 5.000000e-01 : f32
    %629 = vector.broadcast %cst_277 : f32 to vector<8x128xf32>
    %630 = arith.mulf %629, %628 : vector<8x128xf32>
    %cst_278 = arith.constant 5.000000e-01 : f32
    %631 = vector.broadcast %cst_278 : f32 to vector<8x128xf32>
    %632 = arith.addf %630, %631 : vector<8x128xf32>
    %633 = vector.extract_strided_slice %616 {offsets = [0, 256], sizes = [8, 128], strides = [1, 1]} : vector<8x512xf32> to vector<8x128xf32>
    %634 = math.tanh %633 : vector<8x128xf32>
    %635 = vector.extract_strided_slice %616 {offsets = [0, 384], sizes = [8, 128], strides = [1, 1]} : vector<8x512xf32> to vector<8x128xf32>
    %cst_279 = arith.constant 5.000000e-01 : f32
    %636 = vector.broadcast %cst_279 : f32 to vector<8x128xf32>
    %637 = arith.mulf %636, %635 : vector<8x128xf32>
    %638 = math.tanh %637 : vector<8x128xf32>
    %cst_280 = arith.constant 5.000000e-01 : f32
    %639 = vector.broadcast %cst_280 : f32 to vector<8x128xf32>
    %640 = arith.mulf %639, %638 : vector<8x128xf32>
    %cst_281 = arith.constant 5.000000e-01 : f32
    %641 = vector.broadcast %cst_281 : f32 to vector<8x128xf32>
    %642 = arith.addf %640, %641 : vector<8x128xf32>
    %643 = arith.mulf %632, %559 : vector<8x128xf32>
    %644 = arith.mulf %624, %634 : vector<8x128xf32>
    %645 = arith.addf %643, %644 : vector<8x128xf32>
    %646 = math.tanh %645 : vector<8x128xf32>
    %647 = arith.mulf %642, %646 : vector<8x128xf32>
    %648 = arith.truncf %647 : vector<8x128xf32> to vector<8x128xbf16>
    %c7_282 = arith.constant 7 : index
    %c0_283 = arith.constant 0 : index
    %c0_284 = arith.constant 0 : index
    %649 = vector.load %arg4[%c7_282, %c0_283, %c0_284] : memref<8x8x128xbf16, #tpu.memory_space<vmem>>, vector<1x8x128xbf16>
    %650 = vector.shape_cast %649 : vector<1x8x128xbf16> to vector<8x128xbf16>
    %651 = vector.shape_cast %648 : vector<8x128xbf16> to vector<1x8x128xbf16>
    tpu.vector_store %arg4[%c7_282, %c0_283, %c0_284], %651 {strides = array<i32>} : memref<8x8x128xbf16, #tpu.memory_space<vmem>>, vector<1x8x128xbf16>,
    %c0_285 = arith.constant 0 : index
    %c0_286 = arith.constant 0 : index
    %c0_287 = arith.constant 0 : index
    %652 = vector.load %arg2[%c0_285, %c0_286, %c0_287] : memref<8x8x512xbf16, #tpu.memory_space<vmem>>, vector<1x8x512xbf16>
    %653 = vector.shape_cast %652 : vector<1x8x512xbf16> to vector<8x512xbf16>
    %654 = arith.extf %653 : vector<8x512xbf16> to vector<8x512xf32>
    %655 = arith.truncf %604 : vector<8x128xf32> to vector<8x128xbf16>
    %c1_288 = arith.constant 1 : index
    %c0_289 = arith.constant 0 : index
    %c0_290 = arith.constant 0 : index
    %656 = vector.load %arg3[%c1_288, %c0_289, %c0_290] : memref<2x128x512xbf16, #tpu.memory_space<vmem>>, vector<1x128x512xbf16>
    %657 = vector.shape_cast %656 : vector<1x128x512xbf16> to vector<128x512xbf16>
    %cst_291 = arith.constant dense<0.000000e+00> : vector<8x512xf32>
    %658 = tpu.matmul %655, %657, %cst_291 {dimension_numbers = #tpu.dot_dimension_numbers<[1], [0], [0], [1], [0, 0, 1, 1], [], []>} : vector<8x128xbf16>, vector<128x512xbf16>, vector<8x512xf32> -> vector<8x512xf32>
    %659 = arith.addf %654, %658 : vector<8x512xf32>
    %660 = vector.extract_strided_slice %659 {offsets = [0, 0], sizes = [8, 128], strides = [1, 1]} : vector<8x512xf32> to vector<8x128xf32>
    %cst_292 = arith.constant 5.000000e-01 : f32
    %661 = vector.broadcast %cst_292 : f32 to vector<8x128xf32>
    %662 = arith.mulf %661, %660 : vector<8x128xf32>
    %663 = math.tanh %662 : vector<8x128xf32>
    %cst_293 = arith.constant 5.000000e-01 : f32
    %664 = vector.broadcast %cst_293 : f32 to vector<8x128xf32>
    %665 = arith.mulf %664, %663 : vector<8x128xf32>
    %cst_294 = arith.constant 5.000000e-01 : f32
    %666 = vector.broadcast %cst_294 : f32 to vector<8x128xf32>
    %667 = arith.addf %665, %666 : vector<8x128xf32>
    %668 = vector.extract_strided_slice %659 {offsets = [0, 128], sizes = [8, 128], strides = [1, 1]} : vector<8x512xf32> to vector<8x128xf32>
    %cst_295 = arith.constant 5.000000e-01 : f32
    %669 = vector.broadcast %cst_295 : f32 to vector<8x128xf32>
    %670 = arith.mulf %669, %668 : vector<8x128xf32>
    %671 = math.tanh %670 : vector<8x128xf32>
    %cst_296 = arith.constant 5.000000e-01 : f32
    %672 = vector.broadcast %cst_296 : f32 to vector<8x128xf32>
    %673 = arith.mulf %672, %671 : vector<8x128xf32>
    %cst_297 = arith.constant 5.000000e-01 : f32
    %674 = vector.broadcast %cst_297 : f32 to vector<8x128xf32>
    %675 = arith.addf %673, %674 : vector<8x128xf32>
    %676 = vector.extract_strided_slice %659 {offsets = [0, 256], sizes = [8, 128], strides = [1, 1]} : vector<8x512xf32> to vector<8x128xf32>
    %677 = math.tanh %676 : vector<8x128xf32>
    %678 = vector.extract_strided_slice %659 {offsets = [0, 384], sizes = [8, 128], strides = [1, 1]} : vector<8x512xf32> to vector<8x128xf32>
    %cst_298 = arith.constant 5.000000e-01 : f32
    %679 = vector.broadcast %cst_298 : f32 to vector<8x128xf32>
    %680 = arith.mulf %679, %678 : vector<8x128xf32>
    %681 = math.tanh %680 : vector<8x128xf32>
    %cst_299 = arith.constant 5.000000e-01 : f32
    %682 = vector.broadcast %cst_299 : f32 to vector<8x128xf32>
    %683 = arith.mulf %682, %681 : vector<8x128xf32>
    %cst_300 = arith.constant 5.000000e-01 : f32
    %684 = vector.broadcast %cst_300 : f32 to vector<8x128xf32>
    %685 = arith.addf %683, %684 : vector<8x128xf32>
    %686 = arith.mulf %675, %602 : vector<8x128xf32>
    %687 = arith.mulf %667, %677 : vector<8x128xf32>
    %688 = arith.addf %686, %687 : vector<8x128xf32>
    %689 = math.tanh %688 : vector<8x128xf32>
    %690 = arith.mulf %685, %689 : vector<8x128xf32>
    %691 = arith.truncf %690 : vector<8x128xf32> to vector<8x128xbf16>
    %c0_301 = arith.constant 0 : index
    %c0_302 = arith.constant 0 : index
    %c0_303 = arith.constant 0 : index
    %692 = vector.load %arg5[%c0_301, %c0_302, %c0_303] : memref<8x8x128xbf16, #tpu.memory_space<vmem>>, vector<1x8x128xbf16>
    %693 = vector.shape_cast %692 : vector<1x8x128xbf16> to vector<8x128xbf16>
    %694 = vector.shape_cast %691 : vector<8x128xbf16> to vector<1x8x128xbf16>
    tpu.vector_store %arg5[%c0_301, %c0_302, %c0_303], %694 {strides = array<i32>} : memref<8x8x128xbf16, #tpu.memory_space<vmem>>, vector<1x8x128xbf16>,
    %c0_304 = arith.constant 0 : index
    %c0_305 = arith.constant 0 : index
    %695 = vector.load %arg6[%c0_304, %c0_305] : memref<8x128xf32, #tpu.memory_space<vmem>>, vector<8x128xf32>
    tpu.vector_store %arg6[%c0_304, %c0_305], %647 {strides = array<i32>} : memref<8x128xf32, #tpu.memory_space<vmem>>, vector<8x128xf32>,
    %c0_306 = arith.constant 0 : index
    %c0_307 = arith.constant 0 : index
    %696 = vector.load %arg7[%c0_306, %c0_307] : memref<8x128xf32, #tpu.memory_space<vmem>>, vector<8x128xf32>
    tpu.vector_store %arg7[%c0_306, %c0_307], %645 {strides = array<i32>} : memref<8x128xf32, #tpu.memory_space<vmem>>, vector<8x128xf32>,
    %c0_308 = arith.constant 0 : index
    %c0_309 = arith.constant 0 : index
    %697 = vector.load %arg8[%c0_308, %c0_309] : memref<8x128xf32, #tpu.memory_space<vmem>>, vector<8x128xf32>
    tpu.vector_store %arg8[%c0_308, %c0_309], %690 {strides = array<i32>} : memref<8x128xf32, #tpu.memory_space<vmem>>, vector<8x128xf32>,
    %c0_310 = arith.constant 0 : index
    %c0_311 = arith.constant 0 : index
    %698 = vector.load %arg9[%c0_310, %c0_311] : memref<8x128xf32, #tpu.memory_space<vmem>>, vector<8x128xf32>
    tpu.vector_store %arg9[%c0_310, %c0_311], %688 {strides = array<i32>} : memref<8x128xf32, #tpu.memory_space<vmem>>, vector<8x128xf32>,
    return
  }
  func.func @transform_0(%arg0: i32) -> (i32, i32, i32) {
    %c0_i32 = arith.constant 0 : i32
    %c0_i32_0 = arith.constant 0 : i32
    %c0_i32_1 = arith.constant 0 : i32
    return %arg0, %c0_i32, %c0_i32_0 : i32, i32, i32
  }
  func.func @transform_1(%arg0: i32) -> (i32, i32, i32) {
    %c0_i32 = arith.constant 0 : i32
    %0 = arith.subi %c0_i32, %arg0 : i32
    %c0_i32_0 = arith.constant 0 : i32
    %c0_i32_1 = arith.constant 0 : i32
    %c0_i32_2 = arith.constant 0 : i32
    return %0, %c0_i32_0, %c0_i32_1 : i32, i32, i32
  }
  func.func @transform_2(%arg0: i32) -> (i32, i32, i32) {
    %c0_i32 = arith.constant 0 : i32
    %c0_i32_0 = arith.constant 0 : i32
    %c0_i32_1 = arith.constant 0 : i32
    %c0_i32_2 = arith.constant 0 : i32
    return %c0_i32, %c0_i32_0, %c0_i32_1 : i32, i32, i32
  }
  func.func @transform_3(%arg0: i32) -> (i32, i32, i32) {
    %c0_i32 = arith.constant 0 : i32
    %c0_i32_0 = arith.constant 0 : i32
    %c0_i32_1 = arith.constant 0 : i32
    return %arg0, %c0_i32, %c0_i32_0 : i32, i32, i32
  }
  func.func @transform_4(%arg0: i32) -> (i32, i32, i32) {
    %c0_i32 = arith.constant 0 : i32
    %0 = arith.subi %c0_i32, %arg0 : i32
    %c0_i32_0 = arith.constant 0 : i32
    %c0_i32_1 = arith.constant 0 : i32
    %c0_i32_2 = arith.constant 0 : i32
    return %0, %c0_i32_0, %c0_i32_1 : i32, i32, i32
  }
}

module attributes {stable_mosaic.version = 11 : i64} {
  func.func @_bilstm_chunk_kernel(%arg0: i32, %arg1: memref<8x8x512xbf16, #tpu.memory_space<vmem>>, %arg2: memref<8x8x512xbf16, #tpu.memory_space<vmem>>, %arg3: memref<2x128x512xbf16, #tpu.memory_space<vmem>>, %arg4: memref<8x8x128xbf16, #tpu.memory_space<vmem>>, %arg5: memref<8x8x128xbf16, #tpu.memory_space<vmem>>, %arg6: memref<8x128xf32, #tpu.memory_space<vmem>>, %arg7: memref<8x128xf32, #tpu.memory_space<vmem>>, %arg8: memref<8x128xf32, #tpu.memory_space<vmem>>, %arg9: memref<8x128xf32, #tpu.memory_space<vmem>>) attributes {dimension_semantics = [#tpu.dimension_semantics<arbitrary>], iteration_bounds = array<i64: 1>, scalar_prefetch = 0 : i64, scratch_operands = 4 : i64, tpu.core_type = #tpu.core_type<tc>, window_params = [{transform_indices = @transform_0, window_bounds = array<i64: 8, 8, 512>}, {transform_indices = @transform_1, window_bounds = array<i64: 8, 8, 512>}, {pipeline_mode = #tpu.pipeline_mode<synchronous>, transform_indices = @transform_2, window_bounds = array<i64: 2, 128, 512>}, {transform_indices = @transform_3, window_bounds = array<i64: 8, 8, 128>}, {transform_indices = @transform_4, window_bounds = array<i64: 8, 8, 128>}]} {
    %c0_i32 = arith.constant 0 : i32
    %0 = arith.cmpi eq, %arg0, %c0_i32 : i32
    %1 = arith.extui %0 : i1 to i32
    %c0_i32_0 = arith.constant 0 : i32
    %2 = arith.cmpi ne, %1, %c0_i32_0 : i32
    scf.if %2 {
      %cst_312 = arith.constant 0.000000e+00 : f32
      %699 = vector.broadcast %cst_312 : f32 to vector<8x128xf32>
      %c0_313 = arith.constant 0 : index
      %c0_314 = arith.constant 0 : index
      %700 = vector.load %arg6[%c0_313, %c0_314] : memref<8x128xf32, #tpu.memory_space<vmem>>, vector<8x128xf32>
      tpu.vector_store %arg6[%c0_313, %c0_314], %699 {strides = array<i32>} : memref<8x128xf32, #tpu.memory_space<vmem>>, vector<8x128xf32>,
      %cst_315 = arith.constant 0.000000e+00 : f32
      %701 = vector.broadcast %cst_315 : f32 to vector<8x128xf32>
      %c0_316 = arith.constant 0 : index
      %c0_317 = arith.constant 0 : index
      %702 = vector.load %arg7[%c0_316, %c0_317] : memref<8x128xf32, #tpu.memory_space<vmem>>, vector<8x128xf32>
      tpu.vector_store %arg7[%c0_316, %c0_317], %701 {strides = array<i32>} : memref<8x128xf32, #tpu.memory_space<vmem>>, vector<8x128xf32>,
      %cst_318 = arith.constant 0.000000e+00 : f32
      %703 = vector.broadcast %cst_318 : f32 to vector<8x128xf32>
      %c0_319 = arith.constant 0 : index
      %c0_320 = arith.constant 0 : index
      %704 = vector.load %arg8[%c0_319, %c0_320] : memref<8x128xf32, #tpu.memory_space<vmem>>, vector<8x128xf32>
      tpu.vector_store %arg8[%c0_319, %c0_320], %703 {strides = array<i32>} : memref<8x128xf32, #tpu.memory_space<vmem>>, vector<8x128xf32>,
      %cst_321 = arith.constant 0.000000e+00 : f32
      %705 = vector.broadcast %cst_321 : f32 to vector<8x128xf32>
      %c0_322 = arith.constant 0 : index
      %c0_323 = arith.constant 0 : index
      %706 = vector.load %arg9[%c0_322, %c0_323] : memref<8x128xf32, #tpu.memory_space<vmem>>, vector<8x128xf32>
      tpu.vector_store %arg9[%c0_322, %c0_323], %705 {strides = array<i32>} : memref<8x128xf32, #tpu.memory_space<vmem>>, vector<8x128xf32>,
    } else {
    }
    %c0 = arith.constant 0 : index
    %c0_1 = arith.constant 0 : index
    %3 = vector.load %arg6[%c0, %c0_1] : memref<8x128xf32, #tpu.memory_space<vmem>>, vector<8x128xf32>
    %c0_2 = arith.constant 0 : index
    %c0_3 = arith.constant 0 : index
    %4 = vector.load %arg7[%c0_2, %c0_3] : memref<8x128xf32, #tpu.memory_space<vmem>>, vector<8x128xf32>
    %c0_4 = arith.constant 0 : index
    %c0_5 = arith.constant 0 : index
    %5 = vector.load %arg8[%c0_4, %c0_5] : memref<8x128xf32, #tpu.memory_space<vmem>>, vector<8x128xf32>
    %c0_6 = arith.constant 0 : index
    %c0_7 = arith.constant 0 : index
    %6 = vector.load %arg9[%c0_6, %c0_7] : memref<8x128xf32, #tpu.memory_space<vmem>>, vector<8x128xf32>
    %c0_8 = arith.constant 0 : index
    %c0_9 = arith.constant 0 : index
    %c0_10 = arith.constant 0 : index
    %7 = vector.load %arg1[%c0_8, %c0_9, %c0_10] : memref<8x8x512xbf16, #tpu.memory_space<vmem>>, vector<1x8x512xbf16>
    %8 = vector.shape_cast %7 : vector<1x8x512xbf16> to vector<8x512xbf16>
    %9 = arith.extf %8 : vector<8x512xbf16> to vector<8x512xf32>
    %10 = arith.truncf %3 : vector<8x128xf32> to vector<8x128xbf16>
    %c0_11 = arith.constant 0 : index
    %c0_12 = arith.constant 0 : index
    %c0_13 = arith.constant 0 : index
    %11 = vector.load %arg3[%c0_11, %c0_12, %c0_13] : memref<2x128x512xbf16, #tpu.memory_space<vmem>>, vector<1x128x512xbf16>
    %12 = vector.shape_cast %11 : vector<1x128x512xbf16> to vector<128x512xbf16>
    %cst = arith.constant dense<0.000000e+00> : vector<8x512xf32>
    %13 = tpu.matmul %10, %12, %cst {dimension_numbers = #tpu.dot_dimension_numbers<[1], [0], [0], [1], [0, 0, 1, 1], [], []>} : vector<8x128xbf16>, vector<128x512xbf16>, vector<8x512xf32> -> vector<8x512xf32>
    %14 = arith.addf %9, %13 : vector<8x512xf32>
    %15 = vector.extract_strided_slice %14 {offsets = [0, 0], sizes = [8, 128], strides = [1, 1]} : vector<8x512xf32> to vector<8x128xf32>
    %cst_14 = arith.constant 5.000000e-01 : f32
    %16 = vector.broadcast %cst_14 : f32 to vector<8x128xf32>
    %17 = arith.mulf %16, %15 : vector<8x128xf32>
    %18 = math.tanh %17 : vector<8x128xf32>
    %cst_15 = arith.constant 5.000000e-01 : f32
    %19 = vector.broadcast %cst_15 : f32 to vector<8x128xf32>
    %20 = arith.mulf %19, %18 : vector<8x128xf32>
    %cst_16 = arith.constant 5.000000e-01 : f32
    %21 = vector.broadcast %cst_16 : f32 to vector<8x128xf32>
    %22 = arith.addf %20, %21 : vector<8x128xf32>
    %23 = vector.extract_strided_slice %14 {offsets = [0, 128], sizes = [8, 128], strides = [1, 1]} : vector<8x512xf32> to vector<8x128xf32>
    %cst_17 = arith.constant 5.000000e-01 : f32
    %24 = vector.broadcast %cst_17 : f32 to vector<8x128xf32>
    %25 = arith.mulf %24, %23 : vector<8x128xf32>
    %26 = math.tanh %25 : vector<8x128xf32>
    %cst_18 = arith.constant 5.000000e-01 : f32
    %27 = vector.broadcast %cst_18 : f32 to vector<8x128xf32>
    %28 = arith.mulf %27, %26 : vector<8x128xf32>
    %cst_19 = arith.constant 5.000000e-01 : f32
    %29 = vector.broadcast %cst_19 : f32 to vector<8x128xf32>
    %30 = arith.addf %28, %29 : vector<8x128xf32>
    %31 = vector.extract_strided_slice %14 {offsets = [0, 256], sizes = [8, 128], strides = [1, 1]} : vector<8x512xf32> to vector<8x128xf32>
    %32 = math.tanh %31 : vector<8x128xf32>
    %33 = vector.extract_strided_slice %14 {offsets = [0, 384], sizes = [8, 128], strides = [1, 1]} : vector<8x512xf32> to vector<8x128xf32>
    %cst_20 = arith.constant 5.000000e-01 : f32
    %34 = vector.broadcast %cst_20 : f32 to vector<8x128xf32>
    %35 = arith.mulf %34, %33 : vector<8x128xf32>
    %36 = math.tanh %35 : vector<8x128xf32>
    %cst_21 = arith.constant 5.000000e-01 : f32
    %37 = vector.broadcast %cst_21 : f32 to vector<8x128xf32>
    %38 = arith.mulf %37, %36 : vector<8x128xf32>
    %cst_22 = arith.constant 5.000000e-01 : f32
    %39 = vector.broadcast %cst_22 : f32 to vector<8x128xf32>
    %40 = arith.addf %38, %39 : vector<8x128xf32>
    %41 = arith.mulf %30, %4 : vector<8x128xf32>
    %42 = arith.mulf %22, %32 : vector<8x128xf32>
    %43 = arith.addf %41, %42 : vector<8x128xf32>
    %44 = math.tanh %43 : vector<8x128xf32>
    %45 = arith.mulf %40, %44 : vector<8x128xf32>
    %46 = arith.truncf %45 : vector<8x128xf32> to vector<8x128xbf16>
    %c0_23 = arith.constant 0 : index
    %c0_24 = arith.constant 0 : index
    %c0_25 = arith.constant 0 : index
    %47 = vector.load %arg4[%c0_23, %c0_24, %c0_25] : memref<8x8x128xbf16, #tpu.memory_space<vmem>>, vector<1x8x128xbf16>
    %48 = vector.shape_cast %47 : vector<1x8x128xbf16> to vector<8x128xbf16>
    %49 = vector.shape_cast %46 : vector<8x128xbf16> to vector<1x8x128xbf16>
    tpu.vector_store %arg4[%c0_23, %c0_24, %c0_25], %49 {strides = array<i32>} : memref<8x8x128xbf16, #tpu.memory_space<vmem>>, vector<1x8x128xbf16>,
    %c7 = arith.constant 7 : index
    %c0_26 = arith.constant 0 : index
    %c0_27 = arith.constant 0 : index
    %50 = vector.load %arg2[%c7, %c0_26, %c0_27] : memref<8x8x512xbf16, #tpu.memory_space<vmem>>, vector<1x8x512xbf16>
    %51 = vector.shape_cast %50 : vector<1x8x512xbf16> to vector<8x512xbf16>
    %52 = arith.extf %51 : vector<8x512xbf16> to vector<8x512xf32>
    %53 = arith.truncf %5 : vector<8x128xf32> to vector<8x128xbf16>
    %c1 = arith.constant 1 : index
    %c0_28 = arith.constant 0 : index
    %c0_29 = arith.constant 0 : index
    %54 = vector.load %arg3[%c1, %c0_28, %c0_29] : memref<2x128x512xbf16, #tpu.memory_space<vmem>>, vector<1x128x512xbf16>
    %55 = vector.shape_cast %54 : vector<1x128x512xbf16> to vector<128x512xbf16>
    %cst_30 = arith.constant dense<0.000000e+00> : vector<8x512xf32>
    %56 = tpu.matmul %53, %55, %cst_30 {dimension_numbers = #tpu.dot_dimension_numbers<[1], [0], [0], [1], [0, 0, 1, 1], [], []>} : vector<8x128xbf16>, vector<128x512xbf16>, vector<8x512xf32> -> vector<8x512xf32>
    %57 = arith.addf %52, %56 : vector<8x512xf32>
    %58 = vector.extract_strided_slice %57 {offsets = [0, 0], sizes = [8, 128], strides = [1, 1]} : vector<8x512xf32> to vector<8x128xf32>
    %cst_31 = arith.constant 5.000000e-01 : f32
    %59 = vector.broadcast %cst_31 : f32 to vector<8x128xf32>
    %60 = arith.mulf %59, %58 : vector<8x128xf32>
    %61 = math.tanh %60 : vector<8x128xf32>
    %cst_32 = arith.constant 5.000000e-01 : f32
    %62 = vector.broadcast %cst_32 : f32 to vector<8x128xf32>
    %63 = arith.mulf %62, %61 : vector<8x128xf32>
    %cst_33 = arith.constant 5.000000e-01 : f32
    %64 = vector.broadcast %cst_33 : f32 to vector<8x128xf32>
    %65 = arith.addf %63, %64 : vector<8x128xf32>
    %66 = vector.extract_strided_slice %57 {offsets = [0, 128], sizes = [8, 128], strides = [1, 1]} : vector<8x512xf32> to vector<8x128xf32>
    %cst_34 = arith.constant 5.000000e-01 : f32
    %67 = vector.broadcast %cst_34 : f32 to vector<8x128xf32>
    %68 = arith.mulf %67, %66 : vector<8x128xf32>
    %69 = math.tanh %68 : vector<8x128xf32>
    %cst_35 = arith.constant 5.000000e-01 : f32
    %70 = vector.broadcast %cst_35 : f32 to vector<8x128xf32>
    %71 = arith.mulf %70, %69 : vector<8x128xf32>
    %cst_36 = arith.constant 5.000000e-01 : f32
    %72 = vector.broadcast %cst_36 : f32 to vector<8x128xf32>
    %73 = arith.addf %71, %72 : vector<8x128xf32>
    %74 = vector.extract_strided_slice %57 {offsets = [0, 256], sizes = [8, 128], strides = [1, 1]} : vector<8x512xf32> to vector<8x128xf32>
    %75 = math.tanh %74 : vector<8x128xf32>
    %76 = vector.extract_strided_slice %57 {offsets = [0, 384], sizes = [8, 128], strides = [1, 1]} : vector<8x512xf32> to vector<8x128xf32>
    %cst_37 = arith.constant 5.000000e-01 : f32
    %77 = vector.broadcast %cst_37 : f32 to vector<8x128xf32>
    %78 = arith.mulf %77, %76 : vector<8x128xf32>
    %79 = math.tanh %78 : vector<8x128xf32>
    %cst_38 = arith.constant 5.000000e-01 : f32
    %80 = vector.broadcast %cst_38 : f32 to vector<8x128xf32>
    %81 = arith.mulf %80, %79 : vector<8x128xf32>
    %cst_39 = arith.constant 5.000000e-01 : f32
    %82 = vector.broadcast %cst_39 : f32 to vector<8x128xf32>
    %83 = arith.addf %81, %82 : vector<8x128xf32>
    %84 = arith.mulf %73, %6 : vector<8x128xf32>
    %85 = arith.mulf %65, %75 : vector<8x128xf32>
    %86 = arith.addf %84, %85 : vector<8x128xf32>
    %87 = math.tanh %86 : vector<8x128xf32>
    %88 = arith.mulf %83, %87 : vector<8x128xf32>
    %89 = arith.truncf %88 : vector<8x128xf32> to vector<8x128xbf16>
    %c7_40 = arith.constant 7 : index
    %c0_41 = arith.constant 0 : index
    %c0_42 = arith.constant 0 : index
    %90 = vector.load %arg5[%c7_40, %c0_41, %c0_42] : memref<8x8x128xbf16, #tpu.memory_space<vmem>>, vector<1x8x128xbf16>
    %91 = vector.shape_cast %90 : vector<1x8x128xbf16> to vector<8x128xbf16>
    %92 = vector.shape_cast %89 : vector<8x128xbf16> to vector<1x8x128xbf16>
    tpu.vector_store %arg5[%c7_40, %c0_41, %c0_42], %92 {strides = array<i32>} : memref<8x8x128xbf16, #tpu.memory_space<vmem>>, vector<1x8x128xbf16>,
    %c1_43 = arith.constant 1 : index
    %c0_44 = arith.constant 0 : index
    %c0_45 = arith.constant 0 : index
    %93 = vector.load %arg1[%c1_43, %c0_44, %c0_45] : memref<8x8x512xbf16, #tpu.memory_space<vmem>>, vector<1x8x512xbf16>
    %94 = vector.shape_cast %93 : vector<1x8x512xbf16> to vector<8x512xbf16>
    %95 = arith.extf %94 : vector<8x512xbf16> to vector<8x512xf32>
    %96 = arith.truncf %45 : vector<8x128xf32> to vector<8x128xbf16>
    %c0_46 = arith.constant 0 : index
    %c0_47 = arith.constant 0 : index
    %c0_48 = arith.constant 0 : index
    %97 = vector.load %arg3[%c0_46, %c0_47, %c0_48] : memref<2x128x512xbf16, #tpu.memory_space<vmem>>, vector<1x128x512xbf16>
    %98 = vector.shape_cast %97 : vector<1x128x512xbf16> to vector<128x512xbf16>
    %cst_49 = arith.constant dense<0.000000e+00> : vector<8x512xf32>
    %99 = tpu.matmul %96, %98, %cst_49 {dimension_numbers = #tpu.dot_dimension_numbers<[1], [0], [0], [1], [0, 0, 1, 1], [], []>} : vector<8x128xbf16>, vector<128x512xbf16>, vector<8x512xf32> -> vector<8x512xf32>
    %100 = arith.addf %95, %99 : vector<8x512xf32>
    %101 = vector.extract_strided_slice %100 {offsets = [0, 0], sizes = [8, 128], strides = [1, 1]} : vector<8x512xf32> to vector<8x128xf32>
    %cst_50 = arith.constant 5.000000e-01 : f32
    %102 = vector.broadcast %cst_50 : f32 to vector<8x128xf32>
    %103 = arith.mulf %102, %101 : vector<8x128xf32>
    %104 = math.tanh %103 : vector<8x128xf32>
    %cst_51 = arith.constant 5.000000e-01 : f32
    %105 = vector.broadcast %cst_51 : f32 to vector<8x128xf32>
    %106 = arith.mulf %105, %104 : vector<8x128xf32>
    %cst_52 = arith.constant 5.000000e-01 : f32
    %107 = vector.broadcast %cst_52 : f32 to vector<8x128xf32>
    %108 = arith.addf %106, %107 : vector<8x128xf32>
    %109 = vector.extract_strided_slice %100 {offsets = [0, 128], sizes = [8, 128], strides = [1, 1]} : vector<8x512xf32> to vector<8x128xf32>
    %cst_53 = arith.constant 5.000000e-01 : f32
    %110 = vector.broadcast %cst_53 : f32 to vector<8x128xf32>
    %111 = arith.mulf %110, %109 : vector<8x128xf32>
    %112 = math.tanh %111 : vector<8x128xf32>
    %cst_54 = arith.constant 5.000000e-01 : f32
    %113 = vector.broadcast %cst_54 : f32 to vector<8x128xf32>
    %114 = arith.mulf %113, %112 : vector<8x128xf32>
    %cst_55 = arith.constant 5.000000e-01 : f32
    %115 = vector.broadcast %cst_55 : f32 to vector<8x128xf32>
    %116 = arith.addf %114, %115 : vector<8x128xf32>
    %117 = vector.extract_strided_slice %100 {offsets = [0, 256], sizes = [8, 128], strides = [1, 1]} : vector<8x512xf32> to vector<8x128xf32>
    %118 = math.tanh %117 : vector<8x128xf32>
    %119 = vector.extract_strided_slice %100 {offsets = [0, 384], sizes = [8, 128], strides = [1, 1]} : vector<8x512xf32> to vector<8x128xf32>
    %cst_56 = arith.constant 5.000000e-01 : f32
    %120 = vector.broadcast %cst_56 : f32 to vector<8x128xf32>
    %121 = arith.mulf %120, %119 : vector<8x128xf32>
    %122 = math.tanh %121 : vector<8x128xf32>
    %cst_57 = arith.constant 5.000000e-01 : f32
    %123 = vector.broadcast %cst_57 : f32 to vector<8x128xf32>
    %124 = arith.mulf %123, %122 : vector<8x128xf32>
    %cst_58 = arith.constant 5.000000e-01 : f32
    %125 = vector.broadcast %cst_58 : f32 to vector<8x128xf32>
    %126 = arith.addf %124, %125 : vector<8x128xf32>
    %127 = arith.mulf %116, %43 : vector<8x128xf32>
    %128 = arith.mulf %108, %118 : vector<8x128xf32>
    %129 = arith.addf %127, %128 : vector<8x128xf32>
    %130 = math.tanh %129 : vector<8x128xf32>
    %131 = arith.mulf %126, %130 : vector<8x128xf32>
    %132 = arith.truncf %131 : vector<8x128xf32> to vector<8x128xbf16>
    %c1_59 = arith.constant 1 : index
    %c0_60 = arith.constant 0 : index
    %c0_61 = arith.constant 0 : index
    %133 = vector.load %arg4[%c1_59, %c0_60, %c0_61] : memref<8x8x128xbf16, #tpu.memory_space<vmem>>, vector<1x8x128xbf16>
    %134 = vector.shape_cast %133 : vector<1x8x128xbf16> to vector<8x128xbf16>
    %135 = vector.shape_cast %132 : vector<8x128xbf16> to vector<1x8x128xbf16>
    tpu.vector_store %arg4[%c1_59, %c0_60, %c0_61], %135 {strides = array<i32>} : memref<8x8x128xbf16, #tpu.memory_space<vmem>>, vector<1x8x128xbf16>,
    %c6 = arith.constant 6 : index
    %c0_62 = arith.constant 0 : index
    %c0_63 = arith.constant 0 : index
    %136 = vector.load %arg2[%c6, %c0_62, %c0_63] : memref<8x8x512xbf16, #tpu.memory_space<vmem>>, vector<1x8x512xbf16>
    %137 = vector.shape_cast %136 : vector<1x8x512xbf16> to vector<8x512xbf16>
    %138 = arith.extf %137 : vector<8x512xbf16> to vector<8x512xf32>
    %139 = arith.truncf %88 : vector<8x128xf32> to vector<8x128xbf16>
    %c1_64 = arith.constant 1 : index
    %c0_65 = arith.constant 0 : index
    %c0_66 = arith.constant 0 : index
    %140 = vector.load %arg3[%c1_64, %c0_65, %c0_66] : memref<2x128x512xbf16, #tpu.memory_space<vmem>>, vector<1x128x512xbf16>
    %141 = vector.shape_cast %140 : vector<1x128x512xbf16> to vector<128x512xbf16>
    %cst_67 = arith.constant dense<0.000000e+00> : vector<8x512xf32>
    %142 = tpu.matmul %139, %141, %cst_67 {dimension_numbers = #tpu.dot_dimension_numbers<[1], [0], [0], [1], [0, 0, 1, 1], [], []>} : vector<8x128xbf16>, vector<128x512xbf16>, vector<8x512xf32> -> vector<8x512xf32>
    %143 = arith.addf %138, %142 : vector<8x512xf32>
    %144 = vector.extract_strided_slice %143 {offsets = [0, 0], sizes = [8, 128], strides = [1, 1]} : vector<8x512xf32> to vector<8x128xf32>
    %cst_68 = arith.constant 5.000000e-01 : f32
    %145 = vector.broadcast %cst_68 : f32 to vector<8x128xf32>
    %146 = arith.mulf %145, %144 : vector<8x128xf32>
    %147 = math.tanh %146 : vector<8x128xf32>
    %cst_69 = arith.constant 5.000000e-01 : f32
    %148 = vector.broadcast %cst_69 : f32 to vector<8x128xf32>
    %149 = arith.mulf %148, %147 : vector<8x128xf32>
    %cst_70 = arith.constant 5.000000e-01 : f32
    %150 = vector.broadcast %cst_70 : f32 to vector<8x128xf32>
    %151 = arith.addf %149, %150 : vector<8x128xf32>
    %152 = vector.extract_strided_slice %143 {offsets = [0, 128], sizes = [8, 128], strides = [1, 1]} : vector<8x512xf32> to vector<8x128xf32>
    %cst_71 = arith.constant 5.000000e-01 : f32
    %153 = vector.broadcast %cst_71 : f32 to vector<8x128xf32>
    %154 = arith.mulf %153, %152 : vector<8x128xf32>
    %155 = math.tanh %154 : vector<8x128xf32>
    %cst_72 = arith.constant 5.000000e-01 : f32
    %156 = vector.broadcast %cst_72 : f32 to vector<8x128xf32>
    %157 = arith.mulf %156, %155 : vector<8x128xf32>
    %cst_73 = arith.constant 5.000000e-01 : f32
    %158 = vector.broadcast %cst_73 : f32 to vector<8x128xf32>
    %159 = arith.addf %157, %158 : vector<8x128xf32>
    %160 = vector.extract_strided_slice %143 {offsets = [0, 256], sizes = [8, 128], strides = [1, 1]} : vector<8x512xf32> to vector<8x128xf32>
    %161 = math.tanh %160 : vector<8x128xf32>
    %162 = vector.extract_strided_slice %143 {offsets = [0, 384], sizes = [8, 128], strides = [1, 1]} : vector<8x512xf32> to vector<8x128xf32>
    %cst_74 = arith.constant 5.000000e-01 : f32
    %163 = vector.broadcast %cst_74 : f32 to vector<8x128xf32>
    %164 = arith.mulf %163, %162 : vector<8x128xf32>
    %165 = math.tanh %164 : vector<8x128xf32>
    %cst_75 = arith.constant 5.000000e-01 : f32
    %166 = vector.broadcast %cst_75 : f32 to vector<8x128xf32>
    %167 = arith.mulf %166, %165 : vector<8x128xf32>
    %cst_76 = arith.constant 5.000000e-01 : f32
    %168 = vector.broadcast %cst_76 : f32 to vector<8x128xf32>
    %169 = arith.addf %167, %168 : vector<8x128xf32>
    %170 = arith.mulf %159, %86 : vector<8x128xf32>
    %171 = arith.mulf %151, %161 : vector<8x128xf32>
    %172 = arith.addf %170, %171 : vector<8x128xf32>
    %173 = math.tanh %172 : vector<8x128xf32>
    %174 = arith.mulf %169, %173 : vector<8x128xf32>
    %175 = arith.truncf %174 : vector<8x128xf32> to vector<8x128xbf16>
    %c6_77 = arith.constant 6 : index
    %c0_78 = arith.constant 0 : index
    %c0_79 = arith.constant 0 : index
    %176 = vector.load %arg5[%c6_77, %c0_78, %c0_79] : memref<8x8x128xbf16, #tpu.memory_space<vmem>>, vector<1x8x128xbf16>
    %177 = vector.shape_cast %176 : vector<1x8x128xbf16> to vector<8x128xbf16>
    %178 = vector.shape_cast %175 : vector<8x128xbf16> to vector<1x8x128xbf16>
    tpu.vector_store %arg5[%c6_77, %c0_78, %c0_79], %178 {strides = array<i32>} : memref<8x8x128xbf16, #tpu.memory_space<vmem>>, vector<1x8x128xbf16>,
    %c2 = arith.constant 2 : index
    %c0_80 = arith.constant 0 : index
    %c0_81 = arith.constant 0 : index
    %179 = vector.load %arg1[%c2, %c0_80, %c0_81] : memref<8x8x512xbf16, #tpu.memory_space<vmem>>, vector<1x8x512xbf16>
    %180 = vector.shape_cast %179 : vector<1x8x512xbf16> to vector<8x512xbf16>
    %181 = arith.extf %180 : vector<8x512xbf16> to vector<8x512xf32>
    %182 = arith.truncf %131 : vector<8x128xf32> to vector<8x128xbf16>
    %c0_82 = arith.constant 0 : index
    %c0_83 = arith.constant 0 : index
    %c0_84 = arith.constant 0 : index
    %183 = vector.load %arg3[%c0_82, %c0_83, %c0_84] : memref<2x128x512xbf16, #tpu.memory_space<vmem>>, vector<1x128x512xbf16>
    %184 = vector.shape_cast %183 : vector<1x128x512xbf16> to vector<128x512xbf16>
    %cst_85 = arith.constant dense<0.000000e+00> : vector<8x512xf32>
    %185 = tpu.matmul %182, %184, %cst_85 {dimension_numbers = #tpu.dot_dimension_numbers<[1], [0], [0], [1], [0, 0, 1, 1], [], []>} : vector<8x128xbf16>, vector<128x512xbf16>, vector<8x512xf32> -> vector<8x512xf32>
    %186 = arith.addf %181, %185 : vector<8x512xf32>
    %187 = vector.extract_strided_slice %186 {offsets = [0, 0], sizes = [8, 128], strides = [1, 1]} : vector<8x512xf32> to vector<8x128xf32>
    %cst_86 = arith.constant 5.000000e-01 : f32
    %188 = vector.broadcast %cst_86 : f32 to vector<8x128xf32>
    %189 = arith.mulf %188, %187 : vector<8x128xf32>
    %190 = math.tanh %189 : vector<8x128xf32>
    %cst_87 = arith.constant 5.000000e-01 : f32
    %191 = vector.broadcast %cst_87 : f32 to vector<8x128xf32>
    %192 = arith.mulf %191, %190 : vector<8x128xf32>
    %cst_88 = arith.constant 5.000000e-01 : f32
    %193 = vector.broadcast %cst_88 : f32 to vector<8x128xf32>
    %194 = arith.addf %192, %193 : vector<8x128xf32>
    %195 = vector.extract_strided_slice %186 {offsets = [0, 128], sizes = [8, 128], strides = [1, 1]} : vector<8x512xf32> to vector<8x128xf32>
    %cst_89 = arith.constant 5.000000e-01 : f32
    %196 = vector.broadcast %cst_89 : f32 to vector<8x128xf32>
    %197 = arith.mulf %196, %195 : vector<8x128xf32>
    %198 = math.tanh %197 : vector<8x128xf32>
    %cst_90 = arith.constant 5.000000e-01 : f32
    %199 = vector.broadcast %cst_90 : f32 to vector<8x128xf32>
    %200 = arith.mulf %199, %198 : vector<8x128xf32>
    %cst_91 = arith.constant 5.000000e-01 : f32
    %201 = vector.broadcast %cst_91 : f32 to vector<8x128xf32>
    %202 = arith.addf %200, %201 : vector<8x128xf32>
    %203 = vector.extract_strided_slice %186 {offsets = [0, 256], sizes = [8, 128], strides = [1, 1]} : vector<8x512xf32> to vector<8x128xf32>
    %204 = math.tanh %203 : vector<8x128xf32>
    %205 = vector.extract_strided_slice %186 {offsets = [0, 384], sizes = [8, 128], strides = [1, 1]} : vector<8x512xf32> to vector<8x128xf32>
    %cst_92 = arith.constant 5.000000e-01 : f32
    %206 = vector.broadcast %cst_92 : f32 to vector<8x128xf32>
    %207 = arith.mulf %206, %205 : vector<8x128xf32>
    %208 = math.tanh %207 : vector<8x128xf32>
    %cst_93 = arith.constant 5.000000e-01 : f32
    %209 = vector.broadcast %cst_93 : f32 to vector<8x128xf32>
    %210 = arith.mulf %209, %208 : vector<8x128xf32>
    %cst_94 = arith.constant 5.000000e-01 : f32
    %211 = vector.broadcast %cst_94 : f32 to vector<8x128xf32>
    %212 = arith.addf %210, %211 : vector<8x128xf32>
    %213 = arith.mulf %202, %129 : vector<8x128xf32>
    %214 = arith.mulf %194, %204 : vector<8x128xf32>
    %215 = arith.addf %213, %214 : vector<8x128xf32>
    %216 = math.tanh %215 : vector<8x128xf32>
    %217 = arith.mulf %212, %216 : vector<8x128xf32>
    %218 = arith.truncf %217 : vector<8x128xf32> to vector<8x128xbf16>
    %c2_95 = arith.constant 2 : index
    %c0_96 = arith.constant 0 : index
    %c0_97 = arith.constant 0 : index
    %219 = vector.load %arg4[%c2_95, %c0_96, %c0_97] : memref<8x8x128xbf16, #tpu.memory_space<vmem>>, vector<1x8x128xbf16>
    %220 = vector.shape_cast %219 : vector<1x8x128xbf16> to vector<8x128xbf16>
    %221 = vector.shape_cast %218 : vector<8x128xbf16> to vector<1x8x128xbf16>
    tpu.vector_store %arg4[%c2_95, %c0_96, %c0_97], %221 {strides = array<i32>} : memref<8x8x128xbf16, #tpu.memory_space<vmem>>, vector<1x8x128xbf16>,
    %c5 = arith.constant 5 : index
    %c0_98 = arith.constant 0 : index
    %c0_99 = arith.constant 0 : index
    %222 = vector.load %arg2[%c5, %c0_98, %c0_99] : memref<8x8x512xbf16, #tpu.memory_space<vmem>>, vector<1x8x512xbf16>
    %223 = vector.shape_cast %222 : vector<1x8x512xbf16> to vector<8x512xbf16>
    %224 = arith.extf %223 : vector<8x512xbf16> to vector<8x512xf32>
    %225 = arith.truncf %174 : vector<8x128xf32> to vector<8x128xbf16>
    %c1_100 = arith.constant 1 : index
    %c0_101 = arith.constant 0 : index
    %c0_102 = arith.constant 0 : index
    %226 = vector.load %arg3[%c1_100, %c0_101, %c0_102] : memref<2x128x512xbf16, #tpu.memory_space<vmem>>, vector<1x128x512xbf16>
    %227 = vector.shape_cast %226 : vector<1x128x512xbf16> to vector<128x512xbf16>
    %cst_103 = arith.constant dense<0.000000e+00> : vector<8x512xf32>
    %228 = tpu.matmul %225, %227, %cst_103 {dimension_numbers = #tpu.dot_dimension_numbers<[1], [0], [0], [1], [0, 0, 1, 1], [], []>} : vector<8x128xbf16>, vector<128x512xbf16>, vector<8x512xf32> -> vector<8x512xf32>
    %229 = arith.addf %224, %228 : vector<8x512xf32>
    %230 = vector.extract_strided_slice %229 {offsets = [0, 0], sizes = [8, 128], strides = [1, 1]} : vector<8x512xf32> to vector<8x128xf32>
    %cst_104 = arith.constant 5.000000e-01 : f32
    %231 = vector.broadcast %cst_104 : f32 to vector<8x128xf32>
    %232 = arith.mulf %231, %230 : vector<8x128xf32>
    %233 = math.tanh %232 : vector<8x128xf32>
    %cst_105 = arith.constant 5.000000e-01 : f32
    %234 = vector.broadcast %cst_105 : f32 to vector<8x128xf32>
    %235 = arith.mulf %234, %233 : vector<8x128xf32>
    %cst_106 = arith.constant 5.000000e-01 : f32
    %236 = vector.broadcast %cst_106 : f32 to vector<8x128xf32>
    %237 = arith.addf %235, %236 : vector<8x128xf32>
    %238 = vector.extract_strided_slice %229 {offsets = [0, 128], sizes = [8, 128], strides = [1, 1]} : vector<8x512xf32> to vector<8x128xf32>
    %cst_107 = arith.constant 5.000000e-01 : f32
    %239 = vector.broadcast %cst_107 : f32 to vector<8x128xf32>
    %240 = arith.mulf %239, %238 : vector<8x128xf32>
    %241 = math.tanh %240 : vector<8x128xf32>
    %cst_108 = arith.constant 5.000000e-01 : f32
    %242 = vector.broadcast %cst_108 : f32 to vector<8x128xf32>
    %243 = arith.mulf %242, %241 : vector<8x128xf32>
    %cst_109 = arith.constant 5.000000e-01 : f32
    %244 = vector.broadcast %cst_109 : f32 to vector<8x128xf32>
    %245 = arith.addf %243, %244 : vector<8x128xf32>
    %246 = vector.extract_strided_slice %229 {offsets = [0, 256], sizes = [8, 128], strides = [1, 1]} : vector<8x512xf32> to vector<8x128xf32>
    %247 = math.tanh %246 : vector<8x128xf32>
    %248 = vector.extract_strided_slice %229 {offsets = [0, 384], sizes = [8, 128], strides = [1, 1]} : vector<8x512xf32> to vector<8x128xf32>
    %cst_110 = arith.constant 5.000000e-01 : f32
    %249 = vector.broadcast %cst_110 : f32 to vector<8x128xf32>
    %250 = arith.mulf %249, %248 : vector<8x128xf32>
    %251 = math.tanh %250 : vector<8x128xf32>
    %cst_111 = arith.constant 5.000000e-01 : f32
    %252 = vector.broadcast %cst_111 : f32 to vector<8x128xf32>
    %253 = arith.mulf %252, %251 : vector<8x128xf32>
    %cst_112 = arith.constant 5.000000e-01 : f32
    %254 = vector.broadcast %cst_112 : f32 to vector<8x128xf32>
    %255 = arith.addf %253, %254 : vector<8x128xf32>
    %256 = arith.mulf %245, %172 : vector<8x128xf32>
    %257 = arith.mulf %237, %247 : vector<8x128xf32>
    %258 = arith.addf %256, %257 : vector<8x128xf32>
    %259 = math.tanh %258 : vector<8x128xf32>
    %260 = arith.mulf %255, %259 : vector<8x128xf32>
    %261 = arith.truncf %260 : vector<8x128xf32> to vector<8x128xbf16>
    %c5_113 = arith.constant 5 : index
    %c0_114 = arith.constant 0 : index
    %c0_115 = arith.constant 0 : index
    %262 = vector.load %arg5[%c5_113, %c0_114, %c0_115] : memref<8x8x128xbf16, #tpu.memory_space<vmem>>, vector<1x8x128xbf16>
    %263 = vector.shape_cast %262 : vector<1x8x128xbf16> to vector<8x128xbf16>
    %264 = vector.shape_cast %261 : vector<8x128xbf16> to vector<1x8x128xbf16>
    tpu.vector_store %arg5[%c5_113, %c0_114, %c0_115], %264 {strides = array<i32>} : memref<8x8x128xbf16, #tpu.memory_space<vmem>>, vector<1x8x128xbf16>,
    %c3 = arith.constant 3 : index
    %c0_116 = arith.constant 0 : index
    %c0_117 = arith.constant 0 : index
    %265 = vector.load %arg1[%c3, %c0_116, %c0_117] : memref<8x8x512xbf16, #tpu.memory_space<vmem>>, vector<1x8x512xbf16>
    %266 = vector.shape_cast %265 : vector<1x8x512xbf16> to vector<8x512xbf16>
    %267 = arith.extf %266 : vector<8x512xbf16> to vector<8x512xf32>
    %268 = arith.truncf %217 : vector<8x128xf32> to vector<8x128xbf16>
    %c0_118 = arith.constant 0 : index
    %c0_119 = arith.constant 0 : index
    %c0_120 = arith.constant 0 : index
    %269 = vector.load %arg3[%c0_118, %c0_119, %c0_120] : memref<2x128x512xbf16, #tpu.memory_space<vmem>>, vector<1x128x512xbf16>
    %270 = vector.shape_cast %269 : vector<1x128x512xbf16> to vector<128x512xbf16>
    %cst_121 = arith.constant dense<0.000000e+00> : vector<8x512xf32>
    %271 = tpu.matmul %268, %270, %cst_121 {dimension_numbers = #tpu.dot_dimension_numbers<[1], [0], [0], [1], [0, 0, 1, 1], [], []>} : vector<8x128xbf16>, vector<128x512xbf16>, vector<8x512xf32> -> vector<8x512xf32>
    %272 = arith.addf %267, %271 : vector<8x512xf32>
    %273 = vector.extract_strided_slice %272 {offsets = [0, 0], sizes = [8, 128], strides = [1, 1]} : vector<8x512xf32> to vector<8x128xf32>
    %cst_122 = arith.constant 5.000000e-01 : f32
    %274 = vector.broadcast %cst_122 : f32 to vector<8x128xf32>
    %275 = arith.mulf %274, %273 : vector<8x128xf32>
    %276 = math.tanh %275 : vector<8x128xf32>
    %cst_123 = arith.constant 5.000000e-01 : f32
    %277 = vector.broadcast %cst_123 : f32 to vector<8x128xf32>
    %278 = arith.mulf %277, %276 : vector<8x128xf32>
    %cst_124 = arith.constant 5.000000e-01 : f32
    %279 = vector.broadcast %cst_124 : f32 to vector<8x128xf32>
    %280 = arith.addf %278, %279 : vector<8x128xf32>
    %281 = vector.extract_strided_slice %272 {offsets = [0, 128], sizes = [8, 128], strides = [1, 1]} : vector<8x512xf32> to vector<8x128xf32>
    %cst_125 = arith.constant 5.000000e-01 : f32
    %282 = vector.broadcast %cst_125 : f32 to vector<8x128xf32>
    %283 = arith.mulf %282, %281 : vector<8x128xf32>
    %284 = math.tanh %283 : vector<8x128xf32>
    %cst_126 = arith.constant 5.000000e-01 : f32
    %285 = vector.broadcast %cst_126 : f32 to vector<8x128xf32>
    %286 = arith.mulf %285, %284 : vector<8x128xf32>
    %cst_127 = arith.constant 5.000000e-01 : f32
    %287 = vector.broadcast %cst_127 : f32 to vector<8x128xf32>
    %288 = arith.addf %286, %287 : vector<8x128xf32>
    %289 = vector.extract_strided_slice %272 {offsets = [0, 256], sizes = [8, 128], strides = [1, 1]} : vector<8x512xf32> to vector<8x128xf32>
    %290 = math.tanh %289 : vector<8x128xf32>
    %291 = vector.extract_strided_slice %272 {offsets = [0, 384], sizes = [8, 128], strides = [1, 1]} : vector<8x512xf32> to vector<8x128xf32>
    %cst_128 = arith.constant 5.000000e-01 : f32
    %292 = vector.broadcast %cst_128 : f32 to vector<8x128xf32>
    %293 = arith.mulf %292, %291 : vector<8x128xf32>
    %294 = math.tanh %293 : vector<8x128xf32>
    %cst_129 = arith.constant 5.000000e-01 : f32
    %295 = vector.broadcast %cst_129 : f32 to vector<8x128xf32>
    %296 = arith.mulf %295, %294 : vector<8x128xf32>
    %cst_130 = arith.constant 5.000000e-01 : f32
    %297 = vector.broadcast %cst_130 : f32 to vector<8x128xf32>
    %298 = arith.addf %296, %297 : vector<8x128xf32>
    %299 = arith.mulf %288, %215 : vector<8x128xf32>
    %300 = arith.mulf %280, %290 : vector<8x128xf32>
    %301 = arith.addf %299, %300 : vector<8x128xf32>
    %302 = math.tanh %301 : vector<8x128xf32>
    %303 = arith.mulf %298, %302 : vector<8x128xf32>
    %304 = arith.truncf %303 : vector<8x128xf32> to vector<8x128xbf16>
    %c3_131 = arith.constant 3 : index
    %c0_132 = arith.constant 0 : index
    %c0_133 = arith.constant 0 : index
    %305 = vector.load %arg4[%c3_131, %c0_132, %c0_133] : memref<8x8x128xbf16, #tpu.memory_space<vmem>>, vector<1x8x128xbf16>
    %306 = vector.shape_cast %305 : vector<1x8x128xbf16> to vector<8x128xbf16>
    %307 = vector.shape_cast %304 : vector<8x128xbf16> to vector<1x8x128xbf16>
    tpu.vector_store %arg4[%c3_131, %c0_132, %c0_133], %307 {strides = array<i32>} : memref<8x8x128xbf16, #tpu.memory_space<vmem>>, vector<1x8x128xbf16>,
    %c4 = arith.constant 4 : index
    %c0_134 = arith.constant 0 : index
    %c0_135 = arith.constant 0 : index
    %308 = vector.load %arg2[%c4, %c0_134, %c0_135] : memref<8x8x512xbf16, #tpu.memory_space<vmem>>, vector<1x8x512xbf16>
    %309 = vector.shape_cast %308 : vector<1x8x512xbf16> to vector<8x512xbf16>
    %310 = arith.extf %309 : vector<8x512xbf16> to vector<8x512xf32>
    %311 = arith.truncf %260 : vector<8x128xf32> to vector<8x128xbf16>
    %c1_136 = arith.constant 1 : index
    %c0_137 = arith.constant 0 : index
    %c0_138 = arith.constant 0 : index
    %312 = vector.load %arg3[%c1_136, %c0_137, %c0_138] : memref<2x128x512xbf16, #tpu.memory_space<vmem>>, vector<1x128x512xbf16>
    %313 = vector.shape_cast %312 : vector<1x128x512xbf16> to vector<128x512xbf16>
    %cst_139 = arith.constant dense<0.000000e+00> : vector<8x512xf32>
    %314 = tpu.matmul %311, %313, %cst_139 {dimension_numbers = #tpu.dot_dimension_numbers<[1], [0], [0], [1], [0, 0, 1, 1], [], []>} : vector<8x128xbf16>, vector<128x512xbf16>, vector<8x512xf32> -> vector<8x512xf32>
    %315 = arith.addf %310, %314 : vector<8x512xf32>
    %316 = vector.extract_strided_slice %315 {offsets = [0, 0], sizes = [8, 128], strides = [1, 1]} : vector<8x512xf32> to vector<8x128xf32>
    %cst_140 = arith.constant 5.000000e-01 : f32
    %317 = vector.broadcast %cst_140 : f32 to vector<8x128xf32>
    %318 = arith.mulf %317, %316 : vector<8x128xf32>
    %319 = math.tanh %318 : vector<8x128xf32>
    %cst_141 = arith.constant 5.000000e-01 : f32
    %320 = vector.broadcast %cst_141 : f32 to vector<8x128xf32>
    %321 = arith.mulf %320, %319 : vector<8x128xf32>
    %cst_142 = arith.constant 5.000000e-01 : f32
    %322 = vector.broadcast %cst_142 : f32 to vector<8x128xf32>
    %323 = arith.addf %321, %322 : vector<8x128xf32>
    %324 = vector.extract_strided_slice %315 {offsets = [0, 128], sizes = [8, 128], strides = [1, 1]} : vector<8x512xf32> to vector<8x128xf32>
    %cst_143 = arith.constant 5.000000e-01 : f32
    %325 = vector.broadcast %cst_143 : f32 to vector<8x128xf32>
    %326 = arith.mulf %325, %324 : vector<8x128xf32>
    %327 = math.tanh %326 : vector<8x128xf32>
    %cst_144 = arith.constant 5.000000e-01 : f32
    %328 = vector.broadcast %cst_144 : f32 to vector<8x128xf32>
    %329 = arith.mulf %328, %327 : vector<8x128xf32>
    %cst_145 = arith.constant 5.000000e-01 : f32
    %330 = vector.broadcast %cst_145 : f32 to vector<8x128xf32>
    %331 = arith.addf %329, %330 : vector<8x128xf32>
    %332 = vector.extract_strided_slice %315 {offsets = [0, 256], sizes = [8, 128], strides = [1, 1]} : vector<8x512xf32> to vector<8x128xf32>
    %333 = math.tanh %332 : vector<8x128xf32>
    %334 = vector.extract_strided_slice %315 {offsets = [0, 384], sizes = [8, 128], strides = [1, 1]} : vector<8x512xf32> to vector<8x128xf32>
    %cst_146 = arith.constant 5.000000e-01 : f32
    %335 = vector.broadcast %cst_146 : f32 to vector<8x128xf32>
    %336 = arith.mulf %335, %334 : vector<8x128xf32>
    %337 = math.tanh %336 : vector<8x128xf32>
    %cst_147 = arith.constant 5.000000e-01 : f32
    %338 = vector.broadcast %cst_147 : f32 to vector<8x128xf32>
    %339 = arith.mulf %338, %337 : vector<8x128xf32>
    %cst_148 = arith.constant 5.000000e-01 : f32
    %340 = vector.broadcast %cst_148 : f32 to vector<8x128xf32>
    %341 = arith.addf %339, %340 : vector<8x128xf32>
    %342 = arith.mulf %331, %258 : vector<8x128xf32>
    %343 = arith.mulf %323, %333 : vector<8x128xf32>
    %344 = arith.addf %342, %343 : vector<8x128xf32>
    %345 = math.tanh %344 : vector<8x128xf32>
    %346 = arith.mulf %341, %345 : vector<8x128xf32>
    %347 = arith.truncf %346 : vector<8x128xf32> to vector<8x128xbf16>
    %c4_149 = arith.constant 4 : index
    %c0_150 = arith.constant 0 : index
    %c0_151 = arith.constant 0 : index
    %348 = vector.load %arg5[%c4_149, %c0_150, %c0_151] : memref<8x8x128xbf16, #tpu.memory_space<vmem>>, vector<1x8x128xbf16>
    %349 = vector.shape_cast %348 : vector<1x8x128xbf16> to vector<8x128xbf16>
    %350 = vector.shape_cast %347 : vector<8x128xbf16> to vector<1x8x128xbf16>
    tpu.vector_store %arg5[%c4_149, %c0_150, %c0_151], %350 {strides = array<i32>} : memref<8x8x128xbf16, #tpu.memory_space<vmem>>, vector<1x8x128xbf16>,
    %c4_152 = arith.constant 4 : index
    %c0_153 = arith.constant 0 : index
    %c0_154 = arith.constant 0 : index
    %351 = vector.load %arg1[%c4_152, %c0_153, %c0_154] : memref<8x8x512xbf16, #tpu.memory_space<vmem>>, vector<1x8x512xbf16>
    %352 = vector.shape_cast %351 : vector<1x8x512xbf16> to vector<8x512xbf16>
    %353 = arith.extf %352 : vector<8x512xbf16> to vector<8x512xf32>
    %354 = arith.truncf %303 : vector<8x128xf32> to vector<8x128xbf16>
    %c0_155 = arith.constant 0 : index
    %c0_156 = arith.constant 0 : index
    %c0_157 = arith.constant 0 : index
    %355 = vector.load %arg3[%c0_155, %c0_156, %c0_157] : memref<2x128x512xbf16, #tpu.memory_space<vmem>>, vector<1x128x512xbf16>
    %356 = vector.shape_cast %355 : vector<1x128x512xbf16> to vector<128x512xbf16>
    %cst_158 = arith.constant dense<0.000000e+00> : vector<8x512xf32>
    %357 = tpu.matmul %354, %356, %cst_158 {dimension_numbers = #tpu.dot_dimension_numbers<[1], [0], [0], [1], [0, 0, 1, 1], [], []>} : vector<8x128xbf16>, vector<128x512xbf16>, vector<8x512xf32> -> vector<8x512xf32>
    %358 = arith.addf %353, %357 : vector<8x512xf32>
    %359 = vector.extract_strided_slice %358 {offsets = [0, 0], sizes = [8, 128], strides = [1, 1]} : vector<8x512xf32> to vector<8x128xf32>
    %cst_159 = arith.constant 5.000000e-01 : f32
    %360 = vector.broadcast %cst_159 : f32 to vector<8x128xf32>
    %361 = arith.mulf %360, %359 : vector<8x128xf32>
    %362 = math.tanh %361 : vector<8x128xf32>
    %cst_160 = arith.constant 5.000000e-01 : f32
    %363 = vector.broadcast %cst_160 : f32 to vector<8x128xf32>
    %364 = arith.mulf %363, %362 : vector<8x128xf32>
    %cst_161 = arith.constant 5.000000e-01 : f32
    %365 = vector.broadcast %cst_161 : f32 to vector<8x128xf32>
    %366 = arith.addf %364, %365 : vector<8x128xf32>
    %367 = vector.extract_strided_slice %358 {offsets = [0, 128], sizes = [8, 128], strides = [1, 1]} : vector<8x512xf32> to vector<8x128xf32>
    %cst_162 = arith.constant 5.000000e-01 : f32
    %368 = vector.broadcast %cst_162 : f32 to vector<8x128xf32>
    %369 = arith.mulf %368, %367 : vector<8x128xf32>
    %370 = math.tanh %369 : vector<8x128xf32>
    %cst_163 = arith.constant 5.000000e-01 : f32
    %371 = vector.broadcast %cst_163 : f32 to vector<8x128xf32>
    %372 = arith.mulf %371, %370 : vector<8x128xf32>
    %cst_164 = arith.constant 5.000000e-01 : f32
    %373 = vector.broadcast %cst_164 : f32 to vector<8x128xf32>
    %374 = arith.addf %372, %373 : vector<8x128xf32>
    %375 = vector.extract_strided_slice %358 {offsets = [0, 256], sizes = [8, 128], strides = [1, 1]} : vector<8x512xf32> to vector<8x128xf32>
    %376 = math.tanh %375 : vector<8x128xf32>
    %377 = vector.extract_strided_slice %358 {offsets = [0, 384], sizes = [8, 128], strides = [1, 1]} : vector<8x512xf32> to vector<8x128xf32>
    %cst_165 = arith.constant 5.000000e-01 : f32
    %378 = vector.broadcast %cst_165 : f32 to vector<8x128xf32>
    %379 = arith.mulf %378, %377 : vector<8x128xf32>
    %380 = math.tanh %379 : vector<8x128xf32>
    %cst_166 = arith.constant 5.000000e-01 : f32
    %381 = vector.broadcast %cst_166 : f32 to vector<8x128xf32>
    %382 = arith.mulf %381, %380 : vector<8x128xf32>
    %cst_167 = arith.constant 5.000000e-01 : f32
    %383 = vector.broadcast %cst_167 : f32 to vector<8x128xf32>
    %384 = arith.addf %382, %383 : vector<8x128xf32>
    %385 = arith.mulf %374, %301 : vector<8x128xf32>
    %386 = arith.mulf %366, %376 : vector<8x128xf32>
    %387 = arith.addf %385, %386 : vector<8x128xf32>
    %388 = math.tanh %387 : vector<8x128xf32>
    %389 = arith.mulf %384, %388 : vector<8x128xf32>
    %390 = arith.truncf %389 : vector<8x128xf32> to vector<8x128xbf16>
    %c4_168 = arith.constant 4 : index
    %c0_169 = arith.constant 0 : index
    %c0_170 = arith.constant 0 : index
    %391 = vector.load %arg4[%c4_168, %c0_169, %c0_170] : memref<8x8x128xbf16, #tpu.memory_space<vmem>>, vector<1x8x128xbf16>
    %392 = vector.shape_cast %391 : vector<1x8x128xbf16> to vector<8x128xbf16>
    %393 = vector.shape_cast %390 : vector<8x128xbf16> to vector<1x8x128xbf16>
    tpu.vector_store %arg4[%c4_168, %c0_169, %c0_170], %393 {strides = array<i32>} : memref<8x8x128xbf16, #tpu.memory_space<vmem>>, vector<1x8x128xbf16>,
    %c3_171 = arith.constant 3 : index
    %c0_172 = arith.constant 0 : index
    %c0_173 = arith.constant 0 : index
    %394 = vector.load %arg2[%c3_171, %c0_172, %c0_173] : memref<8x8x512xbf16, #tpu.memory_space<vmem>>, vector<1x8x512xbf16>
    %395 = vector.shape_cast %394 : vector<1x8x512xbf16> to vector<8x512xbf16>
    %396 = arith.extf %395 : vector<8x512xbf16> to vector<8x512xf32>
    %397 = arith.truncf %346 : vector<8x128xf32> to vector<8x128xbf16>
    %c1_174 = arith.constant 1 : index
    %c0_175 = arith.constant 0 : index
    %c0_176 = arith.constant 0 : index
    %398 = vector.load %arg3[%c1_174, %c0_175, %c0_176] : memref<2x128x512xbf16, #tpu.memory_space<vmem>>, vector<1x128x512xbf16>
    %399 = vector.shape_cast %398 : vector<1x128x512xbf16> to vector<128x512xbf16>
    %cst_177 = arith.constant dense<0.000000e+00> : vector<8x512xf32>
    %400 = tpu.matmul %397, %399, %cst_177 {dimension_numbers = #tpu.dot_dimension_numbers<[1], [0], [0], [1], [0, 0, 1, 1], [], []>} : vector<8x128xbf16>, vector<128x512xbf16>, vector<8x512xf32> -> vector<8x512xf32>
    %401 = arith.addf %396, %400 : vector<8x512xf32>
    %402 = vector.extract_strided_slice %401 {offsets = [0, 0], sizes = [8, 128], strides = [1, 1]} : vector<8x512xf32> to vector<8x128xf32>
    %cst_178 = arith.constant 5.000000e-01 : f32
    %403 = vector.broadcast %cst_178 : f32 to vector<8x128xf32>
    %404 = arith.mulf %403, %402 : vector<8x128xf32>
    %405 = math.tanh %404 : vector<8x128xf32>
    %cst_179 = arith.constant 5.000000e-01 : f32
    %406 = vector.broadcast %cst_179 : f32 to vector<8x128xf32>
    %407 = arith.mulf %406, %405 : vector<8x128xf32>
    %cst_180 = arith.constant 5.000000e-01 : f32
    %408 = vector.broadcast %cst_180 : f32 to vector<8x128xf32>
    %409 = arith.addf %407, %408 : vector<8x128xf32>
    %410 = vector.extract_strided_slice %401 {offsets = [0, 128], sizes = [8, 128], strides = [1, 1]} : vector<8x512xf32> to vector<8x128xf32>
    %cst_181 = arith.constant 5.000000e-01 : f32
    %411 = vector.broadcast %cst_181 : f32 to vector<8x128xf32>
    %412 = arith.mulf %411, %410 : vector<8x128xf32>
    %413 = math.tanh %412 : vector<8x128xf32>
    %cst_182 = arith.constant 5.000000e-01 : f32
    %414 = vector.broadcast %cst_182 : f32 to vector<8x128xf32>
    %415 = arith.mulf %414, %413 : vector<8x128xf32>
    %cst_183 = arith.constant 5.000000e-01 : f32
    %416 = vector.broadcast %cst_183 : f32 to vector<8x128xf32>
    %417 = arith.addf %415, %416 : vector<8x128xf32>
    %418 = vector.extract_strided_slice %401 {offsets = [0, 256], sizes = [8, 128], strides = [1, 1]} : vector<8x512xf32> to vector<8x128xf32>
    %419 = math.tanh %418 : vector<8x128xf32>
    %420 = vector.extract_strided_slice %401 {offsets = [0, 384], sizes = [8, 128], strides = [1, 1]} : vector<8x512xf32> to vector<8x128xf32>
    %cst_184 = arith.constant 5.000000e-01 : f32
    %421 = vector.broadcast %cst_184 : f32 to vector<8x128xf32>
    %422 = arith.mulf %421, %420 : vector<8x128xf32>
    %423 = math.tanh %422 : vector<8x128xf32>
    %cst_185 = arith.constant 5.000000e-01 : f32
    %424 = vector.broadcast %cst_185 : f32 to vector<8x128xf32>
    %425 = arith.mulf %424, %423 : vector<8x128xf32>
    %cst_186 = arith.constant 5.000000e-01 : f32
    %426 = vector.broadcast %cst_186 : f32 to vector<8x128xf32>
    %427 = arith.addf %425, %426 : vector<8x128xf32>
    %428 = arith.mulf %417, %344 : vector<8x128xf32>
    %429 = arith.mulf %409, %419 : vector<8x128xf32>
    %430 = arith.addf %428, %429 : vector<8x128xf32>
    %431 = math.tanh %430 : vector<8x128xf32>
    %432 = arith.mulf %427, %431 : vector<8x128xf32>
    %433 = arith.truncf %432 : vector<8x128xf32> to vector<8x128xbf16>
    %c3_187 = arith.constant 3 : index
    %c0_188 = arith.constant 0 : index
    %c0_189 = arith.constant 0 : index
    %434 = vector.load %arg5[%c3_187, %c0_188, %c0_189] : memref<8x8x128xbf16, #tpu.memory_space<vmem>>, vector<1x8x128xbf16>
    %435 = vector.shape_cast %434 : vector<1x8x128xbf16> to vector<8x128xbf16>
    %436 = vector.shape_cast %433 : vector<8x128xbf16> to vector<1x8x128xbf16>
    tpu.vector_store %arg5[%c3_187, %c0_188, %c0_189], %436 {strides = array<i32>} : memref<8x8x128xbf16, #tpu.memory_space<vmem>>, vector<1x8x128xbf16>,
    %c5_190 = arith.constant 5 : index
    %c0_191 = arith.constant 0 : index
    %c0_192 = arith.constant 0 : index
    %437 = vector.load %arg1[%c5_190, %c0_191, %c0_192] : memref<8x8x512xbf16, #tpu.memory_space<vmem>>, vector<1x8x512xbf16>
    %438 = vector.shape_cast %437 : vector<1x8x512xbf16> to vector<8x512xbf16>
    %439 = arith.extf %438 : vector<8x512xbf16> to vector<8x512xf32>
    %440 = arith.truncf %389 : vector<8x128xf32> to vector<8x128xbf16>
    %c0_193 = arith.constant 0 : index
    %c0_194 = arith.constant 0 : index
    %c0_195 = arith.constant 0 : index
    %441 = vector.load %arg3[%c0_193, %c0_194, %c0_195] : memref<2x128x512xbf16, #tpu.memory_space<vmem>>, vector<1x128x512xbf16>
    %442 = vector.shape_cast %441 : vector<1x128x512xbf16> to vector<128x512xbf16>
    %cst_196 = arith.constant dense<0.000000e+00> : vector<8x512xf32>
    %443 = tpu.matmul %440, %442, %cst_196 {dimension_numbers = #tpu.dot_dimension_numbers<[1], [0], [0], [1], [0, 0, 1, 1], [], []>} : vector<8x128xbf16>, vector<128x512xbf16>, vector<8x512xf32> -> vector<8x512xf32>
    %444 = arith.addf %439, %443 : vector<8x512xf32>
    %445 = vector.extract_strided_slice %444 {offsets = [0, 0], sizes = [8, 128], strides = [1, 1]} : vector<8x512xf32> to vector<8x128xf32>
    %cst_197 = arith.constant 5.000000e-01 : f32
    %446 = vector.broadcast %cst_197 : f32 to vector<8x128xf32>
    %447 = arith.mulf %446, %445 : vector<8x128xf32>
    %448 = math.tanh %447 : vector<8x128xf32>
    %cst_198 = arith.constant 5.000000e-01 : f32
    %449 = vector.broadcast %cst_198 : f32 to vector<8x128xf32>
    %450 = arith.mulf %449, %448 : vector<8x128xf32>
    %cst_199 = arith.constant 5.000000e-01 : f32
    %451 = vector.broadcast %cst_199 : f32 to vector<8x128xf32>
    %452 = arith.addf %450, %451 : vector<8x128xf32>
    %453 = vector.extract_strided_slice %444 {offsets = [0, 128], sizes = [8, 128], strides = [1, 1]} : vector<8x512xf32> to vector<8x128xf32>
    %cst_200 = arith.constant 5.000000e-01 : f32
    %454 = vector.broadcast %cst_200 : f32 to vector<8x128xf32>
    %455 = arith.mulf %454, %453 : vector<8x128xf32>
    %456 = math.tanh %455 : vector<8x128xf32>
    %cst_201 = arith.constant 5.000000e-01 : f32
    %457 = vector.broadcast %cst_201 : f32 to vector<8x128xf32>
    %458 = arith.mulf %457, %456 : vector<8x128xf32>
    %cst_202 = arith.constant 5.000000e-01 : f32
    %459 = vector.broadcast %cst_202 : f32 to vector<8x128xf32>
    %460 = arith.addf %458, %459 : vector<8x128xf32>
    %461 = vector.extract_strided_slice %444 {offsets = [0, 256], sizes = [8, 128], strides = [1, 1]} : vector<8x512xf32> to vector<8x128xf32>
    %462 = math.tanh %461 : vector<8x128xf32>
    %463 = vector.extract_strided_slice %444 {offsets = [0, 384], sizes = [8, 128], strides = [1, 1]} : vector<8x512xf32> to vector<8x128xf32>
    %cst_203 = arith.constant 5.000000e-01 : f32
    %464 = vector.broadcast %cst_203 : f32 to vector<8x128xf32>
    %465 = arith.mulf %464, %463 : vector<8x128xf32>
    %466 = math.tanh %465 : vector<8x128xf32>
    %cst_204 = arith.constant 5.000000e-01 : f32
    %467 = vector.broadcast %cst_204 : f32 to vector<8x128xf32>
    %468 = arith.mulf %467, %466 : vector<8x128xf32>
    %cst_205 = arith.constant 5.000000e-01 : f32
    %469 = vector.broadcast %cst_205 : f32 to vector<8x128xf32>
    %470 = arith.addf %468, %469 : vector<8x128xf32>
    %471 = arith.mulf %460, %387 : vector<8x128xf32>
    %472 = arith.mulf %452, %462 : vector<8x128xf32>
    %473 = arith.addf %471, %472 : vector<8x128xf32>
    %474 = math.tanh %473 : vector<8x128xf32>
    %475 = arith.mulf %470, %474 : vector<8x128xf32>
    %476 = arith.truncf %475 : vector<8x128xf32> to vector<8x128xbf16>
    %c5_206 = arith.constant 5 : index
    %c0_207 = arith.constant 0 : index
    %c0_208 = arith.constant 0 : index
    %477 = vector.load %arg4[%c5_206, %c0_207, %c0_208] : memref<8x8x128xbf16, #tpu.memory_space<vmem>>, vector<1x8x128xbf16>
    %478 = vector.shape_cast %477 : vector<1x8x128xbf16> to vector<8x128xbf16>
    %479 = vector.shape_cast %476 : vector<8x128xbf16> to vector<1x8x128xbf16>
    tpu.vector_store %arg4[%c5_206, %c0_207, %c0_208], %479 {strides = array<i32>} : memref<8x8x128xbf16, #tpu.memory_space<vmem>>, vector<1x8x128xbf16>,
    %c2_209 = arith.constant 2 : index
    %c0_210 = arith.constant 0 : index
    %c0_211 = arith.constant 0 : index
    %480 = vector.load %arg2[%c2_209, %c0_210, %c0_211] : memref<8x8x512xbf16, #tpu.memory_space<vmem>>, vector<1x8x512xbf16>
    %481 = vector.shape_cast %480 : vector<1x8x512xbf16> to vector<8x512xbf16>
    %482 = arith.extf %481 : vector<8x512xbf16> to vector<8x512xf32>
    %483 = arith.truncf %432 : vector<8x128xf32> to vector<8x128xbf16>
    %c1_212 = arith.constant 1 : index
    %c0_213 = arith.constant 0 : index
    %c0_214 = arith.constant 0 : index
    %484 = vector.load %arg3[%c1_212, %c0_213, %c0_214] : memref<2x128x512xbf16, #tpu.memory_space<vmem>>, vector<1x128x512xbf16>
    %485 = vector.shape_cast %484 : vector<1x128x512xbf16> to vector<128x512xbf16>
    %cst_215 = arith.constant dense<0.000000e+00> : vector<8x512xf32>
    %486 = tpu.matmul %483, %485, %cst_215 {dimension_numbers = #tpu.dot_dimension_numbers<[1], [0], [0], [1], [0, 0, 1, 1], [], []>} : vector<8x128xbf16>, vector<128x512xbf16>, vector<8x512xf32> -> vector<8x512xf32>
    %487 = arith.addf %482, %486 : vector<8x512xf32>
    %488 = vector.extract_strided_slice %487 {offsets = [0, 0], sizes = [8, 128], strides = [1, 1]} : vector<8x512xf32> to vector<8x128xf32>
    %cst_216 = arith.constant 5.000000e-01 : f32
    %489 = vector.broadcast %cst_216 : f32 to vector<8x128xf32>
    %490 = arith.mulf %489, %488 : vector<8x128xf32>
    %491 = math.tanh %490 : vector<8x128xf32>
    %cst_217 = arith.constant 5.000000e-01 : f32
    %492 = vector.broadcast %cst_217 : f32 to vector<8x128xf32>
    %493 = arith.mulf %492, %491 : vector<8x128xf32>
    %cst_218 = arith.constant 5.000000e-01 : f32
    %494 = vector.broadcast %cst_218 : f32 to vector<8x128xf32>
    %495 = arith.addf %493, %494 : vector<8x128xf32>
    %496 = vector.extract_strided_slice %487 {offsets = [0, 128], sizes = [8, 128], strides = [1, 1]} : vector<8x512xf32> to vector<8x128xf32>
    %cst_219 = arith.constant 5.000000e-01 : f32
    %497 = vector.broadcast %cst_219 : f32 to vector<8x128xf32>
    %498 = arith.mulf %497, %496 : vector<8x128xf32>
    %499 = math.tanh %498 : vector<8x128xf32>
    %cst_220 = arith.constant 5.000000e-01 : f32
    %500 = vector.broadcast %cst_220 : f32 to vector<8x128xf32>
    %501 = arith.mulf %500, %499 : vector<8x128xf32>
    %cst_221 = arith.constant 5.000000e-01 : f32
    %502 = vector.broadcast %cst_221 : f32 to vector<8x128xf32>
    %503 = arith.addf %501, %502 : vector<8x128xf32>
    %504 = vector.extract_strided_slice %487 {offsets = [0, 256], sizes = [8, 128], strides = [1, 1]} : vector<8x512xf32> to vector<8x128xf32>
    %505 = math.tanh %504 : vector<8x128xf32>
    %506 = vector.extract_strided_slice %487 {offsets = [0, 384], sizes = [8, 128], strides = [1, 1]} : vector<8x512xf32> to vector<8x128xf32>
    %cst_222 = arith.constant 5.000000e-01 : f32
    %507 = vector.broadcast %cst_222 : f32 to vector<8x128xf32>
    %508 = arith.mulf %507, %506 : vector<8x128xf32>
    %509 = math.tanh %508 : vector<8x128xf32>
    %cst_223 = arith.constant 5.000000e-01 : f32
    %510 = vector.broadcast %cst_223 : f32 to vector<8x128xf32>
    %511 = arith.mulf %510, %509 : vector<8x128xf32>
    %cst_224 = arith.constant 5.000000e-01 : f32
    %512 = vector.broadcast %cst_224 : f32 to vector<8x128xf32>
    %513 = arith.addf %511, %512 : vector<8x128xf32>
    %514 = arith.mulf %503, %430 : vector<8x128xf32>
    %515 = arith.mulf %495, %505 : vector<8x128xf32>
    %516 = arith.addf %514, %515 : vector<8x128xf32>
    %517 = math.tanh %516 : vector<8x128xf32>
    %518 = arith.mulf %513, %517 : vector<8x128xf32>
    %519 = arith.truncf %518 : vector<8x128xf32> to vector<8x128xbf16>
    %c2_225 = arith.constant 2 : index
    %c0_226 = arith.constant 0 : index
    %c0_227 = arith.constant 0 : index
    %520 = vector.load %arg5[%c2_225, %c0_226, %c0_227] : memref<8x8x128xbf16, #tpu.memory_space<vmem>>, vector<1x8x128xbf16>
    %521 = vector.shape_cast %520 : vector<1x8x128xbf16> to vector<8x128xbf16>
    %522 = vector.shape_cast %519 : vector<8x128xbf16> to vector<1x8x128xbf16>
    tpu.vector_store %arg5[%c2_225, %c0_226, %c0_227], %522 {strides = array<i32>} : memref<8x8x128xbf16, #tpu.memory_space<vmem>>, vector<1x8x128xbf16>,
    %c6_228 = arith.constant 6 : index
    %c0_229 = arith.constant 0 : index
    %c0_230 = arith.constant 0 : index
    %523 = vector.load %arg1[%c6_228, %c0_229, %c0_230] : memref<8x8x512xbf16, #tpu.memory_space<vmem>>, vector<1x8x512xbf16>
    %524 = vector.shape_cast %523 : vector<1x8x512xbf16> to vector<8x512xbf16>
    %525 = arith.extf %524 : vector<8x512xbf16> to vector<8x512xf32>
    %526 = arith.truncf %475 : vector<8x128xf32> to vector<8x128xbf16>
    %c0_231 = arith.constant 0 : index
    %c0_232 = arith.constant 0 : index
    %c0_233 = arith.constant 0 : index
    %527 = vector.load %arg3[%c0_231, %c0_232, %c0_233] : memref<2x128x512xbf16, #tpu.memory_space<vmem>>, vector<1x128x512xbf16>
    %528 = vector.shape_cast %527 : vector<1x128x512xbf16> to vector<128x512xbf16>
    %cst_234 = arith.constant dense<0.000000e+00> : vector<8x512xf32>
    %529 = tpu.matmul %526, %528, %cst_234 {dimension_numbers = #tpu.dot_dimension_numbers<[1], [0], [0], [1], [0, 0, 1, 1], [], []>} : vector<8x128xbf16>, vector<128x512xbf16>, vector<8x512xf32> -> vector<8x512xf32>
    %530 = arith.addf %525, %529 : vector<8x512xf32>
    %531 = vector.extract_strided_slice %530 {offsets = [0, 0], sizes = [8, 128], strides = [1, 1]} : vector<8x512xf32> to vector<8x128xf32>
    %cst_235 = arith.constant 5.000000e-01 : f32
    %532 = vector.broadcast %cst_235 : f32 to vector<8x128xf32>
    %533 = arith.mulf %532, %531 : vector<8x128xf32>
    %534 = math.tanh %533 : vector<8x128xf32>
    %cst_236 = arith.constant 5.000000e-01 : f32
    %535 = vector.broadcast %cst_236 : f32 to vector<8x128xf32>
    %536 = arith.mulf %535, %534 : vector<8x128xf32>
    %cst_237 = arith.constant 5.000000e-01 : f32
    %537 = vector.broadcast %cst_237 : f32 to vector<8x128xf32>
    %538 = arith.addf %536, %537 : vector<8x128xf32>
    %539 = vector.extract_strided_slice %530 {offsets = [0, 128], sizes = [8, 128], strides = [1, 1]} : vector<8x512xf32> to vector<8x128xf32>
    %cst_238 = arith.constant 5.000000e-01 : f32
    %540 = vector.broadcast %cst_238 : f32 to vector<8x128xf32>
    %541 = arith.mulf %540, %539 : vector<8x128xf32>
    %542 = math.tanh %541 : vector<8x128xf32>
    %cst_239 = arith.constant 5.000000e-01 : f32
    %543 = vector.broadcast %cst_239 : f32 to vector<8x128xf32>
    %544 = arith.mulf %543, %542 : vector<8x128xf32>
    %cst_240 = arith.constant 5.000000e-01 : f32
    %545 = vector.broadcast %cst_240 : f32 to vector<8x128xf32>
    %546 = arith.addf %544, %545 : vector<8x128xf32>
    %547 = vector.extract_strided_slice %530 {offsets = [0, 256], sizes = [8, 128], strides = [1, 1]} : vector<8x512xf32> to vector<8x128xf32>
    %548 = math.tanh %547 : vector<8x128xf32>
    %549 = vector.extract_strided_slice %530 {offsets = [0, 384], sizes = [8, 128], strides = [1, 1]} : vector<8x512xf32> to vector<8x128xf32>
    %cst_241 = arith.constant 5.000000e-01 : f32
    %550 = vector.broadcast %cst_241 : f32 to vector<8x128xf32>
    %551 = arith.mulf %550, %549 : vector<8x128xf32>
    %552 = math.tanh %551 : vector<8x128xf32>
    %cst_242 = arith.constant 5.000000e-01 : f32
    %553 = vector.broadcast %cst_242 : f32 to vector<8x128xf32>
    %554 = arith.mulf %553, %552 : vector<8x128xf32>
    %cst_243 = arith.constant 5.000000e-01 : f32
    %555 = vector.broadcast %cst_243 : f32 to vector<8x128xf32>
    %556 = arith.addf %554, %555 : vector<8x128xf32>
    %557 = arith.mulf %546, %473 : vector<8x128xf32>
    %558 = arith.mulf %538, %548 : vector<8x128xf32>
    %559 = arith.addf %557, %558 : vector<8x128xf32>
    %560 = math.tanh %559 : vector<8x128xf32>
    %561 = arith.mulf %556, %560 : vector<8x128xf32>
    %562 = arith.truncf %561 : vector<8x128xf32> to vector<8x128xbf16>
    %c6_244 = arith.constant 6 : index
    %c0_245 = arith.constant 0 : index
    %c0_246 = arith.constant 0 : index
    %563 = vector.load %arg4[%c6_244, %c0_245, %c0_246] : memref<8x8x128xbf16, #tpu.memory_space<vmem>>, vector<1x8x128xbf16>
    %564 = vector.shape_cast %563 : vector<1x8x128xbf16> to vector<8x128xbf16>
    %565 = vector.shape_cast %562 : vector<8x128xbf16> to vector<1x8x128xbf16>
    tpu.vector_store %arg4[%c6_244, %c0_245, %c0_246], %565 {strides = array<i32>} : memref<8x8x128xbf16, #tpu.memory_space<vmem>>, vector<1x8x128xbf16>,
    %c1_247 = arith.constant 1 : index
    %c0_248 = arith.constant 0 : index
    %c0_249 = arith.constant 0 : index
    %566 = vector.load %arg2[%c1_247, %c0_248, %c0_249] : memref<8x8x512xbf16, #tpu.memory_space<vmem>>, vector<1x8x512xbf16>
    %567 = vector.shape_cast %566 : vector<1x8x512xbf16> to vector<8x512xbf16>
    %568 = arith.extf %567 : vector<8x512xbf16> to vector<8x512xf32>
    %569 = arith.truncf %518 : vector<8x128xf32> to vector<8x128xbf16>
    %c1_250 = arith.constant 1 : index
    %c0_251 = arith.constant 0 : index
    %c0_252 = arith.constant 0 : index
    %570 = vector.load %arg3[%c1_250, %c0_251, %c0_252] : memref<2x128x512xbf16, #tpu.memory_space<vmem>>, vector<1x128x512xbf16>
    %571 = vector.shape_cast %570 : vector<1x128x512xbf16> to vector<128x512xbf16>
    %cst_253 = arith.constant dense<0.000000e+00> : vector<8x512xf32>
    %572 = tpu.matmul %569, %571, %cst_253 {dimension_numbers = #tpu.dot_dimension_numbers<[1], [0], [0], [1], [0, 0, 1, 1], [], []>} : vector<8x128xbf16>, vector<128x512xbf16>, vector<8x512xf32> -> vector<8x512xf32>
    %573 = arith.addf %568, %572 : vector<8x512xf32>
    %574 = vector.extract_strided_slice %573 {offsets = [0, 0], sizes = [8, 128], strides = [1, 1]} : vector<8x512xf32> to vector<8x128xf32>
    %cst_254 = arith.constant 5.000000e-01 : f32
    %575 = vector.broadcast %cst_254 : f32 to vector<8x128xf32>
    %576 = arith.mulf %575, %574 : vector<8x128xf32>
    %577 = math.tanh %576 : vector<8x128xf32>
    %cst_255 = arith.constant 5.000000e-01 : f32
    %578 = vector.broadcast %cst_255 : f32 to vector<8x128xf32>
    %579 = arith.mulf %578, %577 : vector<8x128xf32>
    %cst_256 = arith.constant 5.000000e-01 : f32
    %580 = vector.broadcast %cst_256 : f32 to vector<8x128xf32>
    %581 = arith.addf %579, %580 : vector<8x128xf32>
    %582 = vector.extract_strided_slice %573 {offsets = [0, 128], sizes = [8, 128], strides = [1, 1]} : vector<8x512xf32> to vector<8x128xf32>
    %cst_257 = arith.constant 5.000000e-01 : f32
    %583 = vector.broadcast %cst_257 : f32 to vector<8x128xf32>
    %584 = arith.mulf %583, %582 : vector<8x128xf32>
    %585 = math.tanh %584 : vector<8x128xf32>
    %cst_258 = arith.constant 5.000000e-01 : f32
    %586 = vector.broadcast %cst_258 : f32 to vector<8x128xf32>
    %587 = arith.mulf %586, %585 : vector<8x128xf32>
    %cst_259 = arith.constant 5.000000e-01 : f32
    %588 = vector.broadcast %cst_259 : f32 to vector<8x128xf32>
    %589 = arith.addf %587, %588 : vector<8x128xf32>
    %590 = vector.extract_strided_slice %573 {offsets = [0, 256], sizes = [8, 128], strides = [1, 1]} : vector<8x512xf32> to vector<8x128xf32>
    %591 = math.tanh %590 : vector<8x128xf32>
    %592 = vector.extract_strided_slice %573 {offsets = [0, 384], sizes = [8, 128], strides = [1, 1]} : vector<8x512xf32> to vector<8x128xf32>
    %cst_260 = arith.constant 5.000000e-01 : f32
    %593 = vector.broadcast %cst_260 : f32 to vector<8x128xf32>
    %594 = arith.mulf %593, %592 : vector<8x128xf32>
    %595 = math.tanh %594 : vector<8x128xf32>
    %cst_261 = arith.constant 5.000000e-01 : f32
    %596 = vector.broadcast %cst_261 : f32 to vector<8x128xf32>
    %597 = arith.mulf %596, %595 : vector<8x128xf32>
    %cst_262 = arith.constant 5.000000e-01 : f32
    %598 = vector.broadcast %cst_262 : f32 to vector<8x128xf32>
    %599 = arith.addf %597, %598 : vector<8x128xf32>
    %600 = arith.mulf %589, %516 : vector<8x128xf32>
    %601 = arith.mulf %581, %591 : vector<8x128xf32>
    %602 = arith.addf %600, %601 : vector<8x128xf32>
    %603 = math.tanh %602 : vector<8x128xf32>
    %604 = arith.mulf %599, %603 : vector<8x128xf32>
    %605 = arith.truncf %604 : vector<8x128xf32> to vector<8x128xbf16>
    %c1_263 = arith.constant 1 : index
    %c0_264 = arith.constant 0 : index
    %c0_265 = arith.constant 0 : index
    %606 = vector.load %arg5[%c1_263, %c0_264, %c0_265] : memref<8x8x128xbf16, #tpu.memory_space<vmem>>, vector<1x8x128xbf16>
    %607 = vector.shape_cast %606 : vector<1x8x128xbf16> to vector<8x128xbf16>
    %608 = vector.shape_cast %605 : vector<8x128xbf16> to vector<1x8x128xbf16>
    tpu.vector_store %arg5[%c1_263, %c0_264, %c0_265], %608 {strides = array<i32>} : memref<8x8x128xbf16, #tpu.memory_space<vmem>>, vector<1x8x128xbf16>,
    %c7_266 = arith.constant 7 : index
    %c0_267 = arith.constant 0 : index
    %c0_268 = arith.constant 0 : index
    %609 = vector.load %arg1[%c7_266, %c0_267, %c0_268] : memref<8x8x512xbf16, #tpu.memory_space<vmem>>, vector<1x8x512xbf16>
    %610 = vector.shape_cast %609 : vector<1x8x512xbf16> to vector<8x512xbf16>
    %611 = arith.extf %610 : vector<8x512xbf16> to vector<8x512xf32>
    %612 = arith.truncf %561 : vector<8x128xf32> to vector<8x128xbf16>
    %c0_269 = arith.constant 0 : index
    %c0_270 = arith.constant 0 : index
    %c0_271 = arith.constant 0 : index
    %613 = vector.load %arg3[%c0_269, %c0_270, %c0_271] : memref<2x128x512xbf16, #tpu.memory_space<vmem>>, vector<1x128x512xbf16>
    %614 = vector.shape_cast %613 : vector<1x128x512xbf16> to vector<128x512xbf16>
    %cst_272 = arith.constant dense<0.000000e+00> : vector<8x512xf32>
    %615 = tpu.matmul %612, %614, %cst_272 {dimension_numbers = #tpu.dot_dimension_numbers<[1], [0], [0], [1], [0, 0, 1, 1], [], []>} : vector<8x128xbf16>, vector<128x512xbf16>, vector<8x512xf32> -> vector<8x512xf32>
    %616 = arith.addf %611, %615 : vector<8x512xf32>
    %617 = vector.extract_strided_slice %616 {offsets = [0, 0], sizes = [8, 128], strides = [1, 1]} : vector<8x512xf32> to vector<8x128xf32>
    %cst_273 = arith.constant 5.000000e-01 : f32
    %618 = vector.broadcast %cst_273 : f32 to vector<8x128xf32>
    %619 = arith.mulf %618, %617 : vector<8x128xf32>
    %620 = math.tanh %619 : vector<8x128xf32>
    %cst_274 = arith.constant 5.000000e-01 : f32
    %621 = vector.broadcast %cst_274 : f32 to vector<8x128xf32>
    %622 = arith.mulf %621, %620 : vector<8x128xf32>
    %cst_275 = arith.constant 5.000000e-01 : f32
    %623 = vector.broadcast %cst_275 : f32 to vector<8x128xf32>
    %624 = arith.addf %622, %623 : vector<8x128xf32>
    %625 = vector.extract_strided_slice %616 {offsets = [0, 128], sizes = [8, 128], strides = [1, 1]} : vector<8x512xf32> to vector<8x128xf32>
    %cst_276 = arith.constant 5.000000e-01 : f32
    %626 = vector.broadcast %cst_276 : f32 to vector<8x128xf32>
    %627 = arith.mulf %626, %625 : vector<8x128xf32>
    %628 = math.tanh %627 : vector<8x128xf32>
    %cst_277 = arith.constant 5.000000e-01 : f32
    %629 = vector.broadcast %cst_277 : f32 to vector<8x128xf32>
    %630 = arith.mulf %629, %628 : vector<8x128xf32>
    %cst_278 = arith.constant 5.000000e-01 : f32
    %631 = vector.broadcast %cst_278 : f32 to vector<8x128xf32>
    %632 = arith.addf %630, %631 : vector<8x128xf32>
    %633 = vector.extract_strided_slice %616 {offsets = [0, 256], sizes = [8, 128], strides = [1, 1]} : vector<8x512xf32> to vector<8x128xf32>
    %634 = math.tanh %633 : vector<8x128xf32>
    %635 = vector.extract_strided_slice %616 {offsets = [0, 384], sizes = [8, 128], strides = [1, 1]} : vector<8x512xf32> to vector<8x128xf32>
    %cst_279 = arith.constant 5.000000e-01 : f32
    %636 = vector.broadcast %cst_279 : f32 to vector<8x128xf32>
    %637 = arith.mulf %636, %635 : vector<8x128xf32>
    %638 = math.tanh %637 : vector<8x128xf32>
    %cst_280 = arith.constant 5.000000e-01 : f32
    %639 = vector.broadcast %cst_280 : f32 to vector<8x128xf32>
    %640 = arith.mulf %639, %638 : vector<8x128xf32>
    %cst_281 = arith.constant 5.000000e-01 : f32
    %641 = vector.broadcast %cst_281 : f32 to vector<8x128xf32>
    %642 = arith.addf %640, %641 : vector<8x128xf32>
    %643 = arith.mulf %632, %559 : vector<8x128xf32>
    %644 = arith.mulf %624, %634 : vector<8x128xf32>
    %645 = arith.addf %643, %644 : vector<8x128xf32>
    %646 = math.tanh %645 : vector<8x128xf32>
    %647 = arith.mulf %642, %646 : vector<8x128xf32>
    %648 = arith.truncf %647 : vector<8x128xf32> to vector<8x128xbf16>
    %c7_282 = arith.constant 7 : index
    %c0_283 = arith.constant 0 : index
    %c0_284 = arith.constant 0 : index
    %649 = vector.load %arg4[%c7_282, %c0_283, %c0_284] : memref<8x8x128xbf16, #tpu.memory_space<vmem>>, vector<1x8x128xbf16>
    %650 = vector.shape_cast %649 : vector<1x8x128xbf16> to vector<8x128xbf16>
    %651 = vector.shape_cast %648 : vector<8x128xbf16> to vector<1x8x128xbf16>
    tpu.vector_store %arg4[%c7_282, %c0_283, %c0_284], %651 {strides = array<i32>} : memref<8x8x128xbf16, #tpu.memory_space<vmem>>, vector<1x8x128xbf16>,
    %c0_285 = arith.constant 0 : index
    %c0_286 = arith.constant 0 : index
    %c0_287 = arith.constant 0 : index
    %652 = vector.load %arg2[%c0_285, %c0_286, %c0_287] : memref<8x8x512xbf16, #tpu.memory_space<vmem>>, vector<1x8x512xbf16>
    %653 = vector.shape_cast %652 : vector<1x8x512xbf16> to vector<8x512xbf16>
    %654 = arith.extf %653 : vector<8x512xbf16> to vector<8x512xf32>
    %655 = arith.truncf %604 : vector<8x128xf32> to vector<8x128xbf16>
    %c1_288 = arith.constant 1 : index
    %c0_289 = arith.constant 0 : index
    %c0_290 = arith.constant 0 : index
    %656 = vector.load %arg3[%c1_288, %c0_289, %c0_290] : memref<2x128x512xbf16, #tpu.memory_space<vmem>>, vector<1x128x512xbf16>
    %657 = vector.shape_cast %656 : vector<1x128x512xbf16> to vector<128x512xbf16>
    %cst_291 = arith.constant dense<0.000000e+00> : vector<8x512xf32>
    %658 = tpu.matmul %655, %657, %cst_291 {dimension_numbers = #tpu.dot_dimension_numbers<[1], [0], [0], [1], [0, 0, 1, 1], [], []>} : vector<8x128xbf16>, vector<128x512xbf16>, vector<8x512xf32> -> vector<8x512xf32>
    %659 = arith.addf %654, %658 : vector<8x512xf32>
    %660 = vector.extract_strided_slice %659 {offsets = [0, 0], sizes = [8, 128], strides = [1, 1]} : vector<8x512xf32> to vector<8x128xf32>
    %cst_292 = arith.constant 5.000000e-01 : f32
    %661 = vector.broadcast %cst_292 : f32 to vector<8x128xf32>
    %662 = arith.mulf %661, %660 : vector<8x128xf32>
    %663 = math.tanh %662 : vector<8x128xf32>
    %cst_293 = arith.constant 5.000000e-01 : f32
    %664 = vector.broadcast %cst_293 : f32 to vector<8x128xf32>
    %665 = arith.mulf %664, %663 : vector<8x128xf32>
    %cst_294 = arith.constant 5.000000e-01 : f32
    %666 = vector.broadcast %cst_294 : f32 to vector<8x128xf32>
    %667 = arith.addf %665, %666 : vector<8x128xf32>
    %668 = vector.extract_strided_slice %659 {offsets = [0, 128], sizes = [8, 128], strides = [1, 1]} : vector<8x512xf32> to vector<8x128xf32>
    %cst_295 = arith.constant 5.000000e-01 : f32
    %669 = vector.broadcast %cst_295 : f32 to vector<8x128xf32>
    %670 = arith.mulf %669, %668 : vector<8x128xf32>
    %671 = math.tanh %670 : vector<8x128xf32>
    %cst_296 = arith.constant 5.000000e-01 : f32
    %672 = vector.broadcast %cst_296 : f32 to vector<8x128xf32>
    %673 = arith.mulf %672, %671 : vector<8x128xf32>
    %cst_297 = arith.constant 5.000000e-01 : f32
    %674 = vector.broadcast %cst_297 : f32 to vector<8x128xf32>
    %675 = arith.addf %673, %674 : vector<8x128xf32>
    %676 = vector.extract_strided_slice %659 {offsets = [0, 256], sizes = [8, 128], strides = [1, 1]} : vector<8x512xf32> to vector<8x128xf32>
    %677 = math.tanh %676 : vector<8x128xf32>
    %678 = vector.extract_strided_slice %659 {offsets = [0, 384], sizes = [8, 128], strides = [1, 1]} : vector<8x512xf32> to vector<8x128xf32>
    %cst_298 = arith.constant 5.000000e-01 : f32
    %679 = vector.broadcast %cst_298 : f32 to vector<8x128xf32>
    %680 = arith.mulf %679, %678 : vector<8x128xf32>
    %681 = math.tanh %680 : vector<8x128xf32>
    %cst_299 = arith.constant 5.000000e-01 : f32
    %682 = vector.broadcast %cst_299 : f32 to vector<8x128xf32>
    %683 = arith.mulf %682, %681 : vector<8x128xf32>
    %cst_300 = arith.constant 5.000000e-01 : f32
    %684 = vector.broadcast %cst_300 : f32 to vector<8x128xf32>
    %685 = arith.addf %683, %684 : vector<8x128xf32>
    %686 = arith.mulf %675, %602 : vector<8x128xf32>
    %687 = arith.mulf %667, %677 : vector<8x128xf32>
    %688 = arith.addf %686, %687 : vector<8x128xf32>
    %689 = math.tanh %688 : vector<8x128xf32>
    %690 = arith.mulf %685, %689 : vector<8x128xf32>
    %691 = arith.truncf %690 : vector<8x128xf32> to vector<8x128xbf16>
    %c0_301 = arith.constant 0 : index
    %c0_302 = arith.constant 0 : index
    %c0_303 = arith.constant 0 : index
    %692 = vector.load %arg5[%c0_301, %c0_302, %c0_303] : memref<8x8x128xbf16, #tpu.memory_space<vmem>>, vector<1x8x128xbf16>
    %693 = vector.shape_cast %692 : vector<1x8x128xbf16> to vector<8x128xbf16>
    %694 = vector.shape_cast %691 : vector<8x128xbf16> to vector<1x8x128xbf16>
    tpu.vector_store %arg5[%c0_301, %c0_302, %c0_303], %694 {strides = array<i32>} : memref<8x8x128xbf16, #tpu.memory_space<vmem>>, vector<1x8x128xbf16>,
    %c0_304 = arith.constant 0 : index
    %c0_305 = arith.constant 0 : index
    %695 = vector.load %arg6[%c0_304, %c0_305] : memref<8x128xf32, #tpu.memory_space<vmem>>, vector<8x128xf32>
    tpu.vector_store %arg6[%c0_304, %c0_305], %647 {strides = array<i32>} : memref<8x128xf32, #tpu.memory_space<vmem>>, vector<8x128xf32>,
    %c0_306 = arith.constant 0 : index
    %c0_307 = arith.constant 0 : index
    %696 = vector.load %arg7[%c0_306, %c0_307] : memref<8x128xf32, #tpu.memory_space<vmem>>, vector<8x128xf32>
    tpu.vector_store %arg7[%c0_306, %c0_307], %645 {strides = array<i32>} : memref<8x128xf32, #tpu.memory_space<vmem>>, vector<8x128xf32>,
    %c0_308 = arith.constant 0 : index
    %c0_309 = arith.constant 0 : index
    %697 = vector.load %arg8[%c0_308, %c0_309] : memref<8x128xf32, #tpu.memory_space<vmem>>, vector<8x128xf32>
    tpu.vector_store %arg8[%c0_308, %c0_309], %690 {strides = array<i32>} : memref<8x128xf32, #tpu.memory_space<vmem>>, vector<8x128xf32>,
    %c0_310 = arith.constant 0 : index
    %c0_311 = arith.constant 0 : index
    %698 = vector.load %arg9[%c0_310, %c0_311] : memref<8x128xf32, #tpu.memory_space<vmem>>, vector<8x128xf32>
    tpu.vector_store %arg9[%c0_310, %c0_311], %688 {strides = array<i32>} : memref<8x128xf32, #tpu.memory_space<vmem>>, vector<8x128xf32>,
    return
  }
  func.func @transform_0(%arg0: i32) -> (i32, i32, i32) {
    %c0_i32 = arith.constant 0 : i32
    %c0_i32_0 = arith.constant 0 : i32
    %c0_i32_1 = arith.constant 0 : i32
    return %arg0, %c0_i32, %c0_i32_0 : i32, i32, i32
  }
  func.func @transform_1(%arg0: i32) -> (i32, i32, i32) {
    %c0_i32 = arith.constant 0 : i32
    %0 = arith.subi %c0_i32, %arg0 : i32
    %c0_i32_0 = arith.constant 0 : i32
    %c0_i32_1 = arith.constant 0 : i32
    %c0_i32_2 = arith.constant 0 : i32
    return %0, %c0_i32_0, %c0_i32_1 : i32, i32, i32
  }
  func.func @transform_2(%arg0: i32) -> (i32, i32, i32) {
    %c0_i32 = arith.constant 0 : i32
    %c0_i32_0 = arith.constant 0 : i32
    %c0_i32_1 = arith.constant 0 : i32
    %c0_i32_2 = arith.constant 0 : i32
    return %c0_i32, %c0_i32_0, %c0_i32_1 : i32, i32, i32
  }
  func.func @transform_3(%arg0: i32) -> (i32, i32, i32) {
    %c0_i32 = arith.constant 0 : i32
    %c0_i32_0 = arith.constant 0 : i32
    %c0_i32_1 = arith.constant 0 : i32
    return %arg0, %c0_i32, %c0_i32_0 : i32, i32, i32
  }
  func.func @transform_4(%arg0: i32) -> (i32, i32, i32) {
    %c0_i32 = arith.constant 0 : i32
    %0 = arith.subi %c0_i32, %arg0 : i32
    %c0_i32_0 = arith.constant 0 : i32
    %c0_i32_1 = arith.constant 0 : i32
    %c0_i32_2 = arith.constant 0 : i32
    return %0, %c0_i32_0, %c0_i32_1 : i32, i32, i32
  }
}

</mosaic_0001>

<llo_original>
// kernel: bilstm_forward.2
$region0: #{bilstm_forward.2}
  #allocation0 [shape = 'u32[]', space=smem, size = 0x4, offset = 0x4, fixed_abs, tag = 'smem constant byte address 0x4 - core index']
  #allocation1 [shape = 'u32[144,128]{1,0:T(1,128)}', space=vmem, size = 0x12000, scoped, tag = 'internal scratch']
  #allocation2 [shape = 'f32[8,128]{1,0:T(8,128)}', space=vmem, size = 0x1000, scoped, tag = 'scratch operand']
  #allocation3 [shape = 'f32[8,128]{1,0:T(8,128)}', space=vmem, size = 0x1000, scoped, tag = 'scratch operand']
  #allocation4 [shape = 'f32[8,128]{1,0:T(8,128)}', space=vmem, size = 0x1000, scoped, tag = 'scratch operand']
  #allocation5 [shape = 'f32[8,128]{1,0:T(8,128)}', space=vmem, size = 0x1000, scoped, tag = 'scratch operand']
  %s0 = inlined_call_operand.vmem [shape: bf16[8,8,512], index: 0, kind: input, shape index: {}]
  %s1 = inlined_call_operand.vmem [shape: bf16[8,8,512], index: 1, kind: input, shape index: {}]
  %s2 = inlined_call_operand.hbm [shape: bf16[2,128,512], index: 2, kind: input, shape index: {}]
  %s3 = inlined_call_operand.vmem [shape: bf16[8,8,128], index: 3, kind: output, shape index: {0}]
  %s4 = inlined_call_operand.vmem [shape: bf16[8,8,128], index: 4, kind: output, shape index: {1}]
  %5 = xla_tuple %s3, %s4
  %s6 = sld [smem:[#allocation0]]
  $region38: #{bilstm_forward.2} parent=0
    _
  %s8 = ssub.s32 1, %s6
  %s9 = scalar_select 0, %s8, %s6
  $region1: #{bilstm_forward.2} parent=0
    #allocation6 [shape = 'u8[262144]{0}', space=vmem, size = 0x40000, scoped, tag = 'input window, operand 2, single buffered']
    #allocation7 [shape = 's32[1]{0}', space=sflag, size = 0x4, scoped, tag = 'scoped memory for bilstm_forward.2']
    %10 = vsyncpa [#allocation7], 0
    // Predicated region
    $region2: #{bilstm_forward.2} parent=1 // pred_check
      _
    $region3: #{bilstm_forward.2} parent=1 // pred_check_branch
      %12 = sbr.rel (0) target = $region5
    $region4: #{bilstm_forward.2} parent=1 // pred_region
      _
    $region5: #{bilstm_forward.2} parent=1 // pred_fallthru
      _
    // Predicated region
    $region6: #{bilstm_forward.2} parent=1 // pred_check
      _
    $region7: #{bilstm_forward.2} parent=1 // pred_check_branch
      %14 = sbr.rel (0) target = $region9
    $region8: #{bilstm_forward.2} parent=1 // pred_region
      %s15 = ssub.s32 0, 0
      %s16 = smul.u32 8, %s15
      %p17 = scmp.lt.s32.totalorder %s16, 7
      %s18 = scalar_select %p17, %s16, 7
      %s19 = smul.addr %s18, 4
      %s20 = smul.addr %s19, 4
      %s21 = scalar_lea.vmem %s1, %s20
      %s22 = ssub.s32 0, 0
      %s23 = smul.u32 8, %s22
    $region9: #{bilstm_forward.2} parent=1 // pred_fallthru
      _
    // Predicated region
    $region10: #{bilstm_forward.2} parent=1 // pred_check
      _
    $region11: #{bilstm_forward.2} parent=1 // pred_check_branch
      %25 = sbr.rel (0) target = $region13
    $region12: #{bilstm_forward.2} parent=1 // pred_region
      %s27 = ssub.s32 8192, 8192
      %28 = vsyncadd [#allocation7], %s27
      %s29 = sshll.u32 [#allocation6], 4
      %s30 = int_to_ptr.vmem [resolvable:$true] %s29
      %35 = dma.hbm_to_vmem [thread:$0]  %s2, 8192, %s30, [#allocation7], 256, 256, 16
    $region13: #{bilstm_forward.2} parent=1 // pred_fallthru
      _
    // Predicated region
    $region14: #{bilstm_forward.2} parent=1 // pred_check
      _
    $region15: #{bilstm_forward.2} parent=1 // pred_check_branch
      %37 = sbr.rel (0) target = $region17
    $region16: #{bilstm_forward.2} parent=1 // pred_region
      %38 = dma.done [#allocation7], 8192
    $region17: #{bilstm_forward.2} parent=1 // pred_fallthru
      _
    %s39 = ssub.s32 0, 0
    %s40 = smul.u32 8, %s39
    %p41 = scmp.lt.s32.totalorder %s40, 7
    %s42 = scalar_select %p41, %s40, 7
    %s43 = smul.addr %s42, 4
    %s44 = smul.addr %s43, 4
    %s45 = scalar_lea.vmem %s1, %s44
    %s46 = ssub.s32 0, 0
    %s47 = smul.u32 8, %s46
    %p48 = scmp.lt.s32.totalorder %s47, 7
    %s49 = scalar_select %p48, %s47, 7
    %s50 = smul.addr %s49, 4
    %s51 = scalar_lea.vmem %s4, %s50
    %s52 = ssub.s32 0, 0
    %s53 = smul.u32 8, %s52
    %p54 = scmp.lt.s32.totalorder %s53, 7
    %s55 = scalar_select %p54, %s53, 7
    %s56 = smul.addr %s55, 4
    %s57 = smul.addr %s56, 4
    %s58 = scalar_lea.vmem %s1, %s57
    %s59 = ssub.s32 0, 0
    %s60 = smul.u32 8, %s59
    %s61 = ssub.s32 0, 0
    %s62 = smul.u32 8, %s61
    %p63 = scmp.lt.s32.totalorder %s62, 7
    %s64 = scalar_select %p63, %s62, 7
    %s65 = smul.addr %s64, 4
    %s66 = scalar_lea.vmem %s4, %s65
    %s67 = ssub.s32 0, 0
    %s68 = smul.u32 8, %s67
    %p70 = scmp.eq.s32.totalorder 0, 0
    // Predicated region
    $region18: #{bilstm_forward.2} parent=1 // pred_check
      %p71 = pneg %p70
    $region19: #{bilstm_forward.2} parent=1 // pred_check_branch
      %73 = sbr.rel (%p71) target = $region21
    $region20: #{bilstm_forward.2} parent=1 // pred_region
      %74 = vst [vmem:[#allocation2] sm:$0xff] 0.0
      %75 = vst [vmem:[#allocation3] sm:$0xff] 0.0
      %76 = vst [vmem:[#allocation4] sm:$0xff] 0.0
      %77 = vst [vmem:[#allocation5] sm:$0xff] 0.0
    $region21: #{bilstm_forward.2} parent=1 // pred_fallthru
      _
    %v78 = vld [vmem:[#allocation2] sm:$0xff]
    %v79 = vld [vmem:[#allocation3] sm:$0xff]
    %v80 = vld [vmem:[#allocation4] sm:$0xff]
    %v81 = vld [vmem:[#allocation5] sm:$0xff]
    %v82 = vld [vmem:[%s0] sm:$0xff]
    %v83 = vld [vmem:[%s0 + $0x8] sm:$0xff]
    %v84 = vunpack.c.l.bf16 %v82
    %v85 = vunpack.c.h.bf16 %v82
    %v86 = vunpack.c.l.bf16 %v83
    %v87 = vunpack.c.h.bf16 %v83
    %v88 = vpack.c.bf16 %v78, %v78
    %v89 = vld [vmem:[#allocation6] sm:$0xff]
    %v90 = vld [vmem:[#allocation6 + $0x8] sm:$0xff]
    %v91 = vld [vmem:[#allocation6 + $0x10] sm:$0xff]
    %v92 = vld [vmem:[#allocation6 + $0x18] sm:$0xff]
    %v93 = vld [vmem:[#allocation6 + $0x20] sm:$0xff]
    %v94 = vld [vmem:[#allocation6 + $0x28] sm:$0xff]
    %v95 = vld [vmem:[#allocation6 + $0x30] sm:$0xff]
    %v96 = vld [vmem:[#allocation6 + $0x38] sm:$0xff]
    %v97 = vld [vmem:[#allocation6 + $0x40] sm:$0xff]
    %v98 = vld [vmem:[#allocation6 + $0x48] sm:$0xff]
    %v99 = vld [vmem:[#allocation6 + $0x50] sm:$0xff]
    %v100 = vld [vmem:[#allocation6 + $0x58] sm:$0xff]
    %v101 = vld [vmem:[#allocation6 + $0x60] sm:$0xff]
    %v102 = vld [vmem:[#allocation6 + $0x68] sm:$0xff]
    %v103 = vld [vmem:[#allocation6 + $0x70] sm:$0xff]
    %v104 = vld [vmem:[#allocation6 + $0x78] sm:$0xff]
    %v105 = vld [vmem:[#allocation6 + $0x80] sm:$0xff]
    %v106 = vld [vmem:[#allocation6 + $0x88] sm:$0xff]
    %v107 = vld [vmem:[#allocation6 + $0x90] sm:$0xff]
    %v108 = vld [vmem:[#allocation6 + $0x98] sm:$0xff]
    %v109 = vld [vmem:[#allocation6 + $0xa0] sm:$0xff]
    %v110 = vld [vmem:[#allocation6 + $0xa8] sm:$0xff]
    %v111 = vld [vmem:[#allocation6 + $0xb0] sm:$0xff]
    %v112 = vld [vmem:[#allocation6 + $0xb8] sm:$0xff]
    %v113 = vld [vmem:[#allocation6 + $0xc0] sm:$0xff]
    %v114 = vld [vmem:[#allocation6 + $0xc8] sm:$0xff]
    %v115 = vld [vmem:[#allocation6 + $0xd0] sm:$0xff]
    %v116 = vld [vmem:[#allocation6 + $0xd8] sm:$0xff]
    %v117 = vld [vmem:[#allocation6 + $0xe0] sm:$0xff]
    %v118 = vld [vmem:[#allocation6 + $0xe8] sm:$0xff]
    %v119 = vld [vmem:[#allocation6 + $0xf0] sm:$0xff]
    %v120 = vld [vmem:[#allocation6 + $0xf8] sm:$0xff]
    %v153 = vunpack.c.l.b16 %v89
    %v154 = vunpack.c.h.b16 %v89
    %v155 = vunpack.c.l.b16 %v90
    %v156 = vunpack.c.h.b16 %v90
    %v157 = vunpack.c.l.b16 %v91
    %v158 = vunpack.c.h.b16 %v91
    %v159 = vunpack.c.l.b16 %v92
    %v160 = vunpack.c.h.b16 %v92
    %v161 = vunpack.c.l.b16 %v93
    %v162 = vunpack.c.h.b16 %v93
    %v163 = vunpack.c.l.b16 %v94
    %v164 = vunpack.c.h.b16 %v94
    %v165 = vunpack.c.l.b16 %v95
    %v166 = vunpack.c.h.b16 %v95
    %v167 = vunpack.c.l.b16 %v96
    %v168 = vunpack.c.h.b16 %v96
    %v169 = vunpack.c.l.b16 %v97
    %v170 = vunpack.c.h.b16 %v97
    %v171 = vunpack.c.l.b16 %v98
    %v172 = vunpack.c.h.b16 %v98
    %v173 = vunpack.c.l.b16 %v99
    %v174 = vunpack.c.h.b16 %v99
    %v175 = vunpack.c.l.b16 %v100
    %v176 = vunpack.c.h.b16 %v100
    %v177 = vunpack.c.l.b16 %v101
    %v178 = vunpack.c.h.b16 %v101
    %v179 = vunpack.c.l.b16 %v102
    %v180 = vunpack.c.h.b16 %v102
    %v181 = vunpack.c.l.b16 %v103
    %v182 = vunpack.c.h.b16 %v103
    %v183 = vunpack.c.l.b16 %v104
    %v184 = vunpack.c.h.b16 %v104
    %v185 = vunpack.c.l.b16 %v105
    %v186 = vunpack.c.h.b16 %v105
    %v187 = vunpack.c.l.b16 %v106
    %v188 = vunpack.c.h.b16 %v106
    %v189 = vunpack.c.l.b16 %v107
    %v190 = vunpack.c.h.b16 %v107
    %v191 = vunpack.c.l.b16 %v108
    %v192 = vunpack.c.h.b16 %v108
    %v193 = vunpack.c.l.b16 %v109
    %v194 = vunpack.c.h.b16 %v109
    %v195 = vunpack.c.l.b16 %v110
    %v196 = vunpack.c.h.b16 %v110
    %v197 = vunpack.c.l.b16 %v111
    %v198 = vunpack.c.h.b16 %v111
    %v199 = vunpack.c.l.b16 %v112
    %v200 = vunpack.c.h.b16 %v112
    %v201 = vunpack.c.l.b16 %v113
    %v202 = vunpack.c.h.b16 %v113
    %v203 = vunpack.c.l.b16 %v114
    %v204 = vunpack.c.h.b16 %v114
    %v205 = vunpack.c.l.b16 %v115
    %v206 = vunpack.c.h.b16 %v115
    %v207 = vunpack.c.l.b16 %v116
    %v208 = vunpack.c.h.b16 %v116
    %v209 = vunpack.c.l.b16 %v117
    %v210 = vunpack.c.h.b16 %v117
    %v211 = vunpack.c.l.b16 %v118
    %v212 = vunpack.c.h.b16 %v118
    %v213 = vunpack.c.l.b16 %v119
    %v214 = vunpack.c.h.b16 %v119
    %v215 = vunpack.c.l.b16 %v120
    %v216 = vunpack.c.h.b16 %v120
    %v217 = vpack.c.b16 %v157, %v153
    %v218 = vpack.c.b16 %v158, %v154
    %v219 = vpack.c.b16 %v159, %v155
    %v220 = vpack.c.b16 %v160, %v156
    %v221 = vpack.c.b16 %v165, %v161
    %v222 = vpack.c.b16 %v166, %v162
    %v223 = vpack.c.b16 %v167, %v163
    %v224 = vpack.c.b16 %v168, %v164
    %v225 = vpack.c.b16 %v173, %v169
    %v226 = vpack.c.b16 %v174, %v170
    %v227 = vpack.c.b16 %v175, %v171
    %v228 = vpack.c.b16 %v176, %v172
    %v229 = vpack.c.b16 %v181, %v177
    %v230 = vpack.c.b16 %v182, %v178
    %v231 = vpack.c.b16 %v183, %v179
    %v232 = vpack.c.b16 %v184, %v180
    %v233 = vpack.c.b16 %v189, %v185
    %v234 = vpack.c.b16 %v190, %v186
    %v235 = vpack.c.b16 %v191, %v187
    %v236 = vpack.c.b16 %v192, %v188
    %v237 = vpack.c.b16 %v197, %v193
    %v238 = vpack.c.b16 %v198, %v194
    %v239 = vpack.c.b16 %v199, %v195
    %v240 = vpack.c.b16 %v200, %v196
    %v241 = vpack.c.b16 %v205, %v201
    %v242 = vpack.c.b16 %v206, %v202
    %v243 = vpack.c.b16 %v207, %v203
    %v244 = vpack.c.b16 %v208, %v204
    %v245 = vpack.c.b16 %v213, %v209
    %v246 = vpack.c.b16 %v214, %v210
    %v247 = vpack.c.b16 %v215, %v211
    %v248 = vpack.c.b16 %v216, %v212
    %281 = vmatprep.subr.bf16.mxu0 %v218
    %282 = vmatpush1.bf16.msra.mxu0 %v217
    %283 = vmatprep.subr.bf16.mxu0 %v222
    %284 = vmatpush1.bf16.msra.mxu0 %v221
    %285 = vmatprep.subr.bf16.mxu0 %v226
    %286 = vmatpush1.bf16.msra.mxu0 %v225
    %287 = vmatprep.subr.bf16.mxu0 %v230
    %288 = vmatpush1.bf16.msra.mxu0 %v229
    %289 = vmatprep.subr.bf16.mxu0 %v234
    %290 = vmatpush1.bf16.msra.mxu0 %v233
    %291 = vmatprep.subr.bf16.mxu0 %v238
    %292 = vmatpush1.bf16.msra.mxu0 %v237
    %293 = vmatprep.subr.bf16.mxu0 %v242
    %294 = vmatpush1.bf16.msra.mxu0 %v241
    %295 = vmatprep.subr.bf16.mxu0 %v246
    %296 = vmatpush1.bf16.msra.mxu0 %v245
    %297 = vmatprep.subr.bf16.mxu0 0
    %298 = vmatpush1.bf16.msra.mxu0 0
    %299 = vmatprep.subr.bf16.mxu0 0
    %300 = vmatpush1.bf16.msra.mxu0 0
    %301 = vmatprep.subr.bf16.mxu0 0
    %302 = vmatpush1.bf16.msra.mxu0 0
    %303 = vmatprep.subr.bf16.mxu0 0
    %304 = vmatpush1.bf16.msra.mxu0 0
    %305 = vmatprep.subr.bf16.mxu0 0
    %306 = vmatpush1.bf16.msra.mxu0 0
    %307 = vmatprep.subr.bf16.mxu0 0
    %308 = vmatpush1.bf16.msra.mxu0 0
    %309 = vmatprep.subr.bf16.mxu0 0
    %310 = vmatpush1.bf16.msra.mxu0 0
    %311 = vmatprep.subr.bf16.mxu0 0
    %312 = vmatpush1.bf16.msra.mxu0 0
    %313 = vmatprep.mubr.bf16.mxu0 0
    %314 = vmatmul.mubr.bf16.gmra.mrb[0].mxu0 %v88
    %v315 = vpop.f32.mrb[0].mxu0
    %v316 = vadd.f32 0.0, %v315
    %v317 = vpop.f32.mrb[0].mxu0
    %v318 = vadd.f32 0.0, %v317
    %v319 = vpop.f32.mrb[0].mxu0
    %v320 = vpop.f32.mrb[0].mxu0
    %321 = vdwg.mxu0
    %322 = vmatprep.subr.bf16.mxu0 %v220
    %323 = vmatpush1.bf16.msra.mxu0 %v219
    %324 = vmatprep.subr.bf16.mxu0 %v224
    %325 = vmatpush1.bf16.msra.mxu0 %v223
    %326 = vmatprep.subr.bf16.mxu0 %v228
    %327 = vmatpush1.bf16.msra.mxu0 %v227
    %328 = vmatprep.subr.bf16.mxu0 %v232
    %329 = vmatpush1.bf16.msra.mxu0 %v231
    %330 = vmatprep.subr.bf16.mxu0 %v236
    %331 = vmatpush1.bf16.msra.mxu0 %v235
    %332 = vmatprep.subr.bf16.mxu0 %v240
    %333 = vmatpush1.bf16.msra.mxu0 %v239
    %334 = vmatprep.subr.bf16.mxu0 %v244
    %335 = vmatpush1.bf16.msra.mxu0 %v243
    %336 = vmatprep.subr.bf16.mxu0 %v248
    %337 = vmatpush1.bf16.msra.mxu0 %v247
    %338 = vmatprep.subr.bf16.mxu0 0
    %339 = vmatpush1.bf16.msra.mxu0 0
    %340 = vmatprep.subr.bf16.mxu0 0
    %341 = vmatpush1.bf16.msra.mxu0 0
    %342 = vmatprep.subr.bf16.mxu0 0
    %343 = vmatpush1.bf16.msra.mxu0 0
    %344 = vmatprep.subr.bf16.mxu0 0
    %345 = vmatpush1.bf16.msra.mxu0 0
    %346 = vmatprep.subr.bf16.mxu0 0
    %347 = vmatpush1.bf16.msra.mxu0 0
    %348 = vmatprep.subr.bf16.mxu0 0
    %349 = vmatpush1.bf16.msra.mxu0 0
    %350 = vmatprep.subr.bf16.mxu0 0
    %351 = vmatpush1.bf16.msra.mxu0 0
    %352 = vmatprep.subr.bf16.mxu0 0
    %353 = vmatpush1.bf16.msra.mxu0 0
    %354 = vmatprep.mubr.bf16.mxu0 0
    %355 = vmatmul.mubr.bf16.gmra.mrb[0].mxu0 %v88
    %v356 = vpop.f32.mrb[0].mxu0
    %v357 = vadd.f32 0.0, %v356
    %v358 = vpop.f32.mrb[0].mxu0
    %v359 = vadd.f32 0.0, %v358
    %v360 = vpop.f32.mrb[0].mxu0
    %v361 = vpop.f32.mrb[0].mxu0
    %362 = vdwg.mxu0
    %v363 = vadd.f32 %v84, %v316
    %v364 = vadd.f32 %v85, %v318
    %v365 = vadd.f32 %v86, %v357
    %v366 = vadd.f32 %v87, %v359
    %v367 = vmul.f32 %v363, 0.5
    %v368 = vtanh.pop %v367
    %v369 = vmul.f32 %v368, 0.5
    %v370 = vadd.f32 %v369, 0.5
    %v371 = vmul.f32 %v364, 0.5
    %v372 = vtanh.pop %v371
    %v373 = vmul.f32 %v372, 0.5
    %v374 = vadd.f32 %v373, 0.5
    %v375 = vtanh.pop %v365
    %v376 = vmul.f32 %v366, 0.5
    %v377 = vtanh.pop %v376
    %v378 = vmul.f32 %v377, 0.5
    %v379 = vadd.f32 %v378, 0.5
    %v380 = vmul.f32 %v374, %v79
    %v381 = vmul.f32 %v370, %v375
    %v382 = vadd.f32 %v380, %v381
    %v383 = vtanh.pop %v382
    %v384 = vmul.f32 %v379, %v383
    %v385 = vpack.c.bf16 %v384, %v384
    %386 = vst [vmem:[%s3] sm:$0xf] %v385
    %s387 = scalar_lea.vmem %s58, 112
    %v388 = vld [vmem:[%s387] sm:$0xff]
    %v389 = vld [vmem:[%s387 + $0x8] sm:$0xff]
    %v390 = vunpack.c.l.bf16 %v388
    %v391 = vunpack.c.h.bf16 %v388
    %v392 = vunpack.c.l.bf16 %v389
    %v393 = vunpack.c.h.bf16 %v389
    %v394 = vpack.c.bf16 %v80, %v80
    %s395 = scalar_lea.vmem [#allocation6], 256
    %v396 = vld [vmem:[%s395] sm:$0xff]
    %v397 = vld [vmem:[%s395 + $0x8] sm:$0xff]
    %v398 = vld [vmem:[%s395 + $0x10] sm:$0xff]
    %v399 = vld [vmem:[%s395 + $0x18] sm:$0xff]
    %v400 = vld [vmem:[%s395 + $0x20] sm:$0xff]
    %v401 = vld [vmem:[%s395 + $0x28] sm:$0xff]
    %v402 = vld [vmem:[%s395 + $0x30] sm:$0xff]
    %v403 = vld [vmem:[%s395 + $0x38] sm:$0xff]
    %v404 = vld [vmem:[%s395 + $0x40] sm:$0xff]
    %v405 = vld [vmem:[%s395 + $0x48] sm:$0xff]
    %v406 = vld [vmem:[%s395 + $0x50] sm:$0xff]
    %v407 = vld [vmem:[%s395 + $0x58] sm:$0xff]
    %v408 = vld [vmem:[%s395 + $0x60] sm:$0xff]
    %v409 = vld [vmem:[%s395 + $0x68] sm:$0xff]
    %v410 = vld [vmem:[%s395 + $0x70] sm:$0xff]
    %v411 = vld [vmem:[%s395 + $0x78] sm:$0xff]
    %v412 = vld [vmem:[%s395 + $0x80] sm:$0xff]
    %v413 = vld [vmem:[%s395 + $0x88] sm:$0xff]
    %v414 = vld [vmem:[%s395 + $0x90] sm:$0xff]
    %v415 = vld [vmem:[%s395 + $0x98] sm:$0xff]
    %v416 = vld [vmem:[%s395 + $0xa0] sm:$0xff]
    %v417 = vld [vmem:[%s395 + $0xa8] sm:$0xff]
    %v418 = vld [vmem:[%s395 + $0xb0] sm:$0xff]
    %v419 = vld [vmem:[%s395 + $0xb8] sm:$0xff]
    %v420 = vld [vmem:[%s395 + $0xc0] sm:$0xff]
    %v421 = vld [vmem:[%s395 + $0xc8] sm:$0xff]
    %v422 = vld [vmem:[%s395 + $0xd0] sm:$0xff]
    %v423 = vld [vmem:[%s395 + $0xd8] sm:$0xff]
    %v424 = vld [vmem:[%s395 + $0xe0] sm:$0xff]
    %v425 = vld [vmem:[%s395 + $0xe8] sm:$0xff]
    %v426 = vld [vmem:[%s395 + $0xf0] sm:$0xff]
    %v427 = vld [vmem:[%s395 + $0xf8] sm:$0xff]
    %v460 = vunpack.c.l.b16 %v396
    %v461 = vunpack.c.h.b16 %v396
    %v462 = vunpack.c.l.b16 %v397
    %v463 = vunpack.c.h.b16 %v397
    %v464 = vunpack.c.l.b16 %v398
    %v465 = vunpack.c.h.b16 %v398
    %v466 = vunpack.c.l.b16 %v399
    %v467 = vunpack.c.h.b16 %v399
    %v468 = vunpack.c.l.b16 %v400
    %v469 = vunpack.c.h.b16 %v400
    %v470 = vunpack.c.l.b16 %v401
    %v471 = vunpack.c.h.b16 %v401
    %v472 = vunpack.c.l.b16 %v402
    %v473 = vunpack.c.h.b16 %v402
    %v474 = vunpack.c.l.b16 %v403
    %v475 = vunpack.c.h.b16 %v403
    %v476 = vunpack.c.l.b16 %v404
    %v477 = vunpack.c.h.b16 %v404
    %v478 = vunpack.c.l.b16 %v405
    %v479 = vunpack.c.h.b16 %v405
    %v480 = vunpack.c.l.b16 %v406
    %v481 = vunpack.c.h.b16 %v406
    %v482 = vunpack.c.l.b16 %v407
    %v483 = vunpack.c.h.b16 %v407
    %v484 = vunpack.c.l.b16 %v408
    %v485 = vunpack.c.h.b16 %v408
    %v486 = vunpack.c.l.b16 %v409
    %v487 = vunpack.c.h.b16 %v409
    %v488 = vunpack.c.l.b16 %v410
    %v489 = vunpack.c.h.b16 %v410
    %v490 = vunpack.c.l.b16 %v411
    %v491 = vunpack.c.h.b16 %v411
    %v492 = vunpack.c.l.b16 %v412
    %v493 = vunpack.c.h.b16 %v412
    %v494 = vunpack.c.l.b16 %v413
    %v495 = vunpack.c.h.b16 %v413
    %v496 = vunpack.c.l.b16 %v414
    %v497 = vunpack.c.h.b16 %v414
    %v498 = vunpack.c.l.b16 %v415
    %v499 = vunpack.c.h.b16 %v415
    %v500 = vunpack.c.l.b16 %v416
    %v501 = vunpack.c.h.b16 %v416
    %v502 = vunpack.c.l.b16 %v417
    %v503 = vunpack.c.h.b16 %v417
    %v504 = vunpack.c.l.b16 %v418
    %v505 = vunpack.c.h.b16 %v418
    %v506 = vunpack.c.l.b16 %v419
    %v507 = vunpack.c.h.b16 %v419
    %v508 = vunpack.c.l.b16 %v420
    %v509 = vunpack.c.h.b16 %v420
    %v510 = vunpack.c.l.b16 %v421
    %v511 = vunpack.c.h.b16 %v421
    %v512 = vunpack.c.l.b16 %v422
    %v513 = vunpack.c.h.b16 %v422
    %v514 = vunpack.c.l.b16 %v423
    %v515 = vunpack.c.h.b16 %v423
    %v516 = vunpack.c.l.b16 %v424
    %v517 = vunpack.c.h.b16 %v424
    %v518 = vunpack.c.l.b16 %v425
    %v519 = vunpack.c.h.b16 %v425
    %v520 = vunpack.c.l.b16 %v426
    %v521 = vunpack.c.h.b16 %v426
    %v522 = vunpack.c.l.b16 %v427
    %v523 = vunpack.c.h.b16 %v427
    %v524 = vpack.c.b16 %v464, %v460
    %v525 = vpack.c.b16 %v465, %v461
    %v526 = vpack.c.b16 %v466, %v462
    %v527 = vpack.c.b16 %v467, %v463
    %v528 = vpack.c.b16 %v472, %v468
    %v529 = vpack.c.b16 %v473, %v469
    %v530 = vpack.c.b16 %v474, %v470
    %v531 = vpack.c.b16 %v475, %v471
    %v532 = vpack.c.b16 %v480, %v476
    %v533 = vpack.c.b16 %v481, %v477
    %v534 = vpack.c.b16 %v482, %v478
    %v535 = vpack.c.b16 %v483, %v479
    %v536 = vpack.c.b16 %v488, %v484
    %v537 = vpack.c.b16 %v489, %v485
    %v538 = vpack.c.b16 %v490, %v486
    %v539 = vpack.c.b16 %v491, %v487
    %v540 = vpack.c.b16 %v496, %v492
    %v541 = vpack.c.b16 %v497, %v493
    %v542 = vpack.c.b16 %v498, %v494
    %v543 = vpack.c.b16 %v499, %v495
    %v544 = vpack.c.b16 %v504, %v500
    %v545 = vpack.c.b16 %v505, %v501
    %v546 = vpack.c.b16 %v506, %v502
    %v547 = vpack.c.b16 %v507, %v503
    %v548 = vpack.c.b16 %v512, %v508
    %v549 = vpack.c.b16 %v513, %v509
    %v550 = vpack.c.b16 %v514, %v510
    %v551 = vpack.c.b16 %v515, %v511
    %v552 = vpack.c.b16 %v520, %v516
    %v553 = vpack.c.b16 %v521, %v517
    %v554 = vpack.c.b16 %v522, %v518
    %v555 = vpack.c.b16 %v523, %v519
    %588 = vmatprep.subr.bf16.mxu0 %v525
    %589 = vmatpush1.bf16.msra.mxu0 %v524
    %590 = vmatprep.subr.bf16.mxu0 %v529
    %591 = vmatpush1.bf16.msra.mxu0 %v528
    %592 = vmatprep.subr.bf16.mxu0 %v533
    %593 = vmatpush1.bf16.msra.mxu0 %v532
    %594 = vmatprep.subr.bf16.mxu0 %v537
    %595 = vmatpush1.bf16.msra.mxu0 %v536
    %596 = vmatprep.subr.bf16.mxu0 %v541
    %597 = vmatpush1.bf16.msra.mxu0 %v540
    %598 = vmatprep.subr.bf16.mxu0 %v545
    %599 = vmatpush1.bf16.msra.mxu0 %v544
    %600 = vmatprep.subr.bf16.mxu0 %v549
    %601 = vmatpush1.bf16.msra.mxu0 %v548
    %602 = vmatprep.subr.bf16.mxu0 %v553
    %603 = vmatpush1.bf16.msra.mxu0 %v552
    %604 = vmatprep.subr.bf16.mxu0 0
    %605 = vmatpush1.bf16.msra.mxu0 0
    %606 = vmatprep.subr.bf16.mxu0 0
    %607 = vmatpush1.bf16.msra.mxu0 0
    %608 = vmatprep.subr.bf16.mxu0 0
    %609 = vmatpush1.bf16.msra.mxu0 0
    %610 = vmatprep.subr.bf16.mxu0 0
    %611 = vmatpush1.bf16.msra.mxu0 0
    %612 = vmatprep.subr.bf16.mxu0 0
    %613 = vmatpush1.bf16.msra.mxu0 0
    %614 = vmatprep.subr.bf16.mxu0 0
    %615 = vmatpush1.bf16.msra.mxu0 0
    %616 = vmatprep.subr.bf16.mxu0 0
    %617 = vmatpush1.bf16.msra.mxu0 0
    %618 = vmatprep.subr.bf16.mxu0 0
    %619 = vmatpush1.bf16.msra.mxu0 0
    %620 = vmatprep.mubr.bf16.mxu0 0
    %621 = vmatmul.mubr.bf16.gmra.mrb[0].mxu0 %v394
    %v622 = vpop.f32.mrb[0].mxu0
    %v623 = vadd.f32 0.0, %v622
    %v624 = vpop.f32.mrb[0].mxu0
    %v625 = vadd.f32 0.0, %v624
    %v626 = vpop.f32.mrb[0].mxu0
    %v627 = vpop.f32.mrb[0].mxu0
    %628 = vdwg.mxu0
    %629 = vmatprep.subr.bf16.mxu0 %v527
    %630 = vmatpush1.bf16.msra.mxu0 %v526
    %631 = vmatprep.subr.bf16.mxu0 %v531
    %632 = vmatpush1.bf16.msra.mxu0 %v530
    %633 = vmatprep.subr.bf16.mxu0 %v535
    %634 = vmatpush1.bf16.msra.mxu0 %v534
    %635 = vmatprep.subr.bf16.mxu0 %v539
    %636 = vmatpush1.bf16.msra.mxu0 %v538
    %637 = vmatprep.subr.bf16.mxu0 %v543
    %638 = vmatpush1.bf16.msra.mxu0 %v542
    %639 = vmatprep.subr.bf16.mxu0 %v547
    %640 = vmatpush1.bf16.msra.mxu0 %v546
    %641 = vmatprep.subr.bf16.mxu0 %v551
    %642 = vmatpush1.bf16.msra.mxu0 %v550
    %643 = vmatprep.subr.bf16.mxu0 %v555
    %644 = vmatpush1.bf16.msra.mxu0 %v554
    %645 = vmatprep.subr.bf16.mxu0 0
    %646 = vmatpush1.bf16.msra.mxu0 0
    %647 = vmatprep.subr.bf16.mxu0 0
    %648 = vmatpush1.bf16.msra.mxu0 0
    %649 = vmatprep.subr.bf16.mxu0 0
    %650 = vmatpush1.bf16.msra.mxu0 0
    %651 = vmatprep.subr.bf16.mxu0 0
    %652 = vmatpush1.bf16.msra.mxu0 0
    %653 = vmatprep.subr.bf16.mxu0 0
    %654 = vmatpush1.bf16.msra.mxu0 0
    %655 = vmatprep.subr.bf16.mxu0 0
    %656 = vmatpush1.bf16.msra.mxu0 0
    %657 = vmatprep.subr.bf16.mxu0 0
    %658 = vmatpush1.bf16.msra.mxu0 0
    %659 = vmatprep.subr.bf16.mxu0 0
    %660 = vmatpush1.bf16.msra.mxu0 0
    %661 = vmatprep.mubr.bf16.mxu0 0
    %662 = vmatmul.mubr.bf16.gmra.mrb[0].mxu0 %v394
    %v663 = vpop.f32.mrb[0].mxu0
    %v664 = vadd.f32 0.0, %v663
    %v665 = vpop.f32.mrb[0].mxu0
    %v666 = vadd.f32 0.0, %v665
    %v667 = vpop.f32.mrb[0].mxu0
    %v668 = vpop.f32.mrb[0].mxu0
    %669 = vdwg.mxu0
    %v670 = vadd.f32 %v390, %v623
    %v671 = vadd.f32 %v391, %v625
    %v672 = vadd.f32 %v392, %v664
    %v673 = vadd.f32 %v393, %v666
    %v674 = vmul.f32 %v670, 0.5
    %v675 = vtanh.pop %v674
    %v676 = vmul.f32 %v675, 0.5
    %v677 = vadd.f32 %v676, 0.5
    %v678 = vmul.f32 %v671, 0.5
    %v679 = vtanh.pop %v678
    %v680 = vmul.f32 %v679, 0.5
    %v681 = vadd.f32 %v680, 0.5
    %v682 = vtanh.pop %v672
    %v683 = vmul.f32 %v673, 0.5
    %v684 = vtanh.pop %v683
    %v685 = vmul.f32 %v684, 0.5
    %v686 = vadd.f32 %v685, 0.5
    %v687 = vmul.f32 %v681, %v81
    %v688 = vmul.f32 %v677, %v682
    %v689 = vadd.f32 %v687, %v688
    %v690 = vtanh.pop %v689
    %v691 = vmul.f32 %v686, %v690
    %v692 = vpack.c.bf16 %v691, %v691
    %s693 = scalar_lea.vmem %s66, 28
    %694 = vst [vmem:[%s693] sm:$0xf] %v692
    %s695 = scalar_lea.vmem %s0, 16
    %v696 = vld [vmem:[%s695] sm:$0xff]
    %v697 = vld [vmem:[%s695 + $0x8] sm:$0xff]
    %v698 = vunpack.c.l.bf16 %v696
    %v699 = vunpack.c.h.bf16 %v696
    %v700 = vunpack.c.l.bf16 %v697
    %v701 = vunpack.c.h.bf16 %v697
    %v702 = vld [vmem:[#allocation6] sm:$0xff]
    %v703 = vld [vmem:[#allocation6 + $0x8] sm:$0xff]
    %v704 = vld [vmem:[#allocation6 + $0x10] sm:$0xff]
    %v705 = vld [vmem:[#allocation6 + $0x18] sm:$0xff]
    %v706 = vld [vmem:[#allocation6 + $0x20] sm:$0xff]
    %v707 = vld [vmem:[#allocation6 + $0x28] sm:$0xff]
    %v708 = vld [vmem:[#allocation6 + $0x30] sm:$0xff]
    %v709 = vld [vmem:[#allocation6 + $0x38] sm:$0xff]
    %v710 = vld [vmem:[#allocation6 + $0x40] sm:$0xff]
    %v711 = vld [vmem:[#allocation6 + $0x48] sm:$0xff]
    %v712 = vld [vmem:[#allocation6 + $0x50] sm:$0xff]
    %v713 = vld [vmem:[#allocation6 + $0x58] sm:$0xff]
    %v714 = vld [vmem:[#allocation6 + $0x60] sm:$0xff]
    %v715 = vld [vmem:[#allocation6 + $0x68] sm:$0xff]
    %v716 = vld [vmem:[#allocation6 + $0x70] sm:$0xff]
    %v717 = vld [vmem:[#allocation6 + $0x78] sm:$0xff]
    %v718 = vld [vmem:[#allocation6 + $0x80] sm:$0xff]
    %v719 = vld [vmem:[#allocation6 + $0x88] sm:$0xff]
    %v720 = vld [vmem:[#allocation6 + $0x90] sm:$0xff]
    %v721 = vld [vmem:[#allocation6 + $0x98] sm:$0xff]
    %v722 = vld [vmem:[#allocation6 + $0xa0] sm:$0xff]
    %v723 = vld [vmem:[#allocation6 + $0xa8] sm:$0xff]
    %v724 = vld [vmem:[#allocation6 + $0xb0] sm:$0xff]
    %v725 = vld [vmem:[#allocation6 + $0xb8] sm:$0xff]
    %v726 = vld [vmem:[#allocation6 + $0xc0] sm:$0xff]
    %v727 = vld [vmem:[#allocation6 + $0xc8] sm:$0xff]
    %v728 = vld [vmem:[#allocation6 + $0xd0] sm:$0xff]
    %v729 = vld [vmem:[#allocation6 + $0xd8] sm:$0xff]
    %v730 = vld [vmem:[#allocation6 + $0xe0] sm:$0xff]
    %v731 = vld [vmem:[#allocation6 + $0xe8] sm:$0xff]
    %v732 = vld [vmem:[#allocation6 + $0xf0] sm:$0xff]
    %v733 = vld [vmem:[#allocation6 + $0xf8] sm:$0xff]
    %v766 = vunpack.c.l.b16 %v702
    %v767 = vunpack.c.h.b16 %v702
    %v768 = vunpack.c.l.b16 %v703
    %v769 = vunpack.c.h.b16 %v703
    %v770 = vunpack.c.l.b16 %v704
    %v771 = vunpack.c.h.b16 %v704
    %v772 = vunpack.c.l.b16 %v705
    %v773 = vunpack.c.h.b16 %v705
    %v774 = vunpack.c.l.b16 %v706
    %v775 = vunpack.c.h.b16 %v706
    %v776 = vunpack.c.l.b16 %v707
    %v777 = vunpack.c.h.b16 %v707
    %v778 = vunpack.c.l.b16 %v708
    %v779 = vunpack.c.h.b16 %v708
    %v780 = vunpack.c.l.b16 %v709
    %v781 = vunpack.c.h.b16 %v709
    %v782 = vunpack.c.l.b16 %v710
    %v783 = vunpack.c.h.b16 %v710
    %v784 = vunpack.c.l.b16 %v711
    %v785 = vunpack.c.h.b16 %v711
    %v786 = vunpack.c.l.b16 %v712
    %v787 = vunpack.c.h.b16 %v712
    %v788 = vunpack.c.l.b16 %v713
    %v789 = vunpack.c.h.b16 %v713
    %v790 = vunpack.c.l.b16 %v714
    %v791 = vunpack.c.h.b16 %v714
    %v792 = vunpack.c.l.b16 %v715
    %v793 = vunpack.c.h.b16 %v715
    %v794 = vunpack.c.l.b16 %v716
    %v795 = vunpack.c.h.b16 %v716
    %v796 = vunpack.c.l.b16 %v717
    %v797 = vunpack.c.h.b16 %v717
    %v798 = vunpack.c.l.b16 %v718
    %v799 = vunpack.c.h.b16 %v718
    %v800 = vunpack.c.l.b16 %v719
    %v801 = vunpack.c.h.b16 %v719
    %v802 = vunpack.c.l.b16 %v720
    %v803 = vunpack.c.h.b16 %v720
    %v804 = vunpack.c.l.b16 %v721
    %v805 = vunpack.c.h.b16 %v721
    %v806 = vunpack.c.l.b16 %v722
    %v807 = vunpack.c.h.b16 %v722
    %v808 = vunpack.c.l.b16 %v723
    %v809 = vunpack.c.h.b16 %v723
    %v810 = vunpack.c.l.b16 %v724
    %v811 = vunpack.c.h.b16 %v724
    %v812 = vunpack.c.l.b16 %v725
    %v813 = vunpack.c.h.b16 %v725
    %v814 = vunpack.c.l.b16 %v726
    %v815 = vunpack.c.h.b16 %v726
    %v816 = vunpack.c.l.b16 %v727
    %v817 = vunpack.c.h.b16 %v727
    %v818 = vunpack.c.l.b16 %v728
    %v819 = vunpack.c.h.b16 %v728
    %v820 = vunpack.c.l.b16 %v729
    %v821 = vunpack.c.h.b16 %v729
    %v822 = vunpack.c.l.b16 %v730
    %v823 = vunpack.c.h.b16 %v730
    %v824 = vunpack.c.l.b16 %v731
    %v825 = vunpack.c.h.b16 %v731
    %v826 = vunpack.c.l.b16 %v732
    %v827 = vunpack.c.h.b16 %v732
    %v828 = vunpack.c.l.b16 %v733
    %v829 = vunpack.c.h.b16 %v733
    %v830 = vpack.c.b16 %v770, %v766
    %v831 = vpack.c.b16 %v771, %v767
    %v832 = vpack.c.b16 %v772, %v768
    %v833 = vpack.c.b16 %v773, %v769
    %v834 = vpack.c.b16 %v778, %v774
    %v835 = vpack.c.b16 %v779, %v775
    %v836 = vpack.c.b16 %v780, %v776
    %v837 = vpack.c.b16 %v781, %v777
    %v838 = vpack.c.b16 %v786, %v782
    %v839 = vpack.c.b16 %v787, %v783
    %v840 = vpack.c.b16 %v788, %v784
    %v841 = vpack.c.b16 %v789, %v785
    %v842 = vpack.c.b16 %v794, %v790
    %v843 = vpack.c.b16 %v795, %v791
    %v844 = vpack.c.b16 %v796, %v792
    %v845 = vpack.c.b16 %v797, %v793
    %v846 = vpack.c.b16 %v802, %v798
    %v847 = vpack.c.b16 %v803, %v799
    %v848 = vpack.c.b16 %v804, %v800
    %v849 = vpack.c.b16 %v805, %v801
    %v850 = vpack.c.b16 %v810, %v806
    %v851 = vpack.c.b16 %v811, %v807
    %v852 = vpack.c.b16 %v812, %v808
    %v853 = vpack.c.b16 %v813, %v809
    %v854 = vpack.c.b16 %v818, %v814
    %v855 = vpack.c.b16 %v819, %v815
    %v856 = vpack.c.b16 %v820, %v816
    %v857 = vpack.c.b16 %v821, %v817
    %v858 = vpack.c.b16 %v826, %v822
    %v859 = vpack.c.b16 %v827, %v823
    %v860 = vpack.c.b16 %v828, %v824
    %v861 = vpack.c.b16 %v829, %v825
    %894 = vmatprep.subr.bf16.mxu0 %v831
    %895 = vmatpush1.bf16.msra.mxu0 %v830
    %896 = vmatprep.subr.bf16.mxu0 %v835
    %897 = vmatpush1.bf16.msra.mxu0 %v834
    %898 = vmatprep.subr.bf16.mxu0 %v839
    %899 = vmatpush1.bf16.msra.mxu0 %v838
    %900 = vmatprep.subr.bf16.mxu0 %v843
    %901 = vmatpush1.bf16.msra.mxu0 %v842
    %902 = vmatprep.subr.bf16.mxu0 %v847
    %903 = vmatpush1.bf16.msra.mxu0 %v846
    %904 = vmatprep.subr.bf16.mxu0 %v851
    %905 = vmatpush1.bf16.msra.mxu0 %v850
    %906 = vmatprep.subr.bf16.mxu0 %v855
    %907 = vmatpush1.bf16.msra.mxu0 %v854
    %908 = vmatprep.subr.bf16.mxu0 %v859
    %909 = vmatpush1.bf16.msra.mxu0 %v858
    %910 = vmatprep.subr.bf16.mxu0 0
    %911 = vmatpush1.bf16.msra.mxu0 0
    %912 = vmatprep.subr.bf16.mxu0 0
    %913 = vmatpush1.bf16.msra.mxu0 0
    %914 = vmatprep.subr.bf16.mxu0 0
    %915 = vmatpush1.bf16.msra.mxu0 0
    %916 = vmatprep.subr.bf16.mxu0 0
    %917 = vmatpush1.bf16.msra.mxu0 0
    %918 = vmatprep.subr.bf16.mxu0 0
    %919 = vmatpush1.bf16.msra.mxu0 0
    %920 = vmatprep.subr.bf16.mxu0 0
    %921 = vmatpush1.bf16.msra.mxu0 0
    %922 = vmatprep.subr.bf16.mxu0 0
    %923 = vmatpush1.bf16.msra.mxu0 0
    %924 = vmatprep.subr.bf16.mxu0 0
    %925 = vmatpush1.bf16.msra.mxu0 0
    %926 = vmatprep.mubr.bf16.mxu0 0
    %927 = vmatmul.mubr.bf16.gmra.mrb[0].mxu0 %v385
    %v928 = vpop.f32.mrb[0].mxu0
    %v929 = vadd.f32 0.0, %v928
    %v930 = vpop.f32.mrb[0].mxu0
    %v931 = vadd.f32 0.0, %v930
    %v932 = vpop.f32.mrb[0].mxu0
    %v933 = vpop.f32.mrb[0].mxu0
    %934 = vdwg.mxu0
    %935 = vmatprep.subr.bf16.mxu0 %v833
    %936 = vmatpush1.bf16.msra.mxu0 %v832
    %937 = vmatprep.subr.bf16.mxu0 %v837
    %938 = vmatpush1.bf16.msra.mxu0 %v836
    %939 = vmatprep.subr.bf16.mxu0 %v841
    %940 = vmatpush1.bf16.msra.mxu0 %v840
    %941 = vmatprep.subr.bf16.mxu0 %v845
    %942 = vmatpush1.bf16.msra.mxu0 %v844
    %943 = vmatprep.subr.bf16.mxu0 %v849
    %944 = vmatpush1.bf16.msra.mxu0 %v848
    %945 = vmatprep.subr.bf16.mxu0 %v853
    %946 = vmatpush1.bf16.msra.mxu0 %v852
    %947 = vmatprep.subr.bf16.mxu0 %v857
    %948 = vmatpush1.bf16.msra.mxu0 %v856
    %949 = vmatprep.subr.bf16.mxu0 %v861
    %950 = vmatpush1.bf16.msra.mxu0 %v860
    %951 = vmatprep.subr.bf16.mxu0 0
    %952 = vmatpush1.bf16.msra.mxu0 0
    %953 = vmatprep.subr.bf16.mxu0 0
    %954 = vmatpush1.bf16.msra.mxu0 0
    %955 = vmatprep.subr.bf16.mxu0 0
    %956 = vmatpush1.bf16.msra.mxu0 0
    %957 = vmatprep.subr.bf16.mxu0 0
    %958 = vmatpush1.bf16.msra.mxu0 0
    %959 = vmatprep.subr.bf16.mxu0 0
    %960 = vmatpush1.bf16.msra.mxu0 0
    %961 = vmatprep.subr.bf16.mxu0 0
    %962 = vmatpush1.bf16.msra.mxu0 0
    %963 = vmatprep.subr.bf16.mxu0 0
    %964 = vmatpush1.bf16.msra.mxu0 0
    %965 = vmatprep.subr.bf16.mxu0 0
    %966 = vmatpush1.bf16.msra.mxu0 0
    %967 = vmatprep.mubr.bf16.mxu0 0
    %968 = vmatmul.mubr.bf16.gmra.mrb[0].mxu0 %v385
    %v969 = vpop.f32.mrb[0].mxu0
    %v970 = vadd.f32 0.0, %v969
    %v971 = vpop.f32.mrb[0].mxu0
    %v972 = vadd.f32 0.0, %v971
    %v973 = vpop.f32.mrb[0].mxu0
    %v974 = vpop.f32.mrb[0].mxu0
    %975 = vdwg.mxu0
    %v976 = vadd.f32 %v698, %v929
    %v977 = vadd.f32 %v699, %v931
    %v978 = vadd.f32 %v700, %v970
    %v979 = vadd.f32 %v701, %v972
    %v980 = vmul.f32 %v976, 0.5
    %v981 = vtanh.pop %v980
    %v982 = vmul.f32 %v981, 0.5
    %v983 = vadd.f32 %v982, 0.5
    %v984 = vmul.f32 %v977, 0.5
    %v985 = vtanh.pop %v984
    %v986 = vmul.f32 %v985, 0.5
    %v987 = vadd.f32 %v986, 0.5
    %v988 = vtanh.pop %v978
    %v989 = vmul.f32 %v979, 0.5
    %v990 = vtanh.pop %v989
    %v991 = vmul.f32 %v990, 0.5
    %v992 = vadd.f32 %v991, 0.5
    %v993 = vmul.f32 %v987, %v382
    %v994 = vmul.f32 %v983, %v988
    %v995 = vadd.f32 %v993, %v994
    %v996 = vtanh.pop %v995
    %v997 = vmul.f32 %v992, %v996
    %v998 = vpack.c.bf16 %v997, %v997
    %s999 = scalar_lea.vmem %s3, 4
    %1000 = vst [vmem:[%s999] sm:$0xf] %v998
    %s1001 = scalar_lea.vmem %s58, 96
    %v1002 = vld [vmem:[%s1001] sm:$0xff]
    %v1003 = vld [vmem:[%s1001 + $0x8] sm:$0xff]
    %v1004 = vunpack.c.l.bf16 %v1002
    %v1005 = vunpack.c.h.bf16 %v1002
    %v1006 = vunpack.c.l.bf16 %v1003
    %v1007 = vunpack.c.h.bf16 %v1003
    %v1008 = vld [vmem:[%s395] sm:$0xff]
    %v1009 = vld [vmem:[%s395 + $0x8] sm:$0xff]
    %v1010 = vld [vmem:[%s395 + $0x10] sm:$0xff]
    %v1011 = vld [vmem:[%s395 + $0x18] sm:$0xff]
    %v1012 = vld [vmem:[%s395 + $0x20] sm:$0xff]
    %v1013 = vld [vmem:[%s395 + $0x28] sm:$0xff]
    %v1014 = vld [vmem:[%s395 + $0x30] sm:$0xff]
    %v1015 = vld [vmem:[%s395 + $0x38] sm:$0xff]
    %v1016 = vld [vmem:[%s395 + $0x40] sm:$0xff]
    %v1017 = vld [vmem:[%s395 + $0x48] sm:$0xff]
    %v1018 = vld [vmem:[%s395 + $0x50] sm:$0xff]
    %v1019 = vld [vmem:[%s395 + $0x58] sm:$0xff]
    %v1020 = vld [vmem:[%s395 + $0x60] sm:$0xff]
    %v1021 = vld [vmem:[%s395 + $0x68] sm:$0xff]
    %v1022 = vld [vmem:[%s395 + $0x70] sm:$0xff]
    %v1023 = vld [vmem:[%s395 + $0x78] sm:$0xff]
    %v1024 = vld [vmem:[%s395 + $0x80] sm:$0xff]
    %v1025 = vld [vmem:[%s395 + $0x88] sm:$0xff]
    %v1026 = vld [vmem:[%s395 + $0x90] sm:$0xff]
    %v1027 = vld [vmem:[%s395 + $0x98] sm:$0xff]
    %v1028 = vld [vmem:[%s395 + $0xa0] sm:$0xff]
    %v1029 = vld [vmem:[%s395 + $0xa8] sm:$0xff]
    %v1030 = vld [vmem:[%s395 + $0xb0] sm:$0xff]
    %v1031 = vld [vmem:[%s395 + $0xb8] sm:$0xff]
    %v1032 = vld [vmem:[%s395 + $0xc0] sm:$0xff]
    %v1033 = vld [vmem:[%s395 + $0xc8] sm:$0xff]
    %v1034 = vld [vmem:[%s395 + $0xd0] sm:$0xff]
    %v1035 = vld [vmem:[%s395 + $0xd8] sm:$0xff]
    %v1036 = vld [vmem:[%s395 + $0xe0] sm:$0xff]
    %v1037 = vld [vmem:[%s395 + $0xe8] sm:$0xff]
    %v1038 = vld [vmem:[%s395 + $0xf0] sm:$0xff]
    %v1039 = vld [vmem:[%s395 + $0xf8] sm:$0xff]
    %v1072 = vunpack.c.l.b16 %v1008
    %v1073 = vunpack.c.h.b16 %v1008
    %v1074 = vunpack.c.l.b16 %v1009
    %v1075 = vunpack.c.h.b16 %v1009
    %v1076 = vunpack.c.l.b16 %v1010
    %v1077 = vunpack.c.h.b16 %v1010
    %v1078 = vunpack.c.l.b16 %v1011
    %v1079 = vunpack.c.h.b16 %v1011
    %v1080 = vunpack.c.l.b16 %v1012
    %v1081 = vunpack.c.h.b16 %v1012
    %v1082 = vunpack.c.l.b16 %v1013
    %v1083 = vunpack.c.h.b16 %v1013
    %v1084 = vunpack.c.l.b16 %v1014
    %v1085 = vunpack.c.h.b16 %v1014
    %v1086 = vunpack.c.l.b16 %v1015
    %v1087 = vunpack.c.h.b16 %v1015
    %v1088 = vunpack.c.l.b16 %v1016
    %v1089 = vunpack.c.h.b16 %v1016
    %v1090 = vunpack.c.l.b16 %v1017
    %v1091 = vunpack.c.h.b16 %v1017
    %v1092 = vunpack.c.l.b16 %v1018
    %v1093 = vunpack.c.h.b16 %v1018
    %v1094 = vunpack.c.l.b16 %v1019
    %v1095 = vunpack.c.h.b16 %v1019
    %v1096 = vunpack.c.l.b16 %v1020
    %v1097 = vunpack.c.h.b16 %v1020
    %v1098 = vunpack.c.l.b16 %v1021
    %v1099 = vunpack.c.h.b16 %v1021
    %v1100 = vunpack.c.l.b16 %v1022
    %v1101 = vunpack.c.h.b16 %v1022
    %v1102 = vunpack.c.l.b16 %v1023
    %v1103 = vunpack.c.h.b16 %v1023
    %v1104 = vunpack.c.l.b16 %v1024
    %v1105 = vunpack.c.h.b16 %v1024
    %v1106 = vunpack.c.l.b16 %v1025
    %v1107 = vunpack.c.h.b16 %v1025
    %v1108 = vunpack.c.l.b16 %v1026
    %v1109 = vunpack.c.h.b16 %v1026
    %v1110 = vunpack.c.l.b16 %v1027
    %v1111 = vunpack.c.h.b16 %v1027
    %v1112 = vunpack.c.l.b16 %v1028
    %v1113 = vunpack.c.h.b16 %v1028
    %v1114 = vunpack.c.l.b16 %v1029
    %v1115 = vunpack.c.h.b16 %v1029
    %v1116 = vunpack.c.l.b16 %v1030
    %v1117 = vunpack.c.h.b16 %v1030
    %v1118 = vunpack.c.l.b16 %v1031
    %v1119 = vunpack.c.h.b16 %v1031
    %v1120 = vunpack.c.l.b16 %v1032
    %v1121 = vunpack.c.h.b16 %v1032
    %v1122 = vunpack.c.l.b16 %v1033
    %v1123 = vunpack.c.h.b16 %v1033
    %v1124 = vunpack.c.l.b16 %v1034
    %v1125 = vunpack.c.h.b16 %v1034
    %v1126 = vunpack.c.l.b16 %v1035
    %v1127 = vunpack.c.h.b16 %v1035
    %v1128 = vunpack.c.l.b16 %v1036
    %v1129 = vunpack.c.h.b16 %v1036
    %v1130 = vunpack.c.l.b16 %v1037
    %v1131 = vunpack.c.h.b16 %v1037
    %v1132 = vunpack.c.l.b16 %v1038
    %v1133 = vunpack.c.h.b16 %v1038
    %v1134 = vunpack.c.l.b16 %v1039
    %v1135 = vunpack.c.h.b16 %v1039
    %v1136 = vpack.c.b16 %v1076, %v1072
    %v1137 = vpack.c.b16 %v1077, %v1073
    %v1138 = vpack.c.b16 %v1078, %v1074
    %v1139 = vpack.c.b16 %v1079, %v1075
    %v1140 = vpack.c.b16 %v1084, %v1080
    %v1141 = vpack.c.b16 %v1085, %v1081
    %v1142 = vpack.c.b16 %v1086, %v1082
    %v1143 = vpack.c.b16 %v1087, %v1083
    %v1144 = vpack.c.b16 %v1092, %v1088
    %v1145 = vpack.c.b16 %v1093, %v1089
    %v1146 = vpack.c.b16 %v1094, %v1090
    %v1147 = vpack.c.b16 %v1095, %v1091
    %v1148 = vpack.c.b16 %v1100, %v1096
    %v1149 = vpack.c.b16 %v1101, %v1097
    %v1150 = vpack.c.b16 %v1102, %v1098
    %v1151 = vpack.c.b16 %v1103, %v1099
    %v1152 = vpack.c.b16 %v1108, %v1104
    %v1153 = vpack.c.b16 %v1109, %v1105
    %v1154 = vpack.c.b16 %v1110, %v1106
    %v1155 = vpack.c.b16 %v1111, %v1107
    %v1156 = vpack.c.b16 %v1116, %v1112
    %v1157 = vpack.c.b16 %v1117, %v1113
    %v1158 = vpack.c.b16 %v1118, %v1114
    %v1159 = vpack.c.b16 %v1119, %v1115
    %v1160 = vpack.c.b16 %v1124, %v1120
    %v1161 = vpack.c.b16 %v1125, %v1121
    %v1162 = vpack.c.b16 %v1126, %v1122
    %v1163 = vpack.c.b16 %v1127, %v1123
    %v1164 = vpack.c.b16 %v1132, %v1128
    %v1165 = vpack.c.b16 %v1133, %v1129
    %v1166 = vpack.c.b16 %v1134, %v1130
    %v1167 = vpack.c.b16 %v1135, %v1131
    %1200 = vmatprep.subr.bf16.mxu0 %v1137
    %1201 = vmatpush1.bf16.msra.mxu0 %v1136
    %1202 = vmatprep.subr.bf16.mxu0 %v1141
    %1203 = vmatpush1.bf16.msra.mxu0 %v1140
    %1204 = vmatprep.subr.bf16.mxu0 %v1145
    %1205 = vmatpush1.bf16.msra.mxu0 %v1144
    %1206 = vmatprep.subr.bf16.mxu0 %v1149
    %1207 = vmatpush1.bf16.msra.mxu0 %v1148
    %1208 = vmatprep.subr.bf16.mxu0 %v1153
    %1209 = vmatpush1.bf16.msra.mxu0 %v1152
    %1210 = vmatprep.subr.bf16.mxu0 %v1157
    %1211 = vmatpush1.bf16.msra.mxu0 %v1156
    %1212 = vmatprep.subr.bf16.mxu0 %v1161
    %1213 = vmatpush1.bf16.msra.mxu0 %v1160
    %1214 = vmatprep.subr.bf16.mxu0 %v1165
    %1215 = vmatpush1.bf16.msra.mxu0 %v1164
    %1216 = vmatprep.subr.bf16.mxu0 0
    %1217 = vmatpush1.bf16.msra.mxu0 0
    %1218 = vmatprep.subr.bf16.mxu0 0
    %1219 = vmatpush1.bf16.msra.mxu0 0
    %1220 = vmatprep.subr.bf16.mxu0 0
    %1221 = vmatpush1.bf16.msra.mxu0 0
    %1222 = vmatprep.subr.bf16.mxu0 0
    %1223 = vmatpush1.bf16.msra.mxu0 0
    %1224 = vmatprep.subr.bf16.mxu0 0
    %1225 = vmatpush1.bf16.msra.mxu0 0
    %1226 = vmatprep.subr.bf16.mxu0 0
    %1227 = vmatpush1.bf16.msra.mxu0 0
    %1228 = vmatprep.subr.bf16.mxu0 0
    %1229 = vmatpush1.bf16.msra.mxu0 0
    %1230 = vmatprep.subr.bf16.mxu0 0
    %1231 = vmatpush1.bf16.msra.mxu0 0
    %1232 = vmatprep.mubr.bf16.mxu0 0
    %1233 = vmatmul.mubr.bf16.gmra.mrb[0].mxu0 %v692
    %v1234 = vpop.f32.mrb[0].mxu0
    %v1235 = vadd.f32 0.0, %v1234
    %v1236 = vpop.f32.mrb[0].mxu0
    %v1237 = vadd.f32 0.0, %v1236
    %v1238 = vpop.f32.mrb[0].mxu0
    %v1239 = vpop.f32.mrb[0].mxu0
    %1240 = vdwg.mxu0
    %1241 = vmatprep.subr.bf16.mxu0 %v1139
    %1242 = vmatpush1.bf16.msra.mxu0 %v1138
    %1243 = vmatprep.subr.bf16.mxu0 %v1143
    %1244 = vmatpush1.bf16.msra.mxu0 %v1142
    %1245 = vmatprep.subr.bf16.mxu0 %v1147
    %1246 = vmatpush1.bf16.msra.mxu0 %v1146
    %1247 = vmatprep.subr.bf16.mxu0 %v1151
    %1248 = vmatpush1.bf16.msra.mxu0 %v1150
    %1249 = vmatprep.subr.bf16.mxu0 %v1155
    %1250 = vmatpush1.bf16.msra.mxu0 %v1154
    %1251 = vmatprep.subr.bf16.mxu0 %v1159
    %1252 = vmatpush1.bf16.msra.mxu0 %v1158
    %1253 = vmatprep.subr.bf16.mxu0 %v1163
    %1254 = vmatpush1.bf16.msra.mxu0 %v1162
    %1255 = vmatprep.subr.bf16.mxu0 %v1167
    %1256 = vmatpush1.bf16.msra.mxu0 %v1166
    %1257 = vmatprep.subr.bf16.mxu0 0
    %1258 = vmatpush1.bf16.msra.mxu0 0
    %1259 = vmatprep.subr.bf16.mxu0 0
    %1260 = vmatpush1.bf16.msra.mxu0 0
    %1261 = vmatprep.subr.bf16.mxu0 0
    %1262 = vmatpush1.bf16.msra.mxu0 0
    %1263 = vmatprep.subr.bf16.mxu0 0
    %1264 = vmatpush1.bf16.msra.mxu0 0
    %1265 = vmatprep.subr.bf16.mxu0 0
    %1266 = vmatpush1.bf16.msra.mxu0 0
    %1267 = vmatprep.subr.bf16.mxu0 0
    %1268 = vmatpush1.bf16.msra.mxu0 0
    %1269 = vmatprep.subr.bf16.mxu0 0
    %1270 = vmatpush1.bf16.msra.mxu0 0
    %1271 = vmatprep.subr.bf16.mxu0 0
    %1272 = vmatpush1.bf16.msra.mxu0 0
    %1273 = vmatprep.mubr.bf16.mxu0 0
    %1274 = vmatmul.mubr.bf16.gmra.mrb[0].mxu0 %v692
    %v1275 = vpop.f32.mrb[0].mxu0
    %v1276 = vadd.f32 0.0, %v1275
    %v1277 = vpop.f32.mrb[0].mxu0
    %v1278 = vadd.f32 0.0, %v1277
    %v1279 = vpop.f32.mrb[0].mxu0
    %v1280 = vpop.f32.mrb[0].mxu0
    %1281 = vdwg.mxu0
    %v1282 = vadd.f32 %v1004, %v1235
    %v1283 = vadd.f32 %v1005, %v1237
    %v1284 = vadd.f32 %v1006, %v1276
    %v1285 = vadd.f32 %v1007, %v1278
    %v1286 = vmul.f32 %v1282, 0.5
    %v1287 = vtanh.pop %v1286
    %v1288 = vmul.f32 %v1287, 0.5
    %v1289 = vadd.f32 %v1288, 0.5
    %v1290 = vmul.f32 %v1283, 0.5
    %v1291 = vtanh.pop %v1290
    %v1292 = vmul.f32 %v1291, 0.5
    %v1293 = vadd.f32 %v1292, 0.5
    %v1294 = vtanh.pop %v1284
    %v1295 = vmul.f32 %v1285, 0.5
    %v1296 = vtanh.pop %v1295
    %v1297 = vmul.f32 %v1296, 0.5
    %v1298 = vadd.f32 %v1297, 0.5
    %v1299 = vmul.f32 %v1293, %v689
    %v1300 = vmul.f32 %v1289, %v1294
    %v1301 = vadd.f32 %v1299, %v1300
    %v1302 = vtanh.pop %v1301
    %v1303 = vmul.f32 %v1298, %v1302
    %v1304 = vpack.c.bf16 %v1303, %v1303
    %s1305 = scalar_lea.vmem %s66, 24
    %1306 = vst [vmem:[%s1305] sm:$0xf] %v1304
    %s1307 = scalar_lea.vmem %s0, 32
    %v1308 = vld [vmem:[%s1307] sm:$0xff]
    %v1309 = vld [vmem:[%s1307 + $0x8] sm:$0xff]
    %v1310 = vunpack.c.l.bf16 %v1308
    %v1311 = vunpack.c.h.bf16 %v1308
    %v1312 = vunpack.c.l.bf16 %v1309
    %v1313 = vunpack.c.h.bf16 %v1309
    %v1314 = vld [vmem:[#allocation6] sm:$0xff]
    %v1315 = vld [vmem:[#allocation6 + $0x8] sm:$0xff]
    %v1316 = vld [vmem:[#allocation6 + $0x10] sm:$0xff]
    %v1317 = vld [vmem:[#allocation6 + $0x18] sm:$0xff]
    %v1318 = vld [vmem:[#allocation6 + $0x20] sm:$0xff]
    %v1319 = vld [vmem:[#allocation6 + $0x28] sm:$0xff]
    %v1320 = vld [vmem:[#allocation6 + $0x30] sm:$0xff]
    %v1321 = vld [vmem:[#allocation6 + $0x38] sm:$0xff]
    %v1322 = vld [vmem:[#allocation6 + $0x40] sm:$0xff]
    %v1323 = vld [vmem:[#allocation6 + $0x48] sm:$0xff]
    %v1324 = vld [vmem:[#allocation6 + $0x50] sm:$0xff]
    %v1325 = vld [vmem:[#allocation6 + $0x58] sm:$0xff]
    %v1326 = vld [vmem:[#allocation6 + $0x60] sm:$0xff]
    %v1327 = vld [vmem:[#allocation6 + $0x68] sm:$0xff]
    %v1328 = vld [vmem:[#allocation6 + $0x70] sm:$0xff]
    %v1329 = vld [vmem:[#allocation6 + $0x78] sm:$0xff]
    %v1330 = vld [vmem:[#allocation6 + $0x80] sm:$0xff]
    %v1331 = vld [vmem:[#allocation6 + $0x88] sm:$0xff]
    %v1332 = vld [vmem:[#allocation6 + $0x90] sm:$0xff]
    %v1333 = vld [vmem:[#allocation6 + $0x98] sm:$0xff]
    %v1334 = vld [vmem:[#allocation6 + $0xa0] sm:$0xff]
    %v1335 = vld [vmem:[#allocation6 + $0xa8] sm:$0xff]
    %v1336 = vld [vmem:[#allocation6 + $0xb0] sm:$0xff]
    %v1337 = vld [vmem:[#allocation6 + $0xb8] sm:$0xff]
    %v1338 = vld [vmem:[#allocation6 + $0xc0] sm:$0xff]
    %v1339 = vld [vmem:[#allocation6 + $0xc8] sm:$0xff]
    %v1340 = vld [vmem:[#allocation6 + $0xd0] sm:$0xff]
    %v1341 = vld [vmem:[#allocation6 + $0xd8] sm:$0xff]
    %v1342 = vld [vmem:[#allocation6 + $0xe0] sm:$0xff]
    %v1343 = vld [vmem:[#allocation6 + $0xe8] sm:$0xff]
    %v1344 = vld [vmem:[#allocation6 + $0xf0] sm:$0xff]
    %v1345 = vld [vmem:[#allocation6 + $0xf8] sm:$0xff]
    %v1378 = vunpack.c.l.b16 %v1314
    %v1379 = vunpack.c.h.b16 %v1314
    %v1380 = vunpack.c.l.b16 %v1315
    %v1381 = vunpack.c.h.b16 %v1315
    %v1382 = vunpack.c.l.b16 %v1316
    %v1383 = vunpack.c.h.b16 %v1316
    %v1384 = vunpack.c.l.b16 %v1317
    %v1385 = vunpack.c.h.b16 %v1317
    %v1386 = vunpack.c.l.b16 %v1318
    %v1387 = vunpack.c.h.b16 %v1318
    %v1388 = vunpack.c.l.b16 %v1319
    %v1389 = vunpack.c.h.b16 %v1319
    %v1390 = vunpack.c.l.b16 %v1320
    %v1391 = vunpack.c.h.b16 %v1320
    %v1392 = vunpack.c.l.b16 %v1321
    %v1393 = vunpack.c.h.b16 %v1321
    %v1394 = vunpack.c.l.b16 %v1322
    %v1395 = vunpack.c.h.b16 %v1322
    %v1396 = vunpack.c.l.b16 %v1323
    %v1397 = vunpack.c.h.b16 %v1323
    %v1398 = vunpack.c.l.b16 %v1324
    %v1399 = vunpack.c.h.b16 %v1324
    %v1400 = vunpack.c.l.b16 %v1325
    %v1401 = vunpack.c.h.b16 %v1325
    %v1402 = vunpack.c.l.b16 %v1326
    %v1403 = vunpack.c.h.b16 %v1326
    %v1404 = vunpack.c.l.b16 %v1327
    %v1405 = vunpack.c.h.b16 %v1327
    %v1406 = vunpack.c.l.b16 %v1328
    %v1407 = vunpack.c.h.b16 %v1328
    %v1408 = vunpack.c.l.b16 %v1329
    %v1409 = vunpack.c.h.b16 %v1329
    %v1410 = vunpack.c.l.b16 %v1330
    %v1411 = vunpack.c.h.b16 %v1330
    %v1412 = vunpack.c.l.b16 %v1331
    %v1413 = vunpack.c.h.b16 %v1331
    %v1414 = vunpack.c.l.b16 %v1332
    %v1415 = vunpack.c.h.b16 %v1332
    %v1416 = vunpack.c.l.b16 %v1333
    %v1417 = vunpack.c.h.b16 %v1333
    %v1418 = vunpack.c.l.b16 %v1334
    %v1419 = vunpack.c.h.b16 %v1334
    %v1420 = vunpack.c.l.b16 %v1335
    %v1421 = vunpack.c.h.b16 %v1335
    %v1422 = vunpack.c.l.b16 %v1336
    %v1423 = vunpack.c.h.b16 %v1336
    %v1424 = vunpack.c.l.b16 %v1337
    %v1425 = vunpack.c.h.b16 %v1337
    %v1426 = vunpack.c.l.b16 %v1338
    %v1427 = vunpack.c.h.b16 %v1338
    %v1428 = vunpack.c.l.b16 %v1339
    %v1429 = vunpack.c.h.b16 %v1339
    %v1430 = vunpack.c.l.b16 %v1340
    %v1431 = vunpack.c.h.b16 %v1340
    %v1432 = vunpack.c.l.b16 %v1341
    %v1433 = vunpack.c.h.b16 %v1341
    %v1434 = vunpack.c.l.b16 %v1342
    %v1435 = vunpack.c.h.b16 %v1342
    %v1436 = vunpack.c.l.b16 %v1343
    %v1437 = vunpack.c.h.b16 %v1343
    %v1438 = vunpack.c.l.b16 %v1344
    %v1439 = vunpack.c.h.b16 %v1344
    %v1440 = vunpack.c.l.b16 %v1345
    %v1441 = vunpack.c.h.b16 %v1345
    %v1442 = vpack.c.b16 %v1382, %v1378
    %v1443 = vpack.c.b16 %v1383, %v1379
    %v1444 = vpack.c.b16 %v1384, %v1380
    %v1445 = vpack.c.b16 %v1385, %v1381
    %v1446 = vpack.c.b16 %v1390, %v1386
    %v1447 = vpack.c.b16 %v1391, %v1387
    %v1448 = vpack.c.b16 %v1392, %v1388
    %v1449 = vpack.c.b16 %v1393, %v1389
    %v1450 = vpack.c.b16 %v1398, %v1394
    %v1451 = vpack.c.b16 %v1399, %v1395
    %v1452 = vpack.c.b16 %v1400, %v1396
    %v1453 = vpack.c.b16 %v1401, %v1397
    %v1454 = vpack.c.b16 %v1406, %v1402
    %v1455 = vpack.c.b16 %v1407, %v1403
    %v1456 = vpack.c.b16 %v1408, %v1404
    %v1457 = vpack.c.b16 %v1409, %v1405
    %v1458 = vpack.c.b16 %v1414, %v1410
    %v1459 = vpack.c.b16 %v1415, %v1411
    %v1460 = vpack.c.b16 %v1416, %v1412
    %v1461 = vpack.c.b16 %v1417, %v1413
    %v1462 = vpack.c.b16 %v1422, %v1418
    %v1463 = vpack.c.b16 %v1423, %v1419
    %v1464 = vpack.c.b16 %v1424, %v1420
    %v1465 = vpack.c.b16 %v1425, %v1421
    %v1466 = vpack.c.b16 %v1430, %v1426
    %v1467 = vpack.c.b16 %v1431, %v1427
    %v1468 = vpack.c.b16 %v1432, %v1428
    %v1469 = vpack.c.b16 %v1433, %v1429
    %v1470 = vpack.c.b16 %v1438, %v1434
    %v1471 = vpack.c.b16 %v1439, %v1435
    %v1472 = vpack.c.b16 %v1440, %v1436
    %v1473 = vpack.c.b16 %v1441, %v1437
    %1506 = vmatprep.subr.bf16.mxu0 %v1443
    %1507 = vmatpush1.bf16.msra.mxu0 %v1442
    %1508 = vmatprep.subr.bf16.mxu0 %v1447
    %1509 = vmatpush1.bf16.msra.mxu0 %v1446
    %1510 = vmatprep.subr.bf16.mxu0 %v1451
    %1511 = vmatpush1.bf16.msra.mxu0 %v1450
    %1512 = vmatprep.subr.bf16.mxu0 %v1455
    %1513 = vmatpush1.bf16.msra.mxu0 %v1454
    %1514 = vmatprep.subr.bf16.mxu0 %v1459
    %1515 = vmatpush1.bf16.msra.mxu0 %v1458
    %1516 = vmatprep.subr.bf16.mxu0 %v1463
    %1517 = vmatpush1.bf16.msra.mxu0 %v1462
    %1518 = vmatprep.subr.bf16.mxu0 %v1467
    %1519 = vmatpush1.bf16.msra.mxu0 %v1466
    %1520 = vmatprep.subr.bf16.mxu0 %v1471
    %1521 = vmatpush1.bf16.msra.mxu0 %v1470
    %1522 = vmatprep.subr.bf16.mxu0 0
    %1523 = vmatpush1.bf16.msra.mxu0 0
    %1524 = vmatprep.subr.bf16.mxu0 0
    %1525 = vmatpush1.bf16.msra.mxu0 0
    %1526 = vmatprep.subr.bf16.mxu0 0
    %1527 = vmatpush1.bf16.msra.mxu0 0
    %1528 = vmatprep.subr.bf16.mxu0 0
    %1529 = vmatpush1.bf16.msra.mxu0 0
    %1530 = vmatprep.subr.bf16.mxu0 0
    %1531 = vmatpush1.bf16.msra.mxu0 0
    %1532 = vmatprep.subr.bf16.mxu0 0
    %1533 = vmatpush1.bf16.msra.mxu0 0
    %1534 = vmatprep.subr.bf16.mxu0 0
    %1535 = vmatpush1.bf16.msra.mxu0 0
    %1536 = vmatprep.subr.bf16.mxu0 0
    %1537 = vmatpush1.bf16.msra.mxu0 0
    %1538 = vmatprep.mubr.bf16.mxu0 0
    %1539 = vmatmul.mubr.bf16.gmra.mrb[0].mxu0 %v998
    %v1540 = vpop.f32.mrb[0].mxu0
    %v1541 = vadd.f32 0.0, %v1540
    %v1542 = vpop.f32.mrb[0].mxu0
    %v1543 = vadd.f32 0.0, %v1542
    %v1544 = vpop.f32.mrb[0].mxu0
    %v1545 = vpop.f32.mrb[0].mxu0
    %1546 = vdwg.mxu0
    %1547 = vmatprep.subr.bf16.mxu0 %v1445
    %1548 = vmatpush1.bf16.msra.mxu0 %v1444
    %1549 = vmatprep.subr.bf16.mxu0 %v1449
    %1550 = vmatpush1.bf16.msra.mxu0 %v1448
    %1551 = vmatprep.subr.bf16.mxu0 %v1453
    %1552 = vmatpush1.bf16.msra.mxu0 %v1452
    %1553 = vmatprep.subr.bf16.mxu0 %v1457
    %1554 = vmatpush1.bf16.msra.mxu0 %v1456
    %1555 = vmatprep.subr.bf16.mxu0 %v1461
    %1556 = vmatpush1.bf16.msra.mxu0 %v1460
    %1557 = vmatprep.subr.bf16.mxu0 %v1465
    %1558 = vmatpush1.bf16.msra.mxu0 %v1464
    %1559 = vmatprep.subr.bf16.mxu0 %v1469
    %1560 = vmatpush1.bf16.msra.mxu0 %v1468
    %1561 = vmatprep.subr.bf16.mxu0 %v1473
    %1562 = vmatpush1.bf16.msra.mxu0 %v1472
    %1563 = vmatprep.subr.bf16.mxu0 0
    %1564 = vmatpush1.bf16.msra.mxu0 0
    %1565 = vmatprep.subr.bf16.mxu0 0
    %1566 = vmatpush1.bf16.msra.mxu0 0
    %1567 = vmatprep.subr.bf16.mxu0 0
    %1568 = vmatpush1.bf16.msra.mxu0 0
    %1569 = vmatprep.subr.bf16.mxu0 0
    %1570 = vmatpush1.bf16.msra.mxu0 0
    %1571 = vmatprep.subr.bf16.mxu0 0
    %1572 = vmatpush1.bf16.msra.mxu0 0
    %1573 = vmatprep.subr.bf16.mxu0 0
    %1574 = vmatpush1.bf16.msra.mxu0 0
    %1575 = vmatprep.subr.bf16.mxu0 0
    %1576 = vmatpush1.bf16.msra.mxu0 0
    %1577 = vmatprep.subr.bf16.mxu0 0
    %1578 = vmatpush1.bf16.msra.mxu0 0
    %1579 = vmatprep.mubr.bf16.mxu0 0
    %1580 = vmatmul.mubr.bf16.gmra.mrb[0].mxu0 %v998
    %v1581 = vpop.f32.mrb[0].mxu0
    %v1582 = vadd.f32 0.0, %v1581
    %v1583 = vpop.f32.mrb[0].mxu0
    %v1584 = vadd.f32 0.0, %v1583
    %v1585 = vpop.f32.mrb[0].mxu0
    %v1586 = vpop.f32.mrb[0].mxu0
    %1587 = vdwg.mxu0
    %v1588 = vadd.f32 %v1310, %v1541
    %v1589 = vadd.f32 %v1311, %v1543
    %v1590 = vadd.f32 %v1312, %v1582
    %v1591 = vadd.f32 %v1313, %v1584
    %v1592 = vmul.f32 %v1588, 0.5
    %v1593 = vtanh.pop %v1592
    %v1594 = vmul.f32 %v1593, 0.5
    %v1595 = vadd.f32 %v1594, 0.5
    %v1596 = vmul.f32 %v1589, 0.5
    %v1597 = vtanh.pop %v1596
    %v1598 = vmul.f32 %v1597, 0.5
    %v1599 = vadd.f32 %v1598, 0.5
    %v1600 = vtanh.pop %v1590
    %v1601 = vmul.f32 %v1591, 0.5
    %v1602 = vtanh.pop %v1601
    %v1603 = vmul.f32 %v1602, 0.5
    %v1604 = vadd.f32 %v1603, 0.5
    %v1605 = vmul.f32 %v1599, %v995
    %v1606 = vmul.f32 %v1595, %v1600
    %v1607 = vadd.f32 %v1605, %v1606
    %v1608 = vtanh.pop %v1607
    %v1609 = vmul.f32 %v1604, %v1608
    %v1610 = vpack.c.bf16 %v1609, %v1609
    %s1611 = scalar_lea.vmem %s3, 8
    %1612 = vst [vmem:[%s1611] sm:$0xf] %v1610
    %s1613 = scalar_lea.vmem %s58, 80
    %v1614 = vld [vmem:[%s1613] sm:$0xff]
    %v1615 = vld [vmem:[%s1613 + $0x8] sm:$0xff]
    %v1616 = vunpack.c.l.bf16 %v1614
    %v1617 = vunpack.c.h.bf16 %v1614
    %v1618 = vunpack.c.l.bf16 %v1615
    %v1619 = vunpack.c.h.bf16 %v1615
    %v1620 = vld [vmem:[%s395] sm:$0xff]
    %v1621 = vld [vmem:[%s395 + $0x8] sm:$0xff]
    %v1622 = vld [vmem:[%s395 + $0x10] sm:$0xff]
    %v1623 = vld [vmem:[%s395 + $0x18] sm:$0xff]
    %v1624 = vld [vmem:[%s395 + $0x20] sm:$0xff]
    %v1625 = vld [vmem:[%s395 + $0x28] sm:$0xff]
    %v1626 = vld [vmem:[%s395 + $0x30] sm:$0xff]
    %v1627 = vld [vmem:[%s395 + $0x38] sm:$0xff]
    %v1628 = vld [vmem:[%s395 + $0x40] sm:$0xff]
    %v1629 = vld [vmem:[%s395 + $0x48] sm:$0xff]
    %v1630 = vld [vmem:[%s395 + $0x50] sm:$0xff]
    %v1631 = vld [vmem:[%s395 + $0x58] sm:$0xff]
    %v1632 = vld [vmem:[%s395 + $0x60] sm:$0xff]
    %v1633 = vld [vmem:[%s395 + $0x68] sm:$0xff]
    %v1634 = vld [vmem:[%s395 + $0x70] sm:$0xff]
    %v1635 = vld [vmem:[%s395 + $0x78] sm:$0xff]
    %v1636 = vld [vmem:[%s395 + $0x80] sm:$0xff]
    %v1637 = vld [vmem:[%s395 + $0x88] sm:$0xff]
    %v1638 = vld [vmem:[%s395 + $0x90] sm:$0xff]
    %v1639 = vld [vmem:[%s395 + $0x98] sm:$0xff]
    %v1640 = vld [vmem:[%s395 + $0xa0] sm:$0xff]
    %v1641 = vld [vmem:[%s395 + $0xa8] sm:$0xff]
    %v1642 = vld [vmem:[%s395 + $0xb0] sm:$0xff]
    %v1643 = vld [vmem:[%s395 + $0xb8] sm:$0xff]
    %v1644 = vld [vmem:[%s395 + $0xc0] sm:$0xff]
    %v1645 = vld [vmem:[%s395 + $0xc8] sm:$0xff]
    %v1646 = vld [vmem:[%s395 + $0xd0] sm:$0xff]
    %v1647 = vld [vmem:[%s395 + $0xd8] sm:$0xff]
    %v1648 = vld [vmem:[%s395 + $0xe0] sm:$0xff]
    %v1649 = vld [vmem:[%s395 + $0xe8] sm:$0xff]
    %v1650 = vld [vmem:[%s395 + $0xf0] sm:$0xff]
    %v1651 = vld [vmem:[%s395 + $0xf8] sm:$0xff]
    %v1684 = vunpack.c.l.b16 %v1620
    %v1685 = vunpack.c.h.b16 %v1620
    %v1686 = vunpack.c.l.b16 %v1621
    %v1687 = vunpack.c.h.b16 %v1621
    %v1688 = vunpack.c.l.b16 %v1622
    %v1689 = vunpack.c.h.b16 %v1622
    %v1690 = vunpack.c.l.b16 %v1623
    %v1691 = vunpack.c.h.b16 %v1623
    %v1692 = vunpack.c.l.b16 %v1624
    %v1693 = vunpack.c.h.b16 %v1624
    %v1694 = vunpack.c.l.b16 %v1625
    %v1695 = vunpack.c.h.b16 %v1625
    %v1696 = vunpack.c.l.b16 %v1626
    %v1697 = vunpack.c.h.b16 %v1626
    %v1698 = vunpack.c.l.b16 %v1627
    %v1699 = vunpack.c.h.b16 %v1627
    %v1700 = vunpack.c.l.b16 %v1628
    %v1701 = vunpack.c.h.b16 %v1628
    %v1702 = vunpack.c.l.b16 %v1629
    %v1703 = vunpack.c.h.b16 %v1629
    %v1704 = vunpack.c.l.b16 %v1630
    %v1705 = vunpack.c.h.b16 %v1630
    %v1706 = vunpack.c.l.b16 %v1631
    %v1707 = vunpack.c.h.b16 %v1631
    %v1708 = vunpack.c.l.b16 %v1632
    %v1709 = vunpack.c.h.b16 %v1632
    %v1710 = vunpack.c.l.b16 %v1633
    %v1711 = vunpack.c.h.b16 %v1633
    %v1712 = vunpack.c.l.b16 %v1634
    %v1713 = vunpack.c.h.b16 %v1634
    %v1714 = vunpack.c.l.b16 %v1635
    %v1715 = vunpack.c.h.b16 %v1635
    %v1716 = vunpack.c.l.b16 %v1636
    %v1717 = vunpack.c.h.b16 %v1636
    %v1718 = vunpack.c.l.b16 %v1637
    %v1719 = vunpack.c.h.b16 %v1637
    %v1720 = vunpack.c.l.b16 %v1638
    %v1721 = vunpack.c.h.b16 %v1638
    %v1722 = vunpack.c.l.b16 %v1639
    %v1723 = vunpack.c.h.b16 %v1639
    %v1724 = vunpack.c.l.b16 %v1640
    %v1725 = vunpack.c.h.b16 %v1640
    %v1726 = vunpack.c.l.b16 %v1641
    %v1727 = vunpack.c.h.b16 %v1641
    %v1728 = vunpack.c.l.b16 %v1642
    %v1729 = vunpack.c.h.b16 %v1642
    %v1730 = vunpack.c.l.b16 %v1643
    %v1731 = vunpack.c.h.b16 %v1643
    %v1732 = vunpack.c.l.b16 %v1644
    %v1733 = vunpack.c.h.b16 %v1644
    %v1734 = vunpack.c.l.b16 %v1645
    %v1735 = vunpack.c.h.b16 %v1645
    %v1736 = vunpack.c.l.b16 %v1646
    %v1737 = vunpack.c.h.b16 %v1646
    %v1738 = vunpack.c.l.b16 %v1647
    %v1739 = vunpack.c.h.b16 %v1647
    %v1740 = vunpack.c.l.b16 %v1648
    %v1741 = vunpack.c.h.b16 %v1648
    %v1742 = vunpack.c.l.b16 %v1649
    %v1743 = vunpack.c.h.b16 %v1649
    %v1744 = vunpack.c.l.b16 %v1650
    %v1745 = vunpack.c.h.b16 %v1650
    %v1746 = vunpack.c.l.b16 %v1651
    %v1747 = vunpack.c.h.b16 %v1651
    %v1748 = vpack.c.b16 %v1688, %v1684
    %v1749 = vpack.c.b16 %v1689, %v1685
    %v1750 = vpack.c.b16 %v1690, %v1686
    %v1751 = vpack.c.b16 %v1691, %v1687
    %v1752 = vpack.c.b16 %v1696, %v1692
    %v1753 = vpack.c.b16 %v1697, %v1693
    %v1754 = vpack.c.b16 %v1698, %v1694
    %v1755 = vpack.c.b16 %v1699, %v1695
    %v1756 = vpack.c.b16 %v1704, %v1700
    %v1757 = vpack.c.b16 %v1705, %v1701
    %v1758 = vpack.c.b16 %v1706, %v1702
    %v1759 = vpack.c.b16 %v1707, %v1703
    %v1760 = vpack.c.b16 %v1712, %v1708
    %v1761 = vpack.c.b16 %v1713, %v1709
    %v1762 = vpack.c.b16 %v1714, %v1710
    %v1763 = vpack.c.b16 %v1715, %v1711
    %v1764 = vpack.c.b16 %v1720, %v1716
    %v1765 = vpack.c.b16 %v1721, %v1717
    %v1766 = vpack.c.b16 %v1722, %v1718
    %v1767 = vpack.c.b16 %v1723, %v1719
    %v1768 = vpack.c.b16 %v1728, %v1724
    %v1769 = vpack.c.b16 %v1729, %v1725
    %v1770 = vpack.c.b16 %v1730, %v1726
    %v1771 = vpack.c.b16 %v1731, %v1727
    %v1772 = vpack.c.b16 %v1736, %v1732
    %v1773 = vpack.c.b16 %v1737, %v1733
    %v1774 = vpack.c.b16 %v1738, %v1734
    %v1775 = vpack.c.b16 %v1739, %v1735
    %v1776 = vpack.c.b16 %v1744, %v1740
    %v1777 = vpack.c.b16 %v1745, %v1741
    %v1778 = vpack.c.b16 %v1746, %v1742
    %v1779 = vpack.c.b16 %v1747, %v1743
    %1812 = vmatprep.subr.bf16.mxu0 %v1749
    %1813 = vmatpush1.bf16.msra.mxu0 %v1748
    %1814 = vmatprep.subr.bf16.mxu0 %v1753
    %1815 = vmatpush1.bf16.msra.mxu0 %v1752
    %1816 = vmatprep.subr.bf16.mxu0 %v1757
    %1817 = vmatpush1.bf16.msra.mxu0 %v1756
    %1818 = vmatprep.subr.bf16.mxu0 %v1761
    %1819 = vmatpush1.bf16.msra.mxu0 %v1760
    %1820 = vmatprep.subr.bf16.mxu0 %v1765
    %1821 = vmatpush1.bf16.msra.mxu0 %v1764
    %1822 = vmatprep.subr.bf16.mxu0 %v1769
    %1823 = vmatpush1.bf16.msra.mxu0 %v1768
    %1824 = vmatprep.subr.bf16.mxu0 %v1773
    %1825 = vmatpush1.bf16.msra.mxu0 %v1772
    %1826 = vmatprep.subr.bf16.mxu0 %v1777
    %1827 = vmatpush1.bf16.msra.mxu0 %v1776
    %1828 = vmatprep.subr.bf16.mxu0 0
    %1829 = vmatpush1.bf16.msra.mxu0 0
    %1830 = vmatprep.subr.bf16.mxu0 0
    %1831 = vmatpush1.bf16.msra.mxu0 0
    %1832 = vmatprep.subr.bf16.mxu0 0
    %1833 = vmatpush1.bf16.msra.mxu0 0
    %1834 = vmatprep.subr.bf16.mxu0 0
    %1835 = vmatpush1.bf16.msra.mxu0 0
    %1836 = vmatprep.subr.bf16.mxu0 0
    %1837 = vmatpush1.bf16.msra.mxu0 0
    %1838 = vmatprep.subr.bf16.mxu0 0
    %1839 = vmatpush1.bf16.msra.mxu0 0
    %1840 = vmatprep.subr.bf16.mxu0 0
    %1841 = vmatpush1.bf16.msra.mxu0 0
    %1842 = vmatprep.subr.bf16.mxu0 0
    %1843 = vmatpush1.bf16.msra.mxu0 0
    %1844 = vmatprep.mubr.bf16.mxu0 0
    %1845 = vmatmul.mubr.bf16.gmra.mrb[0].mxu0 %v1304
    %v1846 = vpop.f32.mrb[0].mxu0
    %v1847 = vadd.f32 0.0, %v1846
    %v1848 = vpop.f32.mrb[0].mxu0
    %v1849 = vadd.f32 0.0, %v1848
    %v1850 = vpop.f32.mrb[0].mxu0
    %v1851 = vpop.f32.mrb[0].mxu0
    %1852 = vdwg.mxu0
    %1853 = vmatprep.subr.bf16.mxu0 %v1751
    %1854 = vmatpush1.bf16.msra.mxu0 %v1750
    %1855 = vmatprep.subr.bf16.mxu0 %v1755
    %1856 = vmatpush1.bf16.msra.mxu0 %v1754
    %1857 = vmatprep.subr.bf16.mxu0 %v1759
    %1858 = vmatpush1.bf16.msra.mxu0 %v1758
    %1859 = vmatprep.subr.bf16.mxu0 %v1763
    %1860 = vmatpush1.bf16.msra.mxu0 %v1762
    %1861 = vmatprep.subr.bf16.mxu0 %v1767
    %1862 = vmatpush1.bf16.msra.mxu0 %v1766
    %1863 = vmatprep.subr.bf16.mxu0 %v1771
    %1864 = vmatpush1.bf16.msra.mxu0 %v1770
    %1865 = vmatprep.subr.bf16.mxu0 %v1775
    %1866 = vmatpush1.bf16.msra.mxu0 %v1774
    %1867 = vmatprep.subr.bf16.mxu0 %v1779
    %1868 = vmatpush1.bf16.msra.mxu0 %v1778
    %1869 = vmatprep.subr.bf16.mxu0 0
    %1870 = vmatpush1.bf16.msra.mxu0 0
    %1871 = vmatprep.subr.bf16.mxu0 0
    %1872 = vmatpush1.bf16.msra.mxu0 0
    %1873 = vmatprep.subr.bf16.mxu0 0
    %1874 = vmatpush1.bf16.msra.mxu0 0
    %1875 = vmatprep.subr.bf16.mxu0 0
    %1876 = vmatpush1.bf16.msra.mxu0 0
    %1877 = vmatprep.subr.bf16.mxu0 0
    %1878 = vmatpush1.bf16.msra.mxu0 0
    %1879 = vmatprep.subr.bf16.mxu0 0
    %1880 = vmatpush1.bf16.msra.mxu0 0
    %1881 = vmatprep.subr.bf16.mxu0 0
    %1882 = vmatpush1.bf16.msra.mxu0 0
    %1883 = vmatprep.subr.bf16.mxu0 0
    %1884 = vmatpush1.bf16.msra.mxu0 0
    %1885 = vmatprep.mubr.bf16.mxu0 0
    %1886 = vmatmul.mubr.bf16.gmra.mrb[0].mxu0 %v1304
    %v1887 = vpop.f32.mrb[0].mxu0
    %v1888 = vadd.f32 0.0, %v1887
    %v1889 = vpop.f32.mrb[0].mxu0
    %v1890 = vadd.f32 0.0, %v1889
    %v1891 = vpop.f32.mrb[0].mxu0
    %v1892 = vpop.f32.mrb[0].mxu0
    %1893 = vdwg.mxu0
    %v1894 = vadd.f32 %v1616, %v1847
    %v1895 = vadd.f32 %v1617, %v1849
    %v1896 = vadd.f32 %v1618, %v1888
    %v1897 = vadd.f32 %v1619, %v1890
    %v1898 = vmul.f32 %v1894, 0.5
    %v1899 = vtanh.pop %v1898
    %v1900 = vmul.f32 %v1899, 0.5
    %v1901 = vadd.f32 %v1900, 0.5
    %v1902 = vmul.f32 %v1895, 0.5
    %v1903 = vtanh.pop %v1902
    %v1904 = vmul.f32 %v1903, 0.5
    %v1905 = vadd.f32 %v1904, 0.5
    %v1906 = vtanh.pop %v1896
    %v1907 = vmul.f32 %v1897, 0.5
    %v1908 = vtanh.pop %v1907
    %v1909 = vmul.f32 %v1908, 0.5
    %v1910 = vadd.f32 %v1909, 0.5
    %v1911 = vmul.f32 %v1905, %v1301
    %v1912 = vmul.f32 %v1901, %v1906
    %v1913 = vadd.f32 %v1911, %v1912
    %v1914 = vtanh.pop %v1913
    %v1915 = vmul.f32 %v1910, %v1914
    %v1916 = vpack.c.bf16 %v1915, %v1915
    %s1917 = scalar_lea.vmem %s66, 20
    %1918 = vst [vmem:[%s1917] sm:$0xf] %v1916
    %s1919 = scalar_lea.vmem %s0, 48
    %v1920 = vld [vmem:[%s1919] sm:$0xff]
    %v1921 = vld [vmem:[%s1919 + $0x8] sm:$0xff]
    %v1922 = vunpack.c.l.bf16 %v1920
    %v1923 = vunpack.c.h.bf16 %v1920
    %v1924 = vunpack.c.l.bf16 %v1921
    %v1925 = vunpack.c.h.bf16 %v1921
    %v1926 = vld [vmem:[#allocation6] sm:$0xff]
    %v1927 = vld [vmem:[#allocation6 + $0x8] sm:$0xff]
    %v1928 = vld [vmem:[#allocation6 + $0x10] sm:$0xff]
    %v1929 = vld [vmem:[#allocation6 + $0x18] sm:$0xff]
    %v1930 = vld [vmem:[#allocation6 + $0x20] sm:$0xff]
    %v1931 = vld [vmem:[#allocation6 + $0x28] sm:$0xff]
    %v1932 = vld [vmem:[#allocation6 + $0x30] sm:$0xff]
    %v1933 = vld [vmem:[#allocation6 + $0x38] sm:$0xff]
    %v1934 = vld [vmem:[#allocation6 + $0x40] sm:$0xff]
    %v1935 = vld [vmem:[#allocation6 + $0x48] sm:$0xff]
    %v1936 = vld [vmem:[#allocation6 + $0x50] sm:$0xff]
    %v1937 = vld [vmem:[#allocation6 + $0x58] sm:$0xff]
    %v1938 = vld [vmem:[#allocation6 + $0x60] sm:$0xff]
    %v1939 = vld [vmem:[#allocation6 + $0x68] sm:$0xff]
    %v1940 = vld [vmem:[#allocation6 + $0x70] sm:$0xff]
    %v1941 = vld [vmem:[#allocation6 + $0x78] sm:$0xff]
    %v1942 = vld [vmem:[#allocation6 + $0x80] sm:$0xff]
    %v1943 = vld [vmem:[#allocation6 + $0x88] sm:$0xff]
    %v1944 = vld [vmem:[#allocation6 + $0x90] sm:$0xff]
    %v1945 = vld [vmem:[#allocation6 + $0x98] sm:$0xff]
    %v1946 = vld [vmem:[#allocation6 + $0xa0] sm:$0xff]
    %v1947 = vld [vmem:[#allocation6 + $0xa8] sm:$0xff]
    %v1948 = vld [vmem:[#allocation6 + $0xb0] sm:$0xff]
    %v1949 = vld [vmem:[#allocation6 + $0xb8] sm:$0xff]
    %v1950 = vld [vmem:[#allocation6 + $0xc0] sm:$0xff]
    %v1951 = vld [vmem:[#allocation6 + $0xc8] sm:$0xff]
    %v1952 = vld [vmem:[#allocation6 + $0xd0] sm:$0xff]
    %v1953 = vld [vmem:[#allocation6 + $0xd8] sm:$0xff]
    %v1954 = vld [vmem:[#allocation6 + $0xe0] sm:$0xff]
    %v1955 = vld [vmem:[#allocation6 + $0xe8] sm:$0xff]
    %v1956 = vld [vmem:[#allocation6 + $0xf0] sm:$0xff]
    %v1957 = vld [vmem:[#allocation6 + $0xf8] sm:$0xff]
    %v1990 = vunpack.c.l.b16 %v1926
    %v1991 = vunpack.c.h.b16 %v1926
    %v1992 = vunpack.c.l.b16 %v1927
    %v1993 = vunpack.c.h.b16 %v1927
    %v1994 = vunpack.c.l.b16 %v1928
    %v1995 = vunpack.c.h.b16 %v1928
    %v1996 = vunpack.c.l.b16 %v1929
    %v1997 = vunpack.c.h.b16 %v1929
    %v1998 = vunpack.c.l.b16 %v1930
    %v1999 = vunpack.c.h.b16 %v1930
    %v2000 = vunpack.c.l.b16 %v1931
    %v2001 = vunpack.c.h.b16 %v1931
    %v2002 = vunpack.c.l.b16 %v1932
    %v2003 = vunpack.c.h.b16 %v1932
    %v2004 = vunpack.c.l.b16 %v1933
    %v2005 = vunpack.c.h.b16 %v1933
    %v2006 = vunpack.c.l.b16 %v1934
    %v2007 = vunpack.c.h.b16 %v1934
    %v2008 = vunpack.c.l.b16 %v1935
    %v2009 = vunpack.c.h.b16 %v1935
    %v2010 = vunpack.c.l.b16 %v1936
    %v2011 = vunpack.c.h.b16 %v1936
    %v2012 = vunpack.c.l.b16 %v1937
    %v2013 = vunpack.c.h.b16 %v1937
    %v2014 = vunpack.c.l.b16 %v1938
    %v2015 = vunpack.c.h.b16 %v1938
    %v2016 = vunpack.c.l.b16 %v1939
    %v2017 = vunpack.c.h.b16 %v1939
    %v2018 = vunpack.c.l.b16 %v1940
    %v2019 = vunpack.c.h.b16 %v1940
    %v2020 = vunpack.c.l.b16 %v1941
    %v2021 = vunpack.c.h.b16 %v1941
    %v2022 = vunpack.c.l.b16 %v1942
    %v2023 = vunpack.c.h.b16 %v1942
    %v2024 = vunpack.c.l.b16 %v1943
    %v2025 = vunpack.c.h.b16 %v1943
    %v2026 = vunpack.c.l.b16 %v1944
    %v2027 = vunpack.c.h.b16 %v1944
    %v2028 = vunpack.c.l.b16 %v1945
    %v2029 = vunpack.c.h.b16 %v1945
    %v2030 = vunpack.c.l.b16 %v1946
    %v2031 = vunpack.c.h.b16 %v1946
    %v2032 = vunpack.c.l.b16 %v1947
    %v2033 = vunpack.c.h.b16 %v1947
    %v2034 = vunpack.c.l.b16 %v1948
    %v2035 = vunpack.c.h.b16 %v1948
    %v2036 = vunpack.c.l.b16 %v1949
    %v2037 = vunpack.c.h.b16 %v1949
    %v2038 = vunpack.c.l.b16 %v1950
    %v2039 = vunpack.c.h.b16 %v1950
    %v2040 = vunpack.c.l.b16 %v1951
    %v2041 = vunpack.c.h.b16 %v1951
    %v2042 = vunpack.c.l.b16 %v1952
    %v2043 = vunpack.c.h.b16 %v1952
    %v2044 = vunpack.c.l.b16 %v1953
    %v2045 = vunpack.c.h.b16 %v1953
    %v2046 = vunpack.c.l.b16 %v1954
    %v2047 = vunpack.c.h.b16 %v1954
    %v2048 = vunpack.c.l.b16 %v1955
    %v2049 = vunpack.c.h.b16 %v1955
    %v2050 = vunpack.c.l.b16 %v1956
    %v2051 = vunpack.c.h.b16 %v1956
    %v2052 = vunpack.c.l.b16 %v1957
    %v2053 = vunpack.c.h.b16 %v1957
    %v2054 = vpack.c.b16 %v1994, %v1990
    %v2055 = vpack.c.b16 %v1995, %v1991
    %v2056 = vpack.c.b16 %v1996, %v1992
    %v2057 = vpack.c.b16 %v1997, %v1993
    %v2058 = vpack.c.b16 %v2002, %v1998
    %v2059 = vpack.c.b16 %v2003, %v1999
    %v2060 = vpack.c.b16 %v2004, %v2000
    %v2061 = vpack.c.b16 %v2005, %v2001
    %v2062 = vpack.c.b16 %v2010, %v2006
    %v2063 = vpack.c.b16 %v2011, %v2007
    %v2064 = vpack.c.b16 %v2012, %v2008
    %v2065 = vpack.c.b16 %v2013, %v2009
    %v2066 = vpack.c.b16 %v2018, %v2014
    %v2067 = vpack.c.b16 %v2019, %v2015
    %v2068 = vpack.c.b16 %v2020, %v2016
    %v2069 = vpack.c.b16 %v2021, %v2017
    %v2070 = vpack.c.b16 %v2026, %v2022
    %v2071 = vpack.c.b16 %v2027, %v2023
    %v2072 = vpack.c.b16 %v2028, %v2024
    %v2073 = vpack.c.b16 %v2029, %v2025
    %v2074 = vpack.c.b16 %v2034, %v2030
    %v2075 = vpack.c.b16 %v2035, %v2031
    %v2076 = vpack.c.b16 %v2036, %v2032
    %v2077 = vpack.c.b16 %v2037, %v2033
    %v2078 = vpack.c.b16 %v2042, %v2038
    %v2079 = vpack.c.b16 %v2043, %v2039
    %v2080 = vpack.c.b16 %v2044, %v2040
    %v2081 = vpack.c.b16 %v2045, %v2041
    %v2082 = vpack.c.b16 %v2050, %v2046
    %v2083 = vpack.c.b16 %v2051, %v2047
    %v2084 = vpack.c.b16 %v2052, %v2048
    %v2085 = vpack.c.b16 %v2053, %v2049
    %2118 = vmatprep.subr.bf16.mxu0 %v2055
    %2119 = vmatpush1.bf16.msra.mxu0 %v2054
    %2120 = vmatprep.subr.bf16.mxu0 %v2059
    %2121 = vmatpush1.bf16.msra.mxu0 %v2058
    %2122 = vmatprep.subr.bf16.mxu0 %v2063
    %2123 = vmatpush1.bf16.msra.mxu0 %v2062
    %2124 = vmatprep.subr.bf16.mxu0 %v2067
    %2125 = vmatpush1.bf16.msra.mxu0 %v2066
    %2126 = vmatprep.subr.bf16.mxu0 %v2071
    %2127 = vmatpush1.bf16.msra.mxu0 %v2070
    %2128 = vmatprep.subr.bf16.mxu0 %v2075
    %2129 = vmatpush1.bf16.msra.mxu0 %v2074
    %2130 = vmatprep.subr.bf16.mxu0 %v2079
    %2131 = vmatpush1.bf16.msra.mxu0 %v2078
    %2132 = vmatprep.subr.bf16.mxu0 %v2083
    %2133 = vmatpush1.bf16.msra.mxu0 %v2082
    %2134 = vmatprep.subr.bf16.mxu0 0
    %2135 = vmatpush1.bf16.msra.mxu0 0
    %2136 = vmatprep.subr.bf16.mxu0 0
    %2137 = vmatpush1.bf16.msra.mxu0 0
    %2138 = vmatprep.subr.bf16.mxu0 0
    %2139 = vmatpush1.bf16.msra.mxu0 0
    %2140 = vmatprep.subr.bf16.mxu0 0
    %2141 = vmatpush1.bf16.msra.mxu0 0
    %2142 = vmatprep.subr.bf16.mxu0 0
    %2143 = vmatpush1.bf16.msra.mxu0 0
    %2144 = vmatprep.subr.bf16.mxu0 0
    %2145 = vmatpush1.bf16.msra.mxu0 0
    %2146 = vmatprep.subr.bf16.mxu0 0
    %2147 = vmatpush1.bf16.msra.mxu0 0
    %2148 = vmatprep.subr.bf16.mxu0 0
    %2149 = vmatpush1.bf16.msra.mxu0 0
    %2150 = vmatprep.mubr.bf16.mxu0 0
    %2151 = vmatmul.mubr.bf16.gmra.mrb[0].mxu0 %v1610
    %v2152 = vpop.f32.mrb[0].mxu0
    %v2153 = vadd.f32 0.0, %v2152
    %v2154 = vpop.f32.mrb[0].mxu0
    %v2155 = vadd.f32 0.0, %v2154
    %v2156 = vpop.f32.mrb[0].mxu0
    %v2157 = vpop.f32.mrb[0].mxu0
    %2158 = vdwg.mxu0
    %2159 = vmatprep.subr.bf16.mxu0 %v2057
    %2160 = vmatpush1.bf16.msra.mxu0 %v2056
    %2161 = vmatprep.subr.bf16.mxu0 %v2061
    %2162 = vmatpush1.bf16.msra.mxu0 %v2060
    %2163 = vmatprep.subr.bf16.mxu0 %v2065
    %2164 = vmatpush1.bf16.msra.mxu0 %v2064
    %2165 = vmatprep.subr.bf16.mxu0 %v2069
    %2166 = vmatpush1.bf16.msra.mxu0 %v2068
    %2167 = vmatprep.subr.bf16.mxu0 %v2073
    %2168 = vmatpush1.bf16.msra.mxu0 %v2072
    %2169 = vmatprep.subr.bf16.mxu0 %v2077
    %2170 = vmatpush1.bf16.msra.mxu0 %v2076
    %2171 = vmatprep.subr.bf16.mxu0 %v2081
    %2172 = vmatpush1.bf16.msra.mxu0 %v2080
    %2173 = vmatprep.subr.bf16.mxu0 %v2085
    %2174 = vmatpush1.bf16.msra.mxu0 %v2084
    %2175 = vmatprep.subr.bf16.mxu0 0
    %2176 = vmatpush1.bf16.msra.mxu0 0
    %2177 = vmatprep.subr.bf16.mxu0 0
    %2178 = vmatpush1.bf16.msra.mxu0 0
    %2179 = vmatprep.subr.bf16.mxu0 0
    %2180 = vmatpush1.bf16.msra.mxu0 0
    %2181 = vmatprep.subr.bf16.mxu0 0
    %2182 = vmatpush1.bf16.msra.mxu0 0
    %2183 = vmatprep.subr.bf16.mxu0 0
    %2184 = vmatpush1.bf16.msra.mxu0 0
    %2185 = vmatprep.subr.bf16.mxu0 0
    %2186 = vmatpush1.bf16.msra.mxu0 0
    %2187 = vmatprep.subr.bf16.mxu0 0
    %2188 = vmatpush1.bf16.msra.mxu0 0
    %2189 = vmatprep.subr.bf16.mxu0 0
    %2190 = vmatpush1.bf16.msra.mxu0 0
    %2191 = vmatprep.mubr.bf16.mxu0 0
    %2192 = vmatmul.mubr.bf16.gmra.mrb[0].mxu0 %v1610
    %v2193 = vpop.f32.mrb[0].mxu0
    %v2194 = vadd.f32 0.0, %v2193
    %v2195 = vpop.f32.mrb[0].mxu0
    %v2196 = vadd.f32 0.0, %v2195
    %v2197 = vpop.f32.mrb[0].mxu0
    %v2198 = vpop.f32.mrb[0].mxu0
    %2199 = vdwg.mxu0
    %v2200 = vadd.f32 %v1922, %v2153
    %v2201 = vadd.f32 %v1923, %v2155
    %v2202 = vadd.f32 %v1924, %v2194
    %v2203 = vadd.f32 %v1925, %v2196
    %v2204 = vmul.f32 %v2200, 0.5
    %v2205 = vtanh.pop %v2204
    %v2206 = vmul.f32 %v2205, 0.5
    %v2207 = vadd.f32 %v2206, 0.5
    %v2208 = vmul.f32 %v2201, 0.5
    %v2209 = vtanh.pop %v2208
    %v2210 = vmul.f32 %v2209, 0.5
    %v2211 = vadd.f32 %v2210, 0.5
    %v2212 = vtanh.pop %v2202
    %v2213 = vmul.f32 %v2203, 0.5
    %v2214 = vtanh.pop %v2213
    %v2215 = vmul.f32 %v2214, 0.5
    %v2216 = vadd.f32 %v2215, 0.5
    %v2217 = vmul.f32 %v2211, %v1607
    %v2218 = vmul.f32 %v2207, %v2212
    %v2219 = vadd.f32 %v2217, %v2218
    %v2220 = vtanh.pop %v2219
    %v2221 = vmul.f32 %v2216, %v2220
    %v2222 = vpack.c.bf16 %v2221, %v2221
    %s2223 = scalar_lea.vmem %s3, 12
    %2224 = vst [vmem:[%s2223] sm:$0xf] %v2222
    %s2225 = scalar_lea.vmem %s58, 64
    %v2226 = vld [vmem:[%s2225] sm:$0xff]
    %v2227 = vld [vmem:[%s2225 + $0x8] sm:$0xff]
    %v2228 = vunpack.c.l.bf16 %v2226
    %v2229 = vunpack.c.h.bf16 %v2226
    %v2230 = vunpack.c.l.bf16 %v2227
    %v2231 = vunpack.c.h.bf16 %v2227
    %v2232 = vld [vmem:[%s395] sm:$0xff]
    %v2233 = vld [vmem:[%s395 + $0x8] sm:$0xff]
    %v2234 = vld [vmem:[%s395 + $0x10] sm:$0xff]
    %v2235 = vld [vmem:[%s395 + $0x18] sm:$0xff]
    %v2236 = vld [vmem:[%s395 + $0x20] sm:$0xff]
    %v2237 = vld [vmem:[%s395 + $0x28] sm:$0xff]
    %v2238 = vld [vmem:[%s395 + $0x30] sm:$0xff]
    %v2239 = vld [vmem:[%s395 + $0x38] sm:$0xff]
    %v2240 = vld [vmem:[%s395 + $0x40] sm:$0xff]
    %v2241 = vld [vmem:[%s395 + $0x48] sm:$0xff]
    %v2242 = vld [vmem:[%s395 + $0x50] sm:$0xff]
    %v2243 = vld [vmem:[%s395 + $0x58] sm:$0xff]
    %v2244 = vld [vmem:[%s395 + $0x60] sm:$0xff]
    %v2245 = vld [vmem:[%s395 + $0x68] sm:$0xff]
    %v2246 = vld [vmem:[%s395 + $0x70] sm:$0xff]
    %v2247 = vld [vmem:[%s395 + $0x78] sm:$0xff]
    %v2248 = vld [vmem:[%s395 + $0x80] sm:$0xff]
    %v2249 = vld [vmem:[%s395 + $0x88] sm:$0xff]
    %v2250 = vld [vmem:[%s395 + $0x90] sm:$0xff]
    %v2251 = vld [vmem:[%s395 + $0x98] sm:$0xff]
    %v2252 = vld [vmem:[%s395 + $0xa0] sm:$0xff]
    %v2253 = vld [vmem:[%s395 + $0xa8] sm:$0xff]
    %v2254 = vld [vmem:[%s395 + $0xb0] sm:$0xff]
    %v2255 = vld [vmem:[%s395 + $0xb8] sm:$0xff]
    %v2256 = vld [vmem:[%s395 + $0xc0] sm:$0xff]
    %v2257 = vld [vmem:[%s395 + $0xc8] sm:$0xff]
    %v2258 = vld [vmem:[%s395 + $0xd0] sm:$0xff]
    %v2259 = vld [vmem:[%s395 + $0xd8] sm:$0xff]
    %v2260 = vld [vmem:[%s395 + $0xe0] sm:$0xff]
    %v2261 = vld [vmem:[%s395 + $0xe8] sm:$0xff]
    %v2262 = vld [vmem:[%s395 + $0xf0] sm:$0xff]
    %v2263 = vld [vmem:[%s395 + $0xf8] sm:$0xff]
    %v2296 = vunpack.c.l.b16 %v2232
    %v2297 = vunpack.c.h.b16 %v2232
    %v2298 = vunpack.c.l.b16 %v2233
    %v2299 = vunpack.c.h.b16 %v2233
    %v2300 = vunpack.c.l.b16 %v2234
    %v2301 = vunpack.c.h.b16 %v2234
    %v2302 = vunpack.c.l.b16 %v2235
    %v2303 = vunpack.c.h.b16 %v2235
    %v2304 = vunpack.c.l.b16 %v2236
    %v2305 = vunpack.c.h.b16 %v2236
    %v2306 = vunpack.c.l.b16 %v2237
    %v2307 = vunpack.c.h.b16 %v2237
    %v2308 = vunpack.c.l.b16 %v2238
    %v2309 = vunpack.c.h.b16 %v2238
    %v2310 = vunpack.c.l.b16 %v2239
    %v2311 = vunpack.c.h.b16 %v2239
    %v2312 = vunpack.c.l.b16 %v2240
    %v2313 = vunpack.c.h.b16 %v2240
    %v2314 = vunpack.c.l.b16 %v2241
    %v2315 = vunpack.c.h.b16 %v2241
    %v2316 = vunpack.c.l.b16 %v2242
    %v2317 = vunpack.c.h.b16 %v2242
    %v2318 = vunpack.c.l.b16 %v2243
    %v2319 = vunpack.c.h.b16 %v2243
    %v2320 = vunpack.c.l.b16 %v2244
    %v2321 = vunpack.c.h.b16 %v2244
    %v2322 = vunpack.c.l.b16 %v2245
    %v2323 = vunpack.c.h.b16 %v2245
    %v2324 = vunpack.c.l.b16 %v2246
    %v2325 = vunpack.c.h.b16 %v2246
    %v2326 = vunpack.c.l.b16 %v2247
    %v2327 = vunpack.c.h.b16 %v2247
    %v2328 = vunpack.c.l.b16 %v2248
    %v2329 = vunpack.c.h.b16 %v2248
    %v2330 = vunpack.c.l.b16 %v2249
    %v2331 = vunpack.c.h.b16 %v2249
    %v2332 = vunpack.c.l.b16 %v2250
    %v2333 = vunpack.c.h.b16 %v2250
    %v2334 = vunpack.c.l.b16 %v2251
    %v2335 = vunpack.c.h.b16 %v2251
    %v2336 = vunpack.c.l.b16 %v2252
    %v2337 = vunpack.c.h.b16 %v2252
    %v2338 = vunpack.c.l.b16 %v2253
    %v2339 = vunpack.c.h.b16 %v2253
    %v2340 = vunpack.c.l.b16 %v2254
    %v2341 = vunpack.c.h.b16 %v2254
    %v2342 = vunpack.c.l.b16 %v2255
    %v2343 = vunpack.c.h.b16 %v2255
    %v2344 = vunpack.c.l.b16 %v2256
    %v2345 = vunpack.c.h.b16 %v2256
    %v2346 = vunpack.c.l.b16 %v2257
    %v2347 = vunpack.c.h.b16 %v2257
    %v2348 = vunpack.c.l.b16 %v2258
    %v2349 = vunpack.c.h.b16 %v2258
    %v2350 = vunpack.c.l.b16 %v2259
    %v2351 = vunpack.c.h.b16 %v2259
    %v2352 = vunpack.c.l.b16 %v2260
    %v2353 = vunpack.c.h.b16 %v2260
    %v2354 = vunpack.c.l.b16 %v2261
    %v2355 = vunpack.c.h.b16 %v2261
    %v2356 = vunpack.c.l.b16 %v2262
    %v2357 = vunpack.c.h.b16 %v2262
    %v2358 = vunpack.c.l.b16 %v2263
    %v2359 = vunpack.c.h.b16 %v2263
    %v2360 = vpack.c.b16 %v2300, %v2296
    %v2361 = vpack.c.b16 %v2301, %v2297
    %v2362 = vpack.c.b16 %v2302, %v2298
    %v2363 = vpack.c.b16 %v2303, %v2299
    %v2364 = vpack.c.b16 %v2308, %v2304
    %v2365 = vpack.c.b16 %v2309, %v2305
    %v2366 = vpack.c.b16 %v2310, %v2306
    %v2367 = vpack.c.b16 %v2311, %v2307
    %v2368 = vpack.c.b16 %v2316, %v2312
    %v2369 = vpack.c.b16 %v2317, %v2313
    %v2370 = vpack.c.b16 %v2318, %v2314
    %v2371 = vpack.c.b16 %v2319, %v2315
    %v2372 = vpack.c.b16 %v2324, %v2320
    %v2373 = vpack.c.b16 %v2325, %v2321
    %v2374 = vpack.c.b16 %v2326, %v2322
    %v2375 = vpack.c.b16 %v2327, %v2323
    %v2376 = vpack.c.b16 %v2332, %v2328
    %v2377 = vpack.c.b16 %v2333, %v2329
    %v2378 = vpack.c.b16 %v2334, %v2330
    %v2379 = vpack.c.b16 %v2335, %v2331
    %v2380 = vpack.c.b16 %v2340, %v2336
    %v2381 = vpack.c.b16 %v2341, %v2337
    %v2382 = vpack.c.b16 %v2342, %v2338
    %v2383 = vpack.c.b16 %v2343, %v2339
    %v2384 = vpack.c.b16 %v2348, %v2344
    %v2385 = vpack.c.b16 %v2349, %v2345
    %v2386 = vpack.c.b16 %v2350, %v2346
    %v2387 = vpack.c.b16 %v2351, %v2347
    %v2388 = vpack.c.b16 %v2356, %v2352
    %v2389 = vpack.c.b16 %v2357, %v2353
    %v2390 = vpack.c.b16 %v2358, %v2354
    %v2391 = vpack.c.b16 %v2359, %v2355
    %2424 = vmatprep.subr.bf16.mxu0 %v2361
    %2425 = vmatpush1.bf16.msra.mxu0 %v2360
    %2426 = vmatprep.subr.bf16.mxu0 %v2365
    %2427 = vmatpush1.bf16.msra.mxu0 %v2364
    %2428 = vmatprep.subr.bf16.mxu0 %v2369
    %2429 = vmatpush1.bf16.msra.mxu0 %v2368
    %2430 = vmatprep.subr.bf16.mxu0 %v2373
    %2431 = vmatpush1.bf16.msra.mxu0 %v2372
    %2432 = vmatprep.subr.bf16.mxu0 %v2377
    %2433 = vmatpush1.bf16.msra.mxu0 %v2376
    %2434 = vmatprep.subr.bf16.mxu0 %v2381
    %2435 = vmatpush1.bf16.msra.mxu0 %v2380
    %2436 = vmatprep.subr.bf16.mxu0 %v2385
    %2437 = vmatpush1.bf16.msra.mxu0 %v2384
    %2438 = vmatprep.subr.bf16.mxu0 %v2389
    %2439 = vmatpush1.bf16.msra.mxu0 %v2388
    %2440 = vmatprep.subr.bf16.mxu0 0
    %2441 = vmatpush1.bf16.msra.mxu0 0
    %2442 = vmatprep.subr.bf16.mxu0 0
    %2443 = vmatpush1.bf16.msra.mxu0 0
    %2444 = vmatprep.subr.bf16.mxu0 0
    %2445 = vmatpush1.bf16.msra.mxu0 0
    %2446 = vmatprep.subr.bf16.mxu0 0
    %2447 = vmatpush1.bf16.msra.mxu0 0
    %2448 = vmatprep.subr.bf16.mxu0 0
    %2449 = vmatpush1.bf16.msra.mxu0 0
    %2450 = vmatprep.subr.bf16.mxu0 0
    %2451 = vmatpush1.bf16.msra.mxu0 0
    %2452 = vmatprep.subr.bf16.mxu0 0
    %2453 = vmatpush1.bf16.msra.mxu0 0
    %2454 = vmatprep.subr.bf16.mxu0 0
    %2455 = vmatpush1.bf16.msra.mxu0 0
    %2456 = vmatprep.mubr.bf16.mxu0 0
    %2457 = vmatmul.mubr.bf16.gmra.mrb[0].mxu0 %v1916
    %v2458 = vpop.f32.mrb[0].mxu0
    %v2459 = vadd.f32 0.0, %v2458
    %v2460 = vpop.f32.mrb[0].mxu0
    %v2461 = vadd.f32 0.0, %v2460
    %v2462 = vpop.f32.mrb[0].mxu0
    %v2463 = vpop.f32.mrb[0].mxu0
    %2464 = vdwg.mxu0
    %2465 = vmatprep.subr.bf16.mxu0 %v2363
    %2466 = vmatpush1.bf16.msra.mxu0 %v2362
    %2467 = vmatprep.subr.bf16.mxu0 %v2367
    %2468 = vmatpush1.bf16.msra.mxu0 %v2366
    %2469 = vmatprep.subr.bf16.mxu0 %v2371
    %2470 = vmatpush1.bf16.msra.mxu0 %v2370
    %2471 = vmatprep.subr.bf16.mxu0 %v2375
    %2472 = vmatpush1.bf16.msra.mxu0 %v2374
    %2473 = vmatprep.subr.bf16.mxu0 %v2379
    %2474 = vmatpush1.bf16.msra.mxu0 %v2378
    %2475 = vmatprep.subr.bf16.mxu0 %v2383
    %2476 = vmatpush1.bf16.msra.mxu0 %v2382
    %2477 = vmatprep.subr.bf16.mxu0 %v2387
    %2478 = vmatpush1.bf16.msra.mxu0 %v2386
    %2479 = vmatprep.subr.bf16.mxu0 %v2391
    %2480 = vmatpush1.bf16.msra.mxu0 %v2390
    %2481 = vmatprep.subr.bf16.mxu0 0
    %2482 = vmatpush1.bf16.msra.mxu0 0
    %2483 = vmatprep.subr.bf16.mxu0 0
    %2484 = vmatpush1.bf16.msra.mxu0 0
    %2485 = vmatprep.subr.bf16.mxu0 0
    %2486 = vmatpush1.bf16.msra.mxu0 0
    %2487 = vmatprep.subr.bf16.mxu0 0
    %2488 = vmatpush1.bf16.msra.mxu0 0
    %2489 = vmatprep.subr.bf16.mxu0 0
    %2490 = vmatpush1.bf16.msra.mxu0 0
    %2491 = vmatprep.subr.bf16.mxu0 0
    %2492 = vmatpush1.bf16.msra.mxu0 0
    %2493 = vmatprep.subr.bf16.mxu0 0
    %2494 = vmatpush1.bf16.msra.mxu0 0
    %2495 = vmatprep.subr.bf16.mxu0 0
    %2496 = vmatpush1.bf16.msra.mxu0 0
    %2497 = vmatprep.mubr.bf16.mxu0 0
    %2498 = vmatmul.mubr.bf16.gmra.mrb[0].mxu0 %v1916
    %v2499 = vpop.f32.mrb[0].mxu0
    %v2500 = vadd.f32 0.0, %v2499
    %v2501 = vpop.f32.mrb[0].mxu0
    %v2502 = vadd.f32 0.0, %v2501
    %v2503 = vpop.f32.mrb[0].mxu0
    %v2504 = vpop.f32.mrb[0].mxu0
    %2505 = vdwg.mxu0
    %v2506 = vadd.f32 %v2228, %v2459
    %v2507 = vadd.f32 %v2229, %v2461
    %v2508 = vadd.f32 %v2230, %v2500
    %v2509 = vadd.f32 %v2231, %v2502
    %v2510 = vmul.f32 %v2506, 0.5
    %v2511 = vtanh.pop %v2510
    %v2512 = vmul.f32 %v2511, 0.5
    %v2513 = vadd.f32 %v2512, 0.5
    %v2514 = vmul.f32 %v2507, 0.5
    %v2515 = vtanh.pop %v2514
    %v2516 = vmul.f32 %v2515, 0.5
    %v2517 = vadd.f32 %v2516, 0.5
    %v2518 = vtanh.pop %v2508
    %v2519 = vmul.f32 %v2509, 0.5
    %v2520 = vtanh.pop %v2519
    %v2521 = vmul.f32 %v2520, 0.5
    %v2522 = vadd.f32 %v2521, 0.5
    %v2523 = vmul.f32 %v2517, %v1913
    %v2524 = vmul.f32 %v2513, %v2518
    %v2525 = vadd.f32 %v2523, %v2524
    %v2526 = vtanh.pop %v2525
    %v2527 = vmul.f32 %v2522, %v2526
    %v2528 = vpack.c.bf16 %v2527, %v2527
    %s2529 = scalar_lea.vmem %s66, 16
    %2530 = vst [vmem:[%s2529] sm:$0xf] %v2528
    %s2531 = scalar_lea.vmem %s0, 64
    %v2532 = vld [vmem:[%s2531] sm:$0xff]
    %v2533 = vld [vmem:[%s2531 + $0x8] sm:$0xff]
    %v2534 = vunpack.c.l.bf16 %v2532
    %v2535 = vunpack.c.h.bf16 %v2532
    %v2536 = vunpack.c.l.bf16 %v2533
    %v2537 = vunpack.c.h.bf16 %v2533
    %v2538 = vld [vmem:[#allocation6] sm:$0xff]
    %v2539 = vld [vmem:[#allocation6 + $0x8] sm:$0xff]
    %v2540 = vld [vmem:[#allocation6 + $0x10] sm:$0xff]
    %v2541 = vld [vmem:[#allocation6 + $0x18] sm:$0xff]
    %v2542 = vld [vmem:[#allocation6 + $0x20] sm:$0xff]
    %v2543 = vld [vmem:[#allocation6 + $0x28] sm:$0xff]
    %v2544 = vld [vmem:[#allocation6 + $0x30] sm:$0xff]
    %v2545 = vld [vmem:[#allocation6 + $0x38] sm:$0xff]
    %v2546 = vld [vmem:[#allocation6 + $0x40] sm:$0xff]
    %v2547 = vld [vmem:[#allocation6 + $0x48] sm:$0xff]
    %v2548 = vld [vmem:[#allocation6 + $0x50] sm:$0xff]
    %v2549 = vld [vmem:[#allocation6 + $0x58] sm:$0xff]
    %v2550 = vld [vmem:[#allocation6 + $0x60] sm:$0xff]
    %v2551 = vld [vmem:[#allocation6 + $0x68] sm:$0xff]
    %v2552 = vld [vmem:[#allocation6 + $0x70] sm:$0xff]
    %v2553 = vld [vmem:[#allocation6 + $0x78] sm:$0xff]
    %v2554 = vld [vmem:[#allocation6 + $0x80] sm:$0xff]
    %v2555 = vld [vmem:[#allocation6 + $0x88] sm:$0xff]
    %v2556 = vld [vmem:[#allocation6 + $0x90] sm:$0xff]
    %v2557 = vld [vmem:[#allocation6 + $0x98] sm:$0xff]
    %v2558 = vld [vmem:[#allocation6 + $0xa0] sm:$0xff]
    %v2559 = vld [vmem:[#allocation6 + $0xa8] sm:$0xff]
    %v2560 = vld [vmem:[#allocation6 + $0xb0] sm:$0xff]
    %v2561 = vld [vmem:[#allocation6 + $0xb8] sm:$0xff]
    %v2562 = vld [vmem:[#allocation6 + $0xc0] sm:$0xff]
    %v2563 = vld [vmem:[#allocation6 + $0xc8] sm:$0xff]
    %v2564 = vld [vmem:[#allocation6 + $0xd0] sm:$0xff]
    %v2565 = vld [vmem:[#allocation6 + $0xd8] sm:$0xff]
    %v2566 = vld [vmem:[#allocation6 + $0xe0] sm:$0xff]
    %v2567 = vld [vmem:[#allocation6 + $0xe8] sm:$0xff]
    %v2568 = vld [vmem:[#allocation6 + $0xf0] sm:$0xff]
    %v2569 = vld [vmem:[#allocation6 + $0xf8] sm:$0xff]
    %v2602 = vunpack.c.l.b16 %v2538
    %v2603 = vunpack.c.h.b16 %v2538
    %v2604 = vunpack.c.l.b16 %v2539
    %v2605 = vunpack.c.h.b16 %v2539
    %v2606 = vunpack.c.l.b16 %v2540
    %v2607 = vunpack.c.h.b16 %v2540
    %v2608 = vunpack.c.l.b16 %v2541
    %v2609 = vunpack.c.h.b16 %v2541
    %v2610 = vunpack.c.l.b16 %v2542
    %v2611 = vunpack.c.h.b16 %v2542
    %v2612 = vunpack.c.l.b16 %v2543
    %v2613 = vunpack.c.h.b16 %v2543
    %v2614 = vunpack.c.l.b16 %v2544
    %v2615 = vunpack.c.h.b16 %v2544
    %v2616 = vunpack.c.l.b16 %v2545
    %v2617 = vunpack.c.h.b16 %v2545
    %v2618 = vunpack.c.l.b16 %v2546
    %v2619 = vunpack.c.h.b16 %v2546
    %v2620 = vunpack.c.l.b16 %v2547
    %v2621 = vunpack.c.h.b16 %v2547
    %v2622 = vunpack.c.l.b16 %v2548
    %v2623 = vunpack.c.h.b16 %v2548
    %v2624 = vunpack.c.l.b16 %v2549
    %v2625 = vunpack.c.h.b16 %v2549
    %v2626 = vunpack.c.l.b16 %v2550
    %v2627 = vunpack.c.h.b16 %v2550
    %v2628 = vunpack.c.l.b16 %v2551
    %v2629 = vunpack.c.h.b16 %v2551
    %v2630 = vunpack.c.l.b16 %v2552
    %v2631 = vunpack.c.h.b16 %v2552
    %v2632 = vunpack.c.l.b16 %v2553
    %v2633 = vunpack.c.h.b16 %v2553
    %v2634 = vunpack.c.l.b16 %v2554
    %v2635 = vunpack.c.h.b16 %v2554
    %v2636 = vunpack.c.l.b16 %v2555
    %v2637 = vunpack.c.h.b16 %v2555
    %v2638 = vunpack.c.l.b16 %v2556
    %v2639 = vunpack.c.h.b16 %v2556
    %v2640 = vunpack.c.l.b16 %v2557
    %v2641 = vunpack.c.h.b16 %v2557
    %v2642 = vunpack.c.l.b16 %v2558
    %v2643 = vunpack.c.h.b16 %v2558
    %v2644 = vunpack.c.l.b16 %v2559
    %v2645 = vunpack.c.h.b16 %v2559
    %v2646 = vunpack.c.l.b16 %v2560
    %v2647 = vunpack.c.h.b16 %v2560
    %v2648 = vunpack.c.l.b16 %v2561
    %v2649 = vunpack.c.h.b16 %v2561
    %v2650 = vunpack.c.l.b16 %v2562
    %v2651 = vunpack.c.h.b16 %v2562
    %v2652 = vunpack.c.l.b16 %v2563
    %v2653 = vunpack.c.h.b16 %v2563
    %v2654 = vunpack.c.l.b16 %v2564
    %v2655 = vunpack.c.h.b16 %v2564
    %v2656 = vunpack.c.l.b16 %v2565
    %v2657 = vunpack.c.h.b16 %v2565
    %v2658 = vunpack.c.l.b16 %v2566
    %v2659 = vunpack.c.h.b16 %v2566
    %v2660 = vunpack.c.l.b16 %v2567
    %v2661 = vunpack.c.h.b16 %v2567
    %v2662 = vunpack.c.l.b16 %v2568
    %v2663 = vunpack.c.h.b16 %v2568
    %v2664 = vunpack.c.l.b16 %v2569
    %v2665 = vunpack.c.h.b16 %v2569
    %v2666 = vpack.c.b16 %v2606, %v2602
    %v2667 = vpack.c.b16 %v2607, %v2603
    %v2668 = vpack.c.b16 %v2608, %v2604
    %v2669 = vpack.c.b16 %v2609, %v2605
    %v2670 = vpack.c.b16 %v2614, %v2610
    %v2671 = vpack.c.b16 %v2615, %v2611
    %v2672 = vpack.c.b16 %v2616, %v2612
    %v2673 = vpack.c.b16 %v2617, %v2613
    %v2674 = vpack.c.b16 %v2622, %v2618
    %v2675 = vpack.c.b16 %v2623, %v2619
    %v2676 = vpack.c.b16 %v2624, %v2620
    %v2677 = vpack.c.b16 %v2625, %v2621
    %v2678 = vpack.c.b16 %v2630, %v2626
    %v2679 = vpack.c.b16 %v2631, %v2627
    %v2680 = vpack.c.b16 %v2632, %v2628
    %v2681 = vpack.c.b16 %v2633, %v2629
    %v2682 = vpack.c.b16 %v2638, %v2634
    %v2683 = vpack.c.b16 %v2639, %v2635
    %v2684 = vpack.c.b16 %v2640, %v2636
    %v2685 = vpack.c.b16 %v2641, %v2637
    %v2686 = vpack.c.b16 %v2646, %v2642
    %v2687 = vpack.c.b16 %v2647, %v2643
    %v2688 = vpack.c.b16 %v2648, %v2644
    %v2689 = vpack.c.b16 %v2649, %v2645
    %v2690 = vpack.c.b16 %v2654, %v2650
    %v2691 = vpack.c.b16 %v2655, %v2651
    %v2692 = vpack.c.b16 %v2656, %v2652
    %v2693 = vpack.c.b16 %v2657, %v2653
    %v2694 = vpack.c.b16 %v2662, %v2658
    %v2695 = vpack.c.b16 %v2663, %v2659
    %v2696 = vpack.c.b16 %v2664, %v2660
    %v2697 = vpack.c.b16 %v2665, %v2661
    %2730 = vmatprep.subr.bf16.mxu0 %v2667
    %2731 = vmatpush1.bf16.msra.mxu0 %v2666
    %2732 = vmatprep.subr.bf16.mxu0 %v2671
    %2733 = vmatpush1.bf16.msra.mxu0 %v2670
    %2734 = vmatprep.subr.bf16.mxu0 %v2675
    %2735 = vmatpush1.bf16.msra.mxu0 %v2674
    %2736 = vmatprep.subr.bf16.mxu0 %v2679
    %2737 = vmatpush1.bf16.msra.mxu0 %v2678
    %2738 = vmatprep.subr.bf16.mxu0 %v2683
    %2739 = vmatpush1.bf16.msra.mxu0 %v2682
    %2740 = vmatprep.subr.bf16.mxu0 %v2687
    %2741 = vmatpush1.bf16.msra.mxu0 %v2686
    %2742 = vmatprep.subr.bf16.mxu0 %v2691
    %2743 = vmatpush1.bf16.msra.mxu0 %v2690
    %2744 = vmatprep.subr.bf16.mxu0 %v2695
    %2745 = vmatpush1.bf16.msra.mxu0 %v2694
    %2746 = vmatprep.subr.bf16.mxu0 0
    %2747 = vmatpush1.bf16.msra.mxu0 0
    %2748 = vmatprep.subr.bf16.mxu0 0
    %2749 = vmatpush1.bf16.msra.mxu0 0
    %2750 = vmatprep.subr.bf16.mxu0 0
    %2751 = vmatpush1.bf16.msra.mxu0 0
    %2752 = vmatprep.subr.bf16.mxu0 0
    %2753 = vmatpush1.bf16.msra.mxu0 0
    %2754 = vmatprep.subr.bf16.mxu0 0
    %2755 = vmatpush1.bf16.msra.mxu0 0
    %2756 = vmatprep.subr.bf16.mxu0 0
    %2757 = vmatpush1.bf16.msra.mxu0 0
    %2758 = vmatprep.subr.bf16.mxu0 0
    %2759 = vmatpush1.bf16.msra.mxu0 0
    %2760 = vmatprep.subr.bf16.mxu0 0
    %2761 = vmatpush1.bf16.msra.mxu0 0
    %2762 = vmatprep.mubr.bf16.mxu0 0
    %2763 = vmatmul.mubr.bf16.gmra.mrb[0].mxu0 %v2222
    %v2764 = vpop.f32.mrb[0].mxu0
    %v2765 = vadd.f32 0.0, %v2764
    %v2766 = vpop.f32.mrb[0].mxu0
    %v2767 = vadd.f32 0.0, %v2766
    %v2768 = vpop.f32.mrb[0].mxu0
    %v2769 = vpop.f32.mrb[0].mxu0
    %2770 = vdwg.mxu0
    %2771 = vmatprep.subr.bf16.mxu0 %v2669
    %2772 = vmatpush1.bf16.msra.mxu0 %v2668
    %2773 = vmatprep.subr.bf16.mxu0 %v2673
    %2774 = vmatpush1.bf16.msra.mxu0 %v2672
    %2775 = vmatprep.subr.bf16.mxu0 %v2677
    %2776 = vmatpush1.bf16.msra.mxu0 %v2676
    %2777 = vmatprep.subr.bf16.mxu0 %v2681
    %2778 = vmatpush1.bf16.msra.mxu0 %v2680
    %2779 = vmatprep.subr.bf16.mxu0 %v2685
    %2780 = vmatpush1.bf16.msra.mxu0 %v2684
    %2781 = vmatprep.subr.bf16.mxu0 %v2689
    %2782 = vmatpush1.bf16.msra.mxu0 %v2688
    %2783 = vmatprep.subr.bf16.mxu0 %v2693
    %2784 = vmatpush1.bf16.msra.mxu0 %v2692
    %2785 = vmatprep.subr.bf16.mxu0 %v2697
    %2786 = vmatpush1.bf16.msra.mxu0 %v2696
    %2787 = vmatprep.subr.bf16.mxu0 0
    %2788 = vmatpush1.bf16.msra.mxu0 0
    %2789 = vmatprep.subr.bf16.mxu0 0
    %2790 = vmatpush1.bf16.msra.mxu0 0
    %2791 = vmatprep.subr.bf16.mxu0 0
    %2792 = vmatpush1.bf16.msra.mxu0 0
    %2793 = vmatprep.subr.bf16.mxu0 0
    %2794 = vmatpush1.bf16.msra.mxu0 0
    %2795 = vmatprep.subr.bf16.mxu0 0
    %2796 = vmatpush1.bf16.msra.mxu0 0
    %2797 = vmatprep.subr.bf16.mxu0 0
    %2798 = vmatpush1.bf16.msra.mxu0 0
    %2799 = vmatprep.subr.bf16.mxu0 0
    %2800 = vmatpush1.bf16.msra.mxu0 0
    %2801 = vmatprep.subr.bf16.mxu0 0
    %2802 = vmatpush1.bf16.msra.mxu0 0
    %2803 = vmatprep.mubr.bf16.mxu0 0
    %2804 = vmatmul.mubr.bf16.gmra.mrb[0].mxu0 %v2222
    %v2805 = vpop.f32.mrb[0].mxu0
    %v2806 = vadd.f32 0.0, %v2805
    %v2807 = vpop.f32.mrb[0].mxu0
    %v2808 = vadd.f32 0.0, %v2807
    %v2809 = vpop.f32.mrb[0].mxu0
    %v2810 = vpop.f32.mrb[0].mxu0
    %2811 = vdwg.mxu0
    %v2812 = vadd.f32 %v2534, %v2765
    %v2813 = vadd.f32 %v2535, %v2767
    %v2814 = vadd.f32 %v2536, %v2806
    %v2815 = vadd.f32 %v2537, %v2808
    %v2816 = vmul.f32 %v2812, 0.5
    %v2817 = vtanh.pop %v2816
    %v2818 = vmul.f32 %v2817, 0.5
    %v2819 = vadd.f32 %v2818, 0.5
    %v2820 = vmul.f32 %v2813, 0.5
    %v2821 = vtanh.pop %v2820
    %v2822 = vmul.f32 %v2821, 0.5
    %v2823 = vadd.f32 %v2822, 0.5
    %v2824 = vtanh.pop %v2814
    %v2825 = vmul.f32 %v2815, 0.5
    %v2826 = vtanh.pop %v2825
    %v2827 = vmul.f32 %v2826, 0.5
    %v2828 = vadd.f32 %v2827, 0.5
    %v2829 = vmul.f32 %v2823, %v2219
    %v2830 = vmul.f32 %v2819, %v2824
    %v2831 = vadd.f32 %v2829, %v2830
    %v2832 = vtanh.pop %v2831
    %v2833 = vmul.f32 %v2828, %v2832
    %v2834 = vpack.c.bf16 %v2833, %v2833
    %s2835 = scalar_lea.vmem %s3, 16
    %2836 = vst [vmem:[%s2835] sm:$0xf] %v2834
    %s2837 = scalar_lea.vmem %s58, 48
    %v2838 = vld [vmem:[%s2837] sm:$0xff]
    %v2839 = vld [vmem:[%s2837 + $0x8] sm:$0xff]
    %v2840 = vunpack.c.l.bf16 %v2838
    %v2841 = vunpack.c.h.bf16 %v2838
    %v2842 = vunpack.c.l.bf16 %v2839
    %v2843 = vunpack.c.h.bf16 %v2839
    %v2844 = vld [vmem:[%s395] sm:$0xff]
    %v2845 = vld [vmem:[%s395 + $0x8] sm:$0xff]
    %v2846 = vld [vmem:[%s395 + $0x10] sm:$0xff]
    %v2847 = vld [vmem:[%s395 + $0x18] sm:$0xff]
    %v2848 = vld [vmem:[%s395 + $0x20] sm:$0xff]
    %v2849 = vld [vmem:[%s395 + $0x28] sm:$0xff]
    %v2850 = vld [vmem:[%s395 + $0x30] sm:$0xff]
    %v2851 = vld [vmem:[%s395 + $0x38] sm:$0xff]
    %v2852 = vld [vmem:[%s395 + $0x40] sm:$0xff]
    %v2853 = vld [vmem:[%s395 + $0x48] sm:$0xff]
    %v2854 = vld [vmem:[%s395 + $0x50] sm:$0xff]
    %v2855 = vld [vmem:[%s395 + $0x58] sm:$0xff]
    %v2856 = vld [vmem:[%s395 + $0x60] sm:$0xff]
    %v2857 = vld [vmem:[%s395 + $0x68] sm:$0xff]
    %v2858 = vld [vmem:[%s395 + $0x70] sm:$0xff]
    %v2859 = vld [vmem:[%s395 + $0x78] sm:$0xff]
    %v2860 = vld [vmem:[%s395 + $0x80] sm:$0xff]
    %v2861 = vld [vmem:[%s395 + $0x88] sm:$0xff]
    %v2862 = vld [vmem:[%s395 + $0x90] sm:$0xff]
    %v2863 = vld [vmem:[%s395 + $0x98] sm:$0xff]
    %v2864 = vld [vmem:[%s395 + $0xa0] sm:$0xff]
    %v2865 = vld [vmem:[%s395 + $0xa8] sm:$0xff]
    %v2866 = vld [vmem:[%s395 + $0xb0] sm:$0xff]
    %v2867 = vld [vmem:[%s395 + $0xb8] sm:$0xff]
    %v2868 = vld [vmem:[%s395 + $0xc0] sm:$0xff]
    %v2869 = vld [vmem:[%s395 + $0xc8] sm:$0xff]
    %v2870 = vld [vmem:[%s395 + $0xd0] sm:$0xff]
    %v2871 = vld [vmem:[%s395 + $0xd8] sm:$0xff]
    %v2872 = vld [vmem:[%s395 + $0xe0] sm:$0xff]
    %v2873 = vld [vmem:[%s395 + $0xe8] sm:$0xff]
    %v2874 = vld [vmem:[%s395 + $0xf0] sm:$0xff]
    %v2875 = vld [vmem:[%s395 + $0xf8] sm:$0xff]
    %v2908 = vunpack.c.l.b16 %v2844
    %v2909 = vunpack.c.h.b16 %v2844
    %v2910 = vunpack.c.l.b16 %v2845
    %v2911 = vunpack.c.h.b16 %v2845
    %v2912 = vunpack.c.l.b16 %v2846
    %v2913 = vunpack.c.h.b16 %v2846
    %v2914 = vunpack.c.l.b16 %v2847
    %v2915 = vunpack.c.h.b16 %v2847
    %v2916 = vunpack.c.l.b16 %v2848
    %v2917 = vunpack.c.h.b16 %v2848
    %v2918 = vunpack.c.l.b16 %v2849
    %v2919 = vunpack.c.h.b16 %v2849
    %v2920 = vunpack.c.l.b16 %v2850
    %v2921 = vunpack.c.h.b16 %v2850
    %v2922 = vunpack.c.l.b16 %v2851
    %v2923 = vunpack.c.h.b16 %v2851
    %v2924 = vunpack.c.l.b16 %v2852
    %v2925 = vunpack.c.h.b16 %v2852
    %v2926 = vunpack.c.l.b16 %v2853
    %v2927 = vunpack.c.h.b16 %v2853
    %v2928 = vunpack.c.l.b16 %v2854
    %v2929 = vunpack.c.h.b16 %v2854
    %v2930 = vunpack.c.l.b16 %v2855
    %v2931 = vunpack.c.h.b16 %v2855
    %v2932 = vunpack.c.l.b16 %v2856
    %v2933 = vunpack.c.h.b16 %v2856
    %v2934 = vunpack.c.l.b16 %v2857
    %v2935 = vunpack.c.h.b16 %v2857
    %v2936 = vunpack.c.l.b16 %v2858
    %v2937 = vunpack.c.h.b16 %v2858
    %v2938 = vunpack.c.l.b16 %v2859
    %v2939 = vunpack.c.h.b16 %v2859
    %v2940 = vunpack.c.l.b16 %v2860
    %v2941 = vunpack.c.h.b16 %v2860
    %v2942 = vunpack.c.l.b16 %v2861
    %v2943 = vunpack.c.h.b16 %v2861
    %v2944 = vunpack.c.l.b16 %v2862
    %v2945 = vunpack.c.h.b16 %v2862
    %v2946 = vunpack.c.l.b16 %v2863
    %v2947 = vunpack.c.h.b16 %v2863
    %v2948 = vunpack.c.l.b16 %v2864
    %v2949 = vunpack.c.h.b16 %v2864
    %v2950 = vunpack.c.l.b16 %v2865
    %v2951 = vunpack.c.h.b16 %v2865
    %v2952 = vunpack.c.l.b16 %v2866
    %v2953 = vunpack.c.h.b16 %v2866
    %v2954 = vunpack.c.l.b16 %v2867
    %v2955 = vunpack.c.h.b16 %v2867
    %v2956 = vunpack.c.l.b16 %v2868
    %v2957 = vunpack.c.h.b16 %v2868
    %v2958 = vunpack.c.l.b16 %v2869
    %v2959 = vunpack.c.h.b16 %v2869
    %v2960 = vunpack.c.l.b16 %v2870
    %v2961 = vunpack.c.h.b16 %v2870
    %v2962 = vunpack.c.l.b16 %v2871
    %v2963 = vunpack.c.h.b16 %v2871
    %v2964 = vunpack.c.l.b16 %v2872
    %v2965 = vunpack.c.h.b16 %v2872
    %v2966 = vunpack.c.l.b16 %v2873
    %v2967 = vunpack.c.h.b16 %v2873
    %v2968 = vunpack.c.l.b16 %v2874
    %v2969 = vunpack.c.h.b16 %v2874
    %v2970 = vunpack.c.l.b16 %v2875
    %v2971 = vunpack.c.h.b16 %v2875
    %v2972 = vpack.c.b16 %v2912, %v2908
    %v2973 = vpack.c.b16 %v2913, %v2909
    %v2974 = vpack.c.b16 %v2914, %v2910
    %v2975 = vpack.c.b16 %v2915, %v2911
    %v2976 = vpack.c.b16 %v2920, %v2916
    %v2977 = vpack.c.b16 %v2921, %v2917
    %v2978 = vpack.c.b16 %v2922, %v2918
    %v2979 = vpack.c.b16 %v2923, %v2919
    %v2980 = vpack.c.b16 %v2928, %v2924
    %v2981 = vpack.c.b16 %v2929, %v2925
    %v2982 = vpack.c.b16 %v2930, %v2926
    %v2983 = vpack.c.b16 %v2931, %v2927
    %v2984 = vpack.c.b16 %v2936, %v2932
    %v2985 = vpack.c.b16 %v2937, %v2933
    %v2986 = vpack.c.b16 %v2938, %v2934
    %v2987 = vpack.c.b16 %v2939, %v2935
    %v2988 = vpack.c.b16 %v2944, %v2940
    %v2989 = vpack.c.b16 %v2945, %v2941
    %v2990 = vpack.c.b16 %v2946, %v2942
    %v2991 = vpack.c.b16 %v2947, %v2943
    %v2992 = vpack.c.b16 %v2952, %v2948
    %v2993 = vpack.c.b16 %v2953, %v2949
    %v2994 = vpack.c.b16 %v2954, %v2950
    %v2995 = vpack.c.b16 %v2955, %v2951
    %v2996 = vpack.c.b16 %v2960, %v2956
    %v2997 = vpack.c.b16 %v2961, %v2957
    %v2998 = vpack.c.b16 %v2962, %v2958
    %v2999 = vpack.c.b16 %v2963, %v2959
    %v3000 = vpack.c.b16 %v2968, %v2964
    %v3001 = vpack.c.b16 %v2969, %v2965
    %v3002 = vpack.c.b16 %v2970, %v2966
    %v3003 = vpack.c.b16 %v2971, %v2967
    %3036 = vmatprep.subr.bf16.mxu0 %v2973
    %3037 = vmatpush1.bf16.msra.mxu0 %v2972
    %3038 = vmatprep.subr.bf16.mxu0 %v2977
    %3039 = vmatpush1.bf16.msra.mxu0 %v2976
    %3040 = vmatprep.subr.bf16.mxu0 %v2981
    %3041 = vmatpush1.bf16.msra.mxu0 %v2980
    %3042 = vmatprep.subr.bf16.mxu0 %v2985
    %3043 = vmatpush1.bf16.msra.mxu0 %v2984
    %3044 = vmatprep.subr.bf16.mxu0 %v2989
    %3045 = vmatpush1.bf16.msra.mxu0 %v2988
    %3046 = vmatprep.subr.bf16.mxu0 %v2993
    %3047 = vmatpush1.bf16.msra.mxu0 %v2992
    %3048 = vmatprep.subr.bf16.mxu0 %v2997
    %3049 = vmatpush1.bf16.msra.mxu0 %v2996
    %3050 = vmatprep.subr.bf16.mxu0 %v3001
    %3051 = vmatpush1.bf16.msra.mxu0 %v3000
    %3052 = vmatprep.subr.bf16.mxu0 0
    %3053 = vmatpush1.bf16.msra.mxu0 0
    %3054 = vmatprep.subr.bf16.mxu0 0
    %3055 = vmatpush1.bf16.msra.mxu0 0
    %3056 = vmatprep.subr.bf16.mxu0 0
    %3057 = vmatpush1.bf16.msra.mxu0 0
    %3058 = vmatprep.subr.bf16.mxu0 0
    %3059 = vmatpush1.bf16.msra.mxu0 0
    %3060 = vmatprep.subr.bf16.mxu0 0
    %3061 = vmatpush1.bf16.msra.mxu0 0
    %3062 = vmatprep.subr.bf16.mxu0 0
    %3063 = vmatpush1.bf16.msra.mxu0 0
    %3064 = vmatprep.subr.bf16.mxu0 0
    %3065 = vmatpush1.bf16.msra.mxu0 0
    %3066 = vmatprep.subr.bf16.mxu0 0
    %3067 = vmatpush1.bf16.msra.mxu0 0
    %3068 = vmatprep.mubr.bf16.mxu0 0
    %3069 = vmatmul.mubr.bf16.gmra.mrb[0].mxu0 %v2528
    %v3070 = vpop.f32.mrb[0].mxu0
    %v3071 = vadd.f32 0.0, %v3070
    %v3072 = vpop.f32.mrb[0].mxu0
    %v3073 = vadd.f32 0.0, %v3072
    %v3074 = vpop.f32.mrb[0].mxu0
    %v3075 = vpop.f32.mrb[0].mxu0
    %3076 = vdwg.mxu0
    %3077 = vmatprep.subr.bf16.mxu0 %v2975
    %3078 = vmatpush1.bf16.msra.mxu0 %v2974
    %3079 = vmatprep.subr.bf16.mxu0 %v2979
    %3080 = vmatpush1.bf16.msra.mxu0 %v2978
    %3081 = vmatprep.subr.bf16.mxu0 %v2983
    %3082 = vmatpush1.bf16.msra.mxu0 %v2982
    %3083 = vmatprep.subr.bf16.mxu0 %v2987
    %3084 = vmatpush1.bf16.msra.mxu0 %v2986
    %3085 = vmatprep.subr.bf16.mxu0 %v2991
    %3086 = vmatpush1.bf16.msra.mxu0 %v2990
    %3087 = vmatprep.subr.bf16.mxu0 %v2995
    %3088 = vmatpush1.bf16.msra.mxu0 %v2994
    %3089 = vmatprep.subr.bf16.mxu0 %v2999
    %3090 = vmatpush1.bf16.msra.mxu0 %v2998
    %3091 = vmatprep.subr.bf16.mxu0 %v3003
    %3092 = vmatpush1.bf16.msra.mxu0 %v3002
    %3093 = vmatprep.subr.bf16.mxu0 0
    %3094 = vmatpush1.bf16.msra.mxu0 0
    %3095 = vmatprep.subr.bf16.mxu0 0
    %3096 = vmatpush1.bf16.msra.mxu0 0
    %3097 = vmatprep.subr.bf16.mxu0 0
    %3098 = vmatpush1.bf16.msra.mxu0 0
    %3099 = vmatprep.subr.bf16.mxu0 0
    %3100 = vmatpush1.bf16.msra.mxu0 0
    %3101 = vmatprep.subr.bf16.mxu0 0
    %3102 = vmatpush1.bf16.msra.mxu0 0
    %3103 = vmatprep.subr.bf16.mxu0 0
    %3104 = vmatpush1.bf16.msra.mxu0 0
    %3105 = vmatprep.subr.bf16.mxu0 0
    %3106 = vmatpush1.bf16.msra.mxu0 0
    %3107 = vmatprep.subr.bf16.mxu0 0
    %3108 = vmatpush1.bf16.msra.mxu0 0
    %3109 = vmatprep.mubr.bf16.mxu0 0
    %3110 = vmatmul.mubr.bf16.gmra.mrb[0].mxu0 %v2528
    %v3111 = vpop.f32.mrb[0].mxu0
    %v3112 = vadd.f32 0.0, %v3111
    %v3113 = vpop.f32.mrb[0].mxu0
    %v3114 = vadd.f32 0.0, %v3113
    %v3115 = vpop.f32.mrb[0].mxu0
    %v3116 = vpop.f32.mrb[0].mxu0
    %3117 = vdwg.mxu0
    %v3118 = vadd.f32 %v2840, %v3071
    %v3119 = vadd.f32 %v2841, %v3073
    %v3120 = vadd.f32 %v2842, %v3112
    %v3121 = vadd.f32 %v2843, %v3114
    %v3122 = vmul.f32 %v3118, 0.5
    %v3123 = vtanh.pop %v3122
    %v3124 = vmul.f32 %v3123, 0.5
    %v3125 = vadd.f32 %v3124, 0.5
    %v3126 = vmul.f32 %v3119, 0.5
    %v3127 = vtanh.pop %v3126
    %v3128 = vmul.f32 %v3127, 0.5
    %v3129 = vadd.f32 %v3128, 0.5
    %v3130 = vtanh.pop %v3120
    %v3131 = vmul.f32 %v3121, 0.5
    %v3132 = vtanh.pop %v3131
    %v3133 = vmul.f32 %v3132, 0.5
    %v3134 = vadd.f32 %v3133, 0.5
    %v3135 = vmul.f32 %v3129, %v2525
    %v3136 = vmul.f32 %v3125, %v3130
    %v3137 = vadd.f32 %v3135, %v3136
    %v3138 = vtanh.pop %v3137
    %v3139 = vmul.f32 %v3134, %v3138
    %v3140 = vpack.c.bf16 %v3139, %v3139
    %s3141 = scalar_lea.vmem %s66, 12
    %3142 = vst [vmem:[%s3141] sm:$0xf] %v3140
    %s3143 = scalar_lea.vmem %s0, 80
    %v3144 = vld [vmem:[%s3143] sm:$0xff]
    %v3145 = vld [vmem:[%s3143 + $0x8] sm:$0xff]
    %v3146 = vunpack.c.l.bf16 %v3144
    %v3147 = vunpack.c.h.bf16 %v3144
    %v3148 = vunpack.c.l.bf16 %v3145
    %v3149 = vunpack.c.h.bf16 %v3145
    %v3150 = vld [vmem:[#allocation6] sm:$0xff]
    %v3151 = vld [vmem:[#allocation6 + $0x8] sm:$0xff]
    %v3152 = vld [vmem:[#allocation6 + $0x10] sm:$0xff]
    %v3153 = vld [vmem:[#allocation6 + $0x18] sm:$0xff]
    %v3154 = vld [vmem:[#allocation6 + $0x20] sm:$0xff]
    %v3155 = vld [vmem:[#allocation6 + $0x28] sm:$0xff]
    %v3156 = vld [vmem:[#allocation6 + $0x30] sm:$0xff]
    %v3157 = vld [vmem:[#allocation6 + $0x38] sm:$0xff]
    %v3158 = vld [vmem:[#allocation6 + $0x40] sm:$0xff]
    %v3159 = vld [vmem:[#allocation6 + $0x48] sm:$0xff]
    %v3160 = vld [vmem:[#allocation6 + $0x50] sm:$0xff]
    %v3161 = vld [vmem:[#allocation6 + $0x58] sm:$0xff]
    %v3162 = vld [vmem:[#allocation6 + $0x60] sm:$0xff]
    %v3163 = vld [vmem:[#allocation6 + $0x68] sm:$0xff]
    %v3164 = vld [vmem:[#allocation6 + $0x70] sm:$0xff]
    %v3165 = vld [vmem:[#allocation6 + $0x78] sm:$0xff]
    %v3166 = vld [vmem:[#allocation6 + $0x80] sm:$0xff]
    %v3167 = vld [vmem:[#allocation6 + $0x88] sm:$0xff]
    %v3168 = vld [vmem:[#allocation6 + $0x90] sm:$0xff]
    %v3169 = vld [vmem:[#allocation6 + $0x98] sm:$0xff]
    %v3170 = vld [vmem:[#allocation6 + $0xa0] sm:$0xff]
    %v3171 = vld [vmem:[#allocation6 + $0xa8] sm:$0xff]
    %v3172 = vld [vmem:[#allocation6 + $0xb0] sm:$0xff]
    %v3173 = vld [vmem:[#allocation6 + $0xb8] sm:$0xff]
    %v3174 = vld [vmem:[#allocation6 + $0xc0] sm:$0xff]
    %v3175 = vld [vmem:[#allocation6 + $0xc8] sm:$0xff]
    %v3176 = vld [vmem:[#allocation6 + $0xd0] sm:$0xff]
    %v3177 = vld [vmem:[#allocation6 + $0xd8] sm:$0xff]
    %v3178 = vld [vmem:[#allocation6 + $0xe0] sm:$0xff]
    %v3179 = vld [vmem:[#allocation6 + $0xe8] sm:$0xff]
    %v3180 = vld [vmem:[#allocation6 + $0xf0] sm:$0xff]
    %v3181 = vld [vmem:[#allocation6 + $0xf8] sm:$0xff]
    %v3214 = vunpack.c.l.b16 %v3150
    %v3215 = vunpack.c.h.b16 %v3150
    %v3216 = vunpack.c.l.b16 %v3151
    %v3217 = vunpack.c.h.b16 %v3151
    %v3218 = vunpack.c.l.b16 %v3152
    %v3219 = vunpack.c.h.b16 %v3152
    %v3220 = vunpack.c.l.b16 %v3153
    %v3221 = vunpack.c.h.b16 %v3153
    %v3222 = vunpack.c.l.b16 %v3154
    %v3223 = vunpack.c.h.b16 %v3154
    %v3224 = vunpack.c.l.b16 %v3155
    %v3225 = vunpack.c.h.b16 %v3155
    %v3226 = vunpack.c.l.b16 %v3156
    %v3227 = vunpack.c.h.b16 %v3156
    %v3228 = vunpack.c.l.b16 %v3157
    %v3229 = vunpack.c.h.b16 %v3157
    %v3230 = vunpack.c.l.b16 %v3158
    %v3231 = vunpack.c.h.b16 %v3158
    %v3232 = vunpack.c.l.b16 %v3159
    %v3233 = vunpack.c.h.b16 %v3159
    %v3234 = vunpack.c.l.b16 %v3160
    %v3235 = vunpack.c.h.b16 %v3160
    %v3236 = vunpack.c.l.b16 %v3161
    %v3237 = vunpack.c.h.b16 %v3161
    %v3238 = vunpack.c.l.b16 %v3162
    %v3239 = vunpack.c.h.b16 %v3162
    %v3240 = vunpack.c.l.b16 %v3163
    %v3241 = vunpack.c.h.b16 %v3163
    %v3242 = vunpack.c.l.b16 %v3164
    %v3243 = vunpack.c.h.b16 %v3164
    %v3244 = vunpack.c.l.b16 %v3165
    %v3245 = vunpack.c.h.b16 %v3165
    %v3246 = vunpack.c.l.b16 %v3166
    %v3247 = vunpack.c.h.b16 %v3166
    %v3248 = vunpack.c.l.b16 %v3167
    %v3249 = vunpack.c.h.b16 %v3167
    %v3250 = vunpack.c.l.b16 %v3168
    %v3251 = vunpack.c.h.b16 %v3168
    %v3252 = vunpack.c.l.b16 %v3169
    %v3253 = vunpack.c.h.b16 %v3169
    %v3254 = vunpack.c.l.b16 %v3170
    %v3255 = vunpack.c.h.b16 %v3170
    %v3256 = vunpack.c.l.b16 %v3171
    %v3257 = vunpack.c.h.b16 %v3171
    %v3258 = vunpack.c.l.b16 %v3172
    %v3259 = vunpack.c.h.b16 %v3172
    %v3260 = vunpack.c.l.b16 %v3173
    %v3261 = vunpack.c.h.b16 %v3173
    %v3262 = vunpack.c.l.b16 %v3174
    %v3263 = vunpack.c.h.b16 %v3174
    %v3264 = vunpack.c.l.b16 %v3175
    %v3265 = vunpack.c.h.b16 %v3175
    %v3266 = vunpack.c.l.b16 %v3176
    %v3267 = vunpack.c.h.b16 %v3176
    %v3268 = vunpack.c.l.b16 %v3177
    %v3269 = vunpack.c.h.b16 %v3177
    %v3270 = vunpack.c.l.b16 %v3178
    %v3271 = vunpack.c.h.b16 %v3178
    %v3272 = vunpack.c.l.b16 %v3179
    %v3273 = vunpack.c.h.b16 %v3179
    %v3274 = vunpack.c.l.b16 %v3180
    %v3275 = vunpack.c.h.b16 %v3180
    %v3276 = vunpack.c.l.b16 %v3181
    %v3277 = vunpack.c.h.b16 %v3181
    %v3278 = vpack.c.b16 %v3218, %v3214
    %v3279 = vpack.c.b16 %v3219, %v3215
    %v3280 = vpack.c.b16 %v3220, %v3216
    %v3281 = vpack.c.b16 %v3221, %v3217
    %v3282 = vpack.c.b16 %v3226, %v3222
    %v3283 = vpack.c.b16 %v3227, %v3223
    %v3284 = vpack.c.b16 %v3228, %v3224
    %v3285 = vpack.c.b16 %v3229, %v3225
    %v3286 = vpack.c.b16 %v3234, %v3230
    %v3287 = vpack.c.b16 %v3235, %v3231
    %v3288 = vpack.c.b16 %v3236, %v3232
    %v3289 = vpack.c.b16 %v3237, %v3233
    %v3290 = vpack.c.b16 %v3242, %v3238
    %v3291 = vpack.c.b16 %v3243, %v3239
    %v3292 = vpack.c.b16 %v3244, %v3240
    %v3293 = vpack.c.b16 %v3245, %v3241
    %v3294 = vpack.c.b16 %v3250, %v3246
    %v3295 = vpack.c.b16 %v3251, %v3247
    %v3296 = vpack.c.b16 %v3252, %v3248
    %v3297 = vpack.c.b16 %v3253, %v3249
    %v3298 = vpack.c.b16 %v3258, %v3254
    %v3299 = vpack.c.b16 %v3259, %v3255
    %v3300 = vpack.c.b16 %v3260, %v3256
    %v3301 = vpack.c.b16 %v3261, %v3257
    %v3302 = vpack.c.b16 %v3266, %v3262
    %v3303 = vpack.c.b16 %v3267, %v3263
    %v3304 = vpack.c.b16 %v3268, %v3264
    %v3305 = vpack.c.b16 %v3269, %v3265
    %v3306 = vpack.c.b16 %v3274, %v3270
    %v3307 = vpack.c.b16 %v3275, %v3271
    %v3308 = vpack.c.b16 %v3276, %v3272
    %v3309 = vpack.c.b16 %v3277, %v3273
    %3342 = vmatprep.subr.bf16.mxu0 %v3279
    %3343 = vmatpush1.bf16.msra.mxu0 %v3278
    %3344 = vmatprep.subr.bf16.mxu0 %v3283
    %3345 = vmatpush1.bf16.msra.mxu0 %v3282
    %3346 = vmatprep.subr.bf16.mxu0 %v3287
    %3347 = vmatpush1.bf16.msra.mxu0 %v3286
    %3348 = vmatprep.subr.bf16.mxu0 %v3291
    %3349 = vmatpush1.bf16.msra.mxu0 %v3290
    %3350 = vmatprep.subr.bf16.mxu0 %v3295
    %3351 = vmatpush1.bf16.msra.mxu0 %v3294
    %3352 = vmatprep.subr.bf16.mxu0 %v3299
    %3353 = vmatpush1.bf16.msra.mxu0 %v3298
    %3354 = vmatprep.subr.bf16.mxu0 %v3303
    %3355 = vmatpush1.bf16.msra.mxu0 %v3302
    %3356 = vmatprep.subr.bf16.mxu0 %v3307
    %3357 = vmatpush1.bf16.msra.mxu0 %v3306
    %3358 = vmatprep.subr.bf16.mxu0 0
    %3359 = vmatpush1.bf16.msra.mxu0 0
    %3360 = vmatprep.subr.bf16.mxu0 0
    %3361 = vmatpush1.bf16.msra.mxu0 0
    %3362 = vmatprep.subr.bf16.mxu0 0
    %3363 = vmatpush1.bf16.msra.mxu0 0
    %3364 = vmatprep.subr.bf16.mxu0 0
    %3365 = vmatpush1.bf16.msra.mxu0 0
    %3366 = vmatprep.subr.bf16.mxu0 0
    %3367 = vmatpush1.bf16.msra.mxu0 0
    %3368 = vmatprep.subr.bf16.mxu0 0
    %3369 = vmatpush1.bf16.msra.mxu0 0
    %3370 = vmatprep.subr.bf16.mxu0 0
    %3371 = vmatpush1.bf16.msra.mxu0 0
    %3372 = vmatprep.subr.bf16.mxu0 0
    %3373 = vmatpush1.bf16.msra.mxu0 0
    %3374 = vmatprep.mubr.bf16.mxu0 0
    %3375 = vmatmul.mubr.bf16.gmra.mrb[0].mxu0 %v2834
    %v3376 = vpop.f32.mrb[0].mxu0
    %v3377 = vadd.f32 0.0, %v3376
    %v3378 = vpop.f32.mrb[0].mxu0
    %v3379 = vadd.f32 0.0, %v3378
    %v3380 = vpop.f32.mrb[0].mxu0
    %v3381 = vpop.f32.mrb[0].mxu0
    %3382 = vdwg.mxu0
    %3383 = vmatprep.subr.bf16.mxu0 %v3281
    %3384 = vmatpush1.bf16.msra.mxu0 %v3280
    %3385 = vmatprep.subr.bf16.mxu0 %v3285
    %3386 = vmatpush1.bf16.msra.mxu0 %v3284
    %3387 = vmatprep.subr.bf16.mxu0 %v3289
    %3388 = vmatpush1.bf16.msra.mxu0 %v3288
    %3389 = vmatprep.subr.bf16.mxu0 %v3293
    %3390 = vmatpush1.bf16.msra.mxu0 %v3292
    %3391 = vmatprep.subr.bf16.mxu0 %v3297
    %3392 = vmatpush1.bf16.msra.mxu0 %v3296
    %3393 = vmatprep.subr.bf16.mxu0 %v3301
    %3394 = vmatpush1.bf16.msra.mxu0 %v3300
    %3395 = vmatprep.subr.bf16.mxu0 %v3305
    %3396 = vmatpush1.bf16.msra.mxu0 %v3304
    %3397 = vmatprep.subr.bf16.mxu0 %v3309
    %3398 = vmatpush1.bf16.msra.mxu0 %v3308
    %3399 = vmatprep.subr.bf16.mxu0 0
    %3400 = vmatpush1.bf16.msra.mxu0 0
    %3401 = vmatprep.subr.bf16.mxu0 0
    %3402 = vmatpush1.bf16.msra.mxu0 0
    %3403 = vmatprep.subr.bf16.mxu0 0
    %3404 = vmatpush1.bf16.msra.mxu0 0
    %3405 = vmatprep.subr.bf16.mxu0 0
    %3406 = vmatpush1.bf16.msra.mxu0 0
    %3407 = vmatprep.subr.bf16.mxu0 0
    %3408 = vmatpush1.bf16.msra.mxu0 0
    %3409 = vmatprep.subr.bf16.mxu0 0
    %3410 = vmatpush1.bf16.msra.mxu0 0
    %3411 = vmatprep.subr.bf16.mxu0 0
    %3412 = vmatpush1.bf16.msra.mxu0 0
    %3413 = vmatprep.subr.bf16.mxu0 0
    %3414 = vmatpush1.bf16.msra.mxu0 0
    %3415 = vmatprep.mubr.bf16.mxu0 0
    %3416 = vmatmul.mubr.bf16.gmra.mrb[0].mxu0 %v2834
    %v3417 = vpop.f32.mrb[0].mxu0
    %v3418 = vadd.f32 0.0, %v3417
    %v3419 = vpop.f32.mrb[0].mxu0
    %v3420 = vadd.f32 0.0, %v3419
    %v3421 = vpop.f32.mrb[0].mxu0
    %v3422 = vpop.f32.mrb[0].mxu0
    %3423 = vdwg.mxu0
    %v3424 = vadd.f32 %v3146, %v3377
    %v3425 = vadd.f32 %v3147, %v3379
    %v3426 = vadd.f32 %v3148, %v3418
    %v3427 = vadd.f32 %v3149, %v3420
    %v3428 = vmul.f32 %v3424, 0.5
    %v3429 = vtanh.pop %v3428
    %v3430 = vmul.f32 %v3429, 0.5
    %v3431 = vadd.f32 %v3430, 0.5
    %v3432 = vmul.f32 %v3425, 0.5
    %v3433 = vtanh.pop %v3432
    %v3434 = vmul.f32 %v3433, 0.5
    %v3435 = vadd.f32 %v3434, 0.5
    %v3436 = vtanh.pop %v3426
    %v3437 = vmul.f32 %v3427, 0.5
    %v3438 = vtanh.pop %v3437
    %v3439 = vmul.f32 %v3438, 0.5
    %v3440 = vadd.f32 %v3439, 0.5
    %v3441 = vmul.f32 %v3435, %v2831
    %v3442 = vmul.f32 %v3431, %v3436
    %v3443 = vadd.f32 %v3441, %v3442
    %v3444 = vtanh.pop %v3443
    %v3445 = vmul.f32 %v3440, %v3444
    %v3446 = vpack.c.bf16 %v3445, %v3445
    %s3447 = scalar_lea.vmem %s3, 20
    %3448 = vst [vmem:[%s3447] sm:$0xf] %v3446
    %s3449 = scalar_lea.vmem %s58, 32
    %v3450 = vld [vmem:[%s3449] sm:$0xff]
    %v3451 = vld [vmem:[%s3449 + $0x8] sm:$0xff]
    %v3452 = vunpack.c.l.bf16 %v3450
    %v3453 = vunpack.c.h.bf16 %v3450
    %v3454 = vunpack.c.l.bf16 %v3451
    %v3455 = vunpack.c.h.bf16 %v3451
    %v3456 = vld [vmem:[%s395] sm:$0xff]
    %v3457 = vld [vmem:[%s395 + $0x8] sm:$0xff]
    %v3458 = vld [vmem:[%s395 + $0x10] sm:$0xff]
    %v3459 = vld [vmem:[%s395 + $0x18] sm:$0xff]
    %v3460 = vld [vmem:[%s395 + $0x20] sm:$0xff]
    %v3461 = vld [vmem:[%s395 + $0x28] sm:$0xff]
    %v3462 = vld [vmem:[%s395 + $0x30] sm:$0xff]
    %v3463 = vld [vmem:[%s395 + $0x38] sm:$0xff]
    %v3464 = vld [vmem:[%s395 + $0x40] sm:$0xff]
    %v3465 = vld [vmem:[%s395 + $0x48] sm:$0xff]
    %v3466 = vld [vmem:[%s395 + $0x50] sm:$0xff]
    %v3467 = vld [vmem:[%s395 + $0x58] sm:$0xff]
    %v3468 = vld [vmem:[%s395 + $0x60] sm:$0xff]
    %v3469 = vld [vmem:[%s395 + $0x68] sm:$0xff]
    %v3470 = vld [vmem:[%s395 + $0x70] sm:$0xff]
    %v3471 = vld [vmem:[%s395 + $0x78] sm:$0xff]
    %v3472 = vld [vmem:[%s395 + $0x80] sm:$0xff]
    %v3473 = vld [vmem:[%s395 + $0x88] sm:$0xff]
    %v3474 = vld [vmem:[%s395 + $0x90] sm:$0xff]
    %v3475 = vld [vmem:[%s395 + $0x98] sm:$0xff]
    %v3476 = vld [vmem:[%s395 + $0xa0] sm:$0xff]
    %v3477 = vld [vmem:[%s395 + $0xa8] sm:$0xff]
    %v3478 = vld [vmem:[%s395 + $0xb0] sm:$0xff]
    %v3479 = vld [vmem:[%s395 + $0xb8] sm:$0xff]
    %v3480 = vld [vmem:[%s395 + $0xc0] sm:$0xff]
    %v3481 = vld [vmem:[%s395 + $0xc8] sm:$0xff]
    %v3482 = vld [vmem:[%s395 + $0xd0] sm:$0xff]
    %v3483 = vld [vmem:[%s395 + $0xd8] sm:$0xff]
    %v3484 = vld [vmem:[%s395 + $0xe0] sm:$0xff]
    %v3485 = vld [vmem:[%s395 + $0xe8] sm:$0xff]
    %v3486 = vld [vmem:[%s395 + $0xf0] sm:$0xff]
    %v3487 = vld [vmem:[%s395 + $0xf8] sm:$0xff]
    %v3520 = vunpack.c.l.b16 %v3456
    %v3521 = vunpack.c.h.b16 %v3456
    %v3522 = vunpack.c.l.b16 %v3457
    %v3523 = vunpack.c.h.b16 %v3457
    %v3524 = vunpack.c.l.b16 %v3458
    %v3525 = vunpack.c.h.b16 %v3458
    %v3526 = vunpack.c.l.b16 %v3459
    %v3527 = vunpack.c.h.b16 %v3459
    %v3528 = vunpack.c.l.b16 %v3460
    %v3529 = vunpack.c.h.b16 %v3460
    %v3530 = vunpack.c.l.b16 %v3461
    %v3531 = vunpack.c.h.b16 %v3461
    %v3532 = vunpack.c.l.b16 %v3462
    %v3533 = vunpack.c.h.b16 %v3462
    %v3534 = vunpack.c.l.b16 %v3463
    %v3535 = vunpack.c.h.b16 %v3463
    %v3536 = vunpack.c.l.b16 %v3464
    %v3537 = vunpack.c.h.b16 %v3464
    %v3538 = vunpack.c.l.b16 %v3465
    %v3539 = vunpack.c.h.b16 %v3465
    %v3540 = vunpack.c.l.b16 %v3466
    %v3541 = vunpack.c.h.b16 %v3466
    %v3542 = vunpack.c.l.b16 %v3467
    %v3543 = vunpack.c.h.b16 %v3467
    %v3544 = vunpack.c.l.b16 %v3468
    %v3545 = vunpack.c.h.b16 %v3468
    %v3546 = vunpack.c.l.b16 %v3469
    %v3547 = vunpack.c.h.b16 %v3469
    %v3548 = vunpack.c.l.b16 %v3470
    %v3549 = vunpack.c.h.b16 %v3470
    %v3550 = vunpack.c.l.b16 %v3471
    %v3551 = vunpack.c.h.b16 %v3471
    %v3552 = vunpack.c.l.b16 %v3472
    %v3553 = vunpack.c.h.b16 %v3472
    %v3554 = vunpack.c.l.b16 %v3473
    %v3555 = vunpack.c.h.b16 %v3473
    %v3556 = vunpack.c.l.b16 %v3474
    %v3557 = vunpack.c.h.b16 %v3474
    %v3558 = vunpack.c.l.b16 %v3475
    %v3559 = vunpack.c.h.b16 %v3475
    %v3560 = vunpack.c.l.b16 %v3476
    %v3561 = vunpack.c.h.b16 %v3476
    %v3562 = vunpack.c.l.b16 %v3477
    %v3563 = vunpack.c.h.b16 %v3477
    %v3564 = vunpack.c.l.b16 %v3478
    %v3565 = vunpack.c.h.b16 %v3478
    %v3566 = vunpack.c.l.b16 %v3479
    %v3567 = vunpack.c.h.b16 %v3479
    %v3568 = vunpack.c.l.b16 %v3480
    %v3569 = vunpack.c.h.b16 %v3480
    %v3570 = vunpack.c.l.b16 %v3481
    %v3571 = vunpack.c.h.b16 %v3481
    %v3572 = vunpack.c.l.b16 %v3482
    %v3573 = vunpack.c.h.b16 %v3482
    %v3574 = vunpack.c.l.b16 %v3483
    %v3575 = vunpack.c.h.b16 %v3483
    %v3576 = vunpack.c.l.b16 %v3484
    %v3577 = vunpack.c.h.b16 %v3484
    %v3578 = vunpack.c.l.b16 %v3485
    %v3579 = vunpack.c.h.b16 %v3485
    %v3580 = vunpack.c.l.b16 %v3486
    %v3581 = vunpack.c.h.b16 %v3486
    %v3582 = vunpack.c.l.b16 %v3487
    %v3583 = vunpack.c.h.b16 %v3487
    %v3584 = vpack.c.b16 %v3524, %v3520
    %v3585 = vpack.c.b16 %v3525, %v3521
    %v3586 = vpack.c.b16 %v3526, %v3522
    %v3587 = vpack.c.b16 %v3527, %v3523
    %v3588 = vpack.c.b16 %v3532, %v3528
    %v3589 = vpack.c.b16 %v3533, %v3529
    %v3590 = vpack.c.b16 %v3534, %v3530
    %v3591 = vpack.c.b16 %v3535, %v3531
    %v3592 = vpack.c.b16 %v3540, %v3536
    %v3593 = vpack.c.b16 %v3541, %v3537
    %v3594 = vpack.c.b16 %v3542, %v3538
    %v3595 = vpack.c.b16 %v3543, %v3539
    %v3596 = vpack.c.b16 %v3548, %v3544
    %v3597 = vpack.c.b16 %v3549, %v3545
    %v3598 = vpack.c.b16 %v3550, %v3546
    %v3599 = vpack.c.b16 %v3551, %v3547
    %v3600 = vpack.c.b16 %v3556, %v3552
    %v3601 = vpack.c.b16 %v3557, %v3553
    %v3602 = vpack.c.b16 %v3558, %v3554
    %v3603 = vpack.c.b16 %v3559, %v3555
    %v3604 = vpack.c.b16 %v3564, %v3560
    %v3605 = vpack.c.b16 %v3565, %v3561
    %v3606 = vpack.c.b16 %v3566, %v3562
    %v3607 = vpack.c.b16 %v3567, %v3563
    %v3608 = vpack.c.b16 %v3572, %v3568
    %v3609 = vpack.c.b16 %v3573, %v3569
    %v3610 = vpack.c.b16 %v3574, %v3570
    %v3611 = vpack.c.b16 %v3575, %v3571
    %v3612 = vpack.c.b16 %v3580, %v3576
    %v3613 = vpack.c.b16 %v3581, %v3577
    %v3614 = vpack.c.b16 %v3582, %v3578
    %v3615 = vpack.c.b16 %v3583, %v3579
    %3648 = vmatprep.subr.bf16.mxu0 %v3585
    %3649 = vmatpush1.bf16.msra.mxu0 %v3584
    %3650 = vmatprep.subr.bf16.mxu0 %v3589
    %3651 = vmatpush1.bf16.msra.mxu0 %v3588
    %3652 = vmatprep.subr.bf16.mxu0 %v3593
    %3653 = vmatpush1.bf16.msra.mxu0 %v3592
    %3654 = vmatprep.subr.bf16.mxu0 %v3597
    %3655 = vmatpush1.bf16.msra.mxu0 %v3596
    %3656 = vmatprep.subr.bf16.mxu0 %v3601
    %3657 = vmatpush1.bf16.msra.mxu0 %v3600
    %3658 = vmatprep.subr.bf16.mxu0 %v3605
    %3659 = vmatpush1.bf16.msra.mxu0 %v3604
    %3660 = vmatprep.subr.bf16.mxu0 %v3609
    %3661 = vmatpush1.bf16.msra.mxu0 %v3608
    %3662 = vmatprep.subr.bf16.mxu0 %v3613
    %3663 = vmatpush1.bf16.msra.mxu0 %v3612
    %3664 = vmatprep.subr.bf16.mxu0 0
    %3665 = vmatpush1.bf16.msra.mxu0 0
    %3666 = vmatprep.subr.bf16.mxu0 0
    %3667 = vmatpush1.bf16.msra.mxu0 0
    %3668 = vmatprep.subr.bf16.mxu0 0
    %3669 = vmatpush1.bf16.msra.mxu0 0
    %3670 = vmatprep.subr.bf16.mxu0 0
    %3671 = vmatpush1.bf16.msra.mxu0 0
    %3672 = vmatprep.subr.bf16.mxu0 0
    %3673 = vmatpush1.bf16.msra.mxu0 0
    %3674 = vmatprep.subr.bf16.mxu0 0
    %3675 = vmatpush1.bf16.msra.mxu0 0
    %3676 = vmatprep.subr.bf16.mxu0 0
    %3677 = vmatpush1.bf16.msra.mxu0 0
    %3678 = vmatprep.subr.bf16.mxu0 0
    %3679 = vmatpush1.bf16.msra.mxu0 0
    %3680 = vmatprep.mubr.bf16.mxu0 0
    %3681 = vmatmul.mubr.bf16.gmra.mrb[0].mxu0 %v3140
    %v3682 = vpop.f32.mrb[0].mxu0
    %v3683 = vadd.f32 0.0, %v3682
    %v3684 = vpop.f32.mrb[0].mxu0
    %v3685 = vadd.f32 0.0, %v3684
    %v3686 = vpop.f32.mrb[0].mxu0
    %v3687 = vpop.f32.mrb[0].mxu0
    %3688 = vdwg.mxu0
    %3689 = vmatprep.subr.bf16.mxu0 %v3587
    %3690 = vmatpush1.bf16.msra.mxu0 %v3586
    %3691 = vmatprep.subr.bf16.mxu0 %v3591
    %3692 = vmatpush1.bf16.msra.mxu0 %v3590
    %3693 = vmatprep.subr.bf16.mxu0 %v3595
    %3694 = vmatpush1.bf16.msra.mxu0 %v3594
    %3695 = vmatprep.subr.bf16.mxu0 %v3599
    %3696 = vmatpush1.bf16.msra.mxu0 %v3598
    %3697 = vmatprep.subr.bf16.mxu0 %v3603
    %3698 = vmatpush1.bf16.msra.mxu0 %v3602
    %3699 = vmatprep.subr.bf16.mxu0 %v3607
    %3700 = vmatpush1.bf16.msra.mxu0 %v3606
    %3701 = vmatprep.subr.bf16.mxu0 %v3611
    %3702 = vmatpush1.bf16.msra.mxu0 %v3610
    %3703 = vmatprep.subr.bf16.mxu0 %v3615
    %3704 = vmatpush1.bf16.msra.mxu0 %v3614
    %3705 = vmatprep.subr.bf16.mxu0 0
    %3706 = vmatpush1.bf16.msra.mxu0 0
    %3707 = vmatprep.subr.bf16.mxu0 0
    %3708 = vmatpush1.bf16.msra.mxu0 0
    %3709 = vmatprep.subr.bf16.mxu0 0
    %3710 = vmatpush1.bf16.msra.mxu0 0
    %3711 = vmatprep.subr.bf16.mxu0 0
    %3712 = vmatpush1.bf16.msra.mxu0 0
    %3713 = vmatprep.subr.bf16.mxu0 0
    %3714 = vmatpush1.bf16.msra.mxu0 0
    %3715 = vmatprep.subr.bf16.mxu0 0
    %3716 = vmatpush1.bf16.msra.mxu0 0
    %3717 = vmatprep.subr.bf16.mxu0 0
    %3718 = vmatpush1.bf16.msra.mxu0 0
    %3719 = vmatprep.subr.bf16.mxu0 0
    %3720 = vmatpush1.bf16.msra.mxu0 0
    %3721 = vmatprep.mubr.bf16.mxu0 0
    %3722 = vmatmul.mubr.bf16.gmra.mrb[0].mxu0 %v3140
    %v3723 = vpop.f32.mrb[0].mxu0
    %v3724 = vadd.f32 0.0, %v3723
    %v3725 = vpop.f32.mrb[0].mxu0
    %v3726 = vadd.f32 0.0, %v3725
    %v3727 = vpop.f32.mrb[0].mxu0
    %v3728 = vpop.f32.mrb[0].mxu0
    %3729 = vdwg.mxu0
    %v3730 = vadd.f32 %v3452, %v3683
    %v3731 = vadd.f32 %v3453, %v3685
    %v3732 = vadd.f32 %v3454, %v3724
    %v3733 = vadd.f32 %v3455, %v3726
    %v3734 = vmul.f32 %v3730, 0.5
    %v3735 = vtanh.pop %v3734
    %v3736 = vmul.f32 %v3735, 0.5
    %v3737 = vadd.f32 %v3736, 0.5
    %v3738 = vmul.f32 %v3731, 0.5
    %v3739 = vtanh.pop %v3738
    %v3740 = vmul.f32 %v3739, 0.5
    %v3741 = vadd.f32 %v3740, 0.5
    %v3742 = vtanh.pop %v3732
    %v3743 = vmul.f32 %v3733, 0.5
    %v3744 = vtanh.pop %v3743
    %v3745 = vmul.f32 %v3744, 0.5
    %v3746 = vadd.f32 %v3745, 0.5
    %v3747 = vmul.f32 %v3741, %v3137
    %v3748 = vmul.f32 %v3737, %v3742
    %v3749 = vadd.f32 %v3747, %v3748
    %v3750 = vtanh.pop %v3749
    %v3751 = vmul.f32 %v3746, %v3750
    %v3752 = vpack.c.bf16 %v3751, %v3751
    %s3753 = scalar_lea.vmem %s66, 8
    %3754 = vst [vmem:[%s3753] sm:$0xf] %v3752
    %s3755 = scalar_lea.vmem %s0, 96
    %v3756 = vld [vmem:[%s3755] sm:$0xff]
    %v3757 = vld [vmem:[%s3755 + $0x8] sm:$0xff]
    %v3758 = vunpack.c.l.bf16 %v3756
    %v3759 = vunpack.c.h.bf16 %v3756
    %v3760 = vunpack.c.l.bf16 %v3757
    %v3761 = vunpack.c.h.bf16 %v3757
    %v3762 = vld [vmem:[#allocation6] sm:$0xff]
    %v3763 = vld [vmem:[#allocation6 + $0x8] sm:$0xff]
    %v3764 = vld [vmem:[#allocation6 + $0x10] sm:$0xff]
    %v3765 = vld [vmem:[#allocation6 + $0x18] sm:$0xff]
    %v3766 = vld [vmem:[#allocation6 + $0x20] sm:$0xff]
    %v3767 = vld [vmem:[#allocation6 + $0x28] sm:$0xff]
    %v3768 = vld [vmem:[#allocation6 + $0x30] sm:$0xff]
    %v3769 = vld [vmem:[#allocation6 + $0x38] sm:$0xff]
    %v3770 = vld [vmem:[#allocation6 + $0x40] sm:$0xff]
    %v3771 = vld [vmem:[#allocation6 + $0x48] sm:$0xff]
    %v3772 = vld [vmem:[#allocation6 + $0x50] sm:$0xff]
    %v3773 = vld [vmem:[#allocation6 + $0x58] sm:$0xff]
    %v3774 = vld [vmem:[#allocation6 + $0x60] sm:$0xff]
    %v3775 = vld [vmem:[#allocation6 + $0x68] sm:$0xff]
    %v3776 = vld [vmem:[#allocation6 + $0x70] sm:$0xff]
    %v3777 = vld [vmem:[#allocation6 + $0x78] sm:$0xff]
    %v3778 = vld [vmem:[#allocation6 + $0x80] sm:$0xff]
    %v3779 = vld [vmem:[#allocation6 + $0x88] sm:$0xff]
    %v3780 = vld [vmem:[#allocation6 + $0x90] sm:$0xff]
    %v3781 = vld [vmem:[#allocation6 + $0x98] sm:$0xff]
    %v3782 = vld [vmem:[#allocation6 + $0xa0] sm:$0xff]
    %v3783 = vld [vmem:[#allocation6 + $0xa8] sm:$0xff]
    %v3784 = vld [vmem:[#allocation6 + $0xb0] sm:$0xff]
    %v3785 = vld [vmem:[#allocation6 + $0xb8] sm:$0xff]
    %v3786 = vld [vmem:[#allocation6 + $0xc0] sm:$0xff]
    %v3787 = vld [vmem:[#allocation6 + $0xc8] sm:$0xff]
    %v3788 = vld [vmem:[#allocation6 + $0xd0] sm:$0xff]
    %v3789 = vld [vmem:[#allocation6 + $0xd8] sm:$0xff]
    %v3790 = vld [vmem:[#allocation6 + $0xe0] sm:$0xff]
    %v3791 = vld [vmem:[#allocation6 + $0xe8] sm:$0xff]
    %v3792 = vld [vmem:[#allocation6 + $0xf0] sm:$0xff]
    %v3793 = vld [vmem:[#allocation6 + $0xf8] sm:$0xff]
    %v3826 = vunpack.c.l.b16 %v3762
    %v3827 = vunpack.c.h.b16 %v3762
    %v3828 = vunpack.c.l.b16 %v3763
    %v3829 = vunpack.c.h.b16 %v3763
    %v3830 = vunpack.c.l.b16 %v3764
    %v3831 = vunpack.c.h.b16 %v3764
    %v3832 = vunpack.c.l.b16 %v3765
    %v3833 = vunpack.c.h.b16 %v3765
    %v3834 = vunpack.c.l.b16 %v3766
    %v3835 = vunpack.c.h.b16 %v3766
    %v3836 = vunpack.c.l.b16 %v3767
    %v3837 = vunpack.c.h.b16 %v3767
    %v3838 = vunpack.c.l.b16 %v3768
    %v3839 = vunpack.c.h.b16 %v3768
    %v3840 = vunpack.c.l.b16 %v3769
    %v3841 = vunpack.c.h.b16 %v3769
    %v3842 = vunpack.c.l.b16 %v3770
    %v3843 = vunpack.c.h.b16 %v3770
    %v3844 = vunpack.c.l.b16 %v3771
    %v3845 = vunpack.c.h.b16 %v3771
    %v3846 = vunpack.c.l.b16 %v3772
    %v3847 = vunpack.c.h.b16 %v3772
    %v3848 = vunpack.c.l.b16 %v3773
    %v3849 = vunpack.c.h.b16 %v3773
    %v3850 = vunpack.c.l.b16 %v3774
    %v3851 = vunpack.c.h.b16 %v3774
    %v3852 = vunpack.c.l.b16 %v3775
    %v3853 = vunpack.c.h.b16 %v3775
    %v3854 = vunpack.c.l.b16 %v3776
    %v3855 = vunpack.c.h.b16 %v3776
    %v3856 = vunpack.c.l.b16 %v3777
    %v3857 = vunpack.c.h.b16 %v3777
    %v3858 = vunpack.c.l.b16 %v3778
    %v3859 = vunpack.c.h.b16 %v3778
    %v3860 = vunpack.c.l.b16 %v3779
    %v3861 = vunpack.c.h.b16 %v3779
    %v3862 = vunpack.c.l.b16 %v3780
    %v3863 = vunpack.c.h.b16 %v3780
    %v3864 = vunpack.c.l.b16 %v3781
    %v3865 = vunpack.c.h.b16 %v3781
    %v3866 = vunpack.c.l.b16 %v3782
    %v3867 = vunpack.c.h.b16 %v3782
    %v3868 = vunpack.c.l.b16 %v3783
    %v3869 = vunpack.c.h.b16 %v3783
    %v3870 = vunpack.c.l.b16 %v3784
    %v3871 = vunpack.c.h.b16 %v3784
    %v3872 = vunpack.c.l.b16 %v3785
    %v3873 = vunpack.c.h.b16 %v3785
    %v3874 = vunpack.c.l.b16 %v3786
    %v3875 = vunpack.c.h.b16 %v3786
    %v3876 = vunpack.c.l.b16 %v3787
    %v3877 = vunpack.c.h.b16 %v3787
    %v3878 = vunpack.c.l.b16 %v3788
    %v3879 = vunpack.c.h.b16 %v3788
    %v3880 = vunpack.c.l.b16 %v3789
    %v3881 = vunpack.c.h.b16 %v3789
    %v3882 = vunpack.c.l.b16 %v3790
    %v3883 = vunpack.c.h.b16 %v3790
    %v3884 = vunpack.c.l.b16 %v3791
    %v3885 = vunpack.c.h.b16 %v3791
    %v3886 = vunpack.c.l.b16 %v3792
    %v3887 = vunpack.c.h.b16 %v3792
    %v3888 = vunpack.c.l.b16 %v3793
    %v3889 = vunpack.c.h.b16 %v3793
    %v3890 = vpack.c.b16 %v3830, %v3826
    %v3891 = vpack.c.b16 %v3831, %v3827
    %v3892 = vpack.c.b16 %v3832, %v3828
    %v3893 = vpack.c.b16 %v3833, %v3829
    %v3894 = vpack.c.b16 %v3838, %v3834
    %v3895 = vpack.c.b16 %v3839, %v3835
    %v3896 = vpack.c.b16 %v3840, %v3836
    %v3897 = vpack.c.b16 %v3841, %v3837
    %v3898 = vpack.c.b16 %v3846, %v3842
    %v3899 = vpack.c.b16 %v3847, %v3843
    %v3900 = vpack.c.b16 %v3848, %v3844
    %v3901 = vpack.c.b16 %v3849, %v3845
    %v3902 = vpack.c.b16 %v3854, %v3850
    %v3903 = vpack.c.b16 %v3855, %v3851
    %v3904 = vpack.c.b16 %v3856, %v3852
    %v3905 = vpack.c.b16 %v3857, %v3853
    %v3906 = vpack.c.b16 %v3862, %v3858
    %v3907 = vpack.c.b16 %v3863, %v3859
    %v3908 = vpack.c.b16 %v3864, %v3860
    %v3909 = vpack.c.b16 %v3865, %v3861
    %v3910 = vpack.c.b16 %v3870, %v3866
    %v3911 = vpack.c.b16 %v3871, %v3867
    %v3912 = vpack.c.b16 %v3872, %v3868
    %v3913 = vpack.c.b16 %v3873, %v3869
    %v3914 = vpack.c.b16 %v3878, %v3874
    %v3915 = vpack.c.b16 %v3879, %v3875
    %v3916 = vpack.c.b16 %v3880, %v3876
    %v3917 = vpack.c.b16 %v3881, %v3877
    %v3918 = vpack.c.b16 %v3886, %v3882
    %v3919 = vpack.c.b16 %v3887, %v3883
    %v3920 = vpack.c.b16 %v3888, %v3884
    %v3921 = vpack.c.b16 %v3889, %v3885
    %3954 = vmatprep.subr.bf16.mxu0 %v3891
    %3955 = vmatpush1.bf16.msra.mxu0 %v3890
    %3956 = vmatprep.subr.bf16.mxu0 %v3895
    %3957 = vmatpush1.bf16.msra.mxu0 %v3894
    %3958 = vmatprep.subr.bf16.mxu0 %v3899
    %3959 = vmatpush1.bf16.msra.mxu0 %v3898
    %3960 = vmatprep.subr.bf16.mxu0 %v3903
    %3961 = vmatpush1.bf16.msra.mxu0 %v3902
    %3962 = vmatprep.subr.bf16.mxu0 %v3907
    %3963 = vmatpush1.bf16.msra.mxu0 %v3906
    %3964 = vmatprep.subr.bf16.mxu0 %v3911
    %3965 = vmatpush1.bf16.msra.mxu0 %v3910
    %3966 = vmatprep.subr.bf16.mxu0 %v3915
    %3967 = vmatpush1.bf16.msra.mxu0 %v3914
    %3968 = vmatprep.subr.bf16.mxu0 %v3919
    %3969 = vmatpush1.bf16.msra.mxu0 %v3918
    %3970 = vmatprep.subr.bf16.mxu0 0
    %3971 = vmatpush1.bf16.msra.mxu0 0
    %3972 = vmatprep.subr.bf16.mxu0 0
    %3973 = vmatpush1.bf16.msra.mxu0 0
    %3974 = vmatprep.subr.bf16.mxu0 0
    %3975 = vmatpush1.bf16.msra.mxu0 0
    %3976 = vmatprep.subr.bf16.mxu0 0
    %3977 = vmatpush1.bf16.msra.mxu0 0
    %3978 = vmatprep.subr.bf16.mxu0 0
    %3979 = vmatpush1.bf16.msra.mxu0 0
    %3980 = vmatprep.subr.bf16.mxu0 0
    %3981 = vmatpush1.bf16.msra.mxu0 0
    %3982 = vmatprep.subr.bf16.mxu0 0
    %3983 = vmatpush1.bf16.msra.mxu0 0
    %3984 = vmatprep.subr.bf16.mxu0 0
    %3985 = vmatpush1.bf16.msra.mxu0 0
    %3986 = vmatprep.mubr.bf16.mxu0 0
    %3987 = vmatmul.mubr.bf16.gmra.mrb[0].mxu0 %v3446
    %v3988 = vpop.f32.mrb[0].mxu0
    %v3989 = vadd.f32 0.0, %v3988
    %v3990 = vpop.f32.mrb[0].mxu0
    %v3991 = vadd.f32 0.0, %v3990
    %v3992 = vpop.f32.mrb[0].mxu0
    %v3993 = vpop.f32.mrb[0].mxu0
    %3994 = vdwg.mxu0
    %3995 = vmatprep.subr.bf16.mxu0 %v3893
    %3996 = vmatpush1.bf16.msra.mxu0 %v3892
    %3997 = vmatprep.subr.bf16.mxu0 %v3897
    %3998 = vmatpush1.bf16.msra.mxu0 %v3896
    %3999 = vmatprep.subr.bf16.mxu0 %v3901
    %4000 = vmatpush1.bf16.msra.mxu0 %v3900
    %4001 = vmatprep.subr.bf16.mxu0 %v3905
    %4002 = vmatpush1.bf16.msra.mxu0 %v3904
    %4003 = vmatprep.subr.bf16.mxu0 %v3909
    %4004 = vmatpush1.bf16.msra.mxu0 %v3908
    %4005 = vmatprep.subr.bf16.mxu0 %v3913
    %4006 = vmatpush1.bf16.msra.mxu0 %v3912
    %4007 = vmatprep.subr.bf16.mxu0 %v3917
    %4008 = vmatpush1.bf16.msra.mxu0 %v3916
    %4009 = vmatprep.subr.bf16.mxu0 %v3921
    %4010 = vmatpush1.bf16.msra.mxu0 %v3920
    %4011 = vmatprep.subr.bf16.mxu0 0
    %4012 = vmatpush1.bf16.msra.mxu0 0
    %4013 = vmatprep.subr.bf16.mxu0 0
    %4014 = vmatpush1.bf16.msra.mxu0 0
    %4015 = vmatprep.subr.bf16.mxu0 0
    %4016 = vmatpush1.bf16.msra.mxu0 0
    %4017 = vmatprep.subr.bf16.mxu0 0
    %4018 = vmatpush1.bf16.msra.mxu0 0
    %4019 = vmatprep.subr.bf16.mxu0 0
    %4020 = vmatpush1.bf16.msra.mxu0 0
    %4021 = vmatprep.subr.bf16.mxu0 0
    %4022 = vmatpush1.bf16.msra.mxu0 0
    %4023 = vmatprep.subr.bf16.mxu0 0
    %4024 = vmatpush1.bf16.msra.mxu0 0
    %4025 = vmatprep.subr.bf16.mxu0 0
    %4026 = vmatpush1.bf16.msra.mxu0 0
    %4027 = vmatprep.mubr.bf16.mxu0 0
    %4028 = vmatmul.mubr.bf16.gmra.mrb[0].mxu0 %v3446
    %v4029 = vpop.f32.mrb[0].mxu0
    %v4030 = vadd.f32 0.0, %v4029
    %v4031 = vpop.f32.mrb[0].mxu0
    %v4032 = vadd.f32 0.0, %v4031
    %v4033 = vpop.f32.mrb[0].mxu0
    %v4034 = vpop.f32.mrb[0].mxu0
    %4035 = vdwg.mxu0
    %v4036 = vadd.f32 %v3758, %v3989
    %v4037 = vadd.f32 %v3759, %v3991
    %v4038 = vadd.f32 %v3760, %v4030
    %v4039 = vadd.f32 %v3761, %v4032
    %v4040 = vmul.f32 %v4036, 0.5
    %v4041 = vtanh.pop %v4040
    %v4042 = vmul.f32 %v4041, 0.5
    %v4043 = vadd.f32 %v4042, 0.5
    %v4044 = vmul.f32 %v4037, 0.5
    %v4045 = vtanh.pop %v4044
    %v4046 = vmul.f32 %v4045, 0.5
    %v4047 = vadd.f32 %v4046, 0.5
    %v4048 = vtanh.pop %v4038
    %v4049 = vmul.f32 %v4039, 0.5
    %v4050 = vtanh.pop %v4049
    %v4051 = vmul.f32 %v4050, 0.5
    %v4052 = vadd.f32 %v4051, 0.5
    %v4053 = vmul.f32 %v4047, %v3443
    %v4054 = vmul.f32 %v4043, %v4048
    %v4055 = vadd.f32 %v4053, %v4054
    %v4056 = vtanh.pop %v4055
    %v4057 = vmul.f32 %v4052, %v4056
    %v4058 = vpack.c.bf16 %v4057, %v4057
    %s4059 = scalar_lea.vmem %s3, 24
    %4060 = vst [vmem:[%s4059] sm:$0xf] %v4058
    %s4061 = scalar_lea.vmem %s58, 16
    %v4062 = vld [vmem:[%s4061] sm:$0xff]
    %v4063 = vld [vmem:[%s4061 + $0x8] sm:$0xff]
    %v4064 = vunpack.c.l.bf16 %v4062
    %v4065 = vunpack.c.h.bf16 %v4062
    %v4066 = vunpack.c.l.bf16 %v4063
    %v4067 = vunpack.c.h.bf16 %v4063
    %v4068 = vld [vmem:[%s395] sm:$0xff]
    %v4069 = vld [vmem:[%s395 + $0x8] sm:$0xff]
    %v4070 = vld [vmem:[%s395 + $0x10] sm:$0xff]
    %v4071 = vld [vmem:[%s395 + $0x18] sm:$0xff]
    %v4072 = vld [vmem:[%s395 + $0x20] sm:$0xff]
    %v4073 = vld [vmem:[%s395 + $0x28] sm:$0xff]
    %v4074 = vld [vmem:[%s395 + $0x30] sm:$0xff]
    %v4075 = vld [vmem:[%s395 + $0x38] sm:$0xff]
    %v4076 = vld [vmem:[%s395 + $0x40] sm:$0xff]
    %v4077 = vld [vmem:[%s395 + $0x48] sm:$0xff]
    %v4078 = vld [vmem:[%s395 + $0x50] sm:$0xff]
    %v4079 = vld [vmem:[%s395 + $0x58] sm:$0xff]
    %v4080 = vld [vmem:[%s395 + $0x60] sm:$0xff]
    %v4081 = vld [vmem:[%s395 + $0x68] sm:$0xff]
    %v4082 = vld [vmem:[%s395 + $0x70] sm:$0xff]
    %v4083 = vld [vmem:[%s395 + $0x78] sm:$0xff]
    %v4084 = vld [vmem:[%s395 + $0x80] sm:$0xff]
    %v4085 = vld [vmem:[%s395 + $0x88] sm:$0xff]
    %v4086 = vld [vmem:[%s395 + $0x90] sm:$0xff]
    %v4087 = vld [vmem:[%s395 + $0x98] sm:$0xff]
    %v4088 = vld [vmem:[%s395 + $0xa0] sm:$0xff]
    %v4089 = vld [vmem:[%s395 + $0xa8] sm:$0xff]
    %v4090 = vld [vmem:[%s395 + $0xb0] sm:$0xff]
    %v4091 = vld [vmem:[%s395 + $0xb8] sm:$0xff]
    %v4092 = vld [vmem:[%s395 + $0xc0] sm:$0xff]
    %v4093 = vld [vmem:[%s395 + $0xc8] sm:$0xff]
    %v4094 = vld [vmem:[%s395 + $0xd0] sm:$0xff]
    %v4095 = vld [vmem:[%s395 + $0xd8] sm:$0xff]
    %v4096 = vld [vmem:[%s395 + $0xe0] sm:$0xff]
    %v4097 = vld [vmem:[%s395 + $0xe8] sm:$0xff]
    %v4098 = vld [vmem:[%s395 + $0xf0] sm:$0xff]
    %v4099 = vld [vmem:[%s395 + $0xf8] sm:$0xff]
    %v4132 = vunpack.c.l.b16 %v4068
    %v4133 = vunpack.c.h.b16 %v4068
    %v4134 = vunpack.c.l.b16 %v4069
    %v4135 = vunpack.c.h.b16 %v4069
    %v4136 = vunpack.c.l.b16 %v4070
    %v4137 = vunpack.c.h.b16 %v4070
    %v4138 = vunpack.c.l.b16 %v4071
    %v4139 = vunpack.c.h.b16 %v4071
    %v4140 = vunpack.c.l.b16 %v4072
    %v4141 = vunpack.c.h.b16 %v4072
    %v4142 = vunpack.c.l.b16 %v4073
    %v4143 = vunpack.c.h.b16 %v4073
    %v4144 = vunpack.c.l.b16 %v4074
    %v4145 = vunpack.c.h.b16 %v4074
    %v4146 = vunpack.c.l.b16 %v4075
    %v4147 = vunpack.c.h.b16 %v4075
    %v4148 = vunpack.c.l.b16 %v4076
    %v4149 = vunpack.c.h.b16 %v4076
    %v4150 = vunpack.c.l.b16 %v4077
    %v4151 = vunpack.c.h.b16 %v4077
    %v4152 = vunpack.c.l.b16 %v4078
    %v4153 = vunpack.c.h.b16 %v4078
    %v4154 = vunpack.c.l.b16 %v4079
    %v4155 = vunpack.c.h.b16 %v4079
    %v4156 = vunpack.c.l.b16 %v4080
    %v4157 = vunpack.c.h.b16 %v4080
    %v4158 = vunpack.c.l.b16 %v4081
    %v4159 = vunpack.c.h.b16 %v4081
    %v4160 = vunpack.c.l.b16 %v4082
    %v4161 = vunpack.c.h.b16 %v4082
    %v4162 = vunpack.c.l.b16 %v4083
    %v4163 = vunpack.c.h.b16 %v4083
    %v4164 = vunpack.c.l.b16 %v4084
    %v4165 = vunpack.c.h.b16 %v4084
    %v4166 = vunpack.c.l.b16 %v4085
    %v4167 = vunpack.c.h.b16 %v4085
    %v4168 = vunpack.c.l.b16 %v4086
    %v4169 = vunpack.c.h.b16 %v4086
    %v4170 = vunpack.c.l.b16 %v4087
    %v4171 = vunpack.c.h.b16 %v4087
    %v4172 = vunpack.c.l.b16 %v4088
    %v4173 = vunpack.c.h.b16 %v4088
    %v4174 = vunpack.c.l.b16 %v4089
    %v4175 = vunpack.c.h.b16 %v4089
    %v4176 = vunpack.c.l.b16 %v4090
    %v4177 = vunpack.c.h.b16 %v4090
    %v4178 = vunpack.c.l.b16 %v4091
    %v4179 = vunpack.c.h.b16 %v4091
    %v4180 = vunpack.c.l.b16 %v4092
    %v4181 = vunpack.c.h.b16 %v4092
    %v4182 = vunpack.c.l.b16 %v4093
    %v4183 = vunpack.c.h.b16 %v4093
    %v4184 = vunpack.c.l.b16 %v4094
    %v4185 = vunpack.c.h.b16 %v4094
    %v4186 = vunpack.c.l.b16 %v4095
    %v4187 = vunpack.c.h.b16 %v4095
    %v4188 = vunpack.c.l.b16 %v4096
    %v4189 = vunpack.c.h.b16 %v4096
    %v4190 = vunpack.c.l.b16 %v4097
    %v4191 = vunpack.c.h.b16 %v4097
    %v4192 = vunpack.c.l.b16 %v4098
    %v4193 = vunpack.c.h.b16 %v4098
    %v4194 = vunpack.c.l.b16 %v4099
    %v4195 = vunpack.c.h.b16 %v4099
    %v4196 = vpack.c.b16 %v4136, %v4132
    %v4197 = vpack.c.b16 %v4137, %v4133
    %v4198 = vpack.c.b16 %v4138, %v4134
    %v4199 = vpack.c.b16 %v4139, %v4135
    %v4200 = vpack.c.b16 %v4144, %v4140
    %v4201 = vpack.c.b16 %v4145, %v4141
    %v4202 = vpack.c.b16 %v4146, %v4142
    %v4203 = vpack.c.b16 %v4147, %v4143
    %v4204 = vpack.c.b16 %v4152, %v4148
    %v4205 = vpack.c.b16 %v4153, %v4149
    %v4206 = vpack.c.b16 %v4154, %v4150
    %v4207 = vpack.c.b16 %v4155, %v4151
    %v4208 = vpack.c.b16 %v4160, %v4156
    %v4209 = vpack.c.b16 %v4161, %v4157
    %v4210 = vpack.c.b16 %v4162, %v4158
    %v4211 = vpack.c.b16 %v4163, %v4159
    %v4212 = vpack.c.b16 %v4168, %v4164
    %v4213 = vpack.c.b16 %v4169, %v4165
    %v4214 = vpack.c.b16 %v4170, %v4166
    %v4215 = vpack.c.b16 %v4171, %v4167
    %v4216 = vpack.c.b16 %v4176, %v4172
    %v4217 = vpack.c.b16 %v4177, %v4173
    %v4218 = vpack.c.b16 %v4178, %v4174
    %v4219 = vpack.c.b16 %v4179, %v4175
    %v4220 = vpack.c.b16 %v4184, %v4180
    %v4221 = vpack.c.b16 %v4185, %v4181
    %v4222 = vpack.c.b16 %v4186, %v4182
    %v4223 = vpack.c.b16 %v4187, %v4183
    %v4224 = vpack.c.b16 %v4192, %v4188
    %v4225 = vpack.c.b16 %v4193, %v4189
    %v4226 = vpack.c.b16 %v4194, %v4190
    %v4227 = vpack.c.b16 %v4195, %v4191
    %4260 = vmatprep.subr.bf16.mxu0 %v4197
    %4261 = vmatpush1.bf16.msra.mxu0 %v4196
    %4262 = vmatprep.subr.bf16.mxu0 %v4201
    %4263 = vmatpush1.bf16.msra.mxu0 %v4200
    %4264 = vmatprep.subr.bf16.mxu0 %v4205
    %4265 = vmatpush1.bf16.msra.mxu0 %v4204
    %4266 = vmatprep.subr.bf16.mxu0 %v4209
    %4267 = vmatpush1.bf16.msra.mxu0 %v4208
    %4268 = vmatprep.subr.bf16.mxu0 %v4213
    %4269 = vmatpush1.bf16.msra.mxu0 %v4212
    %4270 = vmatprep.subr.bf16.mxu0 %v4217
    %4271 = vmatpush1.bf16.msra.mxu0 %v4216
    %4272 = vmatprep.subr.bf16.mxu0 %v4221
    %4273 = vmatpush1.bf16.msra.mxu0 %v4220
    %4274 = vmatprep.subr.bf16.mxu0 %v4225
    %4275 = vmatpush1.bf16.msra.mxu0 %v4224
    %4276 = vmatprep.subr.bf16.mxu0 0
    %4277 = vmatpush1.bf16.msra.mxu0 0
    %4278 = vmatprep.subr.bf16.mxu0 0
    %4279 = vmatpush1.bf16.msra.mxu0 0
    %4280 = vmatprep.subr.bf16.mxu0 0
    %4281 = vmatpush1.bf16.msra.mxu0 0
    %4282 = vmatprep.subr.bf16.mxu0 0
    %4283 = vmatpush1.bf16.msra.mxu0 0
    %4284 = vmatprep.subr.bf16.mxu0 0
    %4285 = vmatpush1.bf16.msra.mxu0 0
    %4286 = vmatprep.subr.bf16.mxu0 0
    %4287 = vmatpush1.bf16.msra.mxu0 0
    %4288 = vmatprep.subr.bf16.mxu0 0
    %4289 = vmatpush1.bf16.msra.mxu0 0
    %4290 = vmatprep.subr.bf16.mxu0 0
    %4291 = vmatpush1.bf16.msra.mxu0 0
    %4292 = vmatprep.mubr.bf16.mxu0 0
    %4293 = vmatmul.mubr.bf16.gmra.mrb[0].mxu0 %v3752
    %v4294 = vpop.f32.mrb[0].mxu0
    %v4295 = vadd.f32 0.0, %v4294
    %v4296 = vpop.f32.mrb[0].mxu0
    %v4297 = vadd.f32 0.0, %v4296
    %v4298 = vpop.f32.mrb[0].mxu0
    %v4299 = vpop.f32.mrb[0].mxu0
    %4300 = vdwg.mxu0
    %4301 = vmatprep.subr.bf16.mxu0 %v4199
    %4302 = vmatpush1.bf16.msra.mxu0 %v4198
    %4303 = vmatprep.subr.bf16.mxu0 %v4203
    %4304 = vmatpush1.bf16.msra.mxu0 %v4202
    %4305 = vmatprep.subr.bf16.mxu0 %v4207
    %4306 = vmatpush1.bf16.msra.mxu0 %v4206
    %4307 = vmatprep.subr.bf16.mxu0 %v4211
    %4308 = vmatpush1.bf16.msra.mxu0 %v4210
    %4309 = vmatprep.subr.bf16.mxu0 %v4215
    %4310 = vmatpush1.bf16.msra.mxu0 %v4214
    %4311 = vmatprep.subr.bf16.mxu0 %v4219
    %4312 = vmatpush1.bf16.msra.mxu0 %v4218
    %4313 = vmatprep.subr.bf16.mxu0 %v4223
    %4314 = vmatpush1.bf16.msra.mxu0 %v4222
    %4315 = vmatprep.subr.bf16.mxu0 %v4227
    %4316 = vmatpush1.bf16.msra.mxu0 %v4226
    %4317 = vmatprep.subr.bf16.mxu0 0
    %4318 = vmatpush1.bf16.msra.mxu0 0
    %4319 = vmatprep.subr.bf16.mxu0 0
    %4320 = vmatpush1.bf16.msra.mxu0 0
    %4321 = vmatprep.subr.bf16.mxu0 0
    %4322 = vmatpush1.bf16.msra.mxu0 0
    %4323 = vmatprep.subr.bf16.mxu0 0
    %4324 = vmatpush1.bf16.msra.mxu0 0
    %4325 = vmatprep.subr.bf16.mxu0 0
    %4326 = vmatpush1.bf16.msra.mxu0 0
    %4327 = vmatprep.subr.bf16.mxu0 0
    %4328 = vmatpush1.bf16.msra.mxu0 0
    %4329 = vmatprep.subr.bf16.mxu0 0
    %4330 = vmatpush1.bf16.msra.mxu0 0
    %4331 = vmatprep.subr.bf16.mxu0 0
    %4332 = vmatpush1.bf16.msra.mxu0 0
    %4333 = vmatprep.mubr.bf16.mxu0 0
    %4334 = vmatmul.mubr.bf16.gmra.mrb[0].mxu0 %v3752
    %v4335 = vpop.f32.mrb[0].mxu0
    %v4336 = vadd.f32 0.0, %v4335
    %v4337 = vpop.f32.mrb[0].mxu0
    %v4338 = vadd.f32 0.0, %v4337
    %v4339 = vpop.f32.mrb[0].mxu0
    %v4340 = vpop.f32.mrb[0].mxu0
    %4341 = vdwg.mxu0
    %v4342 = vadd.f32 %v4064, %v4295
    %v4343 = vadd.f32 %v4065, %v4297
    %v4344 = vadd.f32 %v4066, %v4336
    %v4345 = vadd.f32 %v4067, %v4338
    %v4346 = vmul.f32 %v4342, 0.5
    %v4347 = vtanh.pop %v4346
    %v4348 = vmul.f32 %v4347, 0.5
    %v4349 = vadd.f32 %v4348, 0.5
    %v4350 = vmul.f32 %v4343, 0.5
    %v4351 = vtanh.pop %v4350
    %v4352 = vmul.f32 %v4351, 0.5
    %v4353 = vadd.f32 %v4352, 0.5
    %v4354 = vtanh.pop %v4344
    %v4355 = vmul.f32 %v4345, 0.5
    %v4356 = vtanh.pop %v4355
    %v4357 = vmul.f32 %v4356, 0.5
    %v4358 = vadd.f32 %v4357, 0.5
    %v4359 = vmul.f32 %v4353, %v3749
    %v4360 = vmul.f32 %v4349, %v4354
    %v4361 = vadd.f32 %v4359, %v4360
    %v4362 = vtanh.pop %v4361
    %v4363 = vmul.f32 %v4358, %v4362
    %v4364 = vpack.c.bf16 %v4363, %v4363
    %s4365 = scalar_lea.vmem %s66, 4
    %4366 = vst [vmem:[%s4365] sm:$0xf] %v4364
    %s4367 = scalar_lea.vmem %s0, 112
    %v4368 = vld [vmem:[%s4367] sm:$0xff]
    %v4369 = vld [vmem:[%s4367 + $0x8] sm:$0xff]
    %v4370 = vunpack.c.l.bf16 %v4368
    %v4371 = vunpack.c.h.bf16 %v4368
    %v4372 = vunpack.c.l.bf16 %v4369
    %v4373 = vunpack.c.h.bf16 %v4369
    %v4374 = vld [vmem:[#allocation6] sm:$0xff]
    %v4375 = vld [vmem:[#allocation6 + $0x8] sm:$0xff]
    %v4376 = vld [vmem:[#allocation6 + $0x10] sm:$0xff]
    %v4377 = vld [vmem:[#allocation6 + $0x18] sm:$0xff]
    %v4378 = vld [vmem:[#allocation6 + $0x20] sm:$0xff]
    %v4379 = vld [vmem:[#allocation6 + $0x28] sm:$0xff]
    %v4380 = vld [vmem:[#allocation6 + $0x30] sm:$0xff]
    %v4381 = vld [vmem:[#allocation6 + $0x38] sm:$0xff]
    %v4382 = vld [vmem:[#allocation6 + $0x40] sm:$0xff]
    %v4383 = vld [vmem:[#allocation6 + $0x48] sm:$0xff]
    %v4384 = vld [vmem:[#allocation6 + $0x50] sm:$0xff]
    %v4385 = vld [vmem:[#allocation6 + $0x58] sm:$0xff]
    %v4386 = vld [vmem:[#allocation6 + $0x60] sm:$0xff]
    %v4387 = vld [vmem:[#allocation6 + $0x68] sm:$0xff]
    %v4388 = vld [vmem:[#allocation6 + $0x70] sm:$0xff]
    %v4389 = vld [vmem:[#allocation6 + $0x78] sm:$0xff]
    %v4390 = vld [vmem:[#allocation6 + $0x80] sm:$0xff]
    %v4391 = vld [vmem:[#allocation6 + $0x88] sm:$0xff]
    %v4392 = vld [vmem:[#allocation6 + $0x90] sm:$0xff]
    %v4393 = vld [vmem:[#allocation6 + $0x98] sm:$0xff]
    %v4394 = vld [vmem:[#allocation6 + $0xa0] sm:$0xff]
    %v4395 = vld [vmem:[#allocation6 + $0xa8] sm:$0xff]
    %v4396 = vld [vmem:[#allocation6 + $0xb0] sm:$0xff]
    %v4397 = vld [vmem:[#allocation6 + $0xb8] sm:$0xff]
    %v4398 = vld [vmem:[#allocation6 + $0xc0] sm:$0xff]
    %v4399 = vld [vmem:[#allocation6 + $0xc8] sm:$0xff]
    %v4400 = vld [vmem:[#allocation6 + $0xd0] sm:$0xff]
    %v4401 = vld [vmem:[#allocation6 + $0xd8] sm:$0xff]
    %v4402 = vld [vmem:[#allocation6 + $0xe0] sm:$0xff]
    %v4403 = vld [vmem:[#allocation6 + $0xe8] sm:$0xff]
    %v4404 = vld [vmem:[#allocation6 + $0xf0] sm:$0xff]
    %v4405 = vld [vmem:[#allocation6 + $0xf8] sm:$0xff]
    %v4438 = vunpack.c.l.b16 %v4374
    %v4439 = vunpack.c.h.b16 %v4374
    %v4440 = vunpack.c.l.b16 %v4375
    %v4441 = vunpack.c.h.b16 %v4375
    %v4442 = vunpack.c.l.b16 %v4376
    %v4443 = vunpack.c.h.b16 %v4376
    %v4444 = vunpack.c.l.b16 %v4377
    %v4445 = vunpack.c.h.b16 %v4377
    %v4446 = vunpack.c.l.b16 %v4378
    %v4447 = vunpack.c.h.b16 %v4378
    %v4448 = vunpack.c.l.b16 %v4379
    %v4449 = vunpack.c.h.b16 %v4379
    %v4450 = vunpack.c.l.b16 %v4380
    %v4451 = vunpack.c.h.b16 %v4380
    %v4452 = vunpack.c.l.b16 %v4381
    %v4453 = vunpack.c.h.b16 %v4381
    %v4454 = vunpack.c.l.b16 %v4382
    %v4455 = vunpack.c.h.b16 %v4382
    %v4456 = vunpack.c.l.b16 %v4383
    %v4457 = vunpack.c.h.b16 %v4383
    %v4458 = vunpack.c.l.b16 %v4384
    %v4459 = vunpack.c.h.b16 %v4384
    %v4460 = vunpack.c.l.b16 %v4385
    %v4461 = vunpack.c.h.b16 %v4385
    %v4462 = vunpack.c.l.b16 %v4386
    %v4463 = vunpack.c.h.b16 %v4386
    %v4464 = vunpack.c.l.b16 %v4387
    %v4465 = vunpack.c.h.b16 %v4387
    %v4466 = vunpack.c.l.b16 %v4388
    %v4467 = vunpack.c.h.b16 %v4388
    %v4468 = vunpack.c.l.b16 %v4389
    %v4469 = vunpack.c.h.b16 %v4389
    %v4470 = vunpack.c.l.b16 %v4390
    %v4471 = vunpack.c.h.b16 %v4390
    %v4472 = vunpack.c.l.b16 %v4391
    %v4473 = vunpack.c.h.b16 %v4391
    %v4474 = vunpack.c.l.b16 %v4392
    %v4475 = vunpack.c.h.b16 %v4392
    %v4476 = vunpack.c.l.b16 %v4393
    %v4477 = vunpack.c.h.b16 %v4393
    %v4478 = vunpack.c.l.b16 %v4394
    %v4479 = vunpack.c.h.b16 %v4394
    %v4480 = vunpack.c.l.b16 %v4395
    %v4481 = vunpack.c.h.b16 %v4395
    %v4482 = vunpack.c.l.b16 %v4396
    %v4483 = vunpack.c.h.b16 %v4396
    %v4484 = vunpack.c.l.b16 %v4397
    %v4485 = vunpack.c.h.b16 %v4397
    %v4486 = vunpack.c.l.b16 %v4398
    %v4487 = vunpack.c.h.b16 %v4398
    %v4488 = vunpack.c.l.b16 %v4399
    %v4489 = vunpack.c.h.b16 %v4399
    %v4490 = vunpack.c.l.b16 %v4400
    %v4491 = vunpack.c.h.b16 %v4400
    %v4492 = vunpack.c.l.b16 %v4401
    %v4493 = vunpack.c.h.b16 %v4401
    %v4494 = vunpack.c.l.b16 %v4402
    %v4495 = vunpack.c.h.b16 %v4402
    %v4496 = vunpack.c.l.b16 %v4403
    %v4497 = vunpack.c.h.b16 %v4403
    %v4498 = vunpack.c.l.b16 %v4404
    %v4499 = vunpack.c.h.b16 %v4404
    %v4500 = vunpack.c.l.b16 %v4405
    %v4501 = vunpack.c.h.b16 %v4405
    %v4502 = vpack.c.b16 %v4442, %v4438
    %v4503 = vpack.c.b16 %v4443, %v4439
    %v4504 = vpack.c.b16 %v4444, %v4440
    %v4505 = vpack.c.b16 %v4445, %v4441
    %v4506 = vpack.c.b16 %v4450, %v4446
    %v4507 = vpack.c.b16 %v4451, %v4447
    %v4508 = vpack.c.b16 %v4452, %v4448
    %v4509 = vpack.c.b16 %v4453, %v4449
    %v4510 = vpack.c.b16 %v4458, %v4454
    %v4511 = vpack.c.b16 %v4459, %v4455
    %v4512 = vpack.c.b16 %v4460, %v4456
    %v4513 = vpack.c.b16 %v4461, %v4457
    %v4514 = vpack.c.b16 %v4466, %v4462
    %v4515 = vpack.c.b16 %v4467, %v4463
    %v4516 = vpack.c.b16 %v4468, %v4464
    %v4517 = vpack.c.b16 %v4469, %v4465
    %v4518 = vpack.c.b16 %v4474, %v4470
    %v4519 = vpack.c.b16 %v4475, %v4471
    %v4520 = vpack.c.b16 %v4476, %v4472
    %v4521 = vpack.c.b16 %v4477, %v4473
    %v4522 = vpack.c.b16 %v4482, %v4478
    %v4523 = vpack.c.b16 %v4483, %v4479
    %v4524 = vpack.c.b16 %v4484, %v4480
    %v4525 = vpack.c.b16 %v4485, %v4481
    %v4526 = vpack.c.b16 %v4490, %v4486
    %v4527 = vpack.c.b16 %v4491, %v4487
    %v4528 = vpack.c.b16 %v4492, %v4488
    %v4529 = vpack.c.b16 %v4493, %v4489
    %v4530 = vpack.c.b16 %v4498, %v4494
    %v4531 = vpack.c.b16 %v4499, %v4495
    %v4532 = vpack.c.b16 %v4500, %v4496
    %v4533 = vpack.c.b16 %v4501, %v4497
    %4566 = vmatprep.subr.bf16.mxu0 %v4503
    %4567 = vmatpush1.bf16.msra.mxu0 %v4502
    %4568 = vmatprep.subr.bf16.mxu0 %v4507
    %4569 = vmatpush1.bf16.msra.mxu0 %v4506
    %4570 = vmatprep.subr.bf16.mxu0 %v4511
    %4571 = vmatpush1.bf16.msra.mxu0 %v4510
    %4572 = vmatprep.subr.bf16.mxu0 %v4515
    %4573 = vmatpush1.bf16.msra.mxu0 %v4514
    %4574 = vmatprep.subr.bf16.mxu0 %v4519
    %4575 = vmatpush1.bf16.msra.mxu0 %v4518
    %4576 = vmatprep.subr.bf16.mxu0 %v4523
    %4577 = vmatpush1.bf16.msra.mxu0 %v4522
    %4578 = vmatprep.subr.bf16.mxu0 %v4527
    %4579 = vmatpush1.bf16.msra.mxu0 %v4526
    %4580 = vmatprep.subr.bf16.mxu0 %v4531
    %4581 = vmatpush1.bf16.msra.mxu0 %v4530
    %4582 = vmatprep.subr.bf16.mxu0 0
    %4583 = vmatpush1.bf16.msra.mxu0 0
    %4584 = vmatprep.subr.bf16.mxu0 0
    %4585 = vmatpush1.bf16.msra.mxu0 0
    %4586 = vmatprep.subr.bf16.mxu0 0
    %4587 = vmatpush1.bf16.msra.mxu0 0
    %4588 = vmatprep.subr.bf16.mxu0 0
    %4589 = vmatpush1.bf16.msra.mxu0 0
    %4590 = vmatprep.subr.bf16.mxu0 0
    %4591 = vmatpush1.bf16.msra.mxu0 0
    %4592 = vmatprep.subr.bf16.mxu0 0
    %4593 = vmatpush1.bf16.msra.mxu0 0
    %4594 = vmatprep.subr.bf16.mxu0 0
    %4595 = vmatpush1.bf16.msra.mxu0 0
    %4596 = vmatprep.subr.bf16.mxu0 0
    %4597 = vmatpush1.bf16.msra.mxu0 0
    %4598 = vmatprep.mubr.bf16.mxu0 0
    %4599 = vmatmul.mubr.bf16.gmra.mrb[0].mxu0 %v4058
    %v4600 = vpop.f32.mrb[0].mxu0
    %v4601 = vadd.f32 0.0, %v4600
    %v4602 = vpop.f32.mrb[0].mxu0
    %v4603 = vadd.f32 0.0, %v4602
    %v4604 = vpop.f32.mrb[0].mxu0
    %v4605 = vpop.f32.mrb[0].mxu0
    %4606 = vdwg.mxu0
    %4607 = vmatprep.subr.bf16.mxu0 %v4505
    %4608 = vmatpush1.bf16.msra.mxu0 %v4504
    %4609 = vmatprep.subr.bf16.mxu0 %v4509
    %4610 = vmatpush1.bf16.msra.mxu0 %v4508
    %4611 = vmatprep.subr.bf16.mxu0 %v4513
    %4612 = vmatpush1.bf16.msra.mxu0 %v4512
    %4613 = vmatprep.subr.bf16.mxu0 %v4517
    %4614 = vmatpush1.bf16.msra.mxu0 %v4516
    %4615 = vmatprep.subr.bf16.mxu0 %v4521
    %4616 = vmatpush1.bf16.msra.mxu0 %v4520
    %4617 = vmatprep.subr.bf16.mxu0 %v4525
    %4618 = vmatpush1.bf16.msra.mxu0 %v4524
    %4619 = vmatprep.subr.bf16.mxu0 %v4529
    %4620 = vmatpush1.bf16.msra.mxu0 %v4528
    %4621 = vmatprep.subr.bf16.mxu0 %v4533
    %4622 = vmatpush1.bf16.msra.mxu0 %v4532
    %4623 = vmatprep.subr.bf16.mxu0 0
    %4624 = vmatpush1.bf16.msra.mxu0 0
    %4625 = vmatprep.subr.bf16.mxu0 0
    %4626 = vmatpush1.bf16.msra.mxu0 0
    %4627 = vmatprep.subr.bf16.mxu0 0
    %4628 = vmatpush1.bf16.msra.mxu0 0
    %4629 = vmatprep.subr.bf16.mxu0 0
    %4630 = vmatpush1.bf16.msra.mxu0 0
    %4631 = vmatprep.subr.bf16.mxu0 0
    %4632 = vmatpush1.bf16.msra.mxu0 0
    %4633 = vmatprep.subr.bf16.mxu0 0
    %4634 = vmatpush1.bf16.msra.mxu0 0
    %4635 = vmatprep.subr.bf16.mxu0 0
    %4636 = vmatpush1.bf16.msra.mxu0 0
    %4637 = vmatprep.subr.bf16.mxu0 0
    %4638 = vmatpush1.bf16.msra.mxu0 0
    %4639 = vmatprep.mubr.bf16.mxu0 0
    %4640 = vmatmul.mubr.bf16.gmra.mrb[0].mxu0 %v4058
    %v4641 = vpop.f32.mrb[0].mxu0
    %v4642 = vadd.f32 0.0, %v4641
    %v4643 = vpop.f32.mrb[0].mxu0
    %v4644 = vadd.f32 0.0, %v4643
    %v4645 = vpop.f32.mrb[0].mxu0
    %v4646 = vpop.f32.mrb[0].mxu0
    %4647 = vdwg.mxu0
    %v4648 = vadd.f32 %v4370, %v4601
    %v4649 = vadd.f32 %v4371, %v4603
    %v4650 = vadd.f32 %v4372, %v4642
    %v4651 = vadd.f32 %v4373, %v4644
    %v4652 = vmul.f32 %v4648, 0.5
    %v4653 = vtanh.pop %v4652
    %v4654 = vmul.f32 %v4653, 0.5
    %v4655 = vadd.f32 %v4654, 0.5
    %v4656 = vmul.f32 %v4649, 0.5
    %v4657 = vtanh.pop %v4656
    %v4658 = vmul.f32 %v4657, 0.5
    %v4659 = vadd.f32 %v4658, 0.5
    %v4660 = vtanh.pop %v4650
    %v4661 = vmul.f32 %v4651, 0.5
    %v4662 = vtanh.pop %v4661
    %v4663 = vmul.f32 %v4662, 0.5
    %v4664 = vadd.f32 %v4663, 0.5
    %v4665 = vmul.f32 %v4659, %v4055
    %v4666 = vmul.f32 %v4655, %v4660
    %v4667 = vadd.f32 %v4665, %v4666
    %v4668 = vtanh.pop %v4667
    %v4669 = vmul.f32 %v4664, %v4668
    %v4670 = vpack.c.bf16 %v4669, %v4669
    %s4671 = scalar_lea.vmem %s3, 28
    %4672 = vst [vmem:[%s4671] sm:$0xf] %v4670
    %v4673 = vld [vmem:[%s58] sm:$0xff]
    %v4674 = vld [vmem:[%s58 + $0x8] sm:$0xff]
    %v4675 = vunpack.c.l.bf16 %v4673
    %v4676 = vunpack.c.h.bf16 %v4673
    %v4677 = vunpack.c.l.bf16 %v4674
    %v4678 = vunpack.c.h.bf16 %v4674
    %v4679 = vld [vmem:[%s395] sm:$0xff]
    %v4680 = vld [vmem:[%s395 + $0x8] sm:$0xff]
    %v4681 = vld [vmem:[%s395 + $0x10] sm:$0xff]
    %v4682 = vld [vmem:[%s395 + $0x18] sm:$0xff]
    %v4683 = vld [vmem:[%s395 + $0x20] sm:$0xff]
    %v4684 = vld [vmem:[%s395 + $0x28] sm:$0xff]
    %v4685 = vld [vmem:[%s395 + $0x30] sm:$0xff]
    %v4686 = vld [vmem:[%s395 + $0x38] sm:$0xff]
    %v4687 = vld [vmem:[%s395 + $0x40] sm:$0xff]
    %v4688 = vld [vmem:[%s395 + $0x48] sm:$0xff]
    %v4689 = vld [vmem:[%s395 + $0x50] sm:$0xff]
    %v4690 = vld [vmem:[%s395 + $0x58] sm:$0xff]
    %v4691 = vld [vmem:[%s395 + $0x60] sm:$0xff]
    %v4692 = vld [vmem:[%s395 + $0x68] sm:$0xff]
    %v4693 = vld [vmem:[%s395 + $0x70] sm:$0xff]
    %v4694 = vld [vmem:[%s395 + $0x78] sm:$0xff]
    %v4695 = vld [vmem:[%s395 + $0x80] sm:$0xff]
    %v4696 = vld [vmem:[%s395 + $0x88] sm:$0xff]
    %v4697 = vld [vmem:[%s395 + $0x90] sm:$0xff]
    %v4698 = vld [vmem:[%s395 + $0x98] sm:$0xff]
    %v4699 = vld [vmem:[%s395 + $0xa0] sm:$0xff]
    %v4700 = vld [vmem:[%s395 + $0xa8] sm:$0xff]
    %v4701 = vld [vmem:[%s395 + $0xb0] sm:$0xff]
    %v4702 = vld [vmem:[%s395 + $0xb8] sm:$0xff]
    %v4703 = vld [vmem:[%s395 + $0xc0] sm:$0xff]
    %v4704 = vld [vmem:[%s395 + $0xc8] sm:$0xff]
    %v4705 = vld [vmem:[%s395 + $0xd0] sm:$0xff]
    %v4706 = vld [vmem:[%s395 + $0xd8] sm:$0xff]
    %v4707 = vld [vmem:[%s395 + $0xe0] sm:$0xff]
    %v4708 = vld [vmem:[%s395 + $0xe8] sm:$0xff]
    %v4709 = vld [vmem:[%s395 + $0xf0] sm:$0xff]
    %v4710 = vld [vmem:[%s395 + $0xf8] sm:$0xff]
    %v4743 = vunpack.c.l.b16 %v4679
    %v4744 = vunpack.c.h.b16 %v4679
    %v4745 = vunpack.c.l.b16 %v4680
    %v4746 = vunpack.c.h.b16 %v4680
    %v4747 = vunpack.c.l.b16 %v4681
    %v4748 = vunpack.c.h.b16 %v4681
    %v4749 = vunpack.c.l.b16 %v4682
    %v4750 = vunpack.c.h.b16 %v4682
    %v4751 = vunpack.c.l.b16 %v4683
    %v4752 = vunpack.c.h.b16 %v4683
    %v4753 = vunpack.c.l.b16 %v4684
    %v4754 = vunpack.c.h.b16 %v4684
    %v4755 = vunpack.c.l.b16 %v4685
    %v4756 = vunpack.c.h.b16 %v4685
    %v4757 = vunpack.c.l.b16 %v4686
    %v4758 = vunpack.c.h.b16 %v4686
    %v4759 = vunpack.c.l.b16 %v4687
    %v4760 = vunpack.c.h.b16 %v4687
    %v4761 = vunpack.c.l.b16 %v4688
    %v4762 = vunpack.c.h.b16 %v4688
    %v4763 = vunpack.c.l.b16 %v4689
    %v4764 = vunpack.c.h.b16 %v4689
    %v4765 = vunpack.c.l.b16 %v4690
    %v4766 = vunpack.c.h.b16 %v4690
    %v4767 = vunpack.c.l.b16 %v4691
    %v4768 = vunpack.c.h.b16 %v4691
    %v4769 = vunpack.c.l.b16 %v4692
    %v4770 = vunpack.c.h.b16 %v4692
    %v4771 = vunpack.c.l.b16 %v4693
    %v4772 = vunpack.c.h.b16 %v4693
    %v4773 = vunpack.c.l.b16 %v4694
    %v4774 = vunpack.c.h.b16 %v4694
    %v4775 = vunpack.c.l.b16 %v4695
    %v4776 = vunpack.c.h.b16 %v4695
    %v4777 = vunpack.c.l.b16 %v4696
    %v4778 = vunpack.c.h.b16 %v4696
    %v4779 = vunpack.c.l.b16 %v4697
    %v4780 = vunpack.c.h.b16 %v4697
    %v4781 = vunpack.c.l.b16 %v4698
    %v4782 = vunpack.c.h.b16 %v4698
    %v4783 = vunpack.c.l.b16 %v4699
    %v4784 = vunpack.c.h.b16 %v4699
    %v4785 = vunpack.c.l.b16 %v4700
    %v4786 = vunpack.c.h.b16 %v4700
    %v4787 = vunpack.c.l.b16 %v4701
    %v4788 = vunpack.c.h.b16 %v4701
    %v4789 = vunpack.c.l.b16 %v4702
    %v4790 = vunpack.c.h.b16 %v4702
    %v4791 = vunpack.c.l.b16 %v4703
    %v4792 = vunpack.c.h.b16 %v4703
    %v4793 = vunpack.c.l.b16 %v4704
    %v4794 = vunpack.c.h.b16 %v4704
    %v4795 = vunpack.c.l.b16 %v4705
    %v4796 = vunpack.c.h.b16 %v4705
    %v4797 = vunpack.c.l.b16 %v4706
    %v4798 = vunpack.c.h.b16 %v4706
    %v4799 = vunpack.c.l.b16 %v4707
    %v4800 = vunpack.c.h.b16 %v4707
    %v4801 = vunpack.c.l.b16 %v4708
    %v4802 = vunpack.c.h.b16 %v4708
    %v4803 = vunpack.c.l.b16 %v4709
    %v4804 = vunpack.c.h.b16 %v4709
    %v4805 = vunpack.c.l.b16 %v4710
    %v4806 = vunpack.c.h.b16 %v4710
    %v4807 = vpack.c.b16 %v4747, %v4743
    %v4808 = vpack.c.b16 %v4748, %v4744
    %v4809 = vpack.c.b16 %v4749, %v4745
    %v4810 = vpack.c.b16 %v4750, %v4746
    %v4811 = vpack.c.b16 %v4755, %v4751
    %v4812 = vpack.c.b16 %v4756, %v4752
    %v4813 = vpack.c.b16 %v4757, %v4753
    %v4814 = vpack.c.b16 %v4758, %v4754
    %v4815 = vpack.c.b16 %v4763, %v4759
    %v4816 = vpack.c.b16 %v4764, %v4760
    %v4817 = vpack.c.b16 %v4765, %v4761
    %v4818 = vpack.c.b16 %v4766, %v4762
    %v4819 = vpack.c.b16 %v4771, %v4767
    %v4820 = vpack.c.b16 %v4772, %v4768
    %v4821 = vpack.c.b16 %v4773, %v4769
    %v4822 = vpack.c.b16 %v4774, %v4770
    %v4823 = vpack.c.b16 %v4779, %v4775
    %v4824 = vpack.c.b16 %v4780, %v4776
    %v4825 = vpack.c.b16 %v4781, %v4777
    %v4826 = vpack.c.b16 %v4782, %v4778
    %v4827 = vpack.c.b16 %v4787, %v4783
    %v4828 = vpack.c.b16 %v4788, %v4784
    %v4829 = vpack.c.b16 %v4789, %v4785
    %v4830 = vpack.c.b16 %v4790, %v4786
    %v4831 = vpack.c.b16 %v4795, %v4791
    %v4832 = vpack.c.b16 %v4796, %v4792
    %v4833 = vpack.c.b16 %v4797, %v4793
    %v4834 = vpack.c.b16 %v4798, %v4794
    %v4835 = vpack.c.b16 %v4803, %v4799
    %v4836 = vpack.c.b16 %v4804, %v4800
    %v4837 = vpack.c.b16 %v4805, %v4801
    %v4838 = vpack.c.b16 %v4806, %v4802
    %4871 = vmatprep.subr.bf16.mxu0 %v4808
    %4872 = vmatpush1.bf16.msra.mxu0 %v4807
    %4873 = vmatprep.subr.bf16.mxu0 %v4812
    %4874 = vmatpush1.bf16.msra.mxu0 %v4811
    %4875 = vmatprep.subr.bf16.mxu0 %v4816
    %4876 = vmatpush1.bf16.msra.mxu0 %v4815
    %4877 = vmatprep.subr.bf16.mxu0 %v4820
    %4878 = vmatpush1.bf16.msra.mxu0 %v4819
    %4879 = vmatprep.subr.bf16.mxu0 %v4824
    %4880 = vmatpush1.bf16.msra.mxu0 %v4823
    %4881 = vmatprep.subr.bf16.mxu0 %v4828
    %4882 = vmatpush1.bf16.msra.mxu0 %v4827
    %4883 = vmatprep.subr.bf16.mxu0 %v4832
    %4884 = vmatpush1.bf16.msra.mxu0 %v4831
    %4885 = vmatprep.subr.bf16.mxu0 %v4836
    %4886 = vmatpush1.bf16.msra.mxu0 %v4835
    %4887 = vmatprep.subr.bf16.mxu0 0
    %4888 = vmatpush1.bf16.msra.mxu0 0
    %4889 = vmatprep.subr.bf16.mxu0 0
    %4890 = vmatpush1.bf16.msra.mxu0 0
    %4891 = vmatprep.subr.bf16.mxu0 0
    %4892 = vmatpush1.bf16.msra.mxu0 0
    %4893 = vmatprep.subr.bf16.mxu0 0
    %4894 = vmatpush1.bf16.msra.mxu0 0
    %4895 = vmatprep.subr.bf16.mxu0 0
    %4896 = vmatpush1.bf16.msra.mxu0 0
    %4897 = vmatprep.subr.bf16.mxu0 0
    %4898 = vmatpush1.bf16.msra.mxu0 0
    %4899 = vmatprep.subr.bf16.mxu0 0
    %4900 = vmatpush1.bf16.msra.mxu0 0
    %4901 = vmatprep.subr.bf16.mxu0 0
    %4902 = vmatpush1.bf16.msra.mxu0 0
    %4903 = vmatprep.mubr.bf16.mxu0 0
    %4904 = vmatmul.mubr.bf16.gmra.mrb[0].mxu0 %v4364
    %v4905 = vpop.f32.mrb[0].mxu0
    %v4906 = vadd.f32 0.0, %v4905
    %v4907 = vpop.f32.mrb[0].mxu0
    %v4908 = vadd.f32 0.0, %v4907
    %v4909 = vpop.f32.mrb[0].mxu0
    %v4910 = vpop.f32.mrb[0].mxu0
    %4911 = vdwg.mxu0
    %4912 = vmatprep.subr.bf16.mxu0 %v4810
    %4913 = vmatpush1.bf16.msra.mxu0 %v4809
    %4914 = vmatprep.subr.bf16.mxu0 %v4814
    %4915 = vmatpush1.bf16.msra.mxu0 %v4813
    %4916 = vmatprep.subr.bf16.mxu0 %v4818
    %4917 = vmatpush1.bf16.msra.mxu0 %v4817
    %4918 = vmatprep.subr.bf16.mxu0 %v4822
    %4919 = vmatpush1.bf16.msra.mxu0 %v4821
    %4920 = vmatprep.subr.bf16.mxu0 %v4826
    %4921 = vmatpush1.bf16.msra.mxu0 %v4825
    %4922 = vmatprep.subr.bf16.mxu0 %v4830
    %4923 = vmatpush1.bf16.msra.mxu0 %v4829
    %4924 = vmatprep.subr.bf16.mxu0 %v4834
    %4925 = vmatpush1.bf16.msra.mxu0 %v4833
    %4926 = vmatprep.subr.bf16.mxu0 %v4838
    %4927 = vmatpush1.bf16.msra.mxu0 %v4837
    %4928 = vmatprep.subr.bf16.mxu0 0
    %4929 = vmatpush1.bf16.msra.mxu0 0
    %4930 = vmatprep.subr.bf16.mxu0 0
    %4931 = vmatpush1.bf16.msra.mxu0 0
    %4932 = vmatprep.subr.bf16.mxu0 0
    %4933 = vmatpush1.bf16.msra.mxu0 0
    %4934 = vmatprep.subr.bf16.mxu0 0
    %4935 = vmatpush1.bf16.msra.mxu0 0
    %4936 = vmatprep.subr.bf16.mxu0 0
    %4937 = vmatpush1.bf16.msra.mxu0 0
    %4938 = vmatprep.subr.bf16.mxu0 0
    %4939 = vmatpush1.bf16.msra.mxu0 0
    %4940 = vmatprep.subr.bf16.mxu0 0
    %4941 = vmatpush1.bf16.msra.mxu0 0
    %4942 = vmatprep.subr.bf16.mxu0 0
    %4943 = vmatpush1.bf16.msra.mxu0 0
    %4944 = vmatprep.mubr.bf16.mxu0 0
    %4945 = vmatmul.mubr.bf16.gmra.mrb[0].mxu0 %v4364
    %v4946 = vpop.f32.mrb[0].mxu0
    %v4947 = vadd.f32 0.0, %v4946
    %v4948 = vpop.f32.mrb[0].mxu0
    %v4949 = vadd.f32 0.0, %v4948
    %v4950 = vpop.f32.mrb[0].mxu0
    %v4951 = vpop.f32.mrb[0].mxu0
    %4952 = vdwg.mxu0
    %v4953 = vadd.f32 %v4675, %v4906
    %v4954 = vadd.f32 %v4676, %v4908
    %v4955 = vadd.f32 %v4677, %v4947
    %v4956 = vadd.f32 %v4678, %v4949
    %v4957 = vmul.f32 %v4953, 0.5
    %v4958 = vtanh.pop %v4957
    %v4959 = vmul.f32 %v4958, 0.5
    %v4960 = vadd.f32 %v4959, 0.5
    %v4961 = vmul.f32 %v4954, 0.5
    %v4962 = vtanh.pop %v4961
    %v4963 = vmul.f32 %v4962, 0.5
    %v4964 = vadd.f32 %v4963, 0.5
    %v4965 = vtanh.pop %v4955
    %v4966 = vmul.f32 %v4956, 0.5
    %v4967 = vtanh.pop %v4966
    %v4968 = vmul.f32 %v4967, 0.5
    %v4969 = vadd.f32 %v4968, 0.5
    %v4970 = vmul.f32 %v4964, %v4361
    %v4971 = vmul.f32 %v4960, %v4965
    %v4972 = vadd.f32 %v4970, %v4971
    %v4973 = vtanh.pop %v4972
    %v4974 = vmul.f32 %v4969, %v4973
    %v4975 = vpack.c.bf16 %v4974, %v4974
    %4976 = vst [vmem:[%s66] sm:$0xf] %v4975
    %4977 = vst [vmem:[#allocation2] sm:$0xff] %v4669
    %4978 = vst [vmem:[#allocation3] sm:$0xff] %v4667
    %4979 = vst [vmem:[#allocation4] sm:$0xff] %v4974
    %4980 = vst [vmem:[#allocation5] sm:$0xff] %v4972
    %s4981 = ssub.s32 0, 0
    %s4982 = smul.u32 8, %s4981
    %p4983 = scmp.lt.s32.totalorder %s4982, 7
    %s4984 = scalar_select %p4983, %s4982, 7
    %s4985 = smul.addr %s4984, 4
    %s4986 = scalar_lea.vmem %s4, %s4985
    // Predicated region
    $region22: #{bilstm_forward.2} parent=1 // pred_check
      _
    $region23: #{bilstm_forward.2} parent=1 // pred_check_branch
      %4988 = sbr.rel (0) target = $region25
    $region24: #{bilstm_forward.2} parent=1 // pred_region
      _
    $region25: #{bilstm_forward.2} parent=1 // pred_fallthru
      _
    // Predicated region
    $region26: #{bilstm_forward.2} parent=1 // pred_check
      _
    $region27: #{bilstm_forward.2} parent=1 // pred_check_branch
      %4990 = sbr.rel (0) target = $region29
    $region28: #{bilstm_forward.2} parent=1 // pred_region
      %s4991 = ssub.s32 0, 0
      %s4992 = smul.u32 8, %s4991
    $region29: #{bilstm_forward.2} parent=1 // pred_fallthru
      _
    // Predicated region
    $region30: #{bilstm_forward.2} parent=1 // pred_check
      _
    $region31: #{bilstm_forward.2} parent=1 // pred_check_branch
      %4994 = sbr.rel (0) target = $region33
    $region32: #{bilstm_forward.2} parent=1 // pred_region
      _
    $region33: #{bilstm_forward.2} parent=1 // pred_fallthru
      _
    // Predicated region
    $region34: #{bilstm_forward.2} parent=1 // pred_check
      _
    $region35: #{bilstm_forward.2} parent=1 // pred_check_branch
      %4996 = sbr.rel (0) target = $region37
    $region36: #{bilstm_forward.2} parent=1 // pred_region
      %s4997 = ssub.s32 0, 0
      %s4998 = smul.u32 8, %s4997
      %p4999 = scmp.lt.s32.totalorder %s4998, 7
      %s5000 = scalar_select %p4999, %s4998, 7
      %s5001 = smul.addr %s5000, 4
      %s5002 = scalar_lea.vmem %s4, %s5001
    $region37: #{bilstm_forward.2} parent=1 // pred_fallthru
      _
    %5003 = vsyncpa [#allocation7], 1

// kernel: bilstm_forward.3
$region0: #{bilstm_forward.3}
  #allocation0 [shape = 'u32[]', space=smem, size = 0x4, offset = 0x4, fixed_abs, tag = 'smem constant byte address 0x4 - core index']
  #allocation1 [shape = 'u32[144,128]{1,0:T(1,128)}', space=vmem, size = 0x12000, scoped, tag = 'internal scratch']
  #allocation2 [shape = 'f32[8,128]{1,0:T(8,128)}', space=vmem, size = 0x1000, scoped, tag = 'scratch operand']
  #allocation3 [shape = 'f32[8,128]{1,0:T(8,128)}', space=vmem, size = 0x1000, scoped, tag = 'scratch operand']
  #allocation4 [shape = 'f32[8,128]{1,0:T(8,128)}', space=vmem, size = 0x1000, scoped, tag = 'scratch operand']
  #allocation5 [shape = 'f32[8,128]{1,0:T(8,128)}', space=vmem, size = 0x1000, scoped, tag = 'scratch operand']
  %s0 = inlined_call_operand.vmem [shape: bf16[8,8,512], index: 0, kind: input, shape index: {}]
  %s1 = inlined_call_operand.vmem [shape: bf16[8,8,512], index: 1, kind: input, shape index: {}]
  %s2 = inlined_call_operand.vmem [shape: bf16[2,128,512], index: 2, kind: input, shape index: {}]
  %s3 = inlined_call_operand.vmem [shape: bf16[8,8,128], index: 3, kind: output, shape index: {0}]
  %s4 = inlined_call_operand.vmem [shape: bf16[8,8,128], index: 4, kind: output, shape index: {1}]
  %5 = xla_tuple %s3, %s4
  %s6 = sld [smem:[#allocation0]]
  $region34: #{bilstm_forward.3} parent=0
    _
  %s8 = ssub.s32 1, %s6
  %s9 = scalar_select 0, %s8, %s6
  // Predicated region
  $region2: #{bilstm_forward.3} parent=0 // pred_check
    _
  $region3: #{bilstm_forward.3} parent=0 // pred_check_branch
    %11 = sbr.rel (0) target = $region5
  $region4: #{bilstm_forward.3} parent=0 // pred_region
    _
  $region5: #{bilstm_forward.3} parent=0 // pred_fallthru
    _
  // Predicated region
  $region6: #{bilstm_forward.3} parent=0 // pred_check
    _
  $region7: #{bilstm_forward.3} parent=0 // pred_check_branch
    %13 = sbr.rel (0) target = $region9
  $region8: #{bilstm_forward.3} parent=0 // pred_region
    %s14 = ssub.s32 0, 0
    %s15 = smul.u32 8, %s14
    %p16 = scmp.lt.s32.totalorder %s15, 7
    %s17 = scalar_select %p16, %s15, 7
    %s18 = smul.addr %s17, 4
    %s19 = smul.addr %s18, 4
    %s20 = scalar_lea.vmem %s1, %s19
    %s21 = ssub.s32 0, 0
    %s22 = smul.u32 8, %s21
  $region9: #{bilstm_forward.3} parent=0 // pred_fallthru
    _
  // Predicated region
  $region10: #{bilstm_forward.3} parent=0 // pred_check
    _
  $region11: #{bilstm_forward.3} parent=0 // pred_check_branch
    %24 = sbr.rel (0) target = $region13
  $region12: #{bilstm_forward.3} parent=0 // pred_region
    _
  $region13: #{bilstm_forward.3} parent=0 // pred_fallthru
    _
  %s25 = ssub.s32 0, 0
  %s26 = smul.u32 8, %s25
  %p27 = scmp.lt.s32.totalorder %s26, 7
  %s28 = scalar_select %p27, %s26, 7
  %s29 = smul.addr %s28, 4
  %s30 = smul.addr %s29, 4
  %s31 = scalar_lea.vmem %s1, %s30
  %s32 = ssub.s32 0, 0
  %s33 = smul.u32 8, %s32
  %p34 = scmp.lt.s32.totalorder %s33, 7
  %s35 = scalar_select %p34, %s33, 7
  %s36 = smul.addr %s35, 4
  %s37 = scalar_lea.vmem %s4, %s36
  %s38 = ssub.s32 0, 0
  %s39 = smul.u32 8, %s38
  %p40 = scmp.lt.s32.totalorder %s39, 7
  %s41 = scalar_select %p40, %s39, 7
  %s42 = smul.addr %s41, 4
  %s43 = smul.addr %s42, 4
  %s44 = scalar_lea.vmem %s1, %s43
  %s45 = ssub.s32 0, 0
  %s46 = smul.u32 8, %s45
  %s47 = ssub.s32 0, 0
  %s48 = smul.u32 8, %s47
  %p49 = scmp.lt.s32.totalorder %s48, 7
  %s50 = scalar_select %p49, %s48, 7
  %s51 = smul.addr %s50, 4
  %s52 = scalar_lea.vmem %s4, %s51
  %s53 = ssub.s32 0, 0
  %s54 = smul.u32 8, %s53
  %p56 = scmp.eq.s32.totalorder 0, 0
  // Predicated region
  $region14: #{bilstm_forward.3} parent=0 // pred_check
    %p57 = pneg %p56
  $region15: #{bilstm_forward.3} parent=0 // pred_check_branch
    %59 = sbr.rel (%p57) target = $region17
  $region16: #{bilstm_forward.3} parent=0 // pred_region
    %60 = vst [vmem:[#allocation2] sm:$0xff] 0.0
    %61 = vst [vmem:[#allocation3] sm:$0xff] 0.0
    %62 = vst [vmem:[#allocation4] sm:$0xff] 0.0
    %63 = vst [vmem:[#allocation5] sm:$0xff] 0.0
  $region17: #{bilstm_forward.3} parent=0 // pred_fallthru
    _
  %v64 = vld [vmem:[#allocation2] sm:$0xff]
  %v65 = vld [vmem:[#allocation3] sm:$0xff]
  %v66 = vld [vmem:[#allocation4] sm:$0xff]
  %v67 = vld [vmem:[#allocation5] sm:$0xff]
  %v68 = vld [vmem:[%s0] sm:$0xff]
  %v69 = vld [vmem:[%s0 + $0x8] sm:$0xff]
  %v70 = vunpack.c.l.bf16 %v68
  %v71 = vunpack.c.h.bf16 %v68
  %v72 = vunpack.c.l.bf16 %v69
  %v73 = vunpack.c.h.bf16 %v69
  %v74 = vpack.c.bf16 %v64, %v64
  %v75 = vld [vmem:[%s2] sm:$0xff]
  %v76 = vld [vmem:[%s2 + $0x8] sm:$0xff]
  %v77 = vld [vmem:[%s2 + $0x10] sm:$0xff]
  %v78 = vld [vmem:[%s2 + $0x18] sm:$0xff]
  %v79 = vld [vmem:[%s2 + $0x20] sm:$0xff]
  %v80 = vld [vmem:[%s2 + $0x28] sm:$0xff]
  %v81 = vld [vmem:[%s2 + $0x30] sm:$0xff]
  %v82 = vld [vmem:[%s2 + $0x38] sm:$0xff]
  %v83 = vld [vmem:[%s2 + $0x40] sm:$0xff]
  %v84 = vld [vmem:[%s2 + $0x48] sm:$0xff]
  %v85 = vld [vmem:[%s2 + $0x50] sm:$0xff]
  %v86 = vld [vmem:[%s2 + $0x58] sm:$0xff]
  %v87 = vld [vmem:[%s2 + $0x60] sm:$0xff]
  %v88 = vld [vmem:[%s2 + $0x68] sm:$0xff]
  %v89 = vld [vmem:[%s2 + $0x70] sm:$0xff]
  %v90 = vld [vmem:[%s2 + $0x78] sm:$0xff]
  %v91 = vld [vmem:[%s2 + $0x80] sm:$0xff]
  %v92 = vld [vmem:[%s2 + $0x88] sm:$0xff]
  %v93 = vld [vmem:[%s2 + $0x90] sm:$0xff]
  %v94 = vld [vmem:[%s2 + $0x98] sm:$0xff]
  %v95 = vld [vmem:[%s2 + $0xa0] sm:$0xff]
  %v96 = vld [vmem:[%s2 + $0xa8] sm:$0xff]
  %v97 = vld [vmem:[%s2 + $0xb0] sm:$0xff]
  %v98 = vld [vmem:[%s2 + $0xb8] sm:$0xff]
  %v99 = vld [vmem:[%s2 + $0xc0] sm:$0xff]
  %v100 = vld [vmem:[%s2 + $0xc8] sm:$0xff]
  %v101 = vld [vmem:[%s2 + $0xd0] sm:$0xff]
  %v102 = vld [vmem:[%s2 + $0xd8] sm:$0xff]
  %v103 = vld [vmem:[%s2 + $0xe0] sm:$0xff]
  %v104 = vld [vmem:[%s2 + $0xe8] sm:$0xff]
  %v105 = vld [vmem:[%s2 + $0xf0] sm:$0xff]
  %v106 = vld [vmem:[%s2 + $0xf8] sm:$0xff]
  %v139 = vunpack.c.l.b16 %v75
  %v140 = vunpack.c.h.b16 %v75
  %v141 = vunpack.c.l.b16 %v76
  %v142 = vunpack.c.h.b16 %v76
  %v143 = vunpack.c.l.b16 %v77
  %v144 = vunpack.c.h.b16 %v77
  %v145 = vunpack.c.l.b16 %v78
  %v146 = vunpack.c.h.b16 %v78
  %v147 = vunpack.c.l.b16 %v79
  %v148 = vunpack.c.h.b16 %v79
  %v149 = vunpack.c.l.b16 %v80
  %v150 = vunpack.c.h.b16 %v80
  %v151 = vunpack.c.l.b16 %v81
  %v152 = vunpack.c.h.b16 %v81
  %v153 = vunpack.c.l.b16 %v82
  %v154 = vunpack.c.h.b16 %v82
  %v155 = vunpack.c.l.b16 %v83
  %v156 = vunpack.c.h.b16 %v83
  %v157 = vunpack.c.l.b16 %v84
  %v158 = vunpack.c.h.b16 %v84
  %v159 = vunpack.c.l.b16 %v85
  %v160 = vunpack.c.h.b16 %v85
  %v161 = vunpack.c.l.b16 %v86
  %v162 = vunpack.c.h.b16 %v86
  %v163 = vunpack.c.l.b16 %v87
  %v164 = vunpack.c.h.b16 %v87
  %v165 = vunpack.c.l.b16 %v88
  %v166 = vunpack.c.h.b16 %v88
  %v167 = vunpack.c.l.b16 %v89
  %v168 = vunpack.c.h.b16 %v89
  %v169 = vunpack.c.l.b16 %v90
  %v170 = vunpack.c.h.b16 %v90
  %v171 = vunpack.c.l.b16 %v91
  %v172 = vunpack.c.h.b16 %v91
  %v173 = vunpack.c.l.b16 %v92
  %v174 = vunpack.c.h.b16 %v92
  %v175 = vunpack.c.l.b16 %v93
  %v176 = vunpack.c.h.b16 %v93
  %v177 = vunpack.c.l.b16 %v94
  %v178 = vunpack.c.h.b16 %v94
  %v179 = vunpack.c.l.b16 %v95
  %v180 = vunpack.c.h.b16 %v95
  %v181 = vunpack.c.l.b16 %v96
  %v182 = vunpack.c.h.b16 %v96
  %v183 = vunpack.c.l.b16 %v97
  %v184 = vunpack.c.h.b16 %v97
  %v185 = vunpack.c.l.b16 %v98
  %v186 = vunpack.c.h.b16 %v98
  %v187 = vunpack.c.l.b16 %v99
  %v188 = vunpack.c.h.b16 %v99
  %v189 = vunpack.c.l.b16 %v100
  %v190 = vunpack.c.h.b16 %v100
  %v191 = vunpack.c.l.b16 %v101
  %v192 = vunpack.c.h.b16 %v101
  %v193 = vunpack.c.l.b16 %v102
  %v194 = vunpack.c.h.b16 %v102
  %v195 = vunpack.c.l.b16 %v103
  %v196 = vunpack.c.h.b16 %v103
  %v197 = vunpack.c.l.b16 %v104
  %v198 = vunpack.c.h.b16 %v104
  %v199 = vunpack.c.l.b16 %v105
  %v200 = vunpack.c.h.b16 %v105
  %v201 = vunpack.c.l.b16 %v106
  %v202 = vunpack.c.h.b16 %v106
  %v203 = vpack.c.b16 %v143, %v139
  %v204 = vpack.c.b16 %v144, %v140
  %v205 = vpack.c.b16 %v145, %v141
  %v206 = vpack.c.b16 %v146, %v142
  %v207 = vpack.c.b16 %v151, %v147
  %v208 = vpack.c.b16 %v152, %v148
  %v209 = vpack.c.b16 %v153, %v149
  %v210 = vpack.c.b16 %v154, %v150
  %v211 = vpack.c.b16 %v159, %v155
  %v212 = vpack.c.b16 %v160, %v156
  %v213 = vpack.c.b16 %v161, %v157
  %v214 = vpack.c.b16 %v162, %v158
  %v215 = vpack.c.b16 %v167, %v163
  %v216 = vpack.c.b16 %v168, %v164
  %v217 = vpack.c.b16 %v169, %v165
  %v218 = vpack.c.b16 %v170, %v166
  %v219 = vpack.c.b16 %v175, %v171
  %v220 = vpack.c.b16 %v176, %v172
  %v221 = vpack.c.b16 %v177, %v173
  %v222 = vpack.c.b16 %v178, %v174
  %v223 = vpack.c.b16 %v183, %v179
  %v224 = vpack.c.b16 %v184, %v180
  %v225 = vpack.c.b16 %v185, %v181
  %v226 = vpack.c.b16 %v186, %v182
  %v227 = vpack.c.b16 %v191, %v187
  %v228 = vpack.c.b16 %v192, %v188
  %v229 = vpack.c.b16 %v193, %v189
  %v230 = vpack.c.b16 %v194, %v190
  %v231 = vpack.c.b16 %v199, %v195
  %v232 = vpack.c.b16 %v200, %v196
  %v233 = vpack.c.b16 %v201, %v197
  %v234 = vpack.c.b16 %v202, %v198
  %267 = vmatprep.subr.bf16.mxu0 %v204
  %268 = vmatpush1.bf16.msra.mxu0 %v203
  %269 = vmatprep.subr.bf16.mxu0 %v208
  %270 = vmatpush1.bf16.msra.mxu0 %v207
  %271 = vmatprep.subr.bf16.mxu0 %v212
  %272 = vmatpush1.bf16.msra.mxu0 %v211
  %273 = vmatprep.subr.bf16.mxu0 %v216
  %274 = vmatpush1.bf16.msra.mxu0 %v215
  %275 = vmatprep.subr.bf16.mxu0 %v220
  %276 = vmatpush1.bf16.msra.mxu0 %v219
  %277 = vmatprep.subr.bf16.mxu0 %v224
  %278 = vmatpush1.bf16.msra.mxu0 %v223
  %279 = vmatprep.subr.bf16.mxu0 %v228
  %280 = vmatpush1.bf16.msra.mxu0 %v227
  %281 = vmatprep.subr.bf16.mxu0 %v232
  %282 = vmatpush1.bf16.msra.mxu0 %v231
  %283 = vmatprep.subr.bf16.mxu0 0
  %284 = vmatpush1.bf16.msra.mxu0 0
  %285 = vmatprep.subr.bf16.mxu0 0
  %286 = vmatpush1.bf16.msra.mxu0 0
  %287 = vmatprep.subr.bf16.mxu0 0
  %288 = vmatpush1.bf16.msra.mxu0 0
  %289 = vmatprep.subr.bf16.mxu0 0
  %290 = vmatpush1.bf16.msra.mxu0 0
  %291 = vmatprep.subr.bf16.mxu0 0
  %292 = vmatpush1.bf16.msra.mxu0 0
  %293 = vmatprep.subr.bf16.mxu0 0
  %294 = vmatpush1.bf16.msra.mxu0 0
  %295 = vmatprep.subr.bf16.mxu0 0
  %296 = vmatpush1.bf16.msra.mxu0 0
  %297 = vmatprep.subr.bf16.mxu0 0
  %298 = vmatpush1.bf16.msra.mxu0 0
  %299 = vmatprep.mubr.bf16.mxu0 0
  %300 = vmatmul.mubr.bf16.gmra.mrb[0].mxu0 %v74
  %v301 = vpop.f32.mrb[0].mxu0
  %v302 = vadd.f32 0.0, %v301
  %v303 = vpop.f32.mrb[0].mxu0
  %v304 = vadd.f32 0.0, %v303
  %v305 = vpop.f32.mrb[0].mxu0
  %v306 = vpop.f32.mrb[0].mxu0
  %307 = vdwg.mxu0
  %308 = vmatprep.subr.bf16.mxu0 %v206
  %309 = vmatpush1.bf16.msra.mxu0 %v205
  %310 = vmatprep.subr.bf16.mxu0 %v210
  %311 = vmatpush1.bf16.msra.mxu0 %v209
  %312 = vmatprep.subr.bf16.mxu0 %v214
  %313 = vmatpush1.bf16.msra.mxu0 %v213
  %314 = vmatprep.subr.bf16.mxu0 %v218
  %315 = vmatpush1.bf16.msra.mxu0 %v217
  %316 = vmatprep.subr.bf16.mxu0 %v222
  %317 = vmatpush1.bf16.msra.mxu0 %v221
  %318 = vmatprep.subr.bf16.mxu0 %v226
  %319 = vmatpush1.bf16.msra.mxu0 %v225
  %320 = vmatprep.subr.bf16.mxu0 %v230
  %321 = vmatpush1.bf16.msra.mxu0 %v229
  %322 = vmatprep.subr.bf16.mxu0 %v234
  %323 = vmatpush1.bf16.msra.mxu0 %v233
  %324 = vmatprep.subr.bf16.mxu0 0
  %325 = vmatpush1.bf16.msra.mxu0 0
  %326 = vmatprep.subr.bf16.mxu0 0
  %327 = vmatpush1.bf16.msra.mxu0 0
  %328 = vmatprep.subr.bf16.mxu0 0
  %329 = vmatpush1.bf16.msra.mxu0 0
  %330 = vmatprep.subr.bf16.mxu0 0
  %331 = vmatpush1.bf16.msra.mxu0 0
  %332 = vmatprep.subr.bf16.mxu0 0
  %333 = vmatpush1.bf16.msra.mxu0 0
  %334 = vmatprep.subr.bf16.mxu0 0
  %335 = vmatpush1.bf16.msra.mxu0 0
  %336 = vmatprep.subr.bf16.mxu0 0
  %337 = vmatpush1.bf16.msra.mxu0 0
  %338 = vmatprep.subr.bf16.mxu0 0
  %339 = vmatpush1.bf16.msra.mxu0 0
  %340 = vmatprep.mubr.bf16.mxu0 0
  %341 = vmatmul.mubr.bf16.gmra.mrb[0].mxu0 %v74
  %v342 = vpop.f32.mrb[0].mxu0
  %v343 = vadd.f32 0.0, %v342
  %v344 = vpop.f32.mrb[0].mxu0
  %v345 = vadd.f32 0.0, %v344
  %v346 = vpop.f32.mrb[0].mxu0
  %v347 = vpop.f32.mrb[0].mxu0
  %348 = vdwg.mxu0
  %v349 = vadd.f32 %v70, %v302
  %v350 = vadd.f32 %v71, %v304
  %v351 = vadd.f32 %v72, %v343
  %v352 = vadd.f32 %v73, %v345
  %v353 = vmul.f32 %v349, 0.5
  %v354 = vtanh.pop %v353
  %v355 = vmul.f32 %v354, 0.5
  %v356 = vadd.f32 %v355, 0.5
  %v357 = vmul.f32 %v350, 0.5
  %v358 = vtanh.pop %v357
  %v359 = vmul.f32 %v358, 0.5
  %v360 = vadd.f32 %v359, 0.5
  %v361 = vtanh.pop %v351
  %v362 = vmul.f32 %v352, 0.5
  %v363 = vtanh.pop %v362
  %v364 = vmul.f32 %v363, 0.5
  %v365 = vadd.f32 %v364, 0.5
  %v366 = vmul.f32 %v360, %v65
  %v367 = vmul.f32 %v356, %v361
  %v368 = vadd.f32 %v366, %v367
  %v369 = vtanh.pop %v368
  %v370 = vmul.f32 %v365, %v369
  %v371 = vpack.c.bf16 %v370, %v370
  %372 = vst [vmem:[%s3] sm:$0xf] %v371
  %s373 = scalar_lea.vmem %s44, 112
  %v374 = vld [vmem:[%s373] sm:$0xff]
  %v375 = vld [vmem:[%s373 + $0x8] sm:$0xff]
  %v376 = vunpack.c.l.bf16 %v374
  %v377 = vunpack.c.h.bf16 %v374
  %v378 = vunpack.c.l.bf16 %v375
  %v379 = vunpack.c.h.bf16 %v375
  %v380 = vpack.c.bf16 %v66, %v66
  %s381 = scalar_lea.vmem %s2, 256
  %v382 = vld [vmem:[%s381] sm:$0xff]
  %v383 = vld [vmem:[%s381 + $0x8] sm:$0xff]
  %v384 = vld [vmem:[%s381 + $0x10] sm:$0xff]
  %v385 = vld [vmem:[%s381 + $0x18] sm:$0xff]
  %v386 = vld [vmem:[%s381 + $0x20] sm:$0xff]
  %v387 = vld [vmem:[%s381 + $0x28] sm:$0xff]
  %v388 = vld [vmem:[%s381 + $0x30] sm:$0xff]
  %v389 = vld [vmem:[%s381 + $0x38] sm:$0xff]
  %v390 = vld [vmem:[%s381 + $0x40] sm:$0xff]
  %v391 = vld [vmem:[%s381 + $0x48] sm:$0xff]
  %v392 = vld [vmem:[%s381 + $0x50] sm:$0xff]
  %v393 = vld [vmem:[%s381 + $0x58] sm:$0xff]
  %v394 = vld [vmem:[%s381 + $0x60] sm:$0xff]
  %v395 = vld [vmem:[%s381 + $0x68] sm:$0xff]
  %v396 = vld [vmem:[%s381 + $0x70] sm:$0xff]
  %v397 = vld [vmem:[%s381 + $0x78] sm:$0xff]
  %v398 = vld [vmem:[%s381 + $0x80] sm:$0xff]
  %v399 = vld [vmem:[%s381 + $0x88] sm:$0xff]
  %v400 = vld [vmem:[%s381 + $0x90] sm:$0xff]
  %v401 = vld [vmem:[%s381 + $0x98] sm:$0xff]
  %v402 = vld [vmem:[%s381 + $0xa0] sm:$0xff]
  %v403 = vld [vmem:[%s381 + $0xa8] sm:$0xff]
  %v404 = vld [vmem:[%s381 + $0xb0] sm:$0xff]
  %v405 = vld [vmem:[%s381 + $0xb8] sm:$0xff]
  %v406 = vld [vmem:[%s381 + $0xc0] sm:$0xff]
  %v407 = vld [vmem:[%s381 + $0xc8] sm:$0xff]
  %v408 = vld [vmem:[%s381 + $0xd0] sm:$0xff]
  %v409 = vld [vmem:[%s381 + $0xd8] sm:$0xff]
  %v410 = vld [vmem:[%s381 + $0xe0] sm:$0xff]
  %v411 = vld [vmem:[%s381 + $0xe8] sm:$0xff]
  %v412 = vld [vmem:[%s381 + $0xf0] sm:$0xff]
  %v413 = vld [vmem:[%s381 + $0xf8] sm:$0xff]
  %v446 = vunpack.c.l.b16 %v382
  %v447 = vunpack.c.h.b16 %v382
  %v448 = vunpack.c.l.b16 %v383
  %v449 = vunpack.c.h.b16 %v383
  %v450 = vunpack.c.l.b16 %v384
  %v451 = vunpack.c.h.b16 %v384
  %v452 = vunpack.c.l.b16 %v385
  %v453 = vunpack.c.h.b16 %v385
  %v454 = vunpack.c.l.b16 %v386
  %v455 = vunpack.c.h.b16 %v386
  %v456 = vunpack.c.l.b16 %v387
  %v457 = vunpack.c.h.b16 %v387
  %v458 = vunpack.c.l.b16 %v388
  %v459 = vunpack.c.h.b16 %v388
  %v460 = vunpack.c.l.b16 %v389
  %v461 = vunpack.c.h.b16 %v389
  %v462 = vunpack.c.l.b16 %v390
  %v463 = vunpack.c.h.b16 %v390
  %v464 = vunpack.c.l.b16 %v391
  %v465 = vunpack.c.h.b16 %v391
  %v466 = vunpack.c.l.b16 %v392
  %v467 = vunpack.c.h.b16 %v392
  %v468 = vunpack.c.l.b16 %v393
  %v469 = vunpack.c.h.b16 %v393
  %v470 = vunpack.c.l.b16 %v394
  %v471 = vunpack.c.h.b16 %v394
  %v472 = vunpack.c.l.b16 %v395
  %v473 = vunpack.c.h.b16 %v395
  %v474 = vunpack.c.l.b16 %v396
  %v475 = vunpack.c.h.b16 %v396
  %v476 = vunpack.c.l.b16 %v397
  %v477 = vunpack.c.h.b16 %v397
  %v478 = vunpack.c.l.b16 %v398
  %v479 = vunpack.c.h.b16 %v398
  %v480 = vunpack.c.l.b16 %v399
  %v481 = vunpack.c.h.b16 %v399
  %v482 = vunpack.c.l.b16 %v400
  %v483 = vunpack.c.h.b16 %v400
  %v484 = vunpack.c.l.b16 %v401
  %v485 = vunpack.c.h.b16 %v401
  %v486 = vunpack.c.l.b16 %v402
  %v487 = vunpack.c.h.b16 %v402
  %v488 = vunpack.c.l.b16 %v403
  %v489 = vunpack.c.h.b16 %v403
  %v490 = vunpack.c.l.b16 %v404
  %v491 = vunpack.c.h.b16 %v404
  %v492 = vunpack.c.l.b16 %v405
  %v493 = vunpack.c.h.b16 %v405
  %v494 = vunpack.c.l.b16 %v406
  %v495 = vunpack.c.h.b16 %v406
  %v496 = vunpack.c.l.b16 %v407
  %v497 = vunpack.c.h.b16 %v407
  %v498 = vunpack.c.l.b16 %v408
  %v499 = vunpack.c.h.b16 %v408
  %v500 = vunpack.c.l.b16 %v409
  %v501 = vunpack.c.h.b16 %v409
  %v502 = vunpack.c.l.b16 %v410
  %v503 = vunpack.c.h.b16 %v410
  %v504 = vunpack.c.l.b16 %v411
  %v505 = vunpack.c.h.b16 %v411
  %v506 = vunpack.c.l.b16 %v412
  %v507 = vunpack.c.h.b16 %v412
  %v508 = vunpack.c.l.b16 %v413
  %v509 = vunpack.c.h.b16 %v413
  %v510 = vpack.c.b16 %v450, %v446
  %v511 = vpack.c.b16 %v451, %v447
  %v512 = vpack.c.b16 %v452, %v448
  %v513 = vpack.c.b16 %v453, %v449
  %v514 = vpack.c.b16 %v458, %v454
  %v515 = vpack.c.b16 %v459, %v455
  %v516 = vpack.c.b16 %v460, %v456
  %v517 = vpack.c.b16 %v461, %v457
  %v518 = vpack.c.b16 %v466, %v462
  %v519 = vpack.c.b16 %v467, %v463
  %v520 = vpack.c.b16 %v468, %v464
  %v521 = vpack.c.b16 %v469, %v465
  %v522 = vpack.c.b16 %v474, %v470
  %v523 = vpack.c.b16 %v475, %v471
  %v524 = vpack.c.b16 %v476, %v472
  %v525 = vpack.c.b16 %v477, %v473
  %v526 = vpack.c.b16 %v482, %v478
  %v527 = vpack.c.b16 %v483, %v479
  %v528 = vpack.c.b16 %v484, %v480
  %v529 = vpack.c.b16 %v485, %v481
  %v530 = vpack.c.b16 %v490, %v486
  %v531 = vpack.c.b16 %v491, %v487
  %v532 = vpack.c.b16 %v492, %v488
  %v533 = vpack.c.b16 %v493, %v489
  %v534 = vpack.c.b16 %v498, %v494
  %v535 = vpack.c.b16 %v499, %v495
  %v536 = vpack.c.b16 %v500, %v496
  %v537 = vpack.c.b16 %v501, %v497
  %v538 = vpack.c.b16 %v506, %v502
  %v539 = vpack.c.b16 %v507, %v503
  %v540 = vpack.c.b16 %v508, %v504
  %v541 = vpack.c.b16 %v509, %v505
  %574 = vmatprep.subr.bf16.mxu0 %v511
  %575 = vmatpush1.bf16.msra.mxu0 %v510
  %576 = vmatprep.subr.bf16.mxu0 %v515
  %577 = vmatpush1.bf16.msra.mxu0 %v514
  %578 = vmatprep.subr.bf16.mxu0 %v519
  %579 = vmatpush1.bf16.msra.mxu0 %v518
  %580 = vmatprep.subr.bf16.mxu0 %v523
  %581 = vmatpush1.bf16.msra.mxu0 %v522
  %582 = vmatprep.subr.bf16.mxu0 %v527
  %583 = vmatpush1.bf16.msra.mxu0 %v526
  %584 = vmatprep.subr.bf16.mxu0 %v531
  %585 = vmatpush1.bf16.msra.mxu0 %v530
  %586 = vmatprep.subr.bf16.mxu0 %v535
  %587 = vmatpush1.bf16.msra.mxu0 %v534
  %588 = vmatprep.subr.bf16.mxu0 %v539
  %589 = vmatpush1.bf16.msra.mxu0 %v538
  %590 = vmatprep.subr.bf16.mxu0 0
  %591 = vmatpush1.bf16.msra.mxu0 0
  %592 = vmatprep.subr.bf16.mxu0 0
  %593 = vmatpush1.bf16.msra.mxu0 0
  %594 = vmatprep.subr.bf16.mxu0 0
  %595 = vmatpush1.bf16.msra.mxu0 0
  %596 = vmatprep.subr.bf16.mxu0 0
  %597 = vmatpush1.bf16.msra.mxu0 0
  %598 = vmatprep.subr.bf16.mxu0 0
  %599 = vmatpush1.bf16.msra.mxu0 0
  %600 = vmatprep.subr.bf16.mxu0 0
  %601 = vmatpush1.bf16.msra.mxu0 0
  %602 = vmatprep.subr.bf16.mxu0 0
  %603 = vmatpush1.bf16.msra.mxu0 0
  %604 = vmatprep.subr.bf16.mxu0 0
  %605 = vmatpush1.bf16.msra.mxu0 0
  %606 = vmatprep.mubr.bf16.mxu0 0
  %607 = vmatmul.mubr.bf16.gmra.mrb[0].mxu0 %v380
  %v608 = vpop.f32.mrb[0].mxu0
  %v609 = vadd.f32 0.0, %v608
  %v610 = vpop.f32.mrb[0].mxu0
  %v611 = vadd.f32 0.0, %v610
  %v612 = vpop.f32.mrb[0].mxu0
  %v613 = vpop.f32.mrb[0].mxu0
  %614 = vdwg.mxu0
  %615 = vmatprep.subr.bf16.mxu0 %v513
  %616 = vmatpush1.bf16.msra.mxu0 %v512
  %617 = vmatprep.subr.bf16.mxu0 %v517
  %618 = vmatpush1.bf16.msra.mxu0 %v516
  %619 = vmatprep.subr.bf16.mxu0 %v521
  %620 = vmatpush1.bf16.msra.mxu0 %v520
  %621 = vmatprep.subr.bf16.mxu0 %v525
  %622 = vmatpush1.bf16.msra.mxu0 %v524
  %623 = vmatprep.subr.bf16.mxu0 %v529
  %624 = vmatpush1.bf16.msra.mxu0 %v528
  %625 = vmatprep.subr.bf16.mxu0 %v533
  %626 = vmatpush1.bf16.msra.mxu0 %v532
  %627 = vmatprep.subr.bf16.mxu0 %v537
  %628 = vmatpush1.bf16.msra.mxu0 %v536
  %629 = vmatprep.subr.bf16.mxu0 %v541
  %630 = vmatpush1.bf16.msra.mxu0 %v540
  %631 = vmatprep.subr.bf16.mxu0 0
  %632 = vmatpush1.bf16.msra.mxu0 0
  %633 = vmatprep.subr.bf16.mxu0 0
  %634 = vmatpush1.bf16.msra.mxu0 0
  %635 = vmatprep.subr.bf16.mxu0 0
  %636 = vmatpush1.bf16.msra.mxu0 0
  %637 = vmatprep.subr.bf16.mxu0 0
  %638 = vmatpush1.bf16.msra.mxu0 0
  %639 = vmatprep.subr.bf16.mxu0 0
  %640 = vmatpush1.bf16.msra.mxu0 0
  %641 = vmatprep.subr.bf16.mxu0 0
  %642 = vmatpush1.bf16.msra.mxu0 0
  %643 = vmatprep.subr.bf16.mxu0 0
  %644 = vmatpush1.bf16.msra.mxu0 0
  %645 = vmatprep.subr.bf16.mxu0 0
  %646 = vmatpush1.bf16.msra.mxu0 0
  %647 = vmatprep.mubr.bf16.mxu0 0
  %648 = vmatmul.mubr.bf16.gmra.mrb[0].mxu0 %v380
  %v649 = vpop.f32.mrb[0].mxu0
  %v650 = vadd.f32 0.0, %v649
  %v651 = vpop.f32.mrb[0].mxu0
  %v652 = vadd.f32 0.0, %v651
  %v653 = vpop.f32.mrb[0].mxu0
  %v654 = vpop.f32.mrb[0].mxu0
  %655 = vdwg.mxu0
  %v656 = vadd.f32 %v376, %v609
  %v657 = vadd.f32 %v377, %v611
  %v658 = vadd.f32 %v378, %v650
  %v659 = vadd.f32 %v379, %v652
  %v660 = vmul.f32 %v656, 0.5
  %v661 = vtanh.pop %v660
  %v662 = vmul.f32 %v661, 0.5
  %v663 = vadd.f32 %v662, 0.5
  %v664 = vmul.f32 %v657, 0.5
  %v665 = vtanh.pop %v664
  %v666 = vmul.f32 %v665, 0.5
  %v667 = vadd.f32 %v666, 0.5
  %v668 = vtanh.pop %v658
  %v669 = vmul.f32 %v659, 0.5
  %v670 = vtanh.pop %v669
  %v671 = vmul.f32 %v670, 0.5
  %v672 = vadd.f32 %v671, 0.5
  %v673 = vmul.f32 %v667, %v67
  %v674 = vmul.f32 %v663, %v668
  %v675 = vadd.f32 %v673, %v674
  %v676 = vtanh.pop %v675
  %v677 = vmul.f32 %v672, %v676
  %v678 = vpack.c.bf16 %v677, %v677
  %s679 = scalar_lea.vmem %s52, 28
  %680 = vst [vmem:[%s679] sm:$0xf] %v678
  %s681 = scalar_lea.vmem %s0, 16
  %v682 = vld [vmem:[%s681] sm:$0xff]
  %v683 = vld [vmem:[%s681 + $0x8] sm:$0xff]
  %v684 = vunpack.c.l.bf16 %v682
  %v685 = vunpack.c.h.bf16 %v682
  %v686 = vunpack.c.l.bf16 %v683
  %v687 = vunpack.c.h.bf16 %v683
  %v688 = vld [vmem:[%s2] sm:$0xff]
  %v689 = vld [vmem:[%s2 + $0x8] sm:$0xff]
  %v690 = vld [vmem:[%s2 + $0x10] sm:$0xff]
  %v691 = vld [vmem:[%s2 + $0x18] sm:$0xff]
  %v692 = vld [vmem:[%s2 + $0x20] sm:$0xff]
  %v693 = vld [vmem:[%s2 + $0x28] sm:$0xff]
  %v694 = vld [vmem:[%s2 + $0x30] sm:$0xff]
  %v695 = vld [vmem:[%s2 + $0x38] sm:$0xff]
  %v696 = vld [vmem:[%s2 + $0x40] sm:$0xff]
  %v697 = vld [vmem:[%s2 + $0x48] sm:$0xff]
  %v698 = vld [vmem:[%s2 + $0x50] sm:$0xff]
  %v699 = vld [vmem:[%s2 + $0x58] sm:$0xff]
  %v700 = vld [vmem:[%s2 + $0x60] sm:$0xff]
  %v701 = vld [vmem:[%s2 + $0x68] sm:$0xff]
  %v702 = vld [vmem:[%s2 + $0x70] sm:$0xff]
  %v703 = vld [vmem:[%s2 + $0x78] sm:$0xff]
  %v704 = vld [vmem:[%s2 + $0x80] sm:$0xff]
  %v705 = vld [vmem:[%s2 + $0x88] sm:$0xff]
  %v706 = vld [vmem:[%s2 + $0x90] sm:$0xff]
  %v707 = vld [vmem:[%s2 + $0x98] sm:$0xff]
  %v708 = vld [vmem:[%s2 + $0xa0] sm:$0xff]
  %v709 = vld [vmem:[%s2 + $0xa8] sm:$0xff]
  %v710 = vld [vmem:[%s2 + $0xb0] sm:$0xff]
  %v711 = vld [vmem:[%s2 + $0xb8] sm:$0xff]
  %v712 = vld [vmem:[%s2 + $0xc0] sm:$0xff]
  %v713 = vld [vmem:[%s2 + $0xc8] sm:$0xff]
  %v714 = vld [vmem:[%s2 + $0xd0] sm:$0xff]
  %v715 = vld [vmem:[%s2 + $0xd8] sm:$0xff]
  %v716 = vld [vmem:[%s2 + $0xe0] sm:$0xff]
  %v717 = vld [vmem:[%s2 + $0xe8] sm:$0xff]
  %v718 = vld [vmem:[%s2 + $0xf0] sm:$0xff]
  %v719 = vld [vmem:[%s2 + $0xf8] sm:$0xff]
  %v752 = vunpack.c.l.b16 %v688
  %v753 = vunpack.c.h.b16 %v688
  %v754 = vunpack.c.l.b16 %v689
  %v755 = vunpack.c.h.b16 %v689
  %v756 = vunpack.c.l.b16 %v690
  %v757 = vunpack.c.h.b16 %v690
  %v758 = vunpack.c.l.b16 %v691
  %v759 = vunpack.c.h.b16 %v691
  %v760 = vunpack.c.l.b16 %v692
  %v761 = vunpack.c.h.b16 %v692
  %v762 = vunpack.c.l.b16 %v693
  %v763 = vunpack.c.h.b16 %v693
  %v764 = vunpack.c.l.b16 %v694
  %v765 = vunpack.c.h.b16 %v694
  %v766 = vunpack.c.l.b16 %v695
  %v767 = vunpack.c.h.b16 %v695
  %v768 = vunpack.c.l.b16 %v696
  %v769 = vunpack.c.h.b16 %v696
  %v770 = vunpack.c.l.b16 %v697
  %v771 = vunpack.c.h.b16 %v697
  %v772 = vunpack.c.l.b16 %v698
  %v773 = vunpack.c.h.b16 %v698
  %v774 = vunpack.c.l.b16 %v699
  %v775 = vunpack.c.h.b16 %v699
  %v776 = vunpack.c.l.b16 %v700
  %v777 = vunpack.c.h.b16 %v700
  %v778 = vunpack.c.l.b16 %v701
  %v779 = vunpack.c.h.b16 %v701
  %v780 = vunpack.c.l.b16 %v702
  %v781 = vunpack.c.h.b16 %v702
  %v782 = vunpack.c.l.b16 %v703
  %v783 = vunpack.c.h.b16 %v703
  %v784 = vunpack.c.l.b16 %v704
  %v785 = vunpack.c.h.b16 %v704
  %v786 = vunpack.c.l.b16 %v705
  %v787 = vunpack.c.h.b16 %v705
  %v788 = vunpack.c.l.b16 %v706
  %v789 = vunpack.c.h.b16 %v706
  %v790 = vunpack.c.l.b16 %v707
  %v791 = vunpack.c.h.b16 %v707
  %v792 = vunpack.c.l.b16 %v708
  %v793 = vunpack.c.h.b16 %v708
  %v794 = vunpack.c.l.b16 %v709
  %v795 = vunpack.c.h.b16 %v709
  %v796 = vunpack.c.l.b16 %v710
  %v797 = vunpack.c.h.b16 %v710
  %v798 = vunpack.c.l.b16 %v711
  %v799 = vunpack.c.h.b16 %v711
  %v800 = vunpack.c.l.b16 %v712
  %v801 = vunpack.c.h.b16 %v712
  %v802 = vunpack.c.l.b16 %v713
  %v803 = vunpack.c.h.b16 %v713
  %v804 = vunpack.c.l.b16 %v714
  %v805 = vunpack.c.h.b16 %v714
  %v806 = vunpack.c.l.b16 %v715
  %v807 = vunpack.c.h.b16 %v715
  %v808 = vunpack.c.l.b16 %v716
  %v809 = vunpack.c.h.b16 %v716
  %v810 = vunpack.c.l.b16 %v717
  %v811 = vunpack.c.h.b16 %v717
  %v812 = vunpack.c.l.b16 %v718
  %v813 = vunpack.c.h.b16 %v718
  %v814 = vunpack.c.l.b16 %v719
  %v815 = vunpack.c.h.b16 %v719
  %v816 = vpack.c.b16 %v756, %v752
  %v817 = vpack.c.b16 %v757, %v753
  %v818 = vpack.c.b16 %v758, %v754
  %v819 = vpack.c.b16 %v759, %v755
  %v820 = vpack.c.b16 %v764, %v760
  %v821 = vpack.c.b16 %v765, %v761
  %v822 = vpack.c.b16 %v766, %v762
  %v823 = vpack.c.b16 %v767, %v763
  %v824 = vpack.c.b16 %v772, %v768
  %v825 = vpack.c.b16 %v773, %v769
  %v826 = vpack.c.b16 %v774, %v770
  %v827 = vpack.c.b16 %v775, %v771
  %v828 = vpack.c.b16 %v780, %v776
  %v829 = vpack.c.b16 %v781, %v777
  %v830 = vpack.c.b16 %v782, %v778
  %v831 = vpack.c.b16 %v783, %v779
  %v832 = vpack.c.b16 %v788, %v784
  %v833 = vpack.c.b16 %v789, %v785
  %v834 = vpack.c.b16 %v790, %v786
  %v835 = vpack.c.b16 %v791, %v787
  %v836 = vpack.c.b16 %v796, %v792
  %v837 = vpack.c.b16 %v797, %v793
  %v838 = vpack.c.b16 %v798, %v794
  %v839 = vpack.c.b16 %v799, %v795
  %v840 = vpack.c.b16 %v804, %v800
  %v841 = vpack.c.b16 %v805, %v801
  %v842 = vpack.c.b16 %v806, %v802
  %v843 = vpack.c.b16 %v807, %v803
  %v844 = vpack.c.b16 %v812, %v808
  %v845 = vpack.c.b16 %v813, %v809
  %v846 = vpack.c.b16 %v814, %v810
  %v847 = vpack.c.b16 %v815, %v811
  %880 = vmatprep.subr.bf16.mxu0 %v817
  %881 = vmatpush1.bf16.msra.mxu0 %v816
  %882 = vmatprep.subr.bf16.mxu0 %v821
  %883 = vmatpush1.bf16.msra.mxu0 %v820
  %884 = vmatprep.subr.bf16.mxu0 %v825
  %885 = vmatpush1.bf16.msra.mxu0 %v824
  %886 = vmatprep.subr.bf16.mxu0 %v829
  %887 = vmatpush1.bf16.msra.mxu0 %v828
  %888 = vmatprep.subr.bf16.mxu0 %v833
  %889 = vmatpush1.bf16.msra.mxu0 %v832
  %890 = vmatprep.subr.bf16.mxu0 %v837
  %891 = vmatpush1.bf16.msra.mxu0 %v836
  %892 = vmatprep.subr.bf16.mxu0 %v841
  %893 = vmatpush1.bf16.msra.mxu0 %v840
  %894 = vmatprep.subr.bf16.mxu0 %v845
  %895 = vmatpush1.bf16.msra.mxu0 %v844
  %896 = vmatprep.subr.bf16.mxu0 0
  %897 = vmatpush1.bf16.msra.mxu0 0
  %898 = vmatprep.subr.bf16.mxu0 0
  %899 = vmatpush1.bf16.msra.mxu0 0
  %900 = vmatprep.subr.bf16.mxu0 0
  %901 = vmatpush1.bf16.msra.mxu0 0
  %902 = vmatprep.subr.bf16.mxu0 0
  %903 = vmatpush1.bf16.msra.mxu0 0
  %904 = vmatprep.subr.bf16.mxu0 0
  %905 = vmatpush1.bf16.msra.mxu0 0
  %906 = vmatprep.subr.bf16.mxu0 0
  %907 = vmatpush1.bf16.msra.mxu0 0
  %908 = vmatprep.subr.bf16.mxu0 0
  %909 = vmatpush1.bf16.msra.mxu0 0
  %910 = vmatprep.subr.bf16.mxu0 0
  %911 = vmatpush1.bf16.msra.mxu0 0
  %912 = vmatprep.mubr.bf16.mxu0 0
  %913 = vmatmul.mubr.bf16.gmra.mrb[0].mxu0 %v371
  %v914 = vpop.f32.mrb[0].mxu0
  %v915 = vadd.f32 0.0, %v914
  %v916 = vpop.f32.mrb[0].mxu0
  %v917 = vadd.f32 0.0, %v916
  %v918 = vpop.f32.mrb[0].mxu0
  %v919 = vpop.f32.mrb[0].mxu0
  %920 = vdwg.mxu0
  %921 = vmatprep.subr.bf16.mxu0 %v819
  %922 = vmatpush1.bf16.msra.mxu0 %v818
  %923 = vmatprep.subr.bf16.mxu0 %v823
  %924 = vmatpush1.bf16.msra.mxu0 %v822
  %925 = vmatprep.subr.bf16.mxu0 %v827
  %926 = vmatpush1.bf16.msra.mxu0 %v826
  %927 = vmatprep.subr.bf16.mxu0 %v831
  %928 = vmatpush1.bf16.msra.mxu0 %v830
  %929 = vmatprep.subr.bf16.mxu0 %v835
  %930 = vmatpush1.bf16.msra.mxu0 %v834
  %931 = vmatprep.subr.bf16.mxu0 %v839
  %932 = vmatpush1.bf16.msra.mxu0 %v838
  %933 = vmatprep.subr.bf16.mxu0 %v843
  %934 = vmatpush1.bf16.msra.mxu0 %v842
  %935 = vmatprep.subr.bf16.mxu0 %v847
  %936 = vmatpush1.bf16.msra.mxu0 %v846
  %937 = vmatprep.subr.bf16.mxu0 0
  %938 = vmatpush1.bf16.msra.mxu0 0
  %939 = vmatprep.subr.bf16.mxu0 0
  %940 = vmatpush1.bf16.msra.mxu0 0
  %941 = vmatprep.subr.bf16.mxu0 0
  %942 = vmatpush1.bf16.msra.mxu0 0
  %943 = vmatprep.subr.bf16.mxu0 0
  %944 = vmatpush1.bf16.msra.mxu0 0
  %945 = vmatprep.subr.bf16.mxu0 0
  %946 = vmatpush1.bf16.msra.mxu0 0
  %947 = vmatprep.subr.bf16.mxu0 0
  %948 = vmatpush1.bf16.msra.mxu0 0
  %949 = vmatprep.subr.bf16.mxu0 0
  %950 = vmatpush1.bf16.msra.mxu0 0
  %951 = vmatprep.subr.bf16.mxu0 0
  %952 = vmatpush1.bf16.msra.mxu0 0
  %953 = vmatprep.mubr.bf16.mxu0 0
  %954 = vmatmul.mubr.bf16.gmra.mrb[0].mxu0 %v371
  %v955 = vpop.f32.mrb[0].mxu0
  %v956 = vadd.f32 0.0, %v955
  %v957 = vpop.f32.mrb[0].mxu0
  %v958 = vadd.f32 0.0, %v957
  %v959 = vpop.f32.mrb[0].mxu0
  %v960 = vpop.f32.mrb[0].mxu0
  %961 = vdwg.mxu0
  %v962 = vadd.f32 %v684, %v915
  %v963 = vadd.f32 %v685, %v917
  %v964 = vadd.f32 %v686, %v956
  %v965 = vadd.f32 %v687, %v958
  %v966 = vmul.f32 %v962, 0.5
  %v967 = vtanh.pop %v966
  %v968 = vmul.f32 %v967, 0.5
  %v969 = vadd.f32 %v968, 0.5
  %v970 = vmul.f32 %v963, 0.5
  %v971 = vtanh.pop %v970
  %v972 = vmul.f32 %v971, 0.5
  %v973 = vadd.f32 %v972, 0.5
  %v974 = vtanh.pop %v964
  %v975 = vmul.f32 %v965, 0.5
  %v976 = vtanh.pop %v975
  %v977 = vmul.f32 %v976, 0.5
  %v978 = vadd.f32 %v977, 0.5
  %v979 = vmul.f32 %v973, %v368
  %v980 = vmul.f32 %v969, %v974
  %v981 = vadd.f32 %v979, %v980
  %v982 = vtanh.pop %v981
  %v983 = vmul.f32 %v978, %v982
  %v984 = vpack.c.bf16 %v983, %v983
  %s985 = scalar_lea.vmem %s3, 4
  %986 = vst [vmem:[%s985] sm:$0xf] %v984
  %s987 = scalar_lea.vmem %s44, 96
  %v988 = vld [vmem:[%s987] sm:$0xff]
  %v989 = vld [vmem:[%s987 + $0x8] sm:$0xff]
  %v990 = vunpack.c.l.bf16 %v988
  %v991 = vunpack.c.h.bf16 %v988
  %v992 = vunpack.c.l.bf16 %v989
  %v993 = vunpack.c.h.bf16 %v989
  %v994 = vld [vmem:[%s381] sm:$0xff]
  %v995 = vld [vmem:[%s381 + $0x8] sm:$0xff]
  %v996 = vld [vmem:[%s381 + $0x10] sm:$0xff]
  %v997 = vld [vmem:[%s381 + $0x18] sm:$0xff]
  %v998 = vld [vmem:[%s381 + $0x20] sm:$0xff]
  %v999 = vld [vmem:[%s381 + $0x28] sm:$0xff]
  %v1000 = vld [vmem:[%s381 + $0x30] sm:$0xff]
  %v1001 = vld [vmem:[%s381 + $0x38] sm:$0xff]
  %v1002 = vld [vmem:[%s381 + $0x40] sm:$0xff]
  %v1003 = vld [vmem:[%s381 + $0x48] sm:$0xff]
  %v1004 = vld [vmem:[%s381 + $0x50] sm:$0xff]
  %v1005 = vld [vmem:[%s381 + $0x58] sm:$0xff]
  %v1006 = vld [vmem:[%s381 + $0x60] sm:$0xff]
  %v1007 = vld [vmem:[%s381 + $0x68] sm:$0xff]
  %v1008 = vld [vmem:[%s381 + $0x70] sm:$0xff]
  %v1009 = vld [vmem:[%s381 + $0x78] sm:$0xff]
  %v1010 = vld [vmem:[%s381 + $0x80] sm:$0xff]
  %v1011 = vld [vmem:[%s381 + $0x88] sm:$0xff]
  %v1012 = vld [vmem:[%s381 + $0x90] sm:$0xff]
  %v1013 = vld [vmem:[%s381 + $0x98] sm:$0xff]
  %v1014 = vld [vmem:[%s381 + $0xa0] sm:$0xff]
  %v1015 = vld [vmem:[%s381 + $0xa8] sm:$0xff]
  %v1016 = vld [vmem:[%s381 + $0xb0] sm:$0xff]
  %v1017 = vld [vmem:[%s381 + $0xb8] sm:$0xff]
  %v1018 = vld [vmem:[%s381 + $0xc0] sm:$0xff]
  %v1019 = vld [vmem:[%s381 + $0xc8] sm:$0xff]
  %v1020 = vld [vmem:[%s381 + $0xd0] sm:$0xff]
  %v1021 = vld [vmem:[%s381 + $0xd8] sm:$0xff]
  %v1022 = vld [vmem:[%s381 + $0xe0] sm:$0xff]
  %v1023 = vld [vmem:[%s381 + $0xe8] sm:$0xff]
  %v1024 = vld [vmem:[%s381 + $0xf0] sm:$0xff]
  %v1025 = vld [vmem:[%s381 + $0xf8] sm:$0xff]
  %v1058 = vunpack.c.l.b16 %v994
  %v1059 = vunpack.c.h.b16 %v994
  %v1060 = vunpack.c.l.b16 %v995
  %v1061 = vunpack.c.h.b16 %v995
  %v1062 = vunpack.c.l.b16 %v996
  %v1063 = vunpack.c.h.b16 %v996
  %v1064 = vunpack.c.l.b16 %v997
  %v1065 = vunpack.c.h.b16 %v997
  %v1066 = vunpack.c.l.b16 %v998
  %v1067 = vunpack.c.h.b16 %v998
  %v1068 = vunpack.c.l.b16 %v999
  %v1069 = vunpack.c.h.b16 %v999
  %v1070 = vunpack.c.l.b16 %v1000
  %v1071 = vunpack.c.h.b16 %v1000
  %v1072 = vunpack.c.l.b16 %v1001
  %v1073 = vunpack.c.h.b16 %v1001
  %v1074 = vunpack.c.l.b16 %v1002
  %v1075 = vunpack.c.h.b16 %v1002
  %v1076 = vunpack.c.l.b16 %v1003
  %v1077 = vunpack.c.h.b16 %v1003
  %v1078 = vunpack.c.l.b16 %v1004
  %v1079 = vunpack.c.h.b16 %v1004
  %v1080 = vunpack.c.l.b16 %v1005
  %v1081 = vunpack.c.h.b16 %v1005
  %v1082 = vunpack.c.l.b16 %v1006
  %v1083 = vunpack.c.h.b16 %v1006
  %v1084 = vunpack.c.l.b16 %v1007
  %v1085 = vunpack.c.h.b16 %v1007
  %v1086 = vunpack.c.l.b16 %v1008
  %v1087 = vunpack.c.h.b16 %v1008
  %v1088 = vunpack.c.l.b16 %v1009
  %v1089 = vunpack.c.h.b16 %v1009
  %v1090 = vunpack.c.l.b16 %v1010
  %v1091 = vunpack.c.h.b16 %v1010
  %v1092 = vunpack.c.l.b16 %v1011
  %v1093 = vunpack.c.h.b16 %v1011
  %v1094 = vunpack.c.l.b16 %v1012
  %v1095 = vunpack.c.h.b16 %v1012
  %v1096 = vunpack.c.l.b16 %v1013
  %v1097 = vunpack.c.h.b16 %v1013
  %v1098 = vunpack.c.l.b16 %v1014
  %v1099 = vunpack.c.h.b16 %v1014
  %v1100 = vunpack.c.l.b16 %v1015
  %v1101 = vunpack.c.h.b16 %v1015
  %v1102 = vunpack.c.l.b16 %v1016
  %v1103 = vunpack.c.h.b16 %v1016
  %v1104 = vunpack.c.l.b16 %v1017
  %v1105 = vunpack.c.h.b16 %v1017
  %v1106 = vunpack.c.l.b16 %v1018
  %v1107 = vunpack.c.h.b16 %v1018
  %v1108 = vunpack.c.l.b16 %v1019
  %v1109 = vunpack.c.h.b16 %v1019
  %v1110 = vunpack.c.l.b16 %v1020
  %v1111 = vunpack.c.h.b16 %v1020
  %v1112 = vunpack.c.l.b16 %v1021
  %v1113 = vunpack.c.h.b16 %v1021
  %v1114 = vunpack.c.l.b16 %v1022
  %v1115 = vunpack.c.h.b16 %v1022
  %v1116 = vunpack.c.l.b16 %v1023
  %v1117 = vunpack.c.h.b16 %v1023
  %v1118 = vunpack.c.l.b16 %v1024
  %v1119 = vunpack.c.h.b16 %v1024
  %v1120 = vunpack.c.l.b16 %v1025
  %v1121 = vunpack.c.h.b16 %v1025
  %v1122 = vpack.c.b16 %v1062, %v1058
  %v1123 = vpack.c.b16 %v1063, %v1059
  %v1124 = vpack.c.b16 %v1064, %v1060
  %v1125 = vpack.c.b16 %v1065, %v1061
  %v1126 = vpack.c.b16 %v1070, %v1066
  %v1127 = vpack.c.b16 %v1071, %v1067
  %v1128 = vpack.c.b16 %v1072, %v1068
  %v1129 = vpack.c.b16 %v1073, %v1069
  %v1130 = vpack.c.b16 %v1078, %v1074
  %v1131 = vpack.c.b16 %v1079, %v1075
  %v1132 = vpack.c.b16 %v1080, %v1076
  %v1133 = vpack.c.b16 %v1081, %v1077
  %v1134 = vpack.c.b16 %v1086, %v1082
  %v1135 = vpack.c.b16 %v1087, %v1083
  %v1136 = vpack.c.b16 %v1088, %v1084
  %v1137 = vpack.c.b16 %v1089, %v1085
  %v1138 = vpack.c.b16 %v1094, %v1090
  %v1139 = vpack.c.b16 %v1095, %v1091
  %v1140 = vpack.c.b16 %v1096, %v1092
  %v1141 = vpack.c.b16 %v1097, %v1093
  %v1142 = vpack.c.b16 %v1102, %v1098
  %v1143 = vpack.c.b16 %v1103, %v1099
  %v1144 = vpack.c.b16 %v1104, %v1100
  %v1145 = vpack.c.b16 %v1105, %v1101
  %v1146 = vpack.c.b16 %v1110, %v1106
  %v1147 = vpack.c.b16 %v1111, %v1107
  %v1148 = vpack.c.b16 %v1112, %v1108
  %v1149 = vpack.c.b16 %v1113, %v1109
  %v1150 = vpack.c.b16 %v1118, %v1114
  %v1151 = vpack.c.b16 %v1119, %v1115
  %v1152 = vpack.c.b16 %v1120, %v1116
  %v1153 = vpack.c.b16 %v1121, %v1117
  %1186 = vmatprep.subr.bf16.mxu0 %v1123
  %1187 = vmatpush1.bf16.msra.mxu0 %v1122
  %1188 = vmatprep.subr.bf16.mxu0 %v1127
  %1189 = vmatpush1.bf16.msra.mxu0 %v1126
  %1190 = vmatprep.subr.bf16.mxu0 %v1131
  %1191 = vmatpush1.bf16.msra.mxu0 %v1130
  %1192 = vmatprep.subr.bf16.mxu0 %v1135
  %1193 = vmatpush1.bf16.msra.mxu0 %v1134
  %1194 = vmatprep.subr.bf16.mxu0 %v1139
  %1195 = vmatpush1.bf16.msra.mxu0 %v1138
  %1196 = vmatprep.subr.bf16.mxu0 %v1143
  %1197 = vmatpush1.bf16.msra.mxu0 %v1142
  %1198 = vmatprep.subr.bf16.mxu0 %v1147
  %1199 = vmatpush1.bf16.msra.mxu0 %v1146
  %1200 = vmatprep.subr.bf16.mxu0 %v1151
  %1201 = vmatpush1.bf16.msra.mxu0 %v1150
  %1202 = vmatprep.subr.bf16.mxu0 0
  %1203 = vmatpush1.bf16.msra.mxu0 0
  %1204 = vmatprep.subr.bf16.mxu0 0
  %1205 = vmatpush1.bf16.msra.mxu0 0
  %1206 = vmatprep.subr.bf16.mxu0 0
  %1207 = vmatpush1.bf16.msra.mxu0 0
  %1208 = vmatprep.subr.bf16.mxu0 0
  %1209 = vmatpush1.bf16.msra.mxu0 0
  %1210 = vmatprep.subr.bf16.mxu0 0
  %1211 = vmatpush1.bf16.msra.mxu0 0
  %1212 = vmatprep.subr.bf16.mxu0 0
  %1213 = vmatpush1.bf16.msra.mxu0 0
  %1214 = vmatprep.subr.bf16.mxu0 0
  %1215 = vmatpush1.bf16.msra.mxu0 0
  %1216 = vmatprep.subr.bf16.mxu0 0
  %1217 = vmatpush1.bf16.msra.mxu0 0
  %1218 = vmatprep.mubr.bf16.mxu0 0
  %1219 = vmatmul.mubr.bf16.gmra.mrb[0].mxu0 %v678
  %v1220 = vpop.f32.mrb[0].mxu0
  %v1221 = vadd.f32 0.0, %v1220
  %v1222 = vpop.f32.mrb[0].mxu0
  %v1223 = vadd.f32 0.0, %v1222
  %v1224 = vpop.f32.mrb[0].mxu0
  %v1225 = vpop.f32.mrb[0].mxu0
  %1226 = vdwg.mxu0
  %1227 = vmatprep.subr.bf16.mxu0 %v1125
  %1228 = vmatpush1.bf16.msra.mxu0 %v1124
  %1229 = vmatprep.subr.bf16.mxu0 %v1129
  %1230 = vmatpush1.bf16.msra.mxu0 %v1128
  %1231 = vmatprep.subr.bf16.mxu0 %v1133
  %1232 = vmatpush1.bf16.msra.mxu0 %v1132
  %1233 = vmatprep.subr.bf16.mxu0 %v1137
  %1234 = vmatpush1.bf16.msra.mxu0 %v1136
  %1235 = vmatprep.subr.bf16.mxu0 %v1141
  %1236 = vmatpush1.bf16.msra.mxu0 %v1140
  %1237 = vmatprep.subr.bf16.mxu0 %v1145
  %1238 = vmatpush1.bf16.msra.mxu0 %v1144
  %1239 = vmatprep.subr.bf16.mxu0 %v1149
  %1240 = vmatpush1.bf16.msra.mxu0 %v1148
  %1241 = vmatprep.subr.bf16.mxu0 %v1153
  %1242 = vmatpush1.bf16.msra.mxu0 %v1152
  %1243 = vmatprep.subr.bf16.mxu0 0
  %1244 = vmatpush1.bf16.msra.mxu0 0
  %1245 = vmatprep.subr.bf16.mxu0 0
  %1246 = vmatpush1.bf16.msra.mxu0 0
  %1247 = vmatprep.subr.bf16.mxu0 0
  %1248 = vmatpush1.bf16.msra.mxu0 0
  %1249 = vmatprep.subr.bf16.mxu0 0
  %1250 = vmatpush1.bf16.msra.mxu0 0
  %1251 = vmatprep.subr.bf16.mxu0 0
  %1252 = vmatpush1.bf16.msra.mxu0 0
  %1253 = vmatprep.subr.bf16.mxu0 0
  %1254 = vmatpush1.bf16.msra.mxu0 0
  %1255 = vmatprep.subr.bf16.mxu0 0
  %1256 = vmatpush1.bf16.msra.mxu0 0
  %1257 = vmatprep.subr.bf16.mxu0 0
  %1258 = vmatpush1.bf16.msra.mxu0 0
  %1259 = vmatprep.mubr.bf16.mxu0 0
  %1260 = vmatmul.mubr.bf16.gmra.mrb[0].mxu0 %v678
  %v1261 = vpop.f32.mrb[0].mxu0
  %v1262 = vadd.f32 0.0, %v1261
  %v1263 = vpop.f32.mrb[0].mxu0
  %v1264 = vadd.f32 0.0, %v1263
  %v1265 = vpop.f32.mrb[0].mxu0
  %v1266 = vpop.f32.mrb[0].mxu0
  %1267 = vdwg.mxu0
  %v1268 = vadd.f32 %v990, %v1221
  %v1269 = vadd.f32 %v991, %v1223
  %v1270 = vadd.f32 %v992, %v1262
  %v1271 = vadd.f32 %v993, %v1264
  %v1272 = vmul.f32 %v1268, 0.5
  %v1273 = vtanh.pop %v1272
  %v1274 = vmul.f32 %v1273, 0.5
  %v1275 = vadd.f32 %v1274, 0.5
  %v1276 = vmul.f32 %v1269, 0.5
  %v1277 = vtanh.pop %v1276
  %v1278 = vmul.f32 %v1277, 0.5
  %v1279 = vadd.f32 %v1278, 0.5
  %v1280 = vtanh.pop %v1270
  %v1281 = vmul.f32 %v1271, 0.5
  %v1282 = vtanh.pop %v1281
  %v1283 = vmul.f32 %v1282, 0.5
  %v1284 = vadd.f32 %v1283, 0.5
  %v1285 = vmul.f32 %v1279, %v675
  %v1286 = vmul.f32 %v1275, %v1280
  %v1287 = vadd.f32 %v1285, %v1286
  %v1288 = vtanh.pop %v1287
  %v1289 = vmul.f32 %v1284, %v1288
  %v1290 = vpack.c.bf16 %v1289, %v1289
  %s1291 = scalar_lea.vmem %s52, 24
  %1292 = vst [vmem:[%s1291] sm:$0xf] %v1290
  %s1293 = scalar_lea.vmem %s0, 32
  %v1294 = vld [vmem:[%s1293] sm:$0xff]
  %v1295 = vld [vmem:[%s1293 + $0x8] sm:$0xff]
  %v1296 = vunpack.c.l.bf16 %v1294
  %v1297 = vunpack.c.h.bf16 %v1294
  %v1298 = vunpack.c.l.bf16 %v1295
  %v1299 = vunpack.c.h.bf16 %v1295
  %v1300 = vld [vmem:[%s2] sm:$0xff]
  %v1301 = vld [vmem:[%s2 + $0x8] sm:$0xff]
  %v1302 = vld [vmem:[%s2 + $0x10] sm:$0xff]
  %v1303 = vld [vmem:[%s2 + $0x18] sm:$0xff]
  %v1304 = vld [vmem:[%s2 + $0x20] sm:$0xff]
  %v1305 = vld [vmem:[%s2 + $0x28] sm:$0xff]
  %v1306 = vld [vmem:[%s2 + $0x30] sm:$0xff]
  %v1307 = vld [vmem:[%s2 + $0x38] sm:$0xff]
  %v1308 = vld [vmem:[%s2 + $0x40] sm:$0xff]
  %v1309 = vld [vmem:[%s2 + $0x48] sm:$0xff]
  %v1310 = vld [vmem:[%s2 + $0x50] sm:$0xff]
  %v1311 = vld [vmem:[%s2 + $0x58] sm:$0xff]
  %v1312 = vld [vmem:[%s2 + $0x60] sm:$0xff]
  %v1313 = vld [vmem:[%s2 + $0x68] sm:$0xff]
  %v1314 = vld [vmem:[%s2 + $0x70] sm:$0xff]
  %v1315 = vld [vmem:[%s2 + $0x78] sm:$0xff]
  %v1316 = vld [vmem:[%s2 + $0x80] sm:$0xff]
  %v1317 = vld [vmem:[%s2 + $0x88] sm:$0xff]
  %v1318 = vld [vmem:[%s2 + $0x90] sm:$0xff]
  %v1319 = vld [vmem:[%s2 + $0x98] sm:$0xff]
  %v1320 = vld [vmem:[%s2 + $0xa0] sm:$0xff]
  %v1321 = vld [vmem:[%s2 + $0xa8] sm:$0xff]
  %v1322 = vld [vmem:[%s2 + $0xb0] sm:$0xff]
  %v1323 = vld [vmem:[%s2 + $0xb8] sm:$0xff]
  %v1324 = vld [vmem:[%s2 + $0xc0] sm:$0xff]
  %v1325 = vld [vmem:[%s2 + $0xc8] sm:$0xff]
  %v1326 = vld [vmem:[%s2 + $0xd0] sm:$0xff]
  %v1327 = vld [vmem:[%s2 + $0xd8] sm:$0xff]
  %v1328 = vld [vmem:[%s2 + $0xe0] sm:$0xff]
  %v1329 = vld [vmem:[%s2 + $0xe8] sm:$0xff]
  %v1330 = vld [vmem:[%s2 + $0xf0] sm:$0xff]
  %v1331 = vld [vmem:[%s2 + $0xf8] sm:$0xff]
  %v1364 = vunpack.c.l.b16 %v1300
  %v1365 = vunpack.c.h.b16 %v1300
  %v1366 = vunpack.c.l.b16 %v1301
  %v1367 = vunpack.c.h.b16 %v1301
  %v1368 = vunpack.c.l.b16 %v1302
  %v1369 = vunpack.c.h.b16 %v1302
  %v1370 = vunpack.c.l.b16 %v1303
  %v1371 = vunpack.c.h.b16 %v1303
  %v1372 = vunpack.c.l.b16 %v1304
  %v1373 = vunpack.c.h.b16 %v1304
  %v1374 = vunpack.c.l.b16 %v1305
  %v1375 = vunpack.c.h.b16 %v1305
  %v1376 = vunpack.c.l.b16 %v1306
  %v1377 = vunpack.c.h.b16 %v1306
  %v1378 = vunpack.c.l.b16 %v1307
  %v1379 = vunpack.c.h.b16 %v1307
  %v1380 = vunpack.c.l.b16 %v1308
  %v1381 = vunpack.c.h.b16 %v1308
  %v1382 = vunpack.c.l.b16 %v1309
  %v1383 = vunpack.c.h.b16 %v1309
  %v1384 = vunpack.c.l.b16 %v1310
  %v1385 = vunpack.c.h.b16 %v1310
  %v1386 = vunpack.c.l.b16 %v1311
  %v1387 = vunpack.c.h.b16 %v1311
  %v1388 = vunpack.c.l.b16 %v1312
  %v1389 = vunpack.c.h.b16 %v1312
  %v1390 = vunpack.c.l.b16 %v1313
  %v1391 = vunpack.c.h.b16 %v1313
  %v1392 = vunpack.c.l.b16 %v1314
  %v1393 = vunpack.c.h.b16 %v1314
  %v1394 = vunpack.c.l.b16 %v1315
  %v1395 = vunpack.c.h.b16 %v1315
  %v1396 = vunpack.c.l.b16 %v1316
  %v1397 = vunpack.c.h.b16 %v1316
  %v1398 = vunpack.c.l.b16 %v1317
  %v1399 = vunpack.c.h.b16 %v1317
  %v1400 = vunpack.c.l.b16 %v1318
  %v1401 = vunpack.c.h.b16 %v1318
  %v1402 = vunpack.c.l.b16 %v1319
  %v1403 = vunpack.c.h.b16 %v1319
  %v1404 = vunpack.c.l.b16 %v1320
  %v1405 = vunpack.c.h.b16 %v1320
  %v1406 = vunpack.c.l.b16 %v1321
  %v1407 = vunpack.c.h.b16 %v1321
  %v1408 = vunpack.c.l.b16 %v1322
  %v1409 = vunpack.c.h.b16 %v1322
  %v1410 = vunpack.c.l.b16 %v1323
  %v1411 = vunpack.c.h.b16 %v1323
  %v1412 = vunpack.c.l.b16 %v1324
  %v1413 = vunpack.c.h.b16 %v1324
  %v1414 = vunpack.c.l.b16 %v1325
  %v1415 = vunpack.c.h.b16 %v1325
  %v1416 = vunpack.c.l.b16 %v1326
  %v1417 = vunpack.c.h.b16 %v1326
  %v1418 = vunpack.c.l.b16 %v1327
  %v1419 = vunpack.c.h.b16 %v1327
  %v1420 = vunpack.c.l.b16 %v1328
  %v1421 = vunpack.c.h.b16 %v1328
  %v1422 = vunpack.c.l.b16 %v1329
  %v1423 = vunpack.c.h.b16 %v1329
  %v1424 = vunpack.c.l.b16 %v1330
  %v1425 = vunpack.c.h.b16 %v1330
  %v1426 = vunpack.c.l.b16 %v1331
  %v1427 = vunpack.c.h.b16 %v1331
  %v1428 = vpack.c.b16 %v1368, %v1364
  %v1429 = vpack.c.b16 %v1369, %v1365
  %v1430 = vpack.c.b16 %v1370, %v1366
  %v1431 = vpack.c.b16 %v1371, %v1367
  %v1432 = vpack.c.b16 %v1376, %v1372
  %v1433 = vpack.c.b16 %v1377, %v1373
  %v1434 = vpack.c.b16 %v1378, %v1374
  %v1435 = vpack.c.b16 %v1379, %v1375
  %v1436 = vpack.c.b16 %v1384, %v1380
  %v1437 = vpack.c.b16 %v1385, %v1381
  %v1438 = vpack.c.b16 %v1386, %v1382
  %v1439 = vpack.c.b16 %v1387, %v1383
  %v1440 = vpack.c.b16 %v1392, %v1388
  %v1441 = vpack.c.b16 %v1393, %v1389
  %v1442 = vpack.c.b16 %v1394, %v1390
  %v1443 = vpack.c.b16 %v1395, %v1391
  %v1444 = vpack.c.b16 %v1400, %v1396
  %v1445 = vpack.c.b16 %v1401, %v1397
  %v1446 = vpack.c.b16 %v1402, %v1398
  %v1447 = vpack.c.b16 %v1403, %v1399
  %v1448 = vpack.c.b16 %v1408, %v1404
  %v1449 = vpack.c.b16 %v1409, %v1405
  %v1450 = vpack.c.b16 %v1410, %v1406
  %v1451 = vpack.c.b16 %v1411, %v1407
  %v1452 = vpack.c.b16 %v1416, %v1412
  %v1453 = vpack.c.b16 %v1417, %v1413
  %v1454 = vpack.c.b16 %v1418, %v1414
  %v1455 = vpack.c.b16 %v1419, %v1415
  %v1456 = vpack.c.b16 %v1424, %v1420
  %v1457 = vpack.c.b16 %v1425, %v1421
  %v1458 = vpack.c.b16 %v1426, %v1422
  %v1459 = vpack.c.b16 %v1427, %v1423
  %1492 = vmatprep.subr.bf16.mxu0 %v1429
  %1493 = vmatpush1.bf16.msra.mxu0 %v1428
  %1494 = vmatprep.subr.bf16.mxu0 %v1433
  %1495 = vmatpush1.bf16.msra.mxu0 %v1432
  %1496 = vmatprep.subr.bf16.mxu0 %v1437
  %1497 = vmatpush1.bf16.msra.mxu0 %v1436
  %1498 = vmatprep.subr.bf16.mxu0 %v1441
  %1499 = vmatpush1.bf16.msra.mxu0 %v1440
  %1500 = vmatprep.subr.bf16.mxu0 %v1445
  %1501 = vmatpush1.bf16.msra.mxu0 %v1444
  %1502 = vmatprep.subr.bf16.mxu0 %v1449
  %1503 = vmatpush1.bf16.msra.mxu0 %v1448
  %1504 = vmatprep.subr.bf16.mxu0 %v1453
  %1505 = vmatpush1.bf16.msra.mxu0 %v1452
  %1506 = vmatprep.subr.bf16.mxu0 %v1457
  %1507 = vmatpush1.bf16.msra.mxu0 %v1456
  %1508 = vmatprep.subr.bf16.mxu0 0
  %1509 = vmatpush1.bf16.msra.mxu0 0
  %1510 = vmatprep.subr.bf16.mxu0 0
  %1511 = vmatpush1.bf16.msra.mxu0 0
  %1512 = vmatprep.subr.bf16.mxu0 0
  %1513 = vmatpush1.bf16.msra.mxu0 0
  %1514 = vmatprep.subr.bf16.mxu0 0
  %1515 = vmatpush1.bf16.msra.mxu0 0
  %1516 = vmatprep.subr.bf16.mxu0 0
  %1517 = vmatpush1.bf16.msra.mxu0 0
  %1518 = vmatprep.subr.bf16.mxu0 0
  %1519 = vmatpush1.bf16.msra.mxu0 0
  %1520 = vmatprep.subr.bf16.mxu0 0
  %1521 = vmatpush1.bf16.msra.mxu0 0
  %1522 = vmatprep.subr.bf16.mxu0 0
  %1523 = vmatpush1.bf16.msra.mxu0 0
  %1524 = vmatprep.mubr.bf16.mxu0 0
  %1525 = vmatmul.mubr.bf16.gmra.mrb[0].mxu0 %v984
  %v1526 = vpop.f32.mrb[0].mxu0
  %v1527 = vadd.f32 0.0, %v1526
  %v1528 = vpop.f32.mrb[0].mxu0
  %v1529 = vadd.f32 0.0, %v1528
  %v1530 = vpop.f32.mrb[0].mxu0
  %v1531 = vpop.f32.mrb[0].mxu0
  %1532 = vdwg.mxu0
  %1533 = vmatprep.subr.bf16.mxu0 %v1431
  %1534 = vmatpush1.bf16.msra.mxu0 %v1430
  %1535 = vmatprep.subr.bf16.mxu0 %v1435
  %1536 = vmatpush1.bf16.msra.mxu0 %v1434
  %1537 = vmatprep.subr.bf16.mxu0 %v1439
  %1538 = vmatpush1.bf16.msra.mxu0 %v1438
  %1539 = vmatprep.subr.bf16.mxu0 %v1443
  %1540 = vmatpush1.bf16.msra.mxu0 %v1442
  %1541 = vmatprep.subr.bf16.mxu0 %v1447
  %1542 = vmatpush1.bf16.msra.mxu0 %v1446
  %1543 = vmatprep.subr.bf16.mxu0 %v1451
  %1544 = vmatpush1.bf16.msra.mxu0 %v1450
  %1545 = vmatprep.subr.bf16.mxu0 %v1455
  %1546 = vmatpush1.bf16.msra.mxu0 %v1454
  %1547 = vmatprep.subr.bf16.mxu0 %v1459
  %1548 = vmatpush1.bf16.msra.mxu0 %v1458
  %1549 = vmatprep.subr.bf16.mxu0 0
  %1550 = vmatpush1.bf16.msra.mxu0 0
  %1551 = vmatprep.subr.bf16.mxu0 0
  %1552 = vmatpush1.bf16.msra.mxu0 0
  %1553 = vmatprep.subr.bf16.mxu0 0
  %1554 = vmatpush1.bf16.msra.mxu0 0
  %1555 = vmatprep.subr.bf16.mxu0 0
  %1556 = vmatpush1.bf16.msra.mxu0 0
  %1557 = vmatprep.subr.bf16.mxu0 0
  %1558 = vmatpush1.bf16.msra.mxu0 0
  %1559 = vmatprep.subr.bf16.mxu0 0
  %1560 = vmatpush1.bf16.msra.mxu0 0
  %1561 = vmatprep.subr.bf16.mxu0 0
  %1562 = vmatpush1.bf16.msra.mxu0 0
  %1563 = vmatprep.subr.bf16.mxu0 0
  %1564 = vmatpush1.bf16.msra.mxu0 0
  %1565 = vmatprep.mubr.bf16.mxu0 0
  %1566 = vmatmul.mubr.bf16.gmra.mrb[0].mxu0 %v984
  %v1567 = vpop.f32.mrb[0].mxu0
  %v1568 = vadd.f32 0.0, %v1567
  %v1569 = vpop.f32.mrb[0].mxu0
  %v1570 = vadd.f32 0.0, %v1569
  %v1571 = vpop.f32.mrb[0].mxu0
  %v1572 = vpop.f32.mrb[0].mxu0
  %1573 = vdwg.mxu0
  %v1574 = vadd.f32 %v1296, %v1527
  %v1575 = vadd.f32 %v1297, %v1529
  %v1576 = vadd.f32 %v1298, %v1568
  %v1577 = vadd.f32 %v1299, %v1570
  %v1578 = vmul.f32 %v1574, 0.5
  %v1579 = vtanh.pop %v1578
  %v1580 = vmul.f32 %v1579, 0.5
  %v1581 = vadd.f32 %v1580, 0.5
  %v1582 = vmul.f32 %v1575, 0.5
  %v1583 = vtanh.pop %v1582
  %v1584 = vmul.f32 %v1583, 0.5
  %v1585 = vadd.f32 %v1584, 0.5
  %v1586 = vtanh.pop %v1576
  %v1587 = vmul.f32 %v1577, 0.5
  %v1588 = vtanh.pop %v1587
  %v1589 = vmul.f32 %v1588, 0.5
  %v1590 = vadd.f32 %v1589, 0.5
  %v1591 = vmul.f32 %v1585, %v981
  %v1592 = vmul.f32 %v1581, %v1586
  %v1593 = vadd.f32 %v1591, %v1592
  %v1594 = vtanh.pop %v1593
  %v1595 = vmul.f32 %v1590, %v1594
  %v1596 = vpack.c.bf16 %v1595, %v1595
  %s1597 = scalar_lea.vmem %s3, 8
  %1598 = vst [vmem:[%s1597] sm:$0xf] %v1596
  %s1599 = scalar_lea.vmem %s44, 80
  %v1600 = vld [vmem:[%s1599] sm:$0xff]
  %v1601 = vld [vmem:[%s1599 + $0x8] sm:$0xff]
  %v1602 = vunpack.c.l.bf16 %v1600
  %v1603 = vunpack.c.h.bf16 %v1600
  %v1604 = vunpack.c.l.bf16 %v1601
  %v1605 = vunpack.c.h.bf16 %v1601
  %v1606 = vld [vmem:[%s381] sm:$0xff]
  %v1607 = vld [vmem:[%s381 + $0x8] sm:$0xff]
  %v1608 = vld [vmem:[%s381 + $0x10] sm:$0xff]
  %v1609 = vld [vmem:[%s381 + $0x18] sm:$0xff]
  %v1610 = vld [vmem:[%s381 + $0x20] sm:$0xff]
  %v1611 = vld [vmem:[%s381 + $0x28] sm:$0xff]
  %v1612 = vld [vmem:[%s381 + $0x30] sm:$0xff]
  %v1613 = vld [vmem:[%s381 + $0x38] sm:$0xff]
  %v1614 = vld [vmem:[%s381 + $0x40] sm:$0xff]
  %v1615 = vld [vmem:[%s381 + $0x48] sm:$0xff]
  %v1616 = vld [vmem:[%s381 + $0x50] sm:$0xff]
  %v1617 = vld [vmem:[%s381 + $0x58] sm:$0xff]
  %v1618 = vld [vmem:[%s381 + $0x60] sm:$0xff]
  %v1619 = vld [vmem:[%s381 + $0x68] sm:$0xff]
  %v1620 = vld [vmem:[%s381 + $0x70] sm:$0xff]
  %v1621 = vld [vmem:[%s381 + $0x78] sm:$0xff]
  %v1622 = vld [vmem:[%s381 + $0x80] sm:$0xff]
  %v1623 = vld [vmem:[%s381 + $0x88] sm:$0xff]
  %v1624 = vld [vmem:[%s381 + $0x90] sm:$0xff]
  %v1625 = vld [vmem:[%s381 + $0x98] sm:$0xff]
  %v1626 = vld [vmem:[%s381 + $0xa0] sm:$0xff]
  %v1627 = vld [vmem:[%s381 + $0xa8] sm:$0xff]
  %v1628 = vld [vmem:[%s381 + $0xb0] sm:$0xff]
  %v1629 = vld [vmem:[%s381 + $0xb8] sm:$0xff]
  %v1630 = vld [vmem:[%s381 + $0xc0] sm:$0xff]
  %v1631 = vld [vmem:[%s381 + $0xc8] sm:$0xff]
  %v1632 = vld [vmem:[%s381 + $0xd0] sm:$0xff]
  %v1633 = vld [vmem:[%s381 + $0xd8] sm:$0xff]
  %v1634 = vld [vmem:[%s381 + $0xe0] sm:$0xff]
  %v1635 = vld [vmem:[%s381 + $0xe8] sm:$0xff]
  %v1636 = vld [vmem:[%s381 + $0xf0] sm:$0xff]
  %v1637 = vld [vmem:[%s381 + $0xf8] sm:$0xff]
  %v1670 = vunpack.c.l.b16 %v1606
  %v1671 = vunpack.c.h.b16 %v1606
  %v1672 = vunpack.c.l.b16 %v1607
  %v1673 = vunpack.c.h.b16 %v1607
  %v1674 = vunpack.c.l.b16 %v1608
  %v1675 = vunpack.c.h.b16 %v1608
  %v1676 = vunpack.c.l.b16 %v1609
  %v1677 = vunpack.c.h.b16 %v1609
  %v1678 = vunpack.c.l.b16 %v1610
  %v1679 = vunpack.c.h.b16 %v1610
  %v1680 = vunpack.c.l.b16 %v1611
  %v1681 = vunpack.c.h.b16 %v1611
  %v1682 = vunpack.c.l.b16 %v1612
  %v1683 = vunpack.c.h.b16 %v1612
  %v1684 = vunpack.c.l.b16 %v1613
  %v1685 = vunpack.c.h.b16 %v1613
  %v1686 = vunpack.c.l.b16 %v1614
  %v1687 = vunpack.c.h.b16 %v1614
  %v1688 = vunpack.c.l.b16 %v1615
  %v1689 = vunpack.c.h.b16 %v1615
  %v1690 = vunpack.c.l.b16 %v1616
  %v1691 = vunpack.c.h.b16 %v1616
  %v1692 = vunpack.c.l.b16 %v1617
  %v1693 = vunpack.c.h.b16 %v1617
  %v1694 = vunpack.c.l.b16 %v1618
  %v1695 = vunpack.c.h.b16 %v1618
  %v1696 = vunpack.c.l.b16 %v1619
  %v1697 = vunpack.c.h.b16 %v1619
  %v1698 = vunpack.c.l.b16 %v1620
  %v1699 = vunpack.c.h.b16 %v1620
  %v1700 = vunpack.c.l.b16 %v1621
  %v1701 = vunpack.c.h.b16 %v1621
  %v1702 = vunpack.c.l.b16 %v1622
  %v1703 = vunpack.c.h.b16 %v1622
  %v1704 = vunpack.c.l.b16 %v1623
  %v1705 = vunpack.c.h.b16 %v1623
  %v1706 = vunpack.c.l.b16 %v1624
  %v1707 = vunpack.c.h.b16 %v1624
  %v1708 = vunpack.c.l.b16 %v1625
  %v1709 = vunpack.c.h.b16 %v1625
  %v1710 = vunpack.c.l.b16 %v1626
  %v1711 = vunpack.c.h.b16 %v1626
  %v1712 = vunpack.c.l.b16 %v1627
  %v1713 = vunpack.c.h.b16 %v1627
  %v1714 = vunpack.c.l.b16 %v1628
  %v1715 = vunpack.c.h.b16 %v1628
  %v1716 = vunpack.c.l.b16 %v1629
  %v1717 = vunpack.c.h.b16 %v1629
  %v1718 = vunpack.c.l.b16 %v1630
  %v1719 = vunpack.c.h.b16 %v1630
  %v1720 = vunpack.c.l.b16 %v1631
  %v1721 = vunpack.c.h.b16 %v1631
  %v1722 = vunpack.c.l.b16 %v1632
  %v1723 = vunpack.c.h.b16 %v1632
  %v1724 = vunpack.c.l.b16 %v1633
  %v1725 = vunpack.c.h.b16 %v1633
  %v1726 = vunpack.c.l.b16 %v1634
  %v1727 = vunpack.c.h.b16 %v1634
  %v1728 = vunpack.c.l.b16 %v1635
  %v1729 = vunpack.c.h.b16 %v1635
  %v1730 = vunpack.c.l.b16 %v1636
  %v1731 = vunpack.c.h.b16 %v1636
  %v1732 = vunpack.c.l.b16 %v1637
  %v1733 = vunpack.c.h.b16 %v1637
  %v1734 = vpack.c.b16 %v1674, %v1670
  %v1735 = vpack.c.b16 %v1675, %v1671
  %v1736 = vpack.c.b16 %v1676, %v1672
  %v1737 = vpack.c.b16 %v1677, %v1673
  %v1738 = vpack.c.b16 %v1682, %v1678
  %v1739 = vpack.c.b16 %v1683, %v1679
  %v1740 = vpack.c.b16 %v1684, %v1680
  %v1741 = vpack.c.b16 %v1685, %v1681
  %v1742 = vpack.c.b16 %v1690, %v1686
  %v1743 = vpack.c.b16 %v1691, %v1687
  %v1744 = vpack.c.b16 %v1692, %v1688
  %v1745 = vpack.c.b16 %v1693, %v1689
  %v1746 = vpack.c.b16 %v1698, %v1694
  %v1747 = vpack.c.b16 %v1699, %v1695
  %v1748 = vpack.c.b16 %v1700, %v1696
  %v1749 = vpack.c.b16 %v1701, %v1697
  %v1750 = vpack.c.b16 %v1706, %v1702
  %v1751 = vpack.c.b16 %v1707, %v1703
  %v1752 = vpack.c.b16 %v1708, %v1704
  %v1753 = vpack.c.b16 %v1709, %v1705
  %v1754 = vpack.c.b16 %v1714, %v1710
  %v1755 = vpack.c.b16 %v1715, %v1711
  %v1756 = vpack.c.b16 %v1716, %v1712
  %v1757 = vpack.c.b16 %v1717, %v1713
  %v1758 = vpack.c.b16 %v1722, %v1718
  %v1759 = vpack.c.b16 %v1723, %v1719
  %v1760 = vpack.c.b16 %v1724, %v1720
  %v1761 = vpack.c.b16 %v1725, %v1721
  %v1762 = vpack.c.b16 %v1730, %v1726
  %v1763 = vpack.c.b16 %v1731, %v1727
  %v1764 = vpack.c.b16 %v1732, %v1728
  %v1765 = vpack.c.b16 %v1733, %v1729
  %1798 = vmatprep.subr.bf16.mxu0 %v1735
  %1799 = vmatpush1.bf16.msra.mxu0 %v1734
  %1800 = vmatprep.subr.bf16.mxu0 %v1739
  %1801 = vmatpush1.bf16.msra.mxu0 %v1738
  %1802 = vmatprep.subr.bf16.mxu0 %v1743
  %1803 = vmatpush1.bf16.msra.mxu0 %v1742
  %1804 = vmatprep.subr.bf16.mxu0 %v1747
  %1805 = vmatpush1.bf16.msra.mxu0 %v1746
  %1806 = vmatprep.subr.bf16.mxu0 %v1751
  %1807 = vmatpush1.bf16.msra.mxu0 %v1750
  %1808 = vmatprep.subr.bf16.mxu0 %v1755
  %1809 = vmatpush1.bf16.msra.mxu0 %v1754
  %1810 = vmatprep.subr.bf16.mxu0 %v1759
  %1811 = vmatpush1.bf16.msra.mxu0 %v1758
  %1812 = vmatprep.subr.bf16.mxu0 %v1763
  %1813 = vmatpush1.bf16.msra.mxu0 %v1762
  %1814 = vmatprep.subr.bf16.mxu0 0
  %1815 = vmatpush1.bf16.msra.mxu0 0
  %1816 = vmatprep.subr.bf16.mxu0 0
  %1817 = vmatpush1.bf16.msra.mxu0 0
  %1818 = vmatprep.subr.bf16.mxu0 0
  %1819 = vmatpush1.bf16.msra.mxu0 0
  %1820 = vmatprep.subr.bf16.mxu0 0
  %1821 = vmatpush1.bf16.msra.mxu0 0
  %1822 = vmatprep.subr.bf16.mxu0 0
  %1823 = vmatpush1.bf16.msra.mxu0 0
  %1824 = vmatprep.subr.bf16.mxu0 0
  %1825 = vmatpush1.bf16.msra.mxu0 0
  %1826 = vmatprep.subr.bf16.mxu0 0
  %1827 = vmatpush1.bf16.msra.mxu0 0
  %1828 = vmatprep.subr.bf16.mxu0 0
  %1829 = vmatpush1.bf16.msra.mxu0 0
  %1830 = vmatprep.mubr.bf16.mxu0 0
  %1831 = vmatmul.mubr.bf16.gmra.mrb[0].mxu0 %v1290
  %v1832 = vpop.f32.mrb[0].mxu0
  %v1833 = vadd.f32 0.0, %v1832
  %v1834 = vpop.f32.mrb[0].mxu0
  %v1835 = vadd.f32 0.0, %v1834
  %v1836 = vpop.f32.mrb[0].mxu0
  %v1837 = vpop.f32.mrb[0].mxu0
  %1838 = vdwg.mxu0
  %1839 = vmatprep.subr.bf16.mxu0 %v1737
  %1840 = vmatpush1.bf16.msra.mxu0 %v1736
  %1841 = vmatprep.subr.bf16.mxu0 %v1741
  %1842 = vmatpush1.bf16.msra.mxu0 %v1740
  %1843 = vmatprep.subr.bf16.mxu0 %v1745
  %1844 = vmatpush1.bf16.msra.mxu0 %v1744
  %1845 = vmatprep.subr.bf16.mxu0 %v1749
  %1846 = vmatpush1.bf16.msra.mxu0 %v1748
  %1847 = vmatprep.subr.bf16.mxu0 %v1753
  %1848 = vmatpush1.bf16.msra.mxu0 %v1752
  %1849 = vmatprep.subr.bf16.mxu0 %v1757
  %1850 = vmatpush1.bf16.msra.mxu0 %v1756
  %1851 = vmatprep.subr.bf16.mxu0 %v1761
  %1852 = vmatpush1.bf16.msra.mxu0 %v1760
  %1853 = vmatprep.subr.bf16.mxu0 %v1765
  %1854 = vmatpush1.bf16.msra.mxu0 %v1764
  %1855 = vmatprep.subr.bf16.mxu0 0
  %1856 = vmatpush1.bf16.msra.mxu0 0
  %1857 = vmatprep.subr.bf16.mxu0 0
  %1858 = vmatpush1.bf16.msra.mxu0 0
  %1859 = vmatprep.subr.bf16.mxu0 0
  %1860 = vmatpush1.bf16.msra.mxu0 0
  %1861 = vmatprep.subr.bf16.mxu0 0
  %1862 = vmatpush1.bf16.msra.mxu0 0
  %1863 = vmatprep.subr.bf16.mxu0 0
  %1864 = vmatpush1.bf16.msra.mxu0 0
  %1865 = vmatprep.subr.bf16.mxu0 0
  %1866 = vmatpush1.bf16.msra.mxu0 0
  %1867 = vmatprep.subr.bf16.mxu0 0
  %1868 = vmatpush1.bf16.msra.mxu0 0
  %1869 = vmatprep.subr.bf16.mxu0 0
  %1870 = vmatpush1.bf16.msra.mxu0 0
  %1871 = vmatprep.mubr.bf16.mxu0 0
  %1872 = vmatmul.mubr.bf16.gmra.mrb[0].mxu0 %v1290
  %v1873 = vpop.f32.mrb[0].mxu0
  %v1874 = vadd.f32 0.0, %v1873
  %v1875 = vpop.f32.mrb[0].mxu0
  %v1876 = vadd.f32 0.0, %v1875
  %v1877 = vpop.f32.mrb[0].mxu0
  %v1878 = vpop.f32.mrb[0].mxu0
  %1879 = vdwg.mxu0
  %v1880 = vadd.f32 %v1602, %v1833
  %v1881 = vadd.f32 %v1603, %v1835
  %v1882 = vadd.f32 %v1604, %v1874
  %v1883 = vadd.f32 %v1605, %v1876
  %v1884 = vmul.f32 %v1880, 0.5
  %v1885 = vtanh.pop %v1884
  %v1886 = vmul.f32 %v1885, 0.5
  %v1887 = vadd.f32 %v1886, 0.5
  %v1888 = vmul.f32 %v1881, 0.5
  %v1889 = vtanh.pop %v1888
  %v1890 = vmul.f32 %v1889, 0.5
  %v1891 = vadd.f32 %v1890, 0.5
  %v1892 = vtanh.pop %v1882
  %v1893 = vmul.f32 %v1883, 0.5
  %v1894 = vtanh.pop %v1893
  %v1895 = vmul.f32 %v1894, 0.5
  %v1896 = vadd.f32 %v1895, 0.5
  %v1897 = vmul.f32 %v1891, %v1287
  %v1898 = vmul.f32 %v1887, %v1892
  %v1899 = vadd.f32 %v1897, %v1898
  %v1900 = vtanh.pop %v1899
  %v1901 = vmul.f32 %v1896, %v1900
  %v1902 = vpack.c.bf16 %v1901, %v1901
  %s1903 = scalar_lea.vmem %s52, 20
  %1904 = vst [vmem:[%s1903] sm:$0xf] %v1902
  %s1905 = scalar_lea.vmem %s0, 48
  %v1906 = vld [vmem:[%s1905] sm:$0xff]
  %v1907 = vld [vmem:[%s1905 + $0x8] sm:$0xff]
  %v1908 = vunpack.c.l.bf16 %v1906
  %v1909 = vunpack.c.h.bf16 %v1906
  %v1910 = vunpack.c.l.bf16 %v1907
  %v1911 = vunpack.c.h.bf16 %v1907
  %v1912 = vld [vmem:[%s2] sm:$0xff]
  %v1913 = vld [vmem:[%s2 + $0x8] sm:$0xff]
  %v1914 = vld [vmem:[%s2 + $0x10] sm:$0xff]
  %v1915 = vld [vmem:[%s2 + $0x18] sm:$0xff]
  %v1916 = vld [vmem:[%s2 + $0x20] sm:$0xff]
  %v1917 = vld [vmem:[%s2 + $0x28] sm:$0xff]
  %v1918 = vld [vmem:[%s2 + $0x30] sm:$0xff]
  %v1919 = vld [vmem:[%s2 + $0x38] sm:$0xff]
  %v1920 = vld [vmem:[%s2 + $0x40] sm:$0xff]
  %v1921 = vld [vmem:[%s2 + $0x48] sm:$0xff]
  %v1922 = vld [vmem:[%s2 + $0x50] sm:$0xff]
  %v1923 = vld [vmem:[%s2 + $0x58] sm:$0xff]
  %v1924 = vld [vmem:[%s2 + $0x60] sm:$0xff]
  %v1925 = vld [vmem:[%s2 + $0x68] sm:$0xff]
  %v1926 = vld [vmem:[%s2 + $0x70] sm:$0xff]
  %v1927 = vld [vmem:[%s2 + $0x78] sm:$0xff]
  %v1928 = vld [vmem:[%s2 + $0x80] sm:$0xff]
  %v1929 = vld [vmem:[%s2 + $0x88] sm:$0xff]
  %v1930 = vld [vmem:[%s2 + $0x90] sm:$0xff]
  %v1931 = vld [vmem:[%s2 + $0x98] sm:$0xff]
  %v1932 = vld [vmem:[%s2 + $0xa0] sm:$0xff]
  %v1933 = vld [vmem:[%s2 + $0xa8] sm:$0xff]
  %v1934 = vld [vmem:[%s2 + $0xb0] sm:$0xff]
  %v1935 = vld [vmem:[%s2 + $0xb8] sm:$0xff]
  %v1936 = vld [vmem:[%s2 + $0xc0] sm:$0xff]
  %v1937 = vld [vmem:[%s2 + $0xc8] sm:$0xff]
  %v1938 = vld [vmem:[%s2 + $0xd0] sm:$0xff]
  %v1939 = vld [vmem:[%s2 + $0xd8] sm:$0xff]
  %v1940 = vld [vmem:[%s2 + $0xe0] sm:$0xff]
  %v1941 = vld [vmem:[%s2 + $0xe8] sm:$0xff]
  %v1942 = vld [vmem:[%s2 + $0xf0] sm:$0xff]
  %v1943 = vld [vmem:[%s2 + $0xf8] sm:$0xff]
  %v1976 = vunpack.c.l.b16 %v1912
  %v1977 = vunpack.c.h.b16 %v1912
  %v1978 = vunpack.c.l.b16 %v1913
  %v1979 = vunpack.c.h.b16 %v1913
  %v1980 = vunpack.c.l.b16 %v1914
  %v1981 = vunpack.c.h.b16 %v1914
  %v1982 = vunpack.c.l.b16 %v1915
  %v1983 = vunpack.c.h.b16 %v1915
  %v1984 = vunpack.c.l.b16 %v1916
  %v1985 = vunpack.c.h.b16 %v1916
  %v1986 = vunpack.c.l.b16 %v1917
  %v1987 = vunpack.c.h.b16 %v1917
  %v1988 = vunpack.c.l.b16 %v1918
  %v1989 = vunpack.c.h.b16 %v1918
  %v1990 = vunpack.c.l.b16 %v1919
  %v1991 = vunpack.c.h.b16 %v1919
  %v1992 = vunpack.c.l.b16 %v1920
  %v1993 = vunpack.c.h.b16 %v1920
  %v1994 = vunpack.c.l.b16 %v1921
  %v1995 = vunpack.c.h.b16 %v1921
  %v1996 = vunpack.c.l.b16 %v1922
  %v1997 = vunpack.c.h.b16 %v1922
  %v1998 = vunpack.c.l.b16 %v1923
  %v1999 = vunpack.c.h.b16 %v1923
  %v2000 = vunpack.c.l.b16 %v1924
  %v2001 = vunpack.c.h.b16 %v1924
  %v2002 = vunpack.c.l.b16 %v1925
  %v2003 = vunpack.c.h.b16 %v1925
  %v2004 = vunpack.c.l.b16 %v1926
  %v2005 = vunpack.c.h.b16 %v1926
  %v2006 = vunpack.c.l.b16 %v1927
  %v2007 = vunpack.c.h.b16 %v1927
  %v2008 = vunpack.c.l.b16 %v1928
  %v2009 = vunpack.c.h.b16 %v1928
  %v2010 = vunpack.c.l.b16 %v1929
  %v2011 = vunpack.c.h.b16 %v1929
  %v2012 = vunpack.c.l.b16 %v1930
  %v2013 = vunpack.c.h.b16 %v1930
  %v2014 = vunpack.c.l.b16 %v1931
  %v2015 = vunpack.c.h.b16 %v1931
  %v2016 = vunpack.c.l.b16 %v1932
  %v2017 = vunpack.c.h.b16 %v1932
  %v2018 = vunpack.c.l.b16 %v1933
  %v2019 = vunpack.c.h.b16 %v1933
  %v2020 = vunpack.c.l.b16 %v1934
  %v2021 = vunpack.c.h.b16 %v1934
  %v2022 = vunpack.c.l.b16 %v1935
  %v2023 = vunpack.c.h.b16 %v1935
  %v2024 = vunpack.c.l.b16 %v1936
  %v2025 = vunpack.c.h.b16 %v1936
  %v2026 = vunpack.c.l.b16 %v1937
  %v2027 = vunpack.c.h.b16 %v1937
  %v2028 = vunpack.c.l.b16 %v1938
  %v2029 = vunpack.c.h.b16 %v1938
  %v2030 = vunpack.c.l.b16 %v1939
  %v2031 = vunpack.c.h.b16 %v1939
  %v2032 = vunpack.c.l.b16 %v1940
  %v2033 = vunpack.c.h.b16 %v1940
  %v2034 = vunpack.c.l.b16 %v1941
  %v2035 = vunpack.c.h.b16 %v1941
  %v2036 = vunpack.c.l.b16 %v1942
  %v2037 = vunpack.c.h.b16 %v1942
  %v2038 = vunpack.c.l.b16 %v1943
  %v2039 = vunpack.c.h.b16 %v1943
  %v2040 = vpack.c.b16 %v1980, %v1976
  %v2041 = vpack.c.b16 %v1981, %v1977
  %v2042 = vpack.c.b16 %v1982, %v1978
  %v2043 = vpack.c.b16 %v1983, %v1979
  %v2044 = vpack.c.b16 %v1988, %v1984
  %v2045 = vpack.c.b16 %v1989, %v1985
  %v2046 = vpack.c.b16 %v1990, %v1986
  %v2047 = vpack.c.b16 %v1991, %v1987
  %v2048 = vpack.c.b16 %v1996, %v1992
  %v2049 = vpack.c.b16 %v1997, %v1993
  %v2050 = vpack.c.b16 %v1998, %v1994
  %v2051 = vpack.c.b16 %v1999, %v1995
  %v2052 = vpack.c.b16 %v2004, %v2000
  %v2053 = vpack.c.b16 %v2005, %v2001
  %v2054 = vpack.c.b16 %v2006, %v2002
  %v2055 = vpack.c.b16 %v2007, %v2003
  %v2056 = vpack.c.b16 %v2012, %v2008
  %v2057 = vpack.c.b16 %v2013, %v2009
  %v2058 = vpack.c.b16 %v2014, %v2010
  %v2059 = vpack.c.b16 %v2015, %v2011
  %v2060 = vpack.c.b16 %v2020, %v2016
  %v2061 = vpack.c.b16 %v2021, %v2017
  %v2062 = vpack.c.b16 %v2022, %v2018
  %v2063 = vpack.c.b16 %v2023, %v2019
  %v2064 = vpack.c.b16 %v2028, %v2024
  %v2065 = vpack.c.b16 %v2029, %v2025
  %v2066 = vpack.c.b16 %v2030, %v2026
  %v2067 = vpack.c.b16 %v2031, %v2027
  %v2068 = vpack.c.b16 %v2036, %v2032
  %v2069 = vpack.c.b16 %v2037, %v2033
  %v2070 = vpack.c.b16 %v2038, %v2034
  %v2071 = vpack.c.b16 %v2039, %v2035
  %2104 = vmatprep.subr.bf16.mxu0 %v2041
  %2105 = vmatpush1.bf16.msra.mxu0 %v2040
  %2106 = vmatprep.subr.bf16.mxu0 %v2045
  %2107 = vmatpush1.bf16.msra.mxu0 %v2044
  %2108 = vmatprep.subr.bf16.mxu0 %v2049
  %2109 = vmatpush1.bf16.msra.mxu0 %v2048
  %2110 = vmatprep.subr.bf16.mxu0 %v2053
  %2111 = vmatpush1.bf16.msra.mxu0 %v2052
  %2112 = vmatprep.subr.bf16.mxu0 %v2057
  %2113 = vmatpush1.bf16.msra.mxu0 %v2056
  %2114 = vmatprep.subr.bf16.mxu0 %v2061
  %2115 = vmatpush1.bf16.msra.mxu0 %v2060
  %2116 = vmatprep.subr.bf16.mxu0 %v2065
  %2117 = vmatpush1.bf16.msra.mxu0 %v2064
  %2118 = vmatprep.subr.bf16.mxu0 %v2069
  %2119 = vmatpush1.bf16.msra.mxu0 %v2068
  %2120 = vmatprep.subr.bf16.mxu0 0
  %2121 = vmatpush1.bf16.msra.mxu0 0
  %2122 = vmatprep.subr.bf16.mxu0 0
  %2123 = vmatpush1.bf16.msra.mxu0 0
  %2124 = vmatprep.subr.bf16.mxu0 0
  %2125 = vmatpush1.bf16.msra.mxu0 0
  %2126 = vmatprep.subr.bf16.mxu0 0
  %2127 = vmatpush1.bf16.msra.mxu0 0
  %2128 = vmatprep.subr.bf16.mxu0 0
  %2129 = vmatpush1.bf16.msra.mxu0 0
  %2130 = vmatprep.subr.bf16.mxu0 0
  %2131 = vmatpush1.bf16.msra.mxu0 0
  %2132 = vmatprep.subr.bf16.mxu0 0
  %2133 = vmatpush1.bf16.msra.mxu0 0
  %2134 = vmatprep.subr.bf16.mxu0 0
  %2135 = vmatpush1.bf16.msra.mxu0 0
  %2136 = vmatprep.mubr.bf16.mxu0 0
  %2137 = vmatmul.mubr.bf16.gmra.mrb[0].mxu0 %v1596
  %v2138 = vpop.f32.mrb[0].mxu0
  %v2139 = vadd.f32 0.0, %v2138
  %v2140 = vpop.f32.mrb[0].mxu0
  %v2141 = vadd.f32 0.0, %v2140
  %v2142 = vpop.f32.mrb[0].mxu0
  %v2143 = vpop.f32.mrb[0].mxu0
  %2144 = vdwg.mxu0
  %2145 = vmatprep.subr.bf16.mxu0 %v2043
  %2146 = vmatpush1.bf16.msra.mxu0 %v2042
  %2147 = vmatprep.subr.bf16.mxu0 %v2047
  %2148 = vmatpush1.bf16.msra.mxu0 %v2046
  %2149 = vmatprep.subr.bf16.mxu0 %v2051
  %2150 = vmatpush1.bf16.msra.mxu0 %v2050
  %2151 = vmatprep.subr.bf16.mxu0 %v2055
  %2152 = vmatpush1.bf16.msra.mxu0 %v2054
  %2153 = vmatprep.subr.bf16.mxu0 %v2059
  %2154 = vmatpush1.bf16.msra.mxu0 %v2058
  %2155 = vmatprep.subr.bf16.mxu0 %v2063
  %2156 = vmatpush1.bf16.msra.mxu0 %v2062
  %2157 = vmatprep.subr.bf16.mxu0 %v2067
  %2158 = vmatpush1.bf16.msra.mxu0 %v2066
  %2159 = vmatprep.subr.bf16.mxu0 %v2071
  %2160 = vmatpush1.bf16.msra.mxu0 %v2070
  %2161 = vmatprep.subr.bf16.mxu0 0
  %2162 = vmatpush1.bf16.msra.mxu0 0
  %2163 = vmatprep.subr.bf16.mxu0 0
  %2164 = vmatpush1.bf16.msra.mxu0 0
  %2165 = vmatprep.subr.bf16.mxu0 0
  %2166 = vmatpush1.bf16.msra.mxu0 0
  %2167 = vmatprep.subr.bf16.mxu0 0
  %2168 = vmatpush1.bf16.msra.mxu0 0
  %2169 = vmatprep.subr.bf16.mxu0 0
  %2170 = vmatpush1.bf16.msra.mxu0 0
  %2171 = vmatprep.subr.bf16.mxu0 0
  %2172 = vmatpush1.bf16.msra.mxu0 0
  %2173 = vmatprep.subr.bf16.mxu0 0
  %2174 = vmatpush1.bf16.msra.mxu0 0
  %2175 = vmatprep.subr.bf16.mxu0 0
  %2176 = vmatpush1.bf16.msra.mxu0 0
  %2177 = vmatprep.mubr.bf16.mxu0 0
  %2178 = vmatmul.mubr.bf16.gmra.mrb[0].mxu0 %v1596
  %v2179 = vpop.f32.mrb[0].mxu0
  %v2180 = vadd.f32 0.0, %v2179
  %v2181 = vpop.f32.mrb[0].mxu0
  %v2182 = vadd.f32 0.0, %v2181
  %v2183 = vpop.f32.mrb[0].mxu0
  %v2184 = vpop.f32.mrb[0].mxu0
  %2185 = vdwg.mxu0
  %v2186 = vadd.f32 %v1908, %v2139
  %v2187 = vadd.f32 %v1909, %v2141
  %v2188 = vadd.f32 %v1910, %v2180
  %v2189 = vadd.f32 %v1911, %v2182
  %v2190 = vmul.f32 %v2186, 0.5
  %v2191 = vtanh.pop %v2190
  %v2192 = vmul.f32 %v2191, 0.5
  %v2193 = vadd.f32 %v2192, 0.5
  %v2194 = vmul.f32 %v2187, 0.5
  %v2195 = vtanh.pop %v2194
  %v2196 = vmul.f32 %v2195, 0.5
  %v2197 = vadd.f32 %v2196, 0.5
  %v2198 = vtanh.pop %v2188
  %v2199 = vmul.f32 %v2189, 0.5
  %v2200 = vtanh.pop %v2199
  %v2201 = vmul.f32 %v2200, 0.5
  %v2202 = vadd.f32 %v2201, 0.5
  %v2203 = vmul.f32 %v2197, %v1593
  %v2204 = vmul.f32 %v2193, %v2198
  %v2205 = vadd.f32 %v2203, %v2204
  %v2206 = vtanh.pop %v2205
  %v2207 = vmul.f32 %v2202, %v2206
  %v2208 = vpack.c.bf16 %v2207, %v2207
  %s2209 = scalar_lea.vmem %s3, 12
  %2210 = vst [vmem:[%s2209] sm:$0xf] %v2208
  %s2211 = scalar_lea.vmem %s44, 64
  %v2212 = vld [vmem:[%s2211] sm:$0xff]
  %v2213 = vld [vmem:[%s2211 + $0x8] sm:$0xff]
  %v2214 = vunpack.c.l.bf16 %v2212
  %v2215 = vunpack.c.h.bf16 %v2212
  %v2216 = vunpack.c.l.bf16 %v2213
  %v2217 = vunpack.c.h.bf16 %v2213
  %v2218 = vld [vmem:[%s381] sm:$0xff]
  %v2219 = vld [vmem:[%s381 + $0x8] sm:$0xff]
  %v2220 = vld [vmem:[%s381 + $0x10] sm:$0xff]
  %v2221 = vld [vmem:[%s381 + $0x18] sm:$0xff]
  %v2222 = vld [vmem:[%s381 + $0x20] sm:$0xff]
  %v2223 = vld [vmem:[%s381 + $0x28] sm:$0xff]
  %v2224 = vld [vmem:[%s381 + $0x30] sm:$0xff]
  %v2225 = vld [vmem:[%s381 + $0x38] sm:$0xff]
  %v2226 = vld [vmem:[%s381 + $0x40] sm:$0xff]
  %v2227 = vld [vmem:[%s381 + $0x48] sm:$0xff]
  %v2228 = vld [vmem:[%s381 + $0x50] sm:$0xff]
  %v2229 = vld [vmem:[%s381 + $0x58] sm:$0xff]
  %v2230 = vld [vmem:[%s381 + $0x60] sm:$0xff]
  %v2231 = vld [vmem:[%s381 + $0x68] sm:$0xff]
  %v2232 = vld [vmem:[%s381 + $0x70] sm:$0xff]
  %v2233 = vld [vmem:[%s381 + $0x78] sm:$0xff]
  %v2234 = vld [vmem:[%s381 + $0x80] sm:$0xff]
  %v2235 = vld [vmem:[%s381 + $0x88] sm:$0xff]
  %v2236 = vld [vmem:[%s381 + $0x90] sm:$0xff]
  %v2237 = vld [vmem:[%s381 + $0x98] sm:$0xff]
  %v2238 = vld [vmem:[%s381 + $0xa0] sm:$0xff]
  %v2239 = vld [vmem:[%s381 + $0xa8] sm:$0xff]
  %v2240 = vld [vmem:[%s381 + $0xb0] sm:$0xff]
  %v2241 = vld [vmem:[%s381 + $0xb8] sm:$0xff]
  %v2242 = vld [vmem:[%s381 + $0xc0] sm:$0xff]
  %v2243 = vld [vmem:[%s381 + $0xc8] sm:$0xff]
  %v2244 = vld [vmem:[%s381 + $0xd0] sm:$0xff]
  %v2245 = vld [vmem:[%s381 + $0xd8] sm:$0xff]
  %v2246 = vld [vmem:[%s381 + $0xe0] sm:$0xff]
  %v2247 = vld [vmem:[%s381 + $0xe8] sm:$0xff]
  %v2248 = vld [vmem:[%s381 + $0xf0] sm:$0xff]
  %v2249 = vld [vmem:[%s381 + $0xf8] sm:$0xff]
  %v2282 = vunpack.c.l.b16 %v2218
  %v2283 = vunpack.c.h.b16 %v2218
  %v2284 = vunpack.c.l.b16 %v2219
  %v2285 = vunpack.c.h.b16 %v2219
  %v2286 = vunpack.c.l.b16 %v2220
  %v2287 = vunpack.c.h.b16 %v2220
  %v2288 = vunpack.c.l.b16 %v2221
  %v2289 = vunpack.c.h.b16 %v2221
  %v2290 = vunpack.c.l.b16 %v2222
  %v2291 = vunpack.c.h.b16 %v2222
  %v2292 = vunpack.c.l.b16 %v2223
  %v2293 = vunpack.c.h.b16 %v2223
  %v2294 = vunpack.c.l.b16 %v2224
  %v2295 = vunpack.c.h.b16 %v2224
  %v2296 = vunpack.c.l.b16 %v2225
  %v2297 = vunpack.c.h.b16 %v2225
  %v2298 = vunpack.c.l.b16 %v2226
  %v2299 = vunpack.c.h.b16 %v2226
  %v2300 = vunpack.c.l.b16 %v2227
  %v2301 = vunpack.c.h.b16 %v2227
  %v2302 = vunpack.c.l.b16 %v2228
  %v2303 = vunpack.c.h.b16 %v2228
  %v2304 = vunpack.c.l.b16 %v2229
  %v2305 = vunpack.c.h.b16 %v2229
  %v2306 = vunpack.c.l.b16 %v2230
  %v2307 = vunpack.c.h.b16 %v2230
  %v2308 = vunpack.c.l.b16 %v2231
  %v2309 = vunpack.c.h.b16 %v2231
  %v2310 = vunpack.c.l.b16 %v2232
  %v2311 = vunpack.c.h.b16 %v2232
  %v2312 = vunpack.c.l.b16 %v2233
  %v2313 = vunpack.c.h.b16 %v2233
  %v2314 = vunpack.c.l.b16 %v2234
  %v2315 = vunpack.c.h.b16 %v2234
  %v2316 = vunpack.c.l.b16 %v2235
  %v2317 = vunpack.c.h.b16 %v2235
  %v2318 = vunpack.c.l.b16 %v2236
  %v2319 = vunpack.c.h.b16 %v2236
  %v2320 = vunpack.c.l.b16 %v2237
  %v2321 = vunpack.c.h.b16 %v2237
  %v2322 = vunpack.c.l.b16 %v2238
  %v2323 = vunpack.c.h.b16 %v2238
  %v2324 = vunpack.c.l.b16 %v2239
  %v2325 = vunpack.c.h.b16 %v2239
  %v2326 = vunpack.c.l.b16 %v2240
  %v2327 = vunpack.c.h.b16 %v2240
  %v2328 = vunpack.c.l.b16 %v2241
  %v2329 = vunpack.c.h.b16 %v2241
  %v2330 = vunpack.c.l.b16 %v2242
  %v2331 = vunpack.c.h.b16 %v2242
  %v2332 = vunpack.c.l.b16 %v2243
  %v2333 = vunpack.c.h.b16 %v2243
  %v2334 = vunpack.c.l.b16 %v2244
  %v2335 = vunpack.c.h.b16 %v2244
  %v2336 = vunpack.c.l.b16 %v2245
  %v2337 = vunpack.c.h.b16 %v2245
  %v2338 = vunpack.c.l.b16 %v2246
  %v2339 = vunpack.c.h.b16 %v2246
  %v2340 = vunpack.c.l.b16 %v2247
  %v2341 = vunpack.c.h.b16 %v2247
  %v2342 = vunpack.c.l.b16 %v2248
  %v2343 = vunpack.c.h.b16 %v2248
  %v2344 = vunpack.c.l.b16 %v2249
  %v2345 = vunpack.c.h.b16 %v2249
  %v2346 = vpack.c.b16 %v2286, %v2282
  %v2347 = vpack.c.b16 %v2287, %v2283
  %v2348 = vpack.c.b16 %v2288, %v2284
  %v2349 = vpack.c.b16 %v2289, %v2285
  %v2350 = vpack.c.b16 %v2294, %v2290
  %v2351 = vpack.c.b16 %v2295, %v2291
  %v2352 = vpack.c.b16 %v2296, %v2292
  %v2353 = vpack.c.b16 %v2297, %v2293
  %v2354 = vpack.c.b16 %v2302, %v2298
  %v2355 = vpack.c.b16 %v2303, %v2299
  %v2356 = vpack.c.b16 %v2304, %v2300
  %v2357 = vpack.c.b16 %v2305, %v2301
  %v2358 = vpack.c.b16 %v2310, %v2306
  %v2359 = vpack.c.b16 %v2311, %v2307
  %v2360 = vpack.c.b16 %v2312, %v2308
  %v2361 = vpack.c.b16 %v2313, %v2309
  %v2362 = vpack.c.b16 %v2318, %v2314
  %v2363 = vpack.c.b16 %v2319, %v2315
  %v2364 = vpack.c.b16 %v2320, %v2316
  %v2365 = vpack.c.b16 %v2321, %v2317
  %v2366 = vpack.c.b16 %v2326, %v2322
  %v2367 = vpack.c.b16 %v2327, %v2323
  %v2368 = vpack.c.b16 %v2328, %v2324
  %v2369 = vpack.c.b16 %v2329, %v2325
  %v2370 = vpack.c.b16 %v2334, %v2330
  %v2371 = vpack.c.b16 %v2335, %v2331
  %v2372 = vpack.c.b16 %v2336, %v2332
  %v2373 = vpack.c.b16 %v2337, %v2333
  %v2374 = vpack.c.b16 %v2342, %v2338
  %v2375 = vpack.c.b16 %v2343, %v2339
  %v2376 = vpack.c.b16 %v2344, %v2340
  %v2377 = vpack.c.b16 %v2345, %v2341
  %2410 = vmatprep.subr.bf16.mxu0 %v2347
  %2411 = vmatpush1.bf16.msra.mxu0 %v2346
  %2412 = vmatprep.subr.bf16.mxu0 %v2351
  %2413 = vmatpush1.bf16.msra.mxu0 %v2350
  %2414 = vmatprep.subr.bf16.mxu0 %v2355
  %2415 = vmatpush1.bf16.msra.mxu0 %v2354
  %2416 = vmatprep.subr.bf16.mxu0 %v2359
  %2417 = vmatpush1.bf16.msra.mxu0 %v2358
  %2418 = vmatprep.subr.bf16.mxu0 %v2363
  %2419 = vmatpush1.bf16.msra.mxu0 %v2362
  %2420 = vmatprep.subr.bf16.mxu0 %v2367
  %2421 = vmatpush1.bf16.msra.mxu0 %v2366
  %2422 = vmatprep.subr.bf16.mxu0 %v2371
  %2423 = vmatpush1.bf16.msra.mxu0 %v2370
  %2424 = vmatprep.subr.bf16.mxu0 %v2375
  %2425 = vmatpush1.bf16.msra.mxu0 %v2374
  %2426 = vmatprep.subr.bf16.mxu0 0
  %2427 = vmatpush1.bf16.msra.mxu0 0
  %2428 = vmatprep.subr.bf16.mxu0 0
  %2429 = vmatpush1.bf16.msra.mxu0 0
  %2430 = vmatprep.subr.bf16.mxu0 0
  %2431 = vmatpush1.bf16.msra.mxu0 0
  %2432 = vmatprep.subr.bf16.mxu0 0
  %2433 = vmatpush1.bf16.msra.mxu0 0
  %2434 = vmatprep.subr.bf16.mxu0 0
  %2435 = vmatpush1.bf16.msra.mxu0 0
  %2436 = vmatprep.subr.bf16.mxu0 0
  %2437 = vmatpush1.bf16.msra.mxu0 0
  %2438 = vmatprep.subr.bf16.mxu0 0
  %2439 = vmatpush1.bf16.msra.mxu0 0
  %2440 = vmatprep.subr.bf16.mxu0 0
  %2441 = vmatpush1.bf16.msra.mxu0 0
  %2442 = vmatprep.mubr.bf16.mxu0 0
  %2443 = vmatmul.mubr.bf16.gmra.mrb[0].mxu0 %v1902
  %v2444 = vpop.f32.mrb[0].mxu0
  %v2445 = vadd.f32 0.0, %v2444
  %v2446 = vpop.f32.mrb[0].mxu0
  %v2447 = vadd.f32 0.0, %v2446
  %v2448 = vpop.f32.mrb[0].mxu0
  %v2449 = vpop.f32.mrb[0].mxu0
  %2450 = vdwg.mxu0
  %2451 = vmatprep.subr.bf16.mxu0 %v2349
  %2452 = vmatpush1.bf16.msra.mxu0 %v2348
  %2453 = vmatprep.subr.bf16.mxu0 %v2353
  %2454 = vmatpush1.bf16.msra.mxu0 %v2352
  %2455 = vmatprep.subr.bf16.mxu0 %v2357
  %2456 = vmatpush1.bf16.msra.mxu0 %v2356
  %2457 = vmatprep.subr.bf16.mxu0 %v2361
  %2458 = vmatpush1.bf16.msra.mxu0 %v2360
  %2459 = vmatprep.subr.bf16.mxu0 %v2365
  %2460 = vmatpush1.bf16.msra.mxu0 %v2364
  %2461 = vmatprep.subr.bf16.mxu0 %v2369
  %2462 = vmatpush1.bf16.msra.mxu0 %v2368
  %2463 = vmatprep.subr.bf16.mxu0 %v2373
  %2464 = vmatpush1.bf16.msra.mxu0 %v2372
  %2465 = vmatprep.subr.bf16.mxu0 %v2377
  %2466 = vmatpush1.bf16.msra.mxu0 %v2376
  %2467 = vmatprep.subr.bf16.mxu0 0
  %2468 = vmatpush1.bf16.msra.mxu0 0
  %2469 = vmatprep.subr.bf16.mxu0 0
  %2470 = vmatpush1.bf16.msra.mxu0 0
  %2471 = vmatprep.subr.bf16.mxu0 0
  %2472 = vmatpush1.bf16.msra.mxu0 0
  %2473 = vmatprep.subr.bf16.mxu0 0
  %2474 = vmatpush1.bf16.msra.mxu0 0
  %2475 = vmatprep.subr.bf16.mxu0 0
  %2476 = vmatpush1.bf16.msra.mxu0 0
  %2477 = vmatprep.subr.bf16.mxu0 0
  %2478 = vmatpush1.bf16.msra.mxu0 0
  %2479 = vmatprep.subr.bf16.mxu0 0
  %2480 = vmatpush1.bf16.msra.mxu0 0
  %2481 = vmatprep.subr.bf16.mxu0 0
  %2482 = vmatpush1.bf16.msra.mxu0 0
  %2483 = vmatprep.mubr.bf16.mxu0 0
  %2484 = vmatmul.mubr.bf16.gmra.mrb[0].mxu0 %v1902
  %v2485 = vpop.f32.mrb[0].mxu0
  %v2486 = vadd.f32 0.0, %v2485
  %v2487 = vpop.f32.mrb[0].mxu0
  %v2488 = vadd.f32 0.0, %v2487
  %v2489 = vpop.f32.mrb[0].mxu0
  %v2490 = vpop.f32.mrb[0].mxu0
  %2491 = vdwg.mxu0
  %v2492 = vadd.f32 %v2214, %v2445
  %v2493 = vadd.f32 %v2215, %v2447
  %v2494 = vadd.f32 %v2216, %v2486
  %v2495 = vadd.f32 %v2217, %v2488
  %v2496 = vmul.f32 %v2492, 0.5
  %v2497 = vtanh.pop %v2496
  %v2498 = vmul.f32 %v2497, 0.5
  %v2499 = vadd.f32 %v2498, 0.5
  %v2500 = vmul.f32 %v2493, 0.5
  %v2501 = vtanh.pop %v2500
  %v2502 = vmul.f32 %v2501, 0.5
  %v2503 = vadd.f32 %v2502, 0.5
  %v2504 = vtanh.pop %v2494
  %v2505 = vmul.f32 %v2495, 0.5
  %v2506 = vtanh.pop %v2505
  %v2507 = vmul.f32 %v2506, 0.5
  %v2508 = vadd.f32 %v2507, 0.5
  %v2509 = vmul.f32 %v2503, %v1899
  %v2510 = vmul.f32 %v2499, %v2504
  %v2511 = vadd.f32 %v2509, %v2510
  %v2512 = vtanh.pop %v2511
  %v2513 = vmul.f32 %v2508, %v2512
  %v2514 = vpack.c.bf16 %v2513, %v2513
  %s2515 = scalar_lea.vmem %s52, 16
  %2516 = vst [vmem:[%s2515] sm:$0xf] %v2514
  %s2517 = scalar_lea.vmem %s0, 64
  %v2518 = vld [vmem:[%s2517] sm:$0xff]
  %v2519 = vld [vmem:[%s2517 + $0x8] sm:$0xff]
  %v2520 = vunpack.c.l.bf16 %v2518
  %v2521 = vunpack.c.h.bf16 %v2518
  %v2522 = vunpack.c.l.bf16 %v2519
  %v2523 = vunpack.c.h.bf16 %v2519
  %v2524 = vld [vmem:[%s2] sm:$0xff]
  %v2525 = vld [vmem:[%s2 + $0x8] sm:$0xff]
  %v2526 = vld [vmem:[%s2 + $0x10] sm:$0xff]
  %v2527 = vld [vmem:[%s2 + $0x18] sm:$0xff]
  %v2528 = vld [vmem:[%s2 + $0x20] sm:$0xff]
  %v2529 = vld [vmem:[%s2 + $0x28] sm:$0xff]
  %v2530 = vld [vmem:[%s2 + $0x30] sm:$0xff]
  %v2531 = vld [vmem:[%s2 + $0x38] sm:$0xff]
  %v2532 = vld [vmem:[%s2 + $0x40] sm:$0xff]
  %v2533 = vld [vmem:[%s2 + $0x48] sm:$0xff]
  %v2534 = vld [vmem:[%s2 + $0x50] sm:$0xff]
  %v2535 = vld [vmem:[%s2 + $0x58] sm:$0xff]
  %v2536 = vld [vmem:[%s2 + $0x60] sm:$0xff]
  %v2537 = vld [vmem:[%s2 + $0x68] sm:$0xff]
  %v2538 = vld [vmem:[%s2 + $0x70] sm:$0xff]
  %v2539 = vld [vmem:[%s2 + $0x78] sm:$0xff]
  %v2540 = vld [vmem:[%s2 + $0x80] sm:$0xff]
  %v2541 = vld [vmem:[%s2 + $0x88] sm:$0xff]
  %v2542 = vld [vmem:[%s2 + $0x90] sm:$0xff]
  %v2543 = vld [vmem:[%s2 + $0x98] sm:$0xff]
  %v2544 = vld [vmem:[%s2 + $0xa0] sm:$0xff]
  %v2545 = vld [vmem:[%s2 + $0xa8] sm:$0xff]
  %v2546 = vld [vmem:[%s2 + $0xb0] sm:$0xff]
  %v2547 = vld [vmem:[%s2 + $0xb8] sm:$0xff]
  %v2548 = vld [vmem:[%s2 + $0xc0] sm:$0xff]
  %v2549 = vld [vmem:[%s2 + $0xc8] sm:$0xff]
  %v2550 = vld [vmem:[%s2 + $0xd0] sm:$0xff]
  %v2551 = vld [vmem:[%s2 + $0xd8] sm:$0xff]
  %v2552 = vld [vmem:[%s2 + $0xe0] sm:$0xff]
  %v2553 = vld [vmem:[%s2 + $0xe8] sm:$0xff]
  %v2554 = vld [vmem:[%s2 + $0xf0] sm:$0xff]
  %v2555 = vld [vmem:[%s2 + $0xf8] sm:$0xff]
  %v2588 = vunpack.c.l.b16 %v2524
  %v2589 = vunpack.c.h.b16 %v2524
  %v2590 = vunpack.c.l.b16 %v2525
  %v2591 = vunpack.c.h.b16 %v2525
  %v2592 = vunpack.c.l.b16 %v2526
  %v2593 = vunpack.c.h.b16 %v2526
  %v2594 = vunpack.c.l.b16 %v2527
  %v2595 = vunpack.c.h.b16 %v2527
  %v2596 = vunpack.c.l.b16 %v2528
  %v2597 = vunpack.c.h.b16 %v2528
  %v2598 = vunpack.c.l.b16 %v2529
  %v2599 = vunpack.c.h.b16 %v2529
  %v2600 = vunpack.c.l.b16 %v2530
  %v2601 = vunpack.c.h.b16 %v2530
  %v2602 = vunpack.c.l.b16 %v2531
  %v2603 = vunpack.c.h.b16 %v2531
  %v2604 = vunpack.c.l.b16 %v2532
  %v2605 = vunpack.c.h.b16 %v2532
  %v2606 = vunpack.c.l.b16 %v2533
  %v2607 = vunpack.c.h.b16 %v2533
  %v2608 = vunpack.c.l.b16 %v2534
  %v2609 = vunpack.c.h.b16 %v2534
  %v2610 = vunpack.c.l.b16 %v2535
  %v2611 = vunpack.c.h.b16 %v2535
  %v2612 = vunpack.c.l.b16 %v2536
  %v2613 = vunpack.c.h.b16 %v2536
  %v2614 = vunpack.c.l.b16 %v2537
  %v2615 = vunpack.c.h.b16 %v2537
  %v2616 = vunpack.c.l.b16 %v2538
  %v2617 = vunpack.c.h.b16 %v2538
  %v2618 = vunpack.c.l.b16 %v2539
  %v2619 = vunpack.c.h.b16 %v2539
  %v2620 = vunpack.c.l.b16 %v2540
  %v2621 = vunpack.c.h.b16 %v2540
  %v2622 = vunpack.c.l.b16 %v2541
  %v2623 = vunpack.c.h.b16 %v2541
  %v2624 = vunpack.c.l.b16 %v2542
  %v2625 = vunpack.c.h.b16 %v2542
  %v2626 = vunpack.c.l.b16 %v2543
  %v2627 = vunpack.c.h.b16 %v2543
  %v2628 = vunpack.c.l.b16 %v2544
  %v2629 = vunpack.c.h.b16 %v2544
  %v2630 = vunpack.c.l.b16 %v2545
  %v2631 = vunpack.c.h.b16 %v2545
  %v2632 = vunpack.c.l.b16 %v2546
  %v2633 = vunpack.c.h.b16 %v2546
  %v2634 = vunpack.c.l.b16 %v2547
  %v2635 = vunpack.c.h.b16 %v2547
  %v2636 = vunpack.c.l.b16 %v2548
  %v2637 = vunpack.c.h.b16 %v2548
  %v2638 = vunpack.c.l.b16 %v2549
  %v2639 = vunpack.c.h.b16 %v2549
  %v2640 = vunpack.c.l.b16 %v2550
  %v2641 = vunpack.c.h.b16 %v2550
  %v2642 = vunpack.c.l.b16 %v2551
  %v2643 = vunpack.c.h.b16 %v2551
  %v2644 = vunpack.c.l.b16 %v2552
  %v2645 = vunpack.c.h.b16 %v2552
  %v2646 = vunpack.c.l.b16 %v2553
  %v2647 = vunpack.c.h.b16 %v2553
  %v2648 = vunpack.c.l.b16 %v2554
  %v2649 = vunpack.c.h.b16 %v2554
  %v2650 = vunpack.c.l.b16 %v2555
  %v2651 = vunpack.c.h.b16 %v2555
  %v2652 = vpack.c.b16 %v2592, %v2588
  %v2653 = vpack.c.b16 %v2593, %v2589
  %v2654 = vpack.c.b16 %v2594, %v2590
  %v2655 = vpack.c.b16 %v2595, %v2591
  %v2656 = vpack.c.b16 %v2600, %v2596
  %v2657 = vpack.c.b16 %v2601, %v2597
  %v2658 = vpack.c.b16 %v2602, %v2598
  %v2659 = vpack.c.b16 %v2603, %v2599
  %v2660 = vpack.c.b16 %v2608, %v2604
  %v2661 = vpack.c.b16 %v2609, %v2605
  %v2662 = vpack.c.b16 %v2610, %v2606
  %v2663 = vpack.c.b16 %v2611, %v2607
  %v2664 = vpack.c.b16 %v2616, %v2612
  %v2665 = vpack.c.b16 %v2617, %v2613
  %v2666 = vpack.c.b16 %v2618, %v2614
  %v2667 = vpack.c.b16 %v2619, %v2615
  %v2668 = vpack.c.b16 %v2624, %v2620
  %v2669 = vpack.c.b16 %v2625, %v2621
  %v2670 = vpack.c.b16 %v2626, %v2622
  %v2671 = vpack.c.b16 %v2627, %v2623
  %v2672 = vpack.c.b16 %v2632, %v2628
  %v2673 = vpack.c.b16 %v2633, %v2629
  %v2674 = vpack.c.b16 %v2634, %v2630
  %v2675 = vpack.c.b16 %v2635, %v2631
  %v2676 = vpack.c.b16 %v2640, %v2636
  %v2677 = vpack.c.b16 %v2641, %v2637
  %v2678 = vpack.c.b16 %v2642, %v2638
  %v2679 = vpack.c.b16 %v2643, %v2639
  %v2680 = vpack.c.b16 %v2648, %v2644
  %v2681 = vpack.c.b16 %v2649, %v2645
  %v2682 = vpack.c.b16 %v2650, %v2646
  %v2683 = vpack.c.b16 %v2651, %v2647
  %2716 = vmatprep.subr.bf16.mxu0 %v2653
  %2717 = vmatpush1.bf16.msra.mxu0 %v2652
  %2718 = vmatprep.subr.bf16.mxu0 %v2657
  %2719 = vmatpush1.bf16.msra.mxu0 %v2656
  %2720 = vmatprep.subr.bf16.mxu0 %v2661
  %2721 = vmatpush1.bf16.msra.mxu0 %v2660
  %2722 = vmatprep.subr.bf16.mxu0 %v2665
  %2723 = vmatpush1.bf16.msra.mxu0 %v2664
  %2724 = vmatprep.subr.bf16.mxu0 %v2669
  %2725 = vmatpush1.bf16.msra.mxu0 %v2668
  %2726 = vmatprep.subr.bf16.mxu0 %v2673
  %2727 = vmatpush1.bf16.msra.mxu0 %v2672
  %2728 = vmatprep.subr.bf16.mxu0 %v2677
  %2729 = vmatpush1.bf16.msra.mxu0 %v2676
  %2730 = vmatprep.subr.bf16.mxu0 %v2681
  %2731 = vmatpush1.bf16.msra.mxu0 %v2680
  %2732 = vmatprep.subr.bf16.mxu0 0
  %2733 = vmatpush1.bf16.msra.mxu0 0
  %2734 = vmatprep.subr.bf16.mxu0 0
  %2735 = vmatpush1.bf16.msra.mxu0 0
  %2736 = vmatprep.subr.bf16.mxu0 0
  %2737 = vmatpush1.bf16.msra.mxu0 0
  %2738 = vmatprep.subr.bf16.mxu0 0
  %2739 = vmatpush1.bf16.msra.mxu0 0
  %2740 = vmatprep.subr.bf16.mxu0 0
  %2741 = vmatpush1.bf16.msra.mxu0 0
  %2742 = vmatprep.subr.bf16.mxu0 0
  %2743 = vmatpush1.bf16.msra.mxu0 0
  %2744 = vmatprep.subr.bf16.mxu0 0
  %2745 = vmatpush1.bf16.msra.mxu0 0
  %2746 = vmatprep.subr.bf16.mxu0 0
  %2747 = vmatpush1.bf16.msra.mxu0 0
  %2748 = vmatprep.mubr.bf16.mxu0 0
  %2749 = vmatmul.mubr.bf16.gmra.mrb[0].mxu0 %v2208
  %v2750 = vpop.f32.mrb[0].mxu0
  %v2751 = vadd.f32 0.0, %v2750
  %v2752 = vpop.f32.mrb[0].mxu0
  %v2753 = vadd.f32 0.0, %v2752
  %v2754 = vpop.f32.mrb[0].mxu0
  %v2755 = vpop.f32.mrb[0].mxu0
  %2756 = vdwg.mxu0
  %2757 = vmatprep.subr.bf16.mxu0 %v2655
  %2758 = vmatpush1.bf16.msra.mxu0 %v2654
  %2759 = vmatprep.subr.bf16.mxu0 %v2659
  %2760 = vmatpush1.bf16.msra.mxu0 %v2658
  %2761 = vmatprep.subr.bf16.mxu0 %v2663
  %2762 = vmatpush1.bf16.msra.mxu0 %v2662
  %2763 = vmatprep.subr.bf16.mxu0 %v2667
  %2764 = vmatpush1.bf16.msra.mxu0 %v2666
  %2765 = vmatprep.subr.bf16.mxu0 %v2671
  %2766 = vmatpush1.bf16.msra.mxu0 %v2670
  %2767 = vmatprep.subr.bf16.mxu0 %v2675
  %2768 = vmatpush1.bf16.msra.mxu0 %v2674
  %2769 = vmatprep.subr.bf16.mxu0 %v2679
  %2770 = vmatpush1.bf16.msra.mxu0 %v2678
  %2771 = vmatprep.subr.bf16.mxu0 %v2683
  %2772 = vmatpush1.bf16.msra.mxu0 %v2682
  %2773 = vmatprep.subr.bf16.mxu0 0
  %2774 = vmatpush1.bf16.msra.mxu0 0
  %2775 = vmatprep.subr.bf16.mxu0 0
  %2776 = vmatpush1.bf16.msra.mxu0 0
  %2777 = vmatprep.subr.bf16.mxu0 0
  %2778 = vmatpush1.bf16.msra.mxu0 0
  %2779 = vmatprep.subr.bf16.mxu0 0
  %2780 = vmatpush1.bf16.msra.mxu0 0
  %2781 = vmatprep.subr.bf16.mxu0 0
  %2782 = vmatpush1.bf16.msra.mxu0 0
  %2783 = vmatprep.subr.bf16.mxu0 0
  %2784 = vmatpush1.bf16.msra.mxu0 0
  %2785 = vmatprep.subr.bf16.mxu0 0
  %2786 = vmatpush1.bf16.msra.mxu0 0
  %2787 = vmatprep.subr.bf16.mxu0 0
  %2788 = vmatpush1.bf16.msra.mxu0 0
  %2789 = vmatprep.mubr.bf16.mxu0 0
  %2790 = vmatmul.mubr.bf16.gmra.mrb[0].mxu0 %v2208
  %v2791 = vpop.f32.mrb[0].mxu0
  %v2792 = vadd.f32 0.0, %v2791
  %v2793 = vpop.f32.mrb[0].mxu0
  %v2794 = vadd.f32 0.0, %v2793
  %v2795 = vpop.f32.mrb[0].mxu0
  %v2796 = vpop.f32.mrb[0].mxu0
  %2797 = vdwg.mxu0
  %v2798 = vadd.f32 %v2520, %v2751
  %v2799 = vadd.f32 %v2521, %v2753
  %v2800 = vadd.f32 %v2522, %v2792
  %v2801 = vadd.f32 %v2523, %v2794
  %v2802 = vmul.f32 %v2798, 0.5
  %v2803 = vtanh.pop %v2802
  %v2804 = vmul.f32 %v2803, 0.5
  %v2805 = vadd.f32 %v2804, 0.5
  %v2806 = vmul.f32 %v2799, 0.5
  %v2807 = vtanh.pop %v2806
  %v2808 = vmul.f32 %v2807, 0.5
  %v2809 = vadd.f32 %v2808, 0.5
  %v2810 = vtanh.pop %v2800
  %v2811 = vmul.f32 %v2801, 0.5
  %v2812 = vtanh.pop %v2811
  %v2813 = vmul.f32 %v2812, 0.5
  %v2814 = vadd.f32 %v2813, 0.5
  %v2815 = vmul.f32 %v2809, %v2205
  %v2816 = vmul.f32 %v2805, %v2810
  %v2817 = vadd.f32 %v2815, %v2816
  %v2818 = vtanh.pop %v2817
  %v2819 = vmul.f32 %v2814, %v2818
  %v2820 = vpack.c.bf16 %v2819, %v2819
  %s2821 = scalar_lea.vmem %s3, 16
  %2822 = vst [vmem:[%s2821] sm:$0xf] %v2820
  %s2823 = scalar_lea.vmem %s44, 48
  %v2824 = vld [vmem:[%s2823] sm:$0xff]
  %v2825 = vld [vmem:[%s2823 + $0x8] sm:$0xff]
  %v2826 = vunpack.c.l.bf16 %v2824
  %v2827 = vunpack.c.h.bf16 %v2824
  %v2828 = vunpack.c.l.bf16 %v2825
  %v2829 = vunpack.c.h.bf16 %v2825
  %v2830 = vld [vmem:[%s381] sm:$0xff]
  %v2831 = vld [vmem:[%s381 + $0x8] sm:$0xff]
  %v2832 = vld [vmem:[%s381 + $0x10] sm:$0xff]
  %v2833 = vld [vmem:[%s381 + $0x18] sm:$0xff]
  %v2834 = vld [vmem:[%s381 + $0x20] sm:$0xff]
  %v2835 = vld [vmem:[%s381 + $0x28] sm:$0xff]
  %v2836 = vld [vmem:[%s381 + $0x30] sm:$0xff]
  %v2837 = vld [vmem:[%s381 + $0x38] sm:$0xff]
  %v2838 = vld [vmem:[%s381 + $0x40] sm:$0xff]
  %v2839 = vld [vmem:[%s381 + $0x48] sm:$0xff]
  %v2840 = vld [vmem:[%s381 + $0x50] sm:$0xff]
  %v2841 = vld [vmem:[%s381 + $0x58] sm:$0xff]
  %v2842 = vld [vmem:[%s381 + $0x60] sm:$0xff]
  %v2843 = vld [vmem:[%s381 + $0x68] sm:$0xff]
  %v2844 = vld [vmem:[%s381 + $0x70] sm:$0xff]
  %v2845 = vld [vmem:[%s381 + $0x78] sm:$0xff]
  %v2846 = vld [vmem:[%s381 + $0x80] sm:$0xff]
  %v2847 = vld [vmem:[%s381 + $0x88] sm:$0xff]
  %v2848 = vld [vmem:[%s381 + $0x90] sm:$0xff]
  %v2849 = vld [vmem:[%s381 + $0x98] sm:$0xff]
  %v2850 = vld [vmem:[%s381 + $0xa0] sm:$0xff]
  %v2851 = vld [vmem:[%s381 + $0xa8] sm:$0xff]
  %v2852 = vld [vmem:[%s381 + $0xb0] sm:$0xff]
  %v2853 = vld [vmem:[%s381 + $0xb8] sm:$0xff]
  %v2854 = vld [vmem:[%s381 + $0xc0] sm:$0xff]
  %v2855 = vld [vmem:[%s381 + $0xc8] sm:$0xff]
  %v2856 = vld [vmem:[%s381 + $0xd0] sm:$0xff]
  %v2857 = vld [vmem:[%s381 + $0xd8] sm:$0xff]
  %v2858 = vld [vmem:[%s381 + $0xe0] sm:$0xff]
  %v2859 = vld [vmem:[%s381 + $0xe8] sm:$0xff]
  %v2860 = vld [vmem:[%s381 + $0xf0] sm:$0xff]
  %v2861 = vld [vmem:[%s381 + $0xf8] sm:$0xff]
  %v2894 = vunpack.c.l.b16 %v2830
  %v2895 = vunpack.c.h.b16 %v2830
  %v2896 = vunpack.c.l.b16 %v2831
  %v2897 = vunpack.c.h.b16 %v2831
  %v2898 = vunpack.c.l.b16 %v2832
  %v2899 = vunpack.c.h.b16 %v2832
  %v2900 = vunpack.c.l.b16 %v2833
  %v2901 = vunpack.c.h.b16 %v2833
  %v2902 = vunpack.c.l.b16 %v2834
  %v2903 = vunpack.c.h.b16 %v2834
  %v2904 = vunpack.c.l.b16 %v2835
  %v2905 = vunpack.c.h.b16 %v2835
  %v2906 = vunpack.c.l.b16 %v2836
  %v2907 = vunpack.c.h.b16 %v2836
  %v2908 = vunpack.c.l.b16 %v2837
  %v2909 = vunpack.c.h.b16 %v2837
  %v2910 = vunpack.c.l.b16 %v2838
  %v2911 = vunpack.c.h.b16 %v2838
  %v2912 = vunpack.c.l.b16 %v2839
  %v2913 = vunpack.c.h.b16 %v2839
  %v2914 = vunpack.c.l.b16 %v2840
  %v2915 = vunpack.c.h.b16 %v2840
  %v2916 = vunpack.c.l.b16 %v2841
  %v2917 = vunpack.c.h.b16 %v2841
  %v2918 = vunpack.c.l.b16 %v2842
  %v2919 = vunpack.c.h.b16 %v2842
  %v2920 = vunpack.c.l.b16 %v2843
  %v2921 = vunpack.c.h.b16 %v2843
  %v2922 = vunpack.c.l.b16 %v2844
  %v2923 = vunpack.c.h.b16 %v2844
  %v2924 = vunpack.c.l.b16 %v2845
  %v2925 = vunpack.c.h.b16 %v2845
  %v2926 = vunpack.c.l.b16 %v2846
  %v2927 = vunpack.c.h.b16 %v2846
  %v2928 = vunpack.c.l.b16 %v2847
  %v2929 = vunpack.c.h.b16 %v2847
  %v2930 = vunpack.c.l.b16 %v2848
  %v2931 = vunpack.c.h.b16 %v2848
  %v2932 = vunpack.c.l.b16 %v2849
  %v2933 = vunpack.c.h.b16 %v2849
  %v2934 = vunpack.c.l.b16 %v2850
  %v2935 = vunpack.c.h.b16 %v2850
  %v2936 = vunpack.c.l.b16 %v2851
  %v2937 = vunpack.c.h.b16 %v2851
  %v2938 = vunpack.c.l.b16 %v2852
  %v2939 = vunpack.c.h.b16 %v2852
  %v2940 = vunpack.c.l.b16 %v2853
  %v2941 = vunpack.c.h.b16 %v2853
  %v2942 = vunpack.c.l.b16 %v2854
  %v2943 = vunpack.c.h.b16 %v2854
  %v2944 = vunpack.c.l.b16 %v2855
  %v2945 = vunpack.c.h.b16 %v2855
  %v2946 = vunpack.c.l.b16 %v2856
  %v2947 = vunpack.c.h.b16 %v2856
  %v2948 = vunpack.c.l.b16 %v2857
  %v2949 = vunpack.c.h.b16 %v2857
  %v2950 = vunpack.c.l.b16 %v2858
  %v2951 = vunpack.c.h.b16 %v2858
  %v2952 = vunpack.c.l.b16 %v2859
  %v2953 = vunpack.c.h.b16 %v2859
  %v2954 = vunpack.c.l.b16 %v2860
  %v2955 = vunpack.c.h.b16 %v2860
  %v2956 = vunpack.c.l.b16 %v2861
  %v2957 = vunpack.c.h.b16 %v2861
  %v2958 = vpack.c.b16 %v2898, %v2894
  %v2959 = vpack.c.b16 %v2899, %v2895
  %v2960 = vpack.c.b16 %v2900, %v2896
  %v2961 = vpack.c.b16 %v2901, %v2897
  %v2962 = vpack.c.b16 %v2906, %v2902
  %v2963 = vpack.c.b16 %v2907, %v2903
  %v2964 = vpack.c.b16 %v2908, %v2904
  %v2965 = vpack.c.b16 %v2909, %v2905
  %v2966 = vpack.c.b16 %v2914, %v2910
  %v2967 = vpack.c.b16 %v2915, %v2911
  %v2968 = vpack.c.b16 %v2916, %v2912
  %v2969 = vpack.c.b16 %v2917, %v2913
  %v2970 = vpack.c.b16 %v2922, %v2918
  %v2971 = vpack.c.b16 %v2923, %v2919
  %v2972 = vpack.c.b16 %v2924, %v2920
  %v2973 = vpack.c.b16 %v2925, %v2921
  %v2974 = vpack.c.b16 %v2930, %v2926
  %v2975 = vpack.c.b16 %v2931, %v2927
  %v2976 = vpack.c.b16 %v2932, %v2928
  %v2977 = vpack.c.b16 %v2933, %v2929
  %v2978 = vpack.c.b16 %v2938, %v2934
  %v2979 = vpack.c.b16 %v2939, %v2935
  %v2980 = vpack.c.b16 %v2940, %v2936
  %v2981 = vpack.c.b16 %v2941, %v2937
  %v2982 = vpack.c.b16 %v2946, %v2942
  %v2983 = vpack.c.b16 %v2947, %v2943
  %v2984 = vpack.c.b16 %v2948, %v2944
  %v2985 = vpack.c.b16 %v2949, %v2945
  %v2986 = vpack.c.b16 %v2954, %v2950
  %v2987 = vpack.c.b16 %v2955, %v2951
  %v2988 = vpack.c.b16 %v2956, %v2952
  %v2989 = vpack.c.b16 %v2957, %v2953
  %3022 = vmatprep.subr.bf16.mxu0 %v2959
  %3023 = vmatpush1.bf16.msra.mxu0 %v2958
  %3024 = vmatprep.subr.bf16.mxu0 %v2963
  %3025 = vmatpush1.bf16.msra.mxu0 %v2962
  %3026 = vmatprep.subr.bf16.mxu0 %v2967
  %3027 = vmatpush1.bf16.msra.mxu0 %v2966
  %3028 = vmatprep.subr.bf16.mxu0 %v2971
  %3029 = vmatpush1.bf16.msra.mxu0 %v2970
  %3030 = vmatprep.subr.bf16.mxu0 %v2975
  %3031 = vmatpush1.bf16.msra.mxu0 %v2974
  %3032 = vmatprep.subr.bf16.mxu0 %v2979
  %3033 = vmatpush1.bf16.msra.mxu0 %v2978
  %3034 = vmatprep.subr.bf16.mxu0 %v2983
  %3035 = vmatpush1.bf16.msra.mxu0 %v2982
  %3036 = vmatprep.subr.bf16.mxu0 %v2987
  %3037 = vmatpush1.bf16.msra.mxu0 %v2986
  %3038 = vmatprep.subr.bf16.mxu0 0
  %3039 = vmatpush1.bf16.msra.mxu0 0
  %3040 = vmatprep.subr.bf16.mxu0 0
  %3041 = vmatpush1.bf16.msra.mxu0 0
  %3042 = vmatprep.subr.bf16.mxu0 0
  %3043 = vmatpush1.bf16.msra.mxu0 0
  %3044 = vmatprep.subr.bf16.mxu0 0
  %3045 = vmatpush1.bf16.msra.mxu0 0
  %3046 = vmatprep.subr.bf16.mxu0 0
  %3047 = vmatpush1.bf16.msra.mxu0 0
  %3048 = vmatprep.subr.bf16.mxu0 0
  %3049 = vmatpush1.bf16.msra.mxu0 0
  %3050 = vmatprep.subr.bf16.mxu0 0
  %3051 = vmatpush1.bf16.msra.mxu0 0
  %3052 = vmatprep.subr.bf16.mxu0 0
  %3053 = vmatpush1.bf16.msra.mxu0 0
  %3054 = vmatprep.mubr.bf16.mxu0 0
  %3055 = vmatmul.mubr.bf16.gmra.mrb[0].mxu0 %v2514
  %v3056 = vpop.f32.mrb[0].mxu0
  %v3057 = vadd.f32 0.0, %v3056
  %v3058 = vpop.f32.mrb[0].mxu0
  %v3059 = vadd.f32 0.0, %v3058
  %v3060 = vpop.f32.mrb[0].mxu0
  %v3061 = vpop.f32.mrb[0].mxu0
  %3062 = vdwg.mxu0
  %3063 = vmatprep.subr.bf16.mxu0 %v2961
  %3064 = vmatpush1.bf16.msra.mxu0 %v2960
  %3065 = vmatprep.subr.bf16.mxu0 %v2965
  %3066 = vmatpush1.bf16.msra.mxu0 %v2964
  %3067 = vmatprep.subr.bf16.mxu0 %v2969
  %3068 = vmatpush1.bf16.msra.mxu0 %v2968
  %3069 = vmatprep.subr.bf16.mxu0 %v2973
  %3070 = vmatpush1.bf16.msra.mxu0 %v2972
  %3071 = vmatprep.subr.bf16.mxu0 %v2977
  %3072 = vmatpush1.bf16.msra.mxu0 %v2976
  %3073 = vmatprep.subr.bf16.mxu0 %v2981
  %3074 = vmatpush1.bf16.msra.mxu0 %v2980
  %3075 = vmatprep.subr.bf16.mxu0 %v2985
  %3076 = vmatpush1.bf16.msra.mxu0 %v2984
  %3077 = vmatprep.subr.bf16.mxu0 %v2989
  %3078 = vmatpush1.bf16.msra.mxu0 %v2988
  %3079 = vmatprep.subr.bf16.mxu0 0
  %3080 = vmatpush1.bf16.msra.mxu0 0
  %3081 = vmatprep.subr.bf16.mxu0 0
  %3082 = vmatpush1.bf16.msra.mxu0 0
  %3083 = vmatprep.subr.bf16.mxu0 0
  %3084 = vmatpush1.bf16.msra.mxu0 0
  %3085 = vmatprep.subr.bf16.mxu0 0
  %3086 = vmatpush1.bf16.msra.mxu0 0
  %3087 = vmatprep.subr.bf16.mxu0 0
  %3088 = vmatpush1.bf16.msra.mxu0 0
  %3089 = vmatprep.subr.bf16.mxu0 0
  %3090 = vmatpush1.bf16.msra.mxu0 0
  %3091 = vmatprep.subr.bf16.mxu0 0
  %3092 = vmatpush1.bf16.msra.mxu0 0
  %3093 = vmatprep.subr.bf16.mxu0 0
  %3094 = vmatpush1.bf16.msra.mxu0 0
  %3095 = vmatprep.mubr.bf16.mxu0 0
  %3096 = vmatmul.mubr.bf16.gmra.mrb[0].mxu0 %v2514
  %v3097 = vpop.f32.mrb[0].mxu0
  %v3098 = vadd.f32 0.0, %v3097
  %v3099 = vpop.f32.mrb[0].mxu0
  %v3100 = vadd.f32 0.0, %v3099
  %v3101 = vpop.f32.mrb[0].mxu0
  %v3102 = vpop.f32.mrb[0].mxu0
  %3103 = vdwg.mxu0
  %v3104 = vadd.f32 %v2826, %v3057
  %v3105 = vadd.f32 %v2827, %v3059
  %v3106 = vadd.f32 %v2828, %v3098
  %v3107 = vadd.f32 %v2829, %v3100
  %v3108 = vmul.f32 %v3104, 0.5
  %v3109 = vtanh.pop %v3108
  %v3110 = vmul.f32 %v3109, 0.5
  %v3111 = vadd.f32 %v3110, 0.5
  %v3112 = vmul.f32 %v3105, 0.5
  %v3113 = vtanh.pop %v3112
  %v3114 = vmul.f32 %v3113, 0.5
  %v3115 = vadd.f32 %v3114, 0.5
  %v3116 = vtanh.pop %v3106
  %v3117 = vmul.f32 %v3107, 0.5
  %v3118 = vtanh.pop %v3117
  %v3119 = vmul.f32 %v3118, 0.5
  %v3120 = vadd.f32 %v3119, 0.5
  %v3121 = vmul.f32 %v3115, %v2511
  %v3122 = vmul.f32 %v3111, %v3116
  %v3123 = vadd.f32 %v3121, %v3122
  %v3124 = vtanh.pop %v3123
  %v3125 = vmul.f32 %v3120, %v3124
  %v3126 = vpack.c.bf16 %v3125, %v3125
  %s3127 = scalar_lea.vmem %s52, 12
  %3128 = vst [vmem:[%s3127] sm:$0xf] %v3126
  %s3129 = scalar_lea.vmem %s0, 80
  %v3130 = vld [vmem:[%s3129] sm:$0xff]
  %v3131 = vld [vmem:[%s3129 + $0x8] sm:$0xff]
  %v3132 = vunpack.c.l.bf16 %v3130
  %v3133 = vunpack.c.h.bf16 %v3130
  %v3134 = vunpack.c.l.bf16 %v3131
  %v3135 = vunpack.c.h.bf16 %v3131
  %v3136 = vld [vmem:[%s2] sm:$0xff]
  %v3137 = vld [vmem:[%s2 + $0x8] sm:$0xff]
  %v3138 = vld [vmem:[%s2 + $0x10] sm:$0xff]
  %v3139 = vld [vmem:[%s2 + $0x18] sm:$0xff]
  %v3140 = vld [vmem:[%s2 + $0x20] sm:$0xff]
  %v3141 = vld [vmem:[%s2 + $0x28] sm:$0xff]
  %v3142 = vld [vmem:[%s2 + $0x30] sm:$0xff]
  %v3143 = vld [vmem:[%s2 + $0x38] sm:$0xff]
  %v3144 = vld [vmem:[%s2 + $0x40] sm:$0xff]
  %v3145 = vld [vmem:[%s2 + $0x48] sm:$0xff]
  %v3146 = vld [vmem:[%s2 + $0x50] sm:$0xff]
  %v3147 = vld [vmem:[%s2 + $0x58] sm:$0xff]
  %v3148 = vld [vmem:[%s2 + $0x60] sm:$0xff]
  %v3149 = vld [vmem:[%s2 + $0x68] sm:$0xff]
  %v3150 = vld [vmem:[%s2 + $0x70] sm:$0xff]
  %v3151 = vld [vmem:[%s2 + $0x78] sm:$0xff]
  %v3152 = vld [vmem:[%s2 + $0x80] sm:$0xff]
  %v3153 = vld [vmem:[%s2 + $0x88] sm:$0xff]
  %v3154 = vld [vmem:[%s2 + $0x90] sm:$0xff]
  %v3155 = vld [vmem:[%s2 + $0x98] sm:$0xff]
  %v3156 = vld [vmem:[%s2 + $0xa0] sm:$0xff]
  %v3157 = vld [vmem:[%s2 + $0xa8] sm:$0xff]
  %v3158 = vld [vmem:[%s2 + $0xb0] sm:$0xff]
  %v3159 = vld [vmem:[%s2 + $0xb8] sm:$0xff]
  %v3160 = vld [vmem:[%s2 + $0xc0] sm:$0xff]
  %v3161 = vld [vmem:[%s2 + $0xc8] sm:$0xff]
  %v3162 = vld [vmem:[%s2 + $0xd0] sm:$0xff]
  %v3163 = vld [vmem:[%s2 + $0xd8] sm:$0xff]
  %v3164 = vld [vmem:[%s2 + $0xe0] sm:$0xff]
  %v3165 = vld [vmem:[%s2 + $0xe8] sm:$0xff]
  %v3166 = vld [vmem:[%s2 + $0xf0] sm:$0xff]
  %v3167 = vld [vmem:[%s2 + $0xf8] sm:$0xff]
  %v3200 = vunpack.c.l.b16 %v3136
  %v3201 = vunpack.c.h.b16 %v3136
  %v3202 = vunpack.c.l.b16 %v3137
  %v3203 = vunpack.c.h.b16 %v3137
  %v3204 = vunpack.c.l.b16 %v3138
  %v3205 = vunpack.c.h.b16 %v3138
  %v3206 = vunpack.c.l.b16 %v3139
  %v3207 = vunpack.c.h.b16 %v3139
  %v3208 = vunpack.c.l.b16 %v3140
  %v3209 = vunpack.c.h.b16 %v3140
  %v3210 = vunpack.c.l.b16 %v3141
  %v3211 = vunpack.c.h.b16 %v3141
  %v3212 = vunpack.c.l.b16 %v3142
  %v3213 = vunpack.c.h.b16 %v3142
  %v3214 = vunpack.c.l.b16 %v3143
  %v3215 = vunpack.c.h.b16 %v3143
  %v3216 = vunpack.c.l.b16 %v3144
  %v3217 = vunpack.c.h.b16 %v3144
  %v3218 = vunpack.c.l.b16 %v3145
  %v3219 = vunpack.c.h.b16 %v3145
  %v3220 = vunpack.c.l.b16 %v3146
  %v3221 = vunpack.c.h.b16 %v3146
  %v3222 = vunpack.c.l.b16 %v3147
  %v3223 = vunpack.c.h.b16 %v3147
  %v3224 = vunpack.c.l.b16 %v3148
  %v3225 = vunpack.c.h.b16 %v3148
  %v3226 = vunpack.c.l.b16 %v3149
  %v3227 = vunpack.c.h.b16 %v3149
  %v3228 = vunpack.c.l.b16 %v3150
  %v3229 = vunpack.c.h.b16 %v3150
  %v3230 = vunpack.c.l.b16 %v3151
  %v3231 = vunpack.c.h.b16 %v3151
  %v3232 = vunpack.c.l.b16 %v3152
  %v3233 = vunpack.c.h.b16 %v3152
  %v3234 = vunpack.c.l.b16 %v3153
  %v3235 = vunpack.c.h.b16 %v3153
  %v3236 = vunpack.c.l.b16 %v3154
  %v3237 = vunpack.c.h.b16 %v3154
  %v3238 = vunpack.c.l.b16 %v3155
  %v3239 = vunpack.c.h.b16 %v3155
  %v3240 = vunpack.c.l.b16 %v3156
  %v3241 = vunpack.c.h.b16 %v3156
  %v3242 = vunpack.c.l.b16 %v3157
  %v3243 = vunpack.c.h.b16 %v3157
  %v3244 = vunpack.c.l.b16 %v3158
  %v3245 = vunpack.c.h.b16 %v3158
  %v3246 = vunpack.c.l.b16 %v3159
  %v3247 = vunpack.c.h.b16 %v3159
  %v3248 = vunpack.c.l.b16 %v3160
  %v3249 = vunpack.c.h.b16 %v3160
  %v3250 = vunpack.c.l.b16 %v3161
  %v3251 = vunpack.c.h.b16 %v3161
  %v3252 = vunpack.c.l.b16 %v3162
  %v3253 = vunpack.c.h.b16 %v3162
  %v3254 = vunpack.c.l.b16 %v3163
  %v3255 = vunpack.c.h.b16 %v3163
  %v3256 = vunpack.c.l.b16 %v3164
  %v3257 = vunpack.c.h.b16 %v3164
  %v3258 = vunpack.c.l.b16 %v3165
  %v3259 = vunpack.c.h.b16 %v3165
  %v3260 = vunpack.c.l.b16 %v3166
  %v3261 = vunpack.c.h.b16 %v3166
  %v3262 = vunpack.c.l.b16 %v3167
  %v3263 = vunpack.c.h.b16 %v3167
  %v3264 = vpack.c.b16 %v3204, %v3200
  %v3265 = vpack.c.b16 %v3205, %v3201
  %v3266 = vpack.c.b16 %v3206, %v3202
  %v3267 = vpack.c.b16 %v3207, %v3203
  %v3268 = vpack.c.b16 %v3212, %v3208
  %v3269 = vpack.c.b16 %v3213, %v3209
  %v3270 = vpack.c.b16 %v3214, %v3210
  %v3271 = vpack.c.b16 %v3215, %v3211
  %v3272 = vpack.c.b16 %v3220, %v3216
  %v3273 = vpack.c.b16 %v3221, %v3217
  %v3274 = vpack.c.b16 %v3222, %v3218
  %v3275 = vpack.c.b16 %v3223, %v3219
  %v3276 = vpack.c.b16 %v3228, %v3224
  %v3277 = vpack.c.b16 %v3229, %v3225
  %v3278 = vpack.c.b16 %v3230, %v3226
  %v3279 = vpack.c.b16 %v3231, %v3227
  %v3280 = vpack.c.b16 %v3236, %v3232
  %v3281 = vpack.c.b16 %v3237, %v3233
  %v3282 = vpack.c.b16 %v3238, %v3234
  %v3283 = vpack.c.b16 %v3239, %v3235
  %v3284 = vpack.c.b16 %v3244, %v3240
  %v3285 = vpack.c.b16 %v3245, %v3241
  %v3286 = vpack.c.b16 %v3246, %v3242
  %v3287 = vpack.c.b16 %v3247, %v3243
  %v3288 = vpack.c.b16 %v3252, %v3248
  %v3289 = vpack.c.b16 %v3253, %v3249
  %v3290 = vpack.c.b16 %v3254, %v3250
  %v3291 = vpack.c.b16 %v3255, %v3251
  %v3292 = vpack.c.b16 %v3260, %v3256
  %v3293 = vpack.c.b16 %v3261, %v3257
  %v3294 = vpack.c.b16 %v3262, %v3258
  %v3295 = vpack.c.b16 %v3263, %v3259
  %3328 = vmatprep.subr.bf16.mxu0 %v3265
  %3329 = vmatpush1.bf16.msra.mxu0 %v3264
  %3330 = vmatprep.subr.bf16.mxu0 %v3269
  %3331 = vmatpush1.bf16.msra.mxu0 %v3268
  %3332 = vmatprep.subr.bf16.mxu0 %v3273
  %3333 = vmatpush1.bf16.msra.mxu0 %v3272
  %3334 = vmatprep.subr.bf16.mxu0 %v3277
  %3335 = vmatpush1.bf16.msra.mxu0 %v3276
  %3336 = vmatprep.subr.bf16.mxu0 %v3281
  %3337 = vmatpush1.bf16.msra.mxu0 %v3280
  %3338 = vmatprep.subr.bf16.mxu0 %v3285
  %3339 = vmatpush1.bf16.msra.mxu0 %v3284
  %3340 = vmatprep.subr.bf16.mxu0 %v3289
  %3341 = vmatpush1.bf16.msra.mxu0 %v3288
  %3342 = vmatprep.subr.bf16.mxu0 %v3293
  %3343 = vmatpush1.bf16.msra.mxu0 %v3292
  %3344 = vmatprep.subr.bf16.mxu0 0
  %3345 = vmatpush1.bf16.msra.mxu0 0
  %3346 = vmatprep.subr.bf16.mxu0 0
  %3347 = vmatpush1.bf16.msra.mxu0 0
  %3348 = vmatprep.subr.bf16.mxu0 0
  %3349 = vmatpush1.bf16.msra.mxu0 0
  %3350 = vmatprep.subr.bf16.mxu0 0
  %3351 = vmatpush1.bf16.msra.mxu0 0
  %3352 = vmatprep.subr.bf16.mxu0 0
  %3353 = vmatpush1.bf16.msra.mxu0 0
  %3354 = vmatprep.subr.bf16.mxu0 0
  %3355 = vmatpush1.bf16.msra.mxu0 0
  %3356 = vmatprep.subr.bf16.mxu0 0
  %3357 = vmatpush1.bf16.msra.mxu0 0
  %3358 = vmatprep.subr.bf16.mxu0 0
  %3359 = vmatpush1.bf16.msra.mxu0 0
  %3360 = vmatprep.mubr.bf16.mxu0 0
  %3361 = vmatmul.mubr.bf16.gmra.mrb[0].mxu0 %v2820
  %v3362 = vpop.f32.mrb[0].mxu0
  %v3363 = vadd.f32 0.0, %v3362
  %v3364 = vpop.f32.mrb[0].mxu0
  %v3365 = vadd.f32 0.0, %v3364
  %v3366 = vpop.f32.mrb[0].mxu0
  %v3367 = vpop.f32.mrb[0].mxu0
  %3368 = vdwg.mxu0
  %3369 = vmatprep.subr.bf16.mxu0 %v3267
  %3370 = vmatpush1.bf16.msra.mxu0 %v3266
  %3371 = vmatprep.subr.bf16.mxu0 %v3271
  %3372 = vmatpush1.bf16.msra.mxu0 %v3270
  %3373 = vmatprep.subr.bf16.mxu0 %v3275
  %3374 = vmatpush1.bf16.msra.mxu0 %v3274
  %3375 = vmatprep.subr.bf16.mxu0 %v3279
  %3376 = vmatpush1.bf16.msra.mxu0 %v3278
  %3377 = vmatprep.subr.bf16.mxu0 %v3283
  %3378 = vmatpush1.bf16.msra.mxu0 %v3282
  %3379 = vmatprep.subr.bf16.mxu0 %v3287
  %3380 = vmatpush1.bf16.msra.mxu0 %v3286
  %3381 = vmatprep.subr.bf16.mxu0 %v3291
  %3382 = vmatpush1.bf16.msra.mxu0 %v3290
  %3383 = vmatprep.subr.bf16.mxu0 %v3295
  %3384 = vmatpush1.bf16.msra.mxu0 %v3294
  %3385 = vmatprep.subr.bf16.mxu0 0
  %3386 = vmatpush1.bf16.msra.mxu0 0
  %3387 = vmatprep.subr.bf16.mxu0 0
  %3388 = vmatpush1.bf16.msra.mxu0 0
  %3389 = vmatprep.subr.bf16.mxu0 0
  %3390 = vmatpush1.bf16.msra.mxu0 0
  %3391 = vmatprep.subr.bf16.mxu0 0
  %3392 = vmatpush1.bf16.msra.mxu0 0
  %3393 = vmatprep.subr.bf16.mxu0 0
  %3394 = vmatpush1.bf16.msra.mxu0 0
  %3395 = vmatprep.subr.bf16.mxu0 0
  %3396 = vmatpush1.bf16.msra.mxu0 0
  %3397 = vmatprep.subr.bf16.mxu0 0
  %3398 = vmatpush1.bf16.msra.mxu0 0
  %3399 = vmatprep.subr.bf16.mxu0 0
  %3400 = vmatpush1.bf16.msra.mxu0 0
  %3401 = vmatprep.mubr.bf16.mxu0 0
  %3402 = vmatmul.mubr.bf16.gmra.mrb[0].mxu0 %v2820
  %v3403 = vpop.f32.mrb[0].mxu0
  %v3404 = vadd.f32 0.0, %v3403
  %v3405 = vpop.f32.mrb[0].mxu0
  %v3406 = vadd.f32 0.0, %v3405
  %v3407 = vpop.f32.mrb[0].mxu0
  %v3408 = vpop.f32.mrb[0].mxu0
  %3409 = vdwg.mxu0
  %v3410 = vadd.f32 %v3132, %v3363
  %v3411 = vadd.f32 %v3133, %v3365
  %v3412 = vadd.f32 %v3134, %v3404
  %v3413 = vadd.f32 %v3135, %v3406
  %v3414 = vmul.f32 %v3410, 0.5
  %v3415 = vtanh.pop %v3414
  %v3416 = vmul.f32 %v3415, 0.5
  %v3417 = vadd.f32 %v3416, 0.5
  %v3418 = vmul.f32 %v3411, 0.5
  %v3419 = vtanh.pop %v3418
  %v3420 = vmul.f32 %v3419, 0.5
  %v3421 = vadd.f32 %v3420, 0.5
  %v3422 = vtanh.pop %v3412
  %v3423 = vmul.f32 %v3413, 0.5
  %v3424 = vtanh.pop %v3423
  %v3425 = vmul.f32 %v3424, 0.5
  %v3426 = vadd.f32 %v3425, 0.5
  %v3427 = vmul.f32 %v3421, %v2817
  %v3428 = vmul.f32 %v3417, %v3422
  %v3429 = vadd.f32 %v3427, %v3428
  %v3430 = vtanh.pop %v3429
  %v3431 = vmul.f32 %v3426, %v3430
  %v3432 = vpack.c.bf16 %v3431, %v3431
  %s3433 = scalar_lea.vmem %s3, 20
  %3434 = vst [vmem:[%s3433] sm:$0xf] %v3432
  %s3435 = scalar_lea.vmem %s44, 32
  %v3436 = vld [vmem:[%s3435] sm:$0xff]
  %v3437 = vld [vmem:[%s3435 + $0x8] sm:$0xff]
  %v3438 = vunpack.c.l.bf16 %v3436
  %v3439 = vunpack.c.h.bf16 %v3436
  %v3440 = vunpack.c.l.bf16 %v3437
  %v3441 = vunpack.c.h.bf16 %v3437
  %v3442 = vld [vmem:[%s381] sm:$0xff]
  %v3443 = vld [vmem:[%s381 + $0x8] sm:$0xff]
  %v3444 = vld [vmem:[%s381 + $0x10] sm:$0xff]
  %v3445 = vld [vmem:[%s381 + $0x18] sm:$0xff]
  %v3446 = vld [vmem:[%s381 + $0x20] sm:$0xff]
  %v3447 = vld [vmem:[%s381 + $0x28] sm:$0xff]
  %v3448 = vld [vmem:[%s381 + $0x30] sm:$0xff]
  %v3449 = vld [vmem:[%s381 + $0x38] sm:$0xff]
  %v3450 = vld [vmem:[%s381 + $0x40] sm:$0xff]
  %v3451 = vld [vmem:[%s381 + $0x48] sm:$0xff]
  %v3452 = vld [vmem:[%s381 + $0x50] sm:$0xff]
  %v3453 = vld [vmem:[%s381 + $0x58] sm:$0xff]
  %v3454 = vld [vmem:[%s381 + $0x60] sm:$0xff]
  %v3455 = vld [vmem:[%s381 + $0x68] sm:$0xff]
  %v3456 = vld [vmem:[%s381 + $0x70] sm:$0xff]
  %v3457 = vld [vmem:[%s381 + $0x78] sm:$0xff]
  %v3458 = vld [vmem:[%s381 + $0x80] sm:$0xff]
  %v3459 = vld [vmem:[%s381 + $0x88] sm:$0xff]
  %v3460 = vld [vmem:[%s381 + $0x90] sm:$0xff]
  %v3461 = vld [vmem:[%s381 + $0x98] sm:$0xff]
  %v3462 = vld [vmem:[%s381 + $0xa0] sm:$0xff]
  %v3463 = vld [vmem:[%s381 + $0xa8] sm:$0xff]
  %v3464 = vld [vmem:[%s381 + $0xb0] sm:$0xff]
  %v3465 = vld [vmem:[%s381 + $0xb8] sm:$0xff]
  %v3466 = vld [vmem:[%s381 + $0xc0] sm:$0xff]
  %v3467 = vld [vmem:[%s381 + $0xc8] sm:$0xff]
  %v3468 = vld [vmem:[%s381 + $0xd0] sm:$0xff]
  %v3469 = vld [vmem:[%s381 + $0xd8] sm:$0xff]
  %v3470 = vld [vmem:[%s381 + $0xe0] sm:$0xff]
  %v3471 = vld [vmem:[%s381 + $0xe8] sm:$0xff]
  %v3472 = vld [vmem:[%s381 + $0xf0] sm:$0xff]
  %v3473 = vld [vmem:[%s381 + $0xf8] sm:$0xff]
  %v3506 = vunpack.c.l.b16 %v3442
  %v3507 = vunpack.c.h.b16 %v3442
  %v3508 = vunpack.c.l.b16 %v3443
  %v3509 = vunpack.c.h.b16 %v3443
  %v3510 = vunpack.c.l.b16 %v3444
  %v3511 = vunpack.c.h.b16 %v3444
  %v3512 = vunpack.c.l.b16 %v3445
  %v3513 = vunpack.c.h.b16 %v3445
  %v3514 = vunpack.c.l.b16 %v3446
  %v3515 = vunpack.c.h.b16 %v3446
  %v3516 = vunpack.c.l.b16 %v3447
  %v3517 = vunpack.c.h.b16 %v3447
  %v3518 = vunpack.c.l.b16 %v3448
  %v3519 = vunpack.c.h.b16 %v3448
  %v3520 = vunpack.c.l.b16 %v3449
  %v3521 = vunpack.c.h.b16 %v3449
  %v3522 = vunpack.c.l.b16 %v3450
  %v3523 = vunpack.c.h.b16 %v3450
  %v3524 = vunpack.c.l.b16 %v3451
  %v3525 = vunpack.c.h.b16 %v3451
  %v3526 = vunpack.c.l.b16 %v3452
  %v3527 = vunpack.c.h.b16 %v3452
  %v3528 = vunpack.c.l.b16 %v3453
  %v3529 = vunpack.c.h.b16 %v3453
  %v3530 = vunpack.c.l.b16 %v3454
  %v3531 = vunpack.c.h.b16 %v3454
  %v3532 = vunpack.c.l.b16 %v3455
  %v3533 = vunpack.c.h.b16 %v3455
  %v3534 = vunpack.c.l.b16 %v3456
  %v3535 = vunpack.c.h.b16 %v3456
  %v3536 = vunpack.c.l.b16 %v3457
  %v3537 = vunpack.c.h.b16 %v3457
  %v3538 = vunpack.c.l.b16 %v3458
  %v3539 = vunpack.c.h.b16 %v3458
  %v3540 = vunpack.c.l.b16 %v3459
  %v3541 = vunpack.c.h.b16 %v3459
  %v3542 = vunpack.c.l.b16 %v3460
  %v3543 = vunpack.c.h.b16 %v3460
  %v3544 = vunpack.c.l.b16 %v3461
  %v3545 = vunpack.c.h.b16 %v3461
  %v3546 = vunpack.c.l.b16 %v3462
  %v3547 = vunpack.c.h.b16 %v3462
  %v3548 = vunpack.c.l.b16 %v3463
  %v3549 = vunpack.c.h.b16 %v3463
  %v3550 = vunpack.c.l.b16 %v3464
  %v3551 = vunpack.c.h.b16 %v3464
  %v3552 = vunpack.c.l.b16 %v3465
  %v3553 = vunpack.c.h.b16 %v3465
  %v3554 = vunpack.c.l.b16 %v3466
  %v3555 = vunpack.c.h.b16 %v3466
  %v3556 = vunpack.c.l.b16 %v3467
  %v3557 = vunpack.c.h.b16 %v3467
  %v3558 = vunpack.c.l.b16 %v3468
  %v3559 = vunpack.c.h.b16 %v3468
  %v3560 = vunpack.c.l.b16 %v3469
  %v3561 = vunpack.c.h.b16 %v3469
  %v3562 = vunpack.c.l.b16 %v3470
  %v3563 = vunpack.c.h.b16 %v3470
  %v3564 = vunpack.c.l.b16 %v3471
  %v3565 = vunpack.c.h.b16 %v3471
  %v3566 = vunpack.c.l.b16 %v3472
  %v3567 = vunpack.c.h.b16 %v3472
  %v3568 = vunpack.c.l.b16 %v3473
  %v3569 = vunpack.c.h.b16 %v3473
  %v3570 = vpack.c.b16 %v3510, %v3506
  %v3571 = vpack.c.b16 %v3511, %v3507
  %v3572 = vpack.c.b16 %v3512, %v3508
  %v3573 = vpack.c.b16 %v3513, %v3509
  %v3574 = vpack.c.b16 %v3518, %v3514
  %v3575 = vpack.c.b16 %v3519, %v3515
  %v3576 = vpack.c.b16 %v3520, %v3516
  %v3577 = vpack.c.b16 %v3521, %v3517
  %v3578 = vpack.c.b16 %v3526, %v3522
  %v3579 = vpack.c.b16 %v3527, %v3523
  %v3580 = vpack.c.b16 %v3528, %v3524
  %v3581 = vpack.c.b16 %v3529, %v3525
  %v3582 = vpack.c.b16 %v3534, %v3530
  %v3583 = vpack.c.b16 %v3535, %v3531
  %v3584 = vpack.c.b16 %v3536, %v3532
  %v3585 = vpack.c.b16 %v3537, %v3533
  %v3586 = vpack.c.b16 %v3542, %v3538
  %v3587 = vpack.c.b16 %v3543, %v3539
  %v3588 = vpack.c.b16 %v3544, %v3540
  %v3589 = vpack.c.b16 %v3545, %v3541
  %v3590 = vpack.c.b16 %v3550, %v3546
  %v3591 = vpack.c.b16 %v3551, %v3547
  %v3592 = vpack.c.b16 %v3552, %v3548
  %v3593 = vpack.c.b16 %v3553, %v3549
  %v3594 = vpack.c.b16 %v3558, %v3554
  %v3595 = vpack.c.b16 %v3559, %v3555
  %v3596 = vpack.c.b16 %v3560, %v3556
  %v3597 = vpack.c.b16 %v3561, %v3557
  %v3598 = vpack.c.b16 %v3566, %v3562
  %v3599 = vpack.c.b16 %v3567, %v3563
  %v3600 = vpack.c.b16 %v3568, %v3564
  %v3601 = vpack.c.b16 %v3569, %v3565
  %3634 = vmatprep.subr.bf16.mxu0 %v3571
  %3635 = vmatpush1.bf16.msra.mxu0 %v3570
  %3636 = vmatprep.subr.bf16.mxu0 %v3575
  %3637 = vmatpush1.bf16.msra.mxu0 %v3574
  %3638 = vmatprep.subr.bf16.mxu0 %v3579
  %3639 = vmatpush1.bf16.msra.mxu0 %v3578
  %3640 = vmatprep.subr.bf16.mxu0 %v3583
  %3641 = vmatpush1.bf16.msra.mxu0 %v3582
  %3642 = vmatprep.subr.bf16.mxu0 %v3587
  %3643 = vmatpush1.bf16.msra.mxu0 %v3586
  %3644 = vmatprep.subr.bf16.mxu0 %v3591
  %3645 = vmatpush1.bf16.msra.mxu0 %v3590
  %3646 = vmatprep.subr.bf16.mxu0 %v3595
  %3647 = vmatpush1.bf16.msra.mxu0 %v3594
  %3648 = vmatprep.subr.bf16.mxu0 %v3599
  %3649 = vmatpush1.bf16.msra.mxu0 %v3598
  %3650 = vmatprep.subr.bf16.mxu0 0
  %3651 = vmatpush1.bf16.msra.mxu0 0
  %3652 = vmatprep.subr.bf16.mxu0 0
  %3653 = vmatpush1.bf16.msra.mxu0 0
  %3654 = vmatprep.subr.bf16.mxu0 0
  %3655 = vmatpush1.bf16.msra.mxu0 0
  %3656 = vmatprep.subr.bf16.mxu0 0
  %3657 = vmatpush1.bf16.msra.mxu0 0
  %3658 = vmatprep.subr.bf16.mxu0 0
  %3659 = vmatpush1.bf16.msra.mxu0 0
  %3660 = vmatprep.subr.bf16.mxu0 0
  %3661 = vmatpush1.bf16.msra.mxu0 0
  %3662 = vmatprep.subr.bf16.mxu0 0
  %3663 = vmatpush1.bf16.msra.mxu0 0
  %3664 = vmatprep.subr.bf16.mxu0 0
  %3665 = vmatpush1.bf16.msra.mxu0 0
  %3666 = vmatprep.mubr.bf16.mxu0 0
  %3667 = vmatmul.mubr.bf16.gmra.mrb[0].mxu0 %v3126
  %v3668 = vpop.f32.mrb[0].mxu0
  %v3669 = vadd.f32 0.0, %v3668
  %v3670 = vpop.f32.mrb[0].mxu0
  %v3671 = vadd.f32 0.0, %v3670
  %v3672 = vpop.f32.mrb[0].mxu0
  %v3673 = vpop.f32.mrb[0].mxu0
  %3674 = vdwg.mxu0
  %3675 = vmatprep.subr.bf16.mxu0 %v3573
  %3676 = vmatpush1.bf16.msra.mxu0 %v3572
  %3677 = vmatprep.subr.bf16.mxu0 %v3577
  %3678 = vmatpush1.bf16.msra.mxu0 %v3576
  %3679 = vmatprep.subr.bf16.mxu0 %v3581
  %3680 = vmatpush1.bf16.msra.mxu0 %v3580
  %3681 = vmatprep.subr.bf16.mxu0 %v3585
  %3682 = vmatpush1.bf16.msra.mxu0 %v3584
  %3683 = vmatprep.subr.bf16.mxu0 %v3589
  %3684 = vmatpush1.bf16.msra.mxu0 %v3588
  %3685 = vmatprep.subr.bf16.mxu0 %v3593
  %3686 = vmatpush1.bf16.msra.mxu0 %v3592
  %3687 = vmatprep.subr.bf16.mxu0 %v3597
  %3688 = vmatpush1.bf16.msra.mxu0 %v3596
  %3689 = vmatprep.subr.bf16.mxu0 %v3601
  %3690 = vmatpush1.bf16.msra.mxu0 %v3600
  %3691 = vmatprep.subr.bf16.mxu0 0
  %3692 = vmatpush1.bf16.msra.mxu0 0
  %3693 = vmatprep.subr.bf16.mxu0 0
  %3694 = vmatpush1.bf16.msra.mxu0 0
  %3695 = vmatprep.subr.bf16.mxu0 0
  %3696 = vmatpush1.bf16.msra.mxu0 0
  %3697 = vmatprep.subr.bf16.mxu0 0
  %3698 = vmatpush1.bf16.msra.mxu0 0
  %3699 = vmatprep.subr.bf16.mxu0 0
  %3700 = vmatpush1.bf16.msra.mxu0 0
  %3701 = vmatprep.subr.bf16.mxu0 0
  %3702 = vmatpush1.bf16.msra.mxu0 0
  %3703 = vmatprep.subr.bf16.mxu0 0
  %3704 = vmatpush1.bf16.msra.mxu0 0
  %3705 = vmatprep.subr.bf16.mxu0 0
  %3706 = vmatpush1.bf16.msra.mxu0 0
  %3707 = vmatprep.mubr.bf16.mxu0 0
  %3708 = vmatmul.mubr.bf16.gmra.mrb[0].mxu0 %v3126
  %v3709 = vpop.f32.mrb[0].mxu0
  %v3710 = vadd.f32 0.0, %v3709
  %v3711 = vpop.f32.mrb[0].mxu0
  %v3712 = vadd.f32 0.0, %v3711
  %v3713 = vpop.f32.mrb[0].mxu0
  %v3714 = vpop.f32.mrb[0].mxu0
  %3715 = vdwg.mxu0
  %v3716 = vadd.f32 %v3438, %v3669
  %v3717 = vadd.f32 %v3439, %v3671
  %v3718 = vadd.f32 %v3440, %v3710
  %v3719 = vadd.f32 %v3441, %v3712
  %v3720 = vmul.f32 %v3716, 0.5
  %v3721 = vtanh.pop %v3720
  %v3722 = vmul.f32 %v3721, 0.5
  %v3723 = vadd.f32 %v3722, 0.5
  %v3724 = vmul.f32 %v3717, 0.5
  %v3725 = vtanh.pop %v3724
  %v3726 = vmul.f32 %v3725, 0.5
  %v3727 = vadd.f32 %v3726, 0.5
  %v3728 = vtanh.pop %v3718
  %v3729 = vmul.f32 %v3719, 0.5
  %v3730 = vtanh.pop %v3729
  %v3731 = vmul.f32 %v3730, 0.5
  %v3732 = vadd.f32 %v3731, 0.5
  %v3733 = vmul.f32 %v3727, %v3123
  %v3734 = vmul.f32 %v3723, %v3728
  %v3735 = vadd.f32 %v3733, %v3734
  %v3736 = vtanh.pop %v3735
  %v3737 = vmul.f32 %v3732, %v3736
  %v3738 = vpack.c.bf16 %v3737, %v3737
  %s3739 = scalar_lea.vmem %s52, 8
  %3740 = vst [vmem:[%s3739] sm:$0xf] %v3738
  %s3741 = scalar_lea.vmem %s0, 96
  %v3742 = vld [vmem:[%s3741] sm:$0xff]
  %v3743 = vld [vmem:[%s3741 + $0x8] sm:$0xff]
  %v3744 = vunpack.c.l.bf16 %v3742
  %v3745 = vunpack.c.h.bf16 %v3742
  %v3746 = vunpack.c.l.bf16 %v3743
  %v3747 = vunpack.c.h.bf16 %v3743
  %v3748 = vld [vmem:[%s2] sm:$0xff]
  %v3749 = vld [vmem:[%s2 + $0x8] sm:$0xff]
  %v3750 = vld [vmem:[%s2 + $0x10] sm:$0xff]
  %v3751 = vld [vmem:[%s2 + $0x18] sm:$0xff]
  %v3752 = vld [vmem:[%s2 + $0x20] sm:$0xff]
  %v3753 = vld [vmem:[%s2 + $0x28] sm:$0xff]
  %v3754 = vld [vmem:[%s2 + $0x30] sm:$0xff]
  %v3755 = vld [vmem:[%s2 + $0x38] sm:$0xff]
  %v3756 = vld [vmem:[%s2 + $0x40] sm:$0xff]
  %v3757 = vld [vmem:[%s2 + $0x48] sm:$0xff]
  %v3758 = vld [vmem:[%s2 + $0x50] sm:$0xff]
  %v3759 = vld [vmem:[%s2 + $0x58] sm:$0xff]
  %v3760 = vld [vmem:[%s2 + $0x60] sm:$0xff]
  %v3761 = vld [vmem:[%s2 + $0x68] sm:$0xff]
  %v3762 = vld [vmem:[%s2 + $0x70] sm:$0xff]
  %v3763 = vld [vmem:[%s2 + $0x78] sm:$0xff]
  %v3764 = vld [vmem:[%s2 + $0x80] sm:$0xff]
  %v3765 = vld [vmem:[%s2 + $0x88] sm:$0xff]
  %v3766 = vld [vmem:[%s2 + $0x90] sm:$0xff]
  %v3767 = vld [vmem:[%s2 + $0x98] sm:$0xff]
  %v3768 = vld [vmem:[%s2 + $0xa0] sm:$0xff]
  %v3769 = vld [vmem:[%s2 + $0xa8] sm:$0xff]
  %v3770 = vld [vmem:[%s2 + $0xb0] sm:$0xff]
  %v3771 = vld [vmem:[%s2 + $0xb8] sm:$0xff]
  %v3772 = vld [vmem:[%s2 + $0xc0] sm:$0xff]
  %v3773 = vld [vmem:[%s2 + $0xc8] sm:$0xff]
  %v3774 = vld [vmem:[%s2 + $0xd0] sm:$0xff]
  %v3775 = vld [vmem:[%s2 + $0xd8] sm:$0xff]
  %v3776 = vld [vmem:[%s2 + $0xe0] sm:$0xff]
  %v3777 = vld [vmem:[%s2 + $0xe8] sm:$0xff]
  %v3778 = vld [vmem:[%s2 + $0xf0] sm:$0xff]
  %v3779 = vld [vmem:[%s2 + $0xf8] sm:$0xff]
  %v3812 = vunpack.c.l.b16 %v3748
  %v3813 = vunpack.c.h.b16 %v3748
  %v3814 = vunpack.c.l.b16 %v3749
  %v3815 = vunpack.c.h.b16 %v3749
  %v3816 = vunpack.c.l.b16 %v3750
  %v3817 = vunpack.c.h.b16 %v3750
  %v3818 = vunpack.c.l.b16 %v3751
  %v3819 = vunpack.c.h.b16 %v3751
  %v3820 = vunpack.c.l.b16 %v3752
  %v3821 = vunpack.c.h.b16 %v3752
  %v3822 = vunpack.c.l.b16 %v3753
  %v3823 = vunpack.c.h.b16 %v3753
  %v3824 = vunpack.c.l.b16 %v3754
  %v3825 = vunpack.c.h.b16 %v3754
  %v3826 = vunpack.c.l.b16 %v3755
  %v3827 = vunpack.c.h.b16 %v3755
  %v3828 = vunpack.c.l.b16 %v3756
  %v3829 = vunpack.c.h.b16 %v3756
  %v3830 = vunpack.c.l.b16 %v3757
  %v3831 = vunpack.c.h.b16 %v3757
  %v3832 = vunpack.c.l.b16 %v3758
  %v3833 = vunpack.c.h.b16 %v3758
  %v3834 = vunpack.c.l.b16 %v3759
  %v3835 = vunpack.c.h.b16 %v3759
  %v3836 = vunpack.c.l.b16 %v3760
  %v3837 = vunpack.c.h.b16 %v3760
  %v3838 = vunpack.c.l.b16 %v3761
  %v3839 = vunpack.c.h.b16 %v3761
  %v3840 = vunpack.c.l.b16 %v3762
  %v3841 = vunpack.c.h.b16 %v3762
  %v3842 = vunpack.c.l.b16 %v3763
  %v3843 = vunpack.c.h.b16 %v3763
  %v3844 = vunpack.c.l.b16 %v3764
  %v3845 = vunpack.c.h.b16 %v3764
  %v3846 = vunpack.c.l.b16 %v3765
  %v3847 = vunpack.c.h.b16 %v3765
  %v3848 = vunpack.c.l.b16 %v3766
  %v3849 = vunpack.c.h.b16 %v3766
  %v3850 = vunpack.c.l.b16 %v3767
  %v3851 = vunpack.c.h.b16 %v3767
  %v3852 = vunpack.c.l.b16 %v3768
  %v3853 = vunpack.c.h.b16 %v3768
  %v3854 = vunpack.c.l.b16 %v3769
  %v3855 = vunpack.c.h.b16 %v3769
  %v3856 = vunpack.c.l.b16 %v3770
  %v3857 = vunpack.c.h.b16 %v3770
  %v3858 = vunpack.c.l.b16 %v3771
  %v3859 = vunpack.c.h.b16 %v3771
  %v3860 = vunpack.c.l.b16 %v3772
  %v3861 = vunpack.c.h.b16 %v3772
  %v3862 = vunpack.c.l.b16 %v3773
  %v3863 = vunpack.c.h.b16 %v3773
  %v3864 = vunpack.c.l.b16 %v3774
  %v3865 = vunpack.c.h.b16 %v3774
  %v3866 = vunpack.c.l.b16 %v3775
  %v3867 = vunpack.c.h.b16 %v3775
  %v3868 = vunpack.c.l.b16 %v3776
  %v3869 = vunpack.c.h.b16 %v3776
  %v3870 = vunpack.c.l.b16 %v3777
  %v3871 = vunpack.c.h.b16 %v3777
  %v3872 = vunpack.c.l.b16 %v3778
  %v3873 = vunpack.c.h.b16 %v3778
  %v3874 = vunpack.c.l.b16 %v3779
  %v3875 = vunpack.c.h.b16 %v3779
  %v3876 = vpack.c.b16 %v3816, %v3812
  %v3877 = vpack.c.b16 %v3817, %v3813
  %v3878 = vpack.c.b16 %v3818, %v3814
  %v3879 = vpack.c.b16 %v3819, %v3815
  %v3880 = vpack.c.b16 %v3824, %v3820
  %v3881 = vpack.c.b16 %v3825, %v3821
  %v3882 = vpack.c.b16 %v3826, %v3822
  %v3883 = vpack.c.b16 %v3827, %v3823
  %v3884 = vpack.c.b16 %v3832, %v3828
  %v3885 = vpack.c.b16 %v3833, %v3829
  %v3886 = vpack.c.b16 %v3834, %v3830
  %v3887 = vpack.c.b16 %v3835, %v3831
  %v3888 = vpack.c.b16 %v3840, %v3836
  %v3889 = vpack.c.b16 %v3841, %v3837
  %v3890 = vpack.c.b16 %v3842, %v3838
  %v3891 = vpack.c.b16 %v3843, %v3839
  %v3892 = vpack.c.b16 %v3848, %v3844
  %v3893 = vpack.c.b16 %v3849, %v3845
  %v3894 = vpack.c.b16 %v3850, %v3846
  %v3895 = vpack.c.b16 %v3851, %v3847
  %v3896 = vpack.c.b16 %v3856, %v3852
  %v3897 = vpack.c.b16 %v3857, %v3853
  %v3898 = vpack.c.b16 %v3858, %v3854
  %v3899 = vpack.c.b16 %v3859, %v3855
  %v3900 = vpack.c.b16 %v3864, %v3860
  %v3901 = vpack.c.b16 %v3865, %v3861
  %v3902 = vpack.c.b16 %v3866, %v3862
  %v3903 = vpack.c.b16 %v3867, %v3863
  %v3904 = vpack.c.b16 %v3872, %v3868
  %v3905 = vpack.c.b16 %v3873, %v3869
  %v3906 = vpack.c.b16 %v3874, %v3870
  %v3907 = vpack.c.b16 %v3875, %v3871
  %3940 = vmatprep.subr.bf16.mxu0 %v3877
  %3941 = vmatpush1.bf16.msra.mxu0 %v3876
  %3942 = vmatprep.subr.bf16.mxu0 %v3881
  %3943 = vmatpush1.bf16.msra.mxu0 %v3880
  %3944 = vmatprep.subr.bf16.mxu0 %v3885
  %3945 = vmatpush1.bf16.msra.mxu0 %v3884
  %3946 = vmatprep.subr.bf16.mxu0 %v3889
  %3947 = vmatpush1.bf16.msra.mxu0 %v3888
  %3948 = vmatprep.subr.bf16.mxu0 %v3893
  %3949 = vmatpush1.bf16.msra.mxu0 %v3892
  %3950 = vmatprep.subr.bf16.mxu0 %v3897
  %3951 = vmatpush1.bf16.msra.mxu0 %v3896
  %3952 = vmatprep.subr.bf16.mxu0 %v3901
  %3953 = vmatpush1.bf16.msra.mxu0 %v3900
  %3954 = vmatprep.subr.bf16.mxu0 %v3905
  %3955 = vmatpush1.bf16.msra.mxu0 %v3904
  %3956 = vmatprep.subr.bf16.mxu0 0
  %3957 = vmatpush1.bf16.msra.mxu0 0
  %3958 = vmatprep.subr.bf16.mxu0 0
  %3959 = vmatpush1.bf16.msra.mxu0 0
  %3960 = vmatprep.subr.bf16.mxu0 0
  %3961 = vmatpush1.bf16.msra.mxu0 0
  %3962 = vmatprep.subr.bf16.mxu0 0
  %3963 = vmatpush1.bf16.msra.mxu0 0
  %3964 = vmatprep.subr.bf16.mxu0 0
  %3965 = vmatpush1.bf16.msra.mxu0 0
  %3966 = vmatprep.subr.bf16.mxu0 0
  %3967 = vmatpush1.bf16.msra.mxu0 0
  %3968 = vmatprep.subr.bf16.mxu0 0
  %3969 = vmatpush1.bf16.msra.mxu0 0
  %3970 = vmatprep.subr.bf16.mxu0 0
  %3971 = vmatpush1.bf16.msra.mxu0 0
  %3972 = vmatprep.mubr.bf16.mxu0 0
  %3973 = vmatmul.mubr.bf16.gmra.mrb[0].mxu0 %v3432
  %v3974 = vpop.f32.mrb[0].mxu0
  %v3975 = vadd.f32 0.0, %v3974
  %v3976 = vpop.f32.mrb[0].mxu0
  %v3977 = vadd.f32 0.0, %v3976
  %v3978 = vpop.f32.mrb[0].mxu0
  %v3979 = vpop.f32.mrb[0].mxu0
  %3980 = vdwg.mxu0
  %3981 = vmatprep.subr.bf16.mxu0 %v3879
  %3982 = vmatpush1.bf16.msra.mxu0 %v3878
  %3983 = vmatprep.subr.bf16.mxu0 %v3883
  %3984 = vmatpush1.bf16.msra.mxu0 %v3882
  %3985 = vmatprep.subr.bf16.mxu0 %v3887
  %3986 = vmatpush1.bf16.msra.mxu0 %v3886
  %3987 = vmatprep.subr.bf16.mxu0 %v3891
  %3988 = vmatpush1.bf16.msra.mxu0 %v3890
  %3989 = vmatprep.subr.bf16.mxu0 %v3895
  %3990 = vmatpush1.bf16.msra.mxu0 %v3894
  %3991 = vmatprep.subr.bf16.mxu0 %v3899
  %3992 = vmatpush1.bf16.msra.mxu0 %v3898
  %3993 = vmatprep.subr.bf16.mxu0 %v3903
  %3994 = vmatpush1.bf16.msra.mxu0 %v3902
  %3995 = vmatprep.subr.bf16.mxu0 %v3907
  %3996 = vmatpush1.bf16.msra.mxu0 %v3906
  %3997 = vmatprep.subr.bf16.mxu0 0
  %3998 = vmatpush1.bf16.msra.mxu0 0
  %3999 = vmatprep.subr.bf16.mxu0 0
  %4000 = vmatpush1.bf16.msra.mxu0 0
  %4001 = vmatprep.subr.bf16.mxu0 0
  %4002 = vmatpush1.bf16.msra.mxu0 0
  %4003 = vmatprep.subr.bf16.mxu0 0
  %4004 = vmatpush1.bf16.msra.mxu0 0
  %4005 = vmatprep.subr.bf16.mxu0 0
  %4006 = vmatpush1.bf16.msra.mxu0 0
  %4007 = vmatprep.subr.bf16.mxu0 0
  %4008 = vmatpush1.bf16.msra.mxu0 0
  %4009 = vmatprep.subr.bf16.mxu0 0
  %4010 = vmatpush1.bf16.msra.mxu0 0
  %4011 = vmatprep.subr.bf16.mxu0 0
  %4012 = vmatpush1.bf16.msra.mxu0 0
  %4013 = vmatprep.mubr.bf16.mxu0 0
  %4014 = vmatmul.mubr.bf16.gmra.mrb[0].mxu0 %v3432
  %v4015 = vpop.f32.mrb[0].mxu0
  %v4016 = vadd.f32 0.0, %v4015
  %v4017 = vpop.f32.mrb[0].mxu0
  %v4018 = vadd.f32 0.0, %v4017
  %v4019 = vpop.f32.mrb[0].mxu0
  %v4020 = vpop.f32.mrb[0].mxu0
  %4021 = vdwg.mxu0
  %v4022 = vadd.f32 %v3744, %v3975
  %v4023 = vadd.f32 %v3745, %v3977
  %v4024 = vadd.f32 %v3746, %v4016
  %v4025 = vadd.f32 %v3747, %v4018
  %v4026 = vmul.f32 %v4022, 0.5
  %v4027 = vtanh.pop %v4026
  %v4028 = vmul.f32 %v4027, 0.5
  %v4029 = vadd.f32 %v4028, 0.5
  %v4030 = vmul.f32 %v4023, 0.5
  %v4031 = vtanh.pop %v4030
  %v4032 = vmul.f32 %v4031, 0.5
  %v4033 = vadd.f32 %v4032, 0.5
  %v4034 = vtanh.pop %v4024
  %v4035 = vmul.f32 %v4025, 0.5
  %v4036 = vtanh.pop %v4035
  %v4037 = vmul.f32 %v4036, 0.5
  %v4038 = vadd.f32 %v4037, 0.5
  %v4039 = vmul.f32 %v4033, %v3429
  %v4040 = vmul.f32 %v4029, %v4034
  %v4041 = vadd.f32 %v4039, %v4040
  %v4042 = vtanh.pop %v4041
  %v4043 = vmul.f32 %v4038, %v4042
  %v4044 = vpack.c.bf16 %v4043, %v4043
  %s4045 = scalar_lea.vmem %s3, 24
  %4046 = vst [vmem:[%s4045] sm:$0xf] %v4044
  %s4047 = scalar_lea.vmem %s44, 16
  %v4048 = vld [vmem:[%s4047] sm:$0xff]
  %v4049 = vld [vmem:[%s4047 + $0x8] sm:$0xff]
  %v4050 = vunpack.c.l.bf16 %v4048
  %v4051 = vunpack.c.h.bf16 %v4048
  %v4052 = vunpack.c.l.bf16 %v4049
  %v4053 = vunpack.c.h.bf16 %v4049
  %v4054 = vld [vmem:[%s381] sm:$0xff]
  %v4055 = vld [vmem:[%s381 + $0x8] sm:$0xff]
  %v4056 = vld [vmem:[%s381 + $0x10] sm:$0xff]
  %v4057 = vld [vmem:[%s381 + $0x18] sm:$0xff]
  %v4058 = vld [vmem:[%s381 + $0x20] sm:$0xff]
  %v4059 = vld [vmem:[%s381 + $0x28] sm:$0xff]
  %v4060 = vld [vmem:[%s381 + $0x30] sm:$0xff]
  %v4061 = vld [vmem:[%s381 + $0x38] sm:$0xff]
  %v4062 = vld [vmem:[%s381 + $0x40] sm:$0xff]
  %v4063 = vld [vmem:[%s381 + $0x48] sm:$0xff]
  %v4064 = vld [vmem:[%s381 + $0x50] sm:$0xff]
  %v4065 = vld [vmem:[%s381 + $0x58] sm:$0xff]
  %v4066 = vld [vmem:[%s381 + $0x60] sm:$0xff]
  %v4067 = vld [vmem:[%s381 + $0x68] sm:$0xff]
  %v4068 = vld [vmem:[%s381 + $0x70] sm:$0xff]
  %v4069 = vld [vmem:[%s381 + $0x78] sm:$0xff]
  %v4070 = vld [vmem:[%s381 + $0x80] sm:$0xff]
  %v4071 = vld [vmem:[%s381 + $0x88] sm:$0xff]
  %v4072 = vld [vmem:[%s381 + $0x90] sm:$0xff]
  %v4073 = vld [vmem:[%s381 + $0x98] sm:$0xff]
  %v4074 = vld [vmem:[%s381 + $0xa0] sm:$0xff]
  %v4075 = vld [vmem:[%s381 + $0xa8] sm:$0xff]
  %v4076 = vld [vmem:[%s381 + $0xb0] sm:$0xff]
  %v4077 = vld [vmem:[%s381 + $0xb8] sm:$0xff]
  %v4078 = vld [vmem:[%s381 + $0xc0] sm:$0xff]
  %v4079 = vld [vmem:[%s381 + $0xc8] sm:$0xff]
  %v4080 = vld [vmem:[%s381 + $0xd0] sm:$0xff]
  %v4081 = vld [vmem:[%s381 + $0xd8] sm:$0xff]
  %v4082 = vld [vmem:[%s381 + $0xe0] sm:$0xff]
  %v4083 = vld [vmem:[%s381 + $0xe8] sm:$0xff]
  %v4084 = vld [vmem:[%s381 + $0xf0] sm:$0xff]
  %v4085 = vld [vmem:[%s381 + $0xf8] sm:$0xff]
  %v4118 = vunpack.c.l.b16 %v4054
  %v4119 = vunpack.c.h.b16 %v4054
  %v4120 = vunpack.c.l.b16 %v4055
  %v4121 = vunpack.c.h.b16 %v4055
  %v4122 = vunpack.c.l.b16 %v4056
  %v4123 = vunpack.c.h.b16 %v4056
  %v4124 = vunpack.c.l.b16 %v4057
  %v4125 = vunpack.c.h.b16 %v4057
  %v4126 = vunpack.c.l.b16 %v4058
  %v4127 = vunpack.c.h.b16 %v4058
  %v4128 = vunpack.c.l.b16 %v4059
  %v4129 = vunpack.c.h.b16 %v4059
  %v4130 = vunpack.c.l.b16 %v4060
  %v4131 = vunpack.c.h.b16 %v4060
  %v4132 = vunpack.c.l.b16 %v4061
  %v4133 = vunpack.c.h.b16 %v4061
  %v4134 = vunpack.c.l.b16 %v4062
  %v4135 = vunpack.c.h.b16 %v4062
  %v4136 = vunpack.c.l.b16 %v4063
  %v4137 = vunpack.c.h.b16 %v4063
  %v4138 = vunpack.c.l.b16 %v4064
  %v4139 = vunpack.c.h.b16 %v4064
  %v4140 = vunpack.c.l.b16 %v4065
  %v4141 = vunpack.c.h.b16 %v4065
  %v4142 = vunpack.c.l.b16 %v4066
  %v4143 = vunpack.c.h.b16 %v4066
  %v4144 = vunpack.c.l.b16 %v4067
  %v4145 = vunpack.c.h.b16 %v4067
  %v4146 = vunpack.c.l.b16 %v4068
  %v4147 = vunpack.c.h.b16 %v4068
  %v4148 = vunpack.c.l.b16 %v4069
  %v4149 = vunpack.c.h.b16 %v4069
  %v4150 = vunpack.c.l.b16 %v4070
  %v4151 = vunpack.c.h.b16 %v4070
  %v4152 = vunpack.c.l.b16 %v4071
  %v4153 = vunpack.c.h.b16 %v4071
  %v4154 = vunpack.c.l.b16 %v4072
  %v4155 = vunpack.c.h.b16 %v4072
  %v4156 = vunpack.c.l.b16 %v4073
  %v4157 = vunpack.c.h.b16 %v4073
  %v4158 = vunpack.c.l.b16 %v4074
  %v4159 = vunpack.c.h.b16 %v4074
  %v4160 = vunpack.c.l.b16 %v4075
  %v4161 = vunpack.c.h.b16 %v4075
  %v4162 = vunpack.c.l.b16 %v4076
  %v4163 = vunpack.c.h.b16 %v4076
  %v4164 = vunpack.c.l.b16 %v4077
  %v4165 = vunpack.c.h.b16 %v4077
  %v4166 = vunpack.c.l.b16 %v4078
  %v4167 = vunpack.c.h.b16 %v4078
  %v4168 = vunpack.c.l.b16 %v4079
  %v4169 = vunpack.c.h.b16 %v4079
  %v4170 = vunpack.c.l.b16 %v4080
  %v4171 = vunpack.c.h.b16 %v4080
  %v4172 = vunpack.c.l.b16 %v4081
  %v4173 = vunpack.c.h.b16 %v4081
  %v4174 = vunpack.c.l.b16 %v4082
  %v4175 = vunpack.c.h.b16 %v4082
  %v4176 = vunpack.c.l.b16 %v4083
  %v4177 = vunpack.c.h.b16 %v4083
  %v4178 = vunpack.c.l.b16 %v4084
  %v4179 = vunpack.c.h.b16 %v4084
  %v4180 = vunpack.c.l.b16 %v4085
  %v4181 = vunpack.c.h.b16 %v4085
  %v4182 = vpack.c.b16 %v4122, %v4118
  %v4183 = vpack.c.b16 %v4123, %v4119
  %v4184 = vpack.c.b16 %v4124, %v4120
  %v4185 = vpack.c.b16 %v4125, %v4121
  %v4186 = vpack.c.b16 %v4130, %v4126
  %v4187 = vpack.c.b16 %v4131, %v4127
  %v4188 = vpack.c.b16 %v4132, %v4128
  %v4189 = vpack.c.b16 %v4133, %v4129
  %v4190 = vpack.c.b16 %v4138, %v4134
  %v4191 = vpack.c.b16 %v4139, %v4135
  %v4192 = vpack.c.b16 %v4140, %v4136
  %v4193 = vpack.c.b16 %v4141, %v4137
  %v4194 = vpack.c.b16 %v4146, %v4142
  %v4195 = vpack.c.b16 %v4147, %v4143
  %v4196 = vpack.c.b16 %v4148, %v4144
  %v4197 = vpack.c.b16 %v4149, %v4145
  %v4198 = vpack.c.b16 %v4154, %v4150
  %v4199 = vpack.c.b16 %v4155, %v4151
  %v4200 = vpack.c.b16 %v4156, %v4152
  %v4201 = vpack.c.b16 %v4157, %v4153
  %v4202 = vpack.c.b16 %v4162, %v4158
  %v4203 = vpack.c.b16 %v4163, %v4159
  %v4204 = vpack.c.b16 %v4164, %v4160
  %v4205 = vpack.c.b16 %v4165, %v4161
  %v4206 = vpack.c.b16 %v4170, %v4166
  %v4207 = vpack.c.b16 %v4171, %v4167
  %v4208 = vpack.c.b16 %v4172, %v4168
  %v4209 = vpack.c.b16 %v4173, %v4169
  %v4210 = vpack.c.b16 %v4178, %v4174
  %v4211 = vpack.c.b16 %v4179, %v4175
  %v4212 = vpack.c.b16 %v4180, %v4176
  %v4213 = vpack.c.b16 %v4181, %v4177
  %4246 = vmatprep.subr.bf16.mxu0 %v4183
  %4247 = vmatpush1.bf16.msra.mxu0 %v4182
  %4248 = vmatprep.subr.bf16.mxu0 %v4187
  %4249 = vmatpush1.bf16.msra.mxu0 %v4186
  %4250 = vmatprep.subr.bf16.mxu0 %v4191
  %4251 = vmatpush1.bf16.msra.mxu0 %v4190
  %4252 = vmatprep.subr.bf16.mxu0 %v4195
  %4253 = vmatpush1.bf16.msra.mxu0 %v4194
  %4254 = vmatprep.subr.bf16.mxu0 %v4199
  %4255 = vmatpush1.bf16.msra.mxu0 %v4198
  %4256 = vmatprep.subr.bf16.mxu0 %v4203
  %4257 = vmatpush1.bf16.msra.mxu0 %v4202
  %4258 = vmatprep.subr.bf16.mxu0 %v4207
  %4259 = vmatpush1.bf16.msra.mxu0 %v4206
  %4260 = vmatprep.subr.bf16.mxu0 %v4211
  %4261 = vmatpush1.bf16.msra.mxu0 %v4210
  %4262 = vmatprep.subr.bf16.mxu0 0
  %4263 = vmatpush1.bf16.msra.mxu0 0
  %4264 = vmatprep.subr.bf16.mxu0 0
  %4265 = vmatpush1.bf16.msra.mxu0 0
  %4266 = vmatprep.subr.bf16.mxu0 0
  %4267 = vmatpush1.bf16.msra.mxu0 0
  %4268 = vmatprep.subr.bf16.mxu0 0
  %4269 = vmatpush1.bf16.msra.mxu0 0
  %4270 = vmatprep.subr.bf16.mxu0 0
  %4271 = vmatpush1.bf16.msra.mxu0 0
  %4272 = vmatprep.subr.bf16.mxu0 0
  %4273 = vmatpush1.bf16.msra.mxu0 0
  %4274 = vmatprep.subr.bf16.mxu0 0
  %4275 = vmatpush1.bf16.msra.mxu0 0
  %4276 = vmatprep.subr.bf16.mxu0 0
  %4277 = vmatpush1.bf16.msra.mxu0 0
  %4278 = vmatprep.mubr.bf16.mxu0 0
  %4279 = vmatmul.mubr.bf16.gmra.mrb[0].mxu0 %v3738
  %v4280 = vpop.f32.mrb[0].mxu0
  %v4281 = vadd.f32 0.0, %v4280
  %v4282 = vpop.f32.mrb[0].mxu0
  %v4283 = vadd.f32 0.0, %v4282
  %v4284 = vpop.f32.mrb[0].mxu0
  %v4285 = vpop.f32.mrb[0].mxu0
  %4286 = vdwg.mxu0
  %4287 = vmatprep.subr.bf16.mxu0 %v4185
  %4288 = vmatpush1.bf16.msra.mxu0 %v4184
  %4289 = vmatprep.subr.bf16.mxu0 %v4189
  %4290 = vmatpush1.bf16.msra.mxu0 %v4188
  %4291 = vmatprep.subr.bf16.mxu0 %v4193
  %4292 = vmatpush1.bf16.msra.mxu0 %v4192
  %4293 = vmatprep.subr.bf16.mxu0 %v4197
  %4294 = vmatpush1.bf16.msra.mxu0 %v4196
  %4295 = vmatprep.subr.bf16.mxu0 %v4201
  %4296 = vmatpush1.bf16.msra.mxu0 %v4200
  %4297 = vmatprep.subr.bf16.mxu0 %v4205
  %4298 = vmatpush1.bf16.msra.mxu0 %v4204
  %4299 = vmatprep.subr.bf16.mxu0 %v4209
  %4300 = vmatpush1.bf16.msra.mxu0 %v4208
  %4301 = vmatprep.subr.bf16.mxu0 %v4213
  %4302 = vmatpush1.bf16.msra.mxu0 %v4212
  %4303 = vmatprep.subr.bf16.mxu0 0
  %4304 = vmatpush1.bf16.msra.mxu0 0
  %4305 = vmatprep.subr.bf16.mxu0 0
  %4306 = vmatpush1.bf16.msra.mxu0 0
  %4307 = vmatprep.subr.bf16.mxu0 0
  %4308 = vmatpush1.bf16.msra.mxu0 0
  %4309 = vmatprep.subr.bf16.mxu0 0
  %4310 = vmatpush1.bf16.msra.mxu0 0
  %4311 = vmatprep.subr.bf16.mxu0 0
  %4312 = vmatpush1.bf16.msra.mxu0 0
  %4313 = vmatprep.subr.bf16.mxu0 0
  %4314 = vmatpush1.bf16.msra.mxu0 0
  %4315 = vmatprep.subr.bf16.mxu0 0
  %4316 = vmatpush1.bf16.msra.mxu0 0
  %4317 = vmatprep.subr.bf16.mxu0 0
  %4318 = vmatpush1.bf16.msra.mxu0 0
  %4319 = vmatprep.mubr.bf16.mxu0 0
  %4320 = vmatmul.mubr.bf16.gmra.mrb[0].mxu0 %v3738
  %v4321 = vpop.f32.mrb[0].mxu0
  %v4322 = vadd.f32 0.0, %v4321
  %v4323 = vpop.f32.mrb[0].mxu0
  %v4324 = vadd.f32 0.0, %v4323
  %v4325 = vpop.f32.mrb[0].mxu0
  %v4326 = vpop.f32.mrb[0].mxu0
  %4327 = vdwg.mxu0
  %v4328 = vadd.f32 %v4050, %v4281
  %v4329 = vadd.f32 %v4051, %v4283
  %v4330 = vadd.f32 %v4052, %v4322
  %v4331 = vadd.f32 %v4053, %v4324
  %v4332 = vmul.f32 %v4328, 0.5
  %v4333 = vtanh.pop %v4332
  %v4334 = vmul.f32 %v4333, 0.5
  %v4335 = vadd.f32 %v4334, 0.5
  %v4336 = vmul.f32 %v4329, 0.5
  %v4337 = vtanh.pop %v4336
  %v4338 = vmul.f32 %v4337, 0.5
  %v4339 = vadd.f32 %v4338, 0.5
  %v4340 = vtanh.pop %v4330
  %v4341 = vmul.f32 %v4331, 0.5
  %v4342 = vtanh.pop %v4341
  %v4343 = vmul.f32 %v4342, 0.5
  %v4344 = vadd.f32 %v4343, 0.5
  %v4345 = vmul.f32 %v4339, %v3735
  %v4346 = vmul.f32 %v4335, %v4340
  %v4347 = vadd.f32 %v4345, %v4346
  %v4348 = vtanh.pop %v4347
  %v4349 = vmul.f32 %v4344, %v4348
  %v4350 = vpack.c.bf16 %v4349, %v4349
  %s4351 = scalar_lea.vmem %s52, 4
  %4352 = vst [vmem:[%s4351] sm:$0xf] %v4350
  %s4353 = scalar_lea.vmem %s0, 112
  %v4354 = vld [vmem:[%s4353] sm:$0xff]
  %v4355 = vld [vmem:[%s4353 + $0x8] sm:$0xff]
  %v4356 = vunpack.c.l.bf16 %v4354
  %v4357 = vunpack.c.h.bf16 %v4354
  %v4358 = vunpack.c.l.bf16 %v4355
  %v4359 = vunpack.c.h.bf16 %v4355
  %v4360 = vld [vmem:[%s2] sm:$0xff]
  %v4361 = vld [vmem:[%s2 + $0x8] sm:$0xff]
  %v4362 = vld [vmem:[%s2 + $0x10] sm:$0xff]
  %v4363 = vld [vmem:[%s2 + $0x18] sm:$0xff]
  %v4364 = vld [vmem:[%s2 + $0x20] sm:$0xff]
  %v4365 = vld [vmem:[%s2 + $0x28] sm:$0xff]
  %v4366 = vld [vmem:[%s2 + $0x30] sm:$0xff]
  %v4367 = vld [vmem:[%s2 + $0x38] sm:$0xff]
  %v4368 = vld [vmem:[%s2 + $0x40] sm:$0xff]
  %v4369 = vld [vmem:[%s2 + $0x48] sm:$0xff]
  %v4370 = vld [vmem:[%s2 + $0x50] sm:$0xff]
  %v4371 = vld [vmem:[%s2 + $0x58] sm:$0xff]
  %v4372 = vld [vmem:[%s2 + $0x60] sm:$0xff]
  %v4373 = vld [vmem:[%s2 + $0x68] sm:$0xff]
  %v4374 = vld [vmem:[%s2 + $0x70] sm:$0xff]
  %v4375 = vld [vmem:[%s2 + $0x78] sm:$0xff]
  %v4376 = vld [vmem:[%s2 + $0x80] sm:$0xff]
  %v4377 = vld [vmem:[%s2 + $0x88] sm:$0xff]
  %v4378 = vld [vmem:[%s2 + $0x90] sm:$0xff]
  %v4379 = vld [vmem:[%s2 + $0x98] sm:$0xff]
  %v4380 = vld [vmem:[%s2 + $0xa0] sm:$0xff]
  %v4381 = vld [vmem:[%s2 + $0xa8] sm:$0xff]
  %v4382 = vld [vmem:[%s2 + $0xb0] sm:$0xff]
  %v4383 = vld [vmem:[%s2 + $0xb8] sm:$0xff]
  %v4384 = vld [vmem:[%s2 + $0xc0] sm:$0xff]
  %v4385 = vld [vmem:[%s2 + $0xc8] sm:$0xff]
  %v4386 = vld [vmem:[%s2 + $0xd0] sm:$0xff]
  %v4387 = vld [vmem:[%s2 + $0xd8] sm:$0xff]
  %v4388 = vld [vmem:[%s2 + $0xe0] sm:$0xff]
  %v4389 = vld [vmem:[%s2 + $0xe8] sm:$0xff]
  %v4390 = vld [vmem:[%s2 + $0xf0] sm:$0xff]
  %v4391 = vld [vmem:[%s2 + $0xf8] sm:$0xff]
  %v4424 = vunpack.c.l.b16 %v4360
  %v4425 = vunpack.c.h.b16 %v4360
  %v4426 = vunpack.c.l.b16 %v4361
  %v4427 = vunpack.c.h.b16 %v4361
  %v4428 = vunpack.c.l.b16 %v4362
  %v4429 = vunpack.c.h.b16 %v4362
  %v4430 = vunpack.c.l.b16 %v4363
  %v4431 = vunpack.c.h.b16 %v4363
  %v4432 = vunpack.c.l.b16 %v4364
  %v4433 = vunpack.c.h.b16 %v4364
  %v4434 = vunpack.c.l.b16 %v4365
  %v4435 = vunpack.c.h.b16 %v4365
  %v4436 = vunpack.c.l.b16 %v4366
  %v4437 = vunpack.c.h.b16 %v4366
  %v4438 = vunpack.c.l.b16 %v4367
  %v4439 = vunpack.c.h.b16 %v4367
  %v4440 = vunpack.c.l.b16 %v4368
  %v4441 = vunpack.c.h.b16 %v4368
  %v4442 = vunpack.c.l.b16 %v4369
  %v4443 = vunpack.c.h.b16 %v4369
  %v4444 = vunpack.c.l.b16 %v4370
  %v4445 = vunpack.c.h.b16 %v4370
  %v4446 = vunpack.c.l.b16 %v4371
  %v4447 = vunpack.c.h.b16 %v4371
  %v4448 = vunpack.c.l.b16 %v4372
  %v4449 = vunpack.c.h.b16 %v4372
  %v4450 = vunpack.c.l.b16 %v4373
  %v4451 = vunpack.c.h.b16 %v4373
  %v4452 = vunpack.c.l.b16 %v4374
  %v4453 = vunpack.c.h.b16 %v4374
  %v4454 = vunpack.c.l.b16 %v4375
  %v4455 = vunpack.c.h.b16 %v4375
  %v4456 = vunpack.c.l.b16 %v4376
  %v4457 = vunpack.c.h.b16 %v4376
  %v4458 = vunpack.c.l.b16 %v4377
  %v4459 = vunpack.c.h.b16 %v4377
  %v4460 = vunpack.c.l.b16 %v4378
  %v4461 = vunpack.c.h.b16 %v4378
  %v4462 = vunpack.c.l.b16 %v4379
  %v4463 = vunpack.c.h.b16 %v4379
  %v4464 = vunpack.c.l.b16 %v4380
  %v4465 = vunpack.c.h.b16 %v4380
  %v4466 = vunpack.c.l.b16 %v4381
  %v4467 = vunpack.c.h.b16 %v4381
  %v4468 = vunpack.c.l.b16 %v4382
  %v4469 = vunpack.c.h.b16 %v4382
  %v4470 = vunpack.c.l.b16 %v4383
  %v4471 = vunpack.c.h.b16 %v4383
  %v4472 = vunpack.c.l.b16 %v4384
  %v4473 = vunpack.c.h.b16 %v4384
  %v4474 = vunpack.c.l.b16 %v4385
  %v4475 = vunpack.c.h.b16 %v4385
  %v4476 = vunpack.c.l.b16 %v4386
  %v4477 = vunpack.c.h.b16 %v4386
  %v4478 = vunpack.c.l.b16 %v4387
  %v4479 = vunpack.c.h.b16 %v4387
  %v4480 = vunpack.c.l.b16 %v4388
  %v4481 = vunpack.c.h.b16 %v4388
  %v4482 = vunpack.c.l.b16 %v4389
  %v4483 = vunpack.c.h.b16 %v4389
  %v4484 = vunpack.c.l.b16 %v4390
  %v4485 = vunpack.c.h.b16 %v4390
  %v4486 = vunpack.c.l.b16 %v4391
  %v4487 = vunpack.c.h.b16 %v4391
  %v4488 = vpack.c.b16 %v4428, %v4424
  %v4489 = vpack.c.b16 %v4429, %v4425
  %v4490 = vpack.c.b16 %v4430, %v4426
  %v4491 = vpack.c.b16 %v4431, %v4427
  %v4492 = vpack.c.b16 %v4436, %v4432
  %v4493 = vpack.c.b16 %v4437, %v4433
  %v4494 = vpack.c.b16 %v4438, %v4434
  %v4495 = vpack.c.b16 %v4439, %v4435
  %v4496 = vpack.c.b16 %v4444, %v4440
  %v4497 = vpack.c.b16 %v4445, %v4441
  %v4498 = vpack.c.b16 %v4446, %v4442
  %v4499 = vpack.c.b16 %v4447, %v4443
  %v4500 = vpack.c.b16 %v4452, %v4448
  %v4501 = vpack.c.b16 %v4453, %v4449
  %v4502 = vpack.c.b16 %v4454, %v4450
  %v4503 = vpack.c.b16 %v4455, %v4451
  %v4504 = vpack.c.b16 %v4460, %v4456
  %v4505 = vpack.c.b16 %v4461, %v4457
  %v4506 = vpack.c.b16 %v4462, %v4458
  %v4507 = vpack.c.b16 %v4463, %v4459
  %v4508 = vpack.c.b16 %v4468, %v4464
  %v4509 = vpack.c.b16 %v4469, %v4465
  %v4510 = vpack.c.b16 %v4470, %v4466
  %v4511 = vpack.c.b16 %v4471, %v4467
  %v4512 = vpack.c.b16 %v4476, %v4472
  %v4513 = vpack.c.b16 %v4477, %v4473
  %v4514 = vpack.c.b16 %v4478, %v4474
  %v4515 = vpack.c.b16 %v4479, %v4475
  %v4516 = vpack.c.b16 %v4484, %v4480
  %v4517 = vpack.c.b16 %v4485, %v4481
  %v4518 = vpack.c.b16 %v4486, %v4482
  %v4519 = vpack.c.b16 %v4487, %v4483
  %4552 = vmatprep.subr.bf16.mxu0 %v4489
  %4553 = vmatpush1.bf16.msra.mxu0 %v4488
  %4554 = vmatprep.subr.bf16.mxu0 %v4493
  %4555 = vmatpush1.bf16.msra.mxu0 %v4492
  %4556 = vmatprep.subr.bf16.mxu0 %v4497
  %4557 = vmatpush1.bf16.msra.mxu0 %v4496
  %4558 = vmatprep.subr.bf16.mxu0 %v4501
  %4559 = vmatpush1.bf16.msra.mxu0 %v4500
  %4560 = vmatprep.subr.bf16.mxu0 %v4505
  %4561 = vmatpush1.bf16.msra.mxu0 %v4504
  %4562 = vmatprep.subr.bf16.mxu0 %v4509
  %4563 = vmatpush1.bf16.msra.mxu0 %v4508
  %4564 = vmatprep.subr.bf16.mxu0 %v4513
  %4565 = vmatpush1.bf16.msra.mxu0 %v4512
  %4566 = vmatprep.subr.bf16.mxu0 %v4517
  %4567 = vmatpush1.bf16.msra.mxu0 %v4516
  %4568 = vmatprep.subr.bf16.mxu0 0
  %4569 = vmatpush1.bf16.msra.mxu0 0
  %4570 = vmatprep.subr.bf16.mxu0 0
  %4571 = vmatpush1.bf16.msra.mxu0 0
  %4572 = vmatprep.subr.bf16.mxu0 0
  %4573 = vmatpush1.bf16.msra.mxu0 0
  %4574 = vmatprep.subr.bf16.mxu0 0
  %4575 = vmatpush1.bf16.msra.mxu0 0
  %4576 = vmatprep.subr.bf16.mxu0 0
  %4577 = vmatpush1.bf16.msra.mxu0 0
  %4578 = vmatprep.subr.bf16.mxu0 0
  %4579 = vmatpush1.bf16.msra.mxu0 0
  %4580 = vmatprep.subr.bf16.mxu0 0
  %4581 = vmatpush1.bf16.msra.mxu0 0
  %4582 = vmatprep.subr.bf16.mxu0 0
  %4583 = vmatpush1.bf16.msra.mxu0 0
  %4584 = vmatprep.mubr.bf16.mxu0 0
  %4585 = vmatmul.mubr.bf16.gmra.mrb[0].mxu0 %v4044
  %v4586 = vpop.f32.mrb[0].mxu0
  %v4587 = vadd.f32 0.0, %v4586
  %v4588 = vpop.f32.mrb[0].mxu0
  %v4589 = vadd.f32 0.0, %v4588
  %v4590 = vpop.f32.mrb[0].mxu0
  %v4591 = vpop.f32.mrb[0].mxu0
  %4592 = vdwg.mxu0
  %4593 = vmatprep.subr.bf16.mxu0 %v4491
  %4594 = vmatpush1.bf16.msra.mxu0 %v4490
  %4595 = vmatprep.subr.bf16.mxu0 %v4495
  %4596 = vmatpush1.bf16.msra.mxu0 %v4494
  %4597 = vmatprep.subr.bf16.mxu0 %v4499
  %4598 = vmatpush1.bf16.msra.mxu0 %v4498
  %4599 = vmatprep.subr.bf16.mxu0 %v4503
  %4600 = vmatpush1.bf16.msra.mxu0 %v4502
  %4601 = vmatprep.subr.bf16.mxu0 %v4507
  %4602 = vmatpush1.bf16.msra.mxu0 %v4506
  %4603 = vmatprep.subr.bf16.mxu0 %v4511
  %4604 = vmatpush1.bf16.msra.mxu0 %v4510
  %4605 = vmatprep.subr.bf16.mxu0 %v4515
  %4606 = vmatpush1.bf16.msra.mxu0 %v4514
  %4607 = vmatprep.subr.bf16.mxu0 %v4519
  %4608 = vmatpush1.bf16.msra.mxu0 %v4518
  %4609 = vmatprep.subr.bf16.mxu0 0
  %4610 = vmatpush1.bf16.msra.mxu0 0
  %4611 = vmatprep.subr.bf16.mxu0 0
  %4612 = vmatpush1.bf16.msra.mxu0 0
  %4613 = vmatprep.subr.bf16.mxu0 0
  %4614 = vmatpush1.bf16.msra.mxu0 0
  %4615 = vmatprep.subr.bf16.mxu0 0
  %4616 = vmatpush1.bf16.msra.mxu0 0
  %4617 = vmatprep.subr.bf16.mxu0 0
  %4618 = vmatpush1.bf16.msra.mxu0 0
  %4619 = vmatprep.subr.bf16.mxu0 0
  %4620 = vmatpush1.bf16.msra.mxu0 0
  %4621 = vmatprep.subr.bf16.mxu0 0
  %4622 = vmatpush1.bf16.msra.mxu0 0
  %4623 = vmatprep.subr.bf16.mxu0 0
  %4624 = vmatpush1.bf16.msra.mxu0 0
  %4625 = vmatprep.mubr.bf16.mxu0 0
  %4626 = vmatmul.mubr.bf16.gmra.mrb[0].mxu0 %v4044
  %v4627 = vpop.f32.mrb[0].mxu0
  %v4628 = vadd.f32 0.0, %v4627
  %v4629 = vpop.f32.mrb[0].mxu0
  %v4630 = vadd.f32 0.0, %v4629
  %v4631 = vpop.f32.mrb[0].mxu0
  %v4632 = vpop.f32.mrb[0].mxu0
  %4633 = vdwg.mxu0
  %v4634 = vadd.f32 %v4356, %v4587
  %v4635 = vadd.f32 %v4357, %v4589
  %v4636 = vadd.f32 %v4358, %v4628
  %v4637 = vadd.f32 %v4359, %v4630
  %v4638 = vmul.f32 %v4634, 0.5
  %v4639 = vtanh.pop %v4638
  %v4640 = vmul.f32 %v4639, 0.5
  %v4641 = vadd.f32 %v4640, 0.5
  %v4642 = vmul.f32 %v4635, 0.5
  %v4643 = vtanh.pop %v4642
  %v4644 = vmul.f32 %v4643, 0.5
  %v4645 = vadd.f32 %v4644, 0.5
  %v4646 = vtanh.pop %v4636
  %v4647 = vmul.f32 %v4637, 0.5
  %v4648 = vtanh.pop %v4647
  %v4649 = vmul.f32 %v4648, 0.5
  %v4650 = vadd.f32 %v4649, 0.5
  %v4651 = vmul.f32 %v4645, %v4041
  %v4652 = vmul.f32 %v4641, %v4646
  %v4653 = vadd.f32 %v4651, %v4652
  %v4654 = vtanh.pop %v4653
  %v4655 = vmul.f32 %v4650, %v4654
  %v4656 = vpack.c.bf16 %v4655, %v4655
  %s4657 = scalar_lea.vmem %s3, 28
  %4658 = vst [vmem:[%s4657] sm:$0xf] %v4656
  %v4659 = vld [vmem:[%s44] sm:$0xff]
  %v4660 = vld [vmem:[%s44 + $0x8] sm:$0xff]
  %v4661 = vunpack.c.l.bf16 %v4659
  %v4662 = vunpack.c.h.bf16 %v4659
  %v4663 = vunpack.c.l.bf16 %v4660
  %v4664 = vunpack.c.h.bf16 %v4660
  %v4665 = vld [vmem:[%s381] sm:$0xff]
  %v4666 = vld [vmem:[%s381 + $0x8] sm:$0xff]
  %v4667 = vld [vmem:[%s381 + $0x10] sm:$0xff]
  %v4668 = vld [vmem:[%s381 + $0x18] sm:$0xff]
  %v4669 = vld [vmem:[%s381 + $0x20] sm:$0xff]
  %v4670 = vld [vmem:[%s381 + $0x28] sm:$0xff]
  %v4671 = vld [vmem:[%s381 + $0x30] sm:$0xff]
  %v4672 = vld [vmem:[%s381 + $0x38] sm:$0xff]
  %v4673 = vld [vmem:[%s381 + $0x40] sm:$0xff]
  %v4674 = vld [vmem:[%s381 + $0x48] sm:$0xff]
  %v4675 = vld [vmem:[%s381 + $0x50] sm:$0xff]
  %v4676 = vld [vmem:[%s381 + $0x58] sm:$0xff]
  %v4677 = vld [vmem:[%s381 + $0x60] sm:$0xff]
  %v4678 = vld [vmem:[%s381 + $0x68] sm:$0xff]
  %v4679 = vld [vmem:[%s381 + $0x70] sm:$0xff]
  %v4680 = vld [vmem:[%s381 + $0x78] sm:$0xff]
  %v4681 = vld [vmem:[%s381 + $0x80] sm:$0xff]
  %v4682 = vld [vmem:[%s381 + $0x88] sm:$0xff]
  %v4683 = vld [vmem:[%s381 + $0x90] sm:$0xff]
  %v4684 = vld [vmem:[%s381 + $0x98] sm:$0xff]
  %v4685 = vld [vmem:[%s381 + $0xa0] sm:$0xff]
  %v4686 = vld [vmem:[%s381 + $0xa8] sm:$0xff]
  %v4687 = vld [vmem:[%s381 + $0xb0] sm:$0xff]
  %v4688 = vld [vmem:[%s381 + $0xb8] sm:$0xff]
  %v4689 = vld [vmem:[%s381 + $0xc0] sm:$0xff]
  %v4690 = vld [vmem:[%s381 + $0xc8] sm:$0xff]
  %v4691 = vld [vmem:[%s381 + $0xd0] sm:$0xff]
  %v4692 = vld [vmem:[%s381 + $0xd8] sm:$0xff]
  %v4693 = vld [vmem:[%s381 + $0xe0] sm:$0xff]
  %v4694 = vld [vmem:[%s381 + $0xe8] sm:$0xff]
  %v4695 = vld [vmem:[%s381 + $0xf0] sm:$0xff]
  %v4696 = vld [vmem:[%s381 + $0xf8] sm:$0xff]
  %v4729 = vunpack.c.l.b16 %v4665
  %v4730 = vunpack.c.h.b16 %v4665
  %v4731 = vunpack.c.l.b16 %v4666
  %v4732 = vunpack.c.h.b16 %v4666
  %v4733 = vunpack.c.l.b16 %v4667
  %v4734 = vunpack.c.h.b16 %v4667
  %v4735 = vunpack.c.l.b16 %v4668
  %v4736 = vunpack.c.h.b16 %v4668
  %v4737 = vunpack.c.l.b16 %v4669
  %v4738 = vunpack.c.h.b16 %v4669
  %v4739 = vunpack.c.l.b16 %v4670
  %v4740 = vunpack.c.h.b16 %v4670
  %v4741 = vunpack.c.l.b16 %v4671
  %v4742 = vunpack.c.h.b16 %v4671
  %v4743 = vunpack.c.l.b16 %v4672
  %v4744 = vunpack.c.h.b16 %v4672
  %v4745 = vunpack.c.l.b16 %v4673
  %v4746 = vunpack.c.h.b16 %v4673
  %v4747 = vunpack.c.l.b16 %v4674
  %v4748 = vunpack.c.h.b16 %v4674
  %v4749 = vunpack.c.l.b16 %v4675
  %v4750 = vunpack.c.h.b16 %v4675
  %v4751 = vunpack.c.l.b16 %v4676
  %v4752 = vunpack.c.h.b16 %v4676
  %v4753 = vunpack.c.l.b16 %v4677
  %v4754 = vunpack.c.h.b16 %v4677
  %v4755 = vunpack.c.l.b16 %v4678
  %v4756 = vunpack.c.h.b16 %v4678
  %v4757 = vunpack.c.l.b16 %v4679
  %v4758 = vunpack.c.h.b16 %v4679
  %v4759 = vunpack.c.l.b16 %v4680
  %v4760 = vunpack.c.h.b16 %v4680
  %v4761 = vunpack.c.l.b16 %v4681
  %v4762 = vunpack.c.h.b16 %v4681
  %v4763 = vunpack.c.l.b16 %v4682
  %v4764 = vunpack.c.h.b16 %v4682
  %v4765 = vunpack.c.l.b16 %v4683
  %v4766 = vunpack.c.h.b16 %v4683
  %v4767 = vunpack.c.l.b16 %v4684
  %v4768 = vunpack.c.h.b16 %v4684
  %v4769 = vunpack.c.l.b16 %v4685
  %v4770 = vunpack.c.h.b16 %v4685
  %v4771 = vunpack.c.l.b16 %v4686
  %v4772 = vunpack.c.h.b16 %v4686
  %v4773 = vunpack.c.l.b16 %v4687
  %v4774 = vunpack.c.h.b16 %v4687
  %v4775 = vunpack.c.l.b16 %v4688
  %v4776 = vunpack.c.h.b16 %v4688
  %v4777 = vunpack.c.l.b16 %v4689
  %v4778 = vunpack.c.h.b16 %v4689
  %v4779 = vunpack.c.l.b16 %v4690
  %v4780 = vunpack.c.h.b16 %v4690
  %v4781 = vunpack.c.l.b16 %v4691
  %v4782 = vunpack.c.h.b16 %v4691
  %v4783 = vunpack.c.l.b16 %v4692
  %v4784 = vunpack.c.h.b16 %v4692
  %v4785 = vunpack.c.l.b16 %v4693
  %v4786 = vunpack.c.h.b16 %v4693
  %v4787 = vunpack.c.l.b16 %v4694
  %v4788 = vunpack.c.h.b16 %v4694
  %v4789 = vunpack.c.l.b16 %v4695
  %v4790 = vunpack.c.h.b16 %v4695
  %v4791 = vunpack.c.l.b16 %v4696
  %v4792 = vunpack.c.h.b16 %v4696
  %v4793 = vpack.c.b16 %v4733, %v4729
  %v4794 = vpack.c.b16 %v4734, %v4730
  %v4795 = vpack.c.b16 %v4735, %v4731
  %v4796 = vpack.c.b16 %v4736, %v4732
  %v4797 = vpack.c.b16 %v4741, %v4737
  %v4798 = vpack.c.b16 %v4742, %v4738
  %v4799 = vpack.c.b16 %v4743, %v4739
  %v4800 = vpack.c.b16 %v4744, %v4740
  %v4801 = vpack.c.b16 %v4749, %v4745
  %v4802 = vpack.c.b16 %v4750, %v4746
  %v4803 = vpack.c.b16 %v4751, %v4747
  %v4804 = vpack.c.b16 %v4752, %v4748
  %v4805 = vpack.c.b16 %v4757, %v4753
  %v4806 = vpack.c.b16 %v4758, %v4754
  %v4807 = vpack.c.b16 %v4759, %v4755
  %v4808 = vpack.c.b16 %v4760, %v4756
  %v4809 = vpack.c.b16 %v4765, %v4761
  %v4810 = vpack.c.b16 %v4766, %v4762
  %v4811 = vpack.c.b16 %v4767, %v4763
  %v4812 = vpack.c.b16 %v4768, %v4764
  %v4813 = vpack.c.b16 %v4773, %v4769
  %v4814 = vpack.c.b16 %v4774, %v4770
  %v4815 = vpack.c.b16 %v4775, %v4771
  %v4816 = vpack.c.b16 %v4776, %v4772
  %v4817 = vpack.c.b16 %v4781, %v4777
  %v4818 = vpack.c.b16 %v4782, %v4778
  %v4819 = vpack.c.b16 %v4783, %v4779
  %v4820 = vpack.c.b16 %v4784, %v4780
  %v4821 = vpack.c.b16 %v4789, %v4785
  %v4822 = vpack.c.b16 %v4790, %v4786
  %v4823 = vpack.c.b16 %v4791, %v4787
  %v4824 = vpack.c.b16 %v4792, %v4788
  %4857 = vmatprep.subr.bf16.mxu0 %v4794
  %4858 = vmatpush1.bf16.msra.mxu0 %v4793
  %4859 = vmatprep.subr.bf16.mxu0 %v4798
  %4860 = vmatpush1.bf16.msra.mxu0 %v4797
  %4861 = vmatprep.subr.bf16.mxu0 %v4802
  %4862 = vmatpush1.bf16.msra.mxu0 %v4801
  %4863 = vmatprep.subr.bf16.mxu0 %v4806
  %4864 = vmatpush1.bf16.msra.mxu0 %v4805
  %4865 = vmatprep.subr.bf16.mxu0 %v4810
  %4866 = vmatpush1.bf16.msra.mxu0 %v4809
  %4867 = vmatprep.subr.bf16.mxu0 %v4814
  %4868 = vmatpush1.bf16.msra.mxu0 %v4813
  %4869 = vmatprep.subr.bf16.mxu0 %v4818
  %4870 = vmatpush1.bf16.msra.mxu0 %v4817
  %4871 = vmatprep.subr.bf16.mxu0 %v4822
  %4872 = vmatpush1.bf16.msra.mxu0 %v4821
  %4873 = vmatprep.subr.bf16.mxu0 0
  %4874 = vmatpush1.bf16.msra.mxu0 0
  %4875 = vmatprep.subr.bf16.mxu0 0
  %4876 = vmatpush1.bf16.msra.mxu0 0
  %4877 = vmatprep.subr.bf16.mxu0 0
  %4878 = vmatpush1.bf16.msra.mxu0 0
  %4879 = vmatprep.subr.bf16.mxu0 0
  %4880 = vmatpush1.bf16.msra.mxu0 0
  %4881 = vmatprep.subr.bf16.mxu0 0
  %4882 = vmatpush1.bf16.msra.mxu0 0
  %4883 = vmatprep.subr.bf16.mxu0 0
  %4884 = vmatpush1.bf16.msra.mxu0 0
  %4885 = vmatprep.subr.bf16.mxu0 0
  %4886 = vmatpush1.bf16.msra.mxu0 0
  %4887 = vmatprep.subr.bf16.mxu0 0
  %4888 = vmatpush1.bf16.msra.mxu0 0
  %4889 = vmatprep.mubr.bf16.mxu0 0
  %4890 = vmatmul.mubr.bf16.gmra.mrb[0].mxu0 %v4350
  %v4891 = vpop.f32.mrb[0].mxu0
  %v4892 = vadd.f32 0.0, %v4891
  %v4893 = vpop.f32.mrb[0].mxu0
  %v4894 = vadd.f32 0.0, %v4893
  %v4895 = vpop.f32.mrb[0].mxu0
  %v4896 = vpop.f32.mrb[0].mxu0
  %4897 = vdwg.mxu0
  %4898 = vmatprep.subr.bf16.mxu0 %v4796
  %4899 = vmatpush1.bf16.msra.mxu0 %v4795
  %4900 = vmatprep.subr.bf16.mxu0 %v4800
  %4901 = vmatpush1.bf16.msra.mxu0 %v4799
  %4902 = vmatprep.subr.bf16.mxu0 %v4804
  %4903 = vmatpush1.bf16.msra.mxu0 %v4803
  %4904 = vmatprep.subr.bf16.mxu0 %v4808
  %4905 = vmatpush1.bf16.msra.mxu0 %v4807
  %4906 = vmatprep.subr.bf16.mxu0 %v4812
  %4907 = vmatpush1.bf16.msra.mxu0 %v4811
  %4908 = vmatprep.subr.bf16.mxu0 %v4816
  %4909 = vmatpush1.bf16.msra.mxu0 %v4815
  %4910 = vmatprep.subr.bf16.mxu0 %v4820
  %4911 = vmatpush1.bf16.msra.mxu0 %v4819
  %4912 = vmatprep.subr.bf16.mxu0 %v4824
  %4913 = vmatpush1.bf16.msra.mxu0 %v4823
  %4914 = vmatprep.subr.bf16.mxu0 0
  %4915 = vmatpush1.bf16.msra.mxu0 0
  %4916 = vmatprep.subr.bf16.mxu0 0
  %4917 = vmatpush1.bf16.msra.mxu0 0
  %4918 = vmatprep.subr.bf16.mxu0 0
  %4919 = vmatpush1.bf16.msra.mxu0 0
  %4920 = vmatprep.subr.bf16.mxu0 0
  %4921 = vmatpush1.bf16.msra.mxu0 0
  %4922 = vmatprep.subr.bf16.mxu0 0
  %4923 = vmatpush1.bf16.msra.mxu0 0
  %4924 = vmatprep.subr.bf16.mxu0 0
  %4925 = vmatpush1.bf16.msra.mxu0 0
  %4926 = vmatprep.subr.bf16.mxu0 0
  %4927 = vmatpush1.bf16.msra.mxu0 0
  %4928 = vmatprep.subr.bf16.mxu0 0
  %4929 = vmatpush1.bf16.msra.mxu0 0
  %4930 = vmatprep.mubr.bf16.mxu0 0
  %4931 = vmatmul.mubr.bf16.gmra.mrb[0].mxu0 %v4350
  %v4932 = vpop.f32.mrb[0].mxu0
  %v4933 = vadd.f32 0.0, %v4932
  %v4934 = vpop.f32.mrb[0].mxu0
  %v4935 = vadd.f32 0.0, %v4934
  %v4936 = vpop.f32.mrb[0].mxu0
  %v4937 = vpop.f32.mrb[0].mxu0
  %4938 = vdwg.mxu0
  %v4939 = vadd.f32 %v4661, %v4892
  %v4940 = vadd.f32 %v4662, %v4894
  %v4941 = vadd.f32 %v4663, %v4933
  %v4942 = vadd.f32 %v4664, %v4935
  %v4943 = vmul.f32 %v4939, 0.5
  %v4944 = vtanh.pop %v4943
  %v4945 = vmul.f32 %v4944, 0.5
  %v4946 = vadd.f32 %v4945, 0.5
  %v4947 = vmul.f32 %v4940, 0.5
  %v4948 = vtanh.pop %v4947
  %v4949 = vmul.f32 %v4948, 0.5
  %v4950 = vadd.f32 %v4949, 0.5
  %v4951 = vtanh.pop %v4941
  %v4952 = vmul.f32 %v4942, 0.5
  %v4953 = vtanh.pop %v4952
  %v4954 = vmul.f32 %v4953, 0.5
  %v4955 = vadd.f32 %v4954, 0.5
  %v4956 = vmul.f32 %v4950, %v4347
  %v4957 = vmul.f32 %v4946, %v4951
  %v4958 = vadd.f32 %v4956, %v4957
  %v4959 = vtanh.pop %v4958
  %v4960 = vmul.f32 %v4955, %v4959
  %v4961 = vpack.c.bf16 %v4960, %v4960
  %4962 = vst [vmem:[%s52] sm:$0xf] %v4961
  %4963 = vst [vmem:[#allocation2] sm:$0xff] %v4655
  %4964 = vst [vmem:[#allocation3] sm:$0xff] %v4653
  %4965 = vst [vmem:[#allocation4] sm:$0xff] %v4960
  %4966 = vst [vmem:[#allocation5] sm:$0xff] %v4958
  %s4967 = ssub.s32 0, 0
  %s4968 = smul.u32 8, %s4967
  %p4969 = scmp.lt.s32.totalorder %s4968, 7
  %s4970 = scalar_select %p4969, %s4968, 7
  %s4971 = smul.addr %s4970, 4
  %s4972 = scalar_lea.vmem %s4, %s4971
  // Predicated region
  $region18: #{bilstm_forward.3} parent=0 // pred_check
    _
  $region19: #{bilstm_forward.3} parent=0 // pred_check_branch
    %4974 = sbr.rel (0) target = $region21
  $region20: #{bilstm_forward.3} parent=0 // pred_region
    _
  $region21: #{bilstm_forward.3} parent=0 // pred_fallthru
    _
  // Predicated region
  $region22: #{bilstm_forward.3} parent=0 // pred_check
    _
  $region23: #{bilstm_forward.3} parent=0 // pred_check_branch
    %4976 = sbr.rel (0) target = $region25
  $region24: #{bilstm_forward.3} parent=0 // pred_region
    %s4977 = ssub.s32 0, 0
    %s4978 = smul.u32 8, %s4977
  $region25: #{bilstm_forward.3} parent=0 // pred_fallthru
    _
  // Predicated region
  $region26: #{bilstm_forward.3} parent=0 // pred_check
    _
  $region27: #{bilstm_forward.3} parent=0 // pred_check_branch
    %4980 = sbr.rel (0) target = $region29
  $region28: #{bilstm_forward.3} parent=0 // pred_region
    _
  $region29: #{bilstm_forward.3} parent=0 // pred_fallthru
    _
  // Predicated region
  $region30: #{bilstm_forward.3} parent=0 // pred_check
    _
  $region31: #{bilstm_forward.3} parent=0 // pred_check_branch
    %4982 = sbr.rel (0) target = $region33
  $region32: #{bilstm_forward.3} parent=0 // pred_region
    %s4983 = ssub.s32 0, 0
    %s4984 = smul.u32 8, %s4983
    %p4985 = scmp.lt.s32.totalorder %s4984, 7
    %s4986 = scalar_select %p4985, %s4984, 7
    %s4987 = smul.addr %s4986, 4
    %s4988 = scalar_lea.vmem %s4, %s4987
  $region33: #{bilstm_forward.3} parent=0 // pred_fallthru
    _

</llo_original>
